<compile_context>
chip_gen: v7x
topology: tpu7x:2x2x1
jax: 0.10.0
libtpu: 0.0.40
codegen_flags: <defaults>
</compile_context>

<pallas_src>
import functools
import math

import jax
import jax.numpy as jnp
from jax.experimental import pallas as pl
from jax.experimental.pallas import tpu as pltpu

EPS = 1e-6
NEG_INF = -1e9


# --------------------------------------------------------------------------- #
# Fused decoder kernel                                                        #
# --------------------------------------------------------------------------- #
def _decoder_kernel(
    x_ref, mem_ref, tgt_mask_ref, src_mask_ref,
    wqkv_s_ref, bqkv_s_ref, wo_s_ref, bo_s_ref,
    wq_x_ref, bq_x_ref, wkv_x_ref, bkv_x_ref, wo_x_ref, bo_x_ref,
    w1_ref, b1_ref, w2_ref, b2_ref,
    ln0_a_ref, ln0_b_ref, ln1_a_ref, ln1_b_ref, ln2_a_ref, ln2_b_ref,
    fin_a_ref, fin_b_ref,
    o_ref,
    *, B, T, S, D, H, N,
):
    dk = D // H
    inv_sqrt_dk = jnp.float32(1.0 / math.sqrt(dk))

    def layer_norm(x2d, a, b):
        mean = jnp.mean(x2d, axis=-1, keepdims=True)
        xc = x2d - mean
        # torch.Tensor.std() -> unbiased sample std (divide by n-1)
        std = jnp.sqrt(jnp.sum(xc * xc, axis=-1, keepdims=True) / (D - 1))
        return a * xc / (std + EPS) + b

    def mha(q2d, k2d, v2d, mask3, Lq, Lk, wo, bo):
        # q2d: (B*Lq, D), k2d/v2d: (B*Lk, D), mask3: (B, Lq, Lk)
        q3 = q2d.reshape(B, Lq, D)
        k3 = k2d.reshape(B, Lk, D)
        v3 = v2d.reshape(B, Lk, D)
        heads = []
        for h in range(H):                        # static loop, unrolled
            lo = h * dk
            qh = q3[:, :, lo:lo + dk]
            kh = k3[:, :, lo:lo + dk]
            vh = v3[:, :, lo:lo + dk]
            s = jnp.einsum("btd,bsd->bts", qh, kh,
                           preferred_element_type=jnp.float32) * inv_sqrt_dk
            s = jnp.where(mask3 == 0.0, jnp.float32(NEG_INF), s)
            m = jnp.max(s, axis=-1, keepdims=True)
            p = jnp.exp(s - m)
            p = p / jnp.sum(p, axis=-1, keepdims=True)
            heads.append(jnp.einsum("bts,bsd->btd", p, vh,
                                    preferred_element_type=jnp.float32))
        cat = jnp.concatenate(heads, axis=-1).reshape(B * Lq, D)
        return jnp.dot(cat, wo, preferred_element_type=jnp.float32) + bo

    tgt_mask = tgt_mask_ref[...]                  # (B, T, T)
    src_mask = src_mask_ref[...]                  # (B, T, S)

    # Shared (cloned) layer weights: loaded into VMEM once, reused N times.
    wqkv_s = wqkv_s_ref[...]; bqkv_s = bqkv_s_ref[...]
    wo_s = wo_s_ref[...];     bo_s = bo_s_ref[...]
    wq_x = wq_x_ref[...];     bq_x = bq_x_ref[...]
    wo_x = wo_x_ref[...];     bo_x = bo_x_ref[...]
    w1 = w1_ref[...]; b1 = b1_ref[...]
    w2 = w2_ref[...]; b2 = b2_ref[...]
    ln0_a = ln0_a_ref[...]; ln0_b = ln0_b_ref[...]
    ln1_a = ln1_a_ref[...]; ln1_b = ln1_b_ref[...]
    ln2_a = ln2_a_ref[...]; ln2_b = ln2_b_ref[...]

    # Source-attention K/V of `memory` are identical for every cloned layer:
    # compute once, keep resident.
    kv_mem = (jnp.dot(mem_ref[...], wkv_x_ref[...],
                      preferred_element_type=jnp.float32) + bkv_x_ref[...])
    k_mem = kv_mem[:, :D]
    v_mem = kv_mem[:, D:]

    x = x_ref[...]                                # (B*T, D)
    for _ in range(N):
        # sublayer 0: pre-LN residual self-attention (fused QKV projection)
        xn = layer_norm(x, ln0_a, ln0_b)
        qkv = jnp.dot(xn, wqkv_s, preferred_element_type=jnp.float32) + bqkv_s
        x = x + mha(qkv[:, :D], qkv[:, D:2 * D], qkv[:, 2 * D:],
                    tgt_mask, T, T, wo_s, bo_s)
        # sublayer 1: pre-LN residual source attention (memory K/V precomputed)
        xn = layer_norm(x, ln1_a, ln1_b)
        q = jnp.dot(xn, wq_x, preferred_element_type=jnp.float32) + bq_x
        x = x + mha(q, k_mem, v_mem, src_mask, T, S, wo_x, bo_x)
        # sublayer 2: pre-LN residual position-wise FFN
        xn = layer_norm(x, ln2_a, ln2_b)
        h1 = jnp.maximum(
            jnp.dot(xn, w1, preferred_element_type=jnp.float32) + b1, 0.0)
        x = x + jnp.dot(h1, w2, preferred_element_type=jnp.float32) + b2

    o_ref[...] = layer_norm(x, fin_a_ref[...], fin_b_ref[...])


# --------------------------------------------------------------------------- #
# Wrapper: one pallas_call for the whole decoder forward                      #
# --------------------------------------------------------------------------- #
def decoder_forward(x, memory, src_mask, tgt_mask, params, N, H):
    B, T, D = x.shape
    S = memory.shape[1]
    lp = params["layer"]
    sa, xa, ffn = lp["self_attn"], lp["src_attn"], lp["ffn"]

    # Host-side one-time weight prep: fused QKV (self-attn), fused KV (src-attn),
    # (1, ·) biases / LN params for in-kernel row broadcast.
    wqkv_s = jnp.concatenate([sa["wq"], sa["wk"], sa["wv"]], axis=1)      # (D, 3D)
    bqkv_s = jnp.concatenate([sa["bq"], sa["bk"], sa["bv"]]).reshape(1, 3 * D)
    wkv_x = jnp.concatenate([xa["wk"], xa["wv"]], axis=1)                 # (D, 2D)
    bkv_x = jnp.concatenate([xa["bk"], xa["bv"]]).reshape(1, 2 * D)
    row = lambda v: v.reshape(1, -1)

    x2d = x.reshape(B * T, D)
    mem2d = memory.reshape(B * S, D)
    # Per-batch masks only (broadcast over heads happens in-kernel).
    tgt_m = jnp.broadcast_to(tgt_mask, (B, T, T)).astype(jnp.float32)
    src_m = jnp.broadcast_to(src_mask, (B, T, S)).astype(jnp.float32)

    operands = (
        x2d, mem2d, tgt_m, src_m,
        wqkv_s, bqkv_s, sa["wo"], row(sa["bo"]),
        xa["wq"], row(xa["bq"]), wkv_x, bkv_x, xa["wo"], row(xa["bo"]),
        ffn["w1"], row(ffn["b1"]), ffn["w2"], row(ffn["b2"]),
        row(lp["ln0_a"]), row(lp["ln0_b"]),
        row(lp["ln1_a"]), row(lp["ln1_b"]),
        row(lp["ln2_a"]), row(lp["ln2_b"]),
        row(params["norm_a"]), row(params["norm_b"]),
    )

    def full_spec(a):
        nd = a.ndim
        return pl.BlockSpec(a.shape, lambda *_: (0,) * nd)

    kernel = functools.partial(_decoder_kernel, B=B, T=T, S=S, D=D, H=H, N=N)

    out2d = pl.pallas_call(
        kernel,
        out_shape=jax.ShapeDtypeStruct((B * T, D), jnp.float32),
        grid=(1,),
        in_specs=[full_spec(a) for a in operands],
        out_specs=pl.BlockSpec((B * T, D), lambda *_: (0, 0)),
        compiler_params=pltpu.CompilerParams(
            dimension_semantics=("arbitrary",)),
    )(*operands)
    return out2d.reshape(B, T, D)


# --------------------------------------------------------------------------- #
# Pure-JAX reference (torch semantics) for correctness check                  #
# --------------------------------------------------------------------------- #
def _reference_forward(x, memory, src_mask, tgt_mask, params, N, H):
    B, T, D = x.shape
    dk = D // H
    lp = params["layer"]

    def ln(y, a, b):
        mean = y.mean(-1, keepdims=True)
        std = jnp.sqrt(jnp.sum((y - mean) ** 2, -1, keepdims=True) / (D - 1))
        return a * (y - mean) / (std + EPS) + b

    def mha(xq, xk, xv, mask, p):
        def proj(z, w, bb):
            return (z @ w + bb).reshape(B, -1, H, dk).transpose(0, 2, 1, 3)
        q = proj(xq, p["wq"], p["bq"])
        k = proj(xk, p["wk"], p["bk"])
        v = proj(xv, p["wv"], p["bv"])
        s = q @ k.transpose(0, 1, 3, 2) / jnp.sqrt(jnp.float32(dk))
        s = jnp.where(mask[:, None] == 0.0, -1e9, s)
        a = jax.nn.softmax(s, axis=-1)
        o = (a @ v).transpose(0, 2, 1, 3).reshape(B, -1, D)
        return o @ p["wo"] + p["bo"]

    for _ in range(N):
        xn = ln(x, lp["ln0_a"], lp["ln0_b"])
        x = x + mha(xn, xn, xn, tgt_mask, lp["self_attn"])
        xn = ln(x, lp["ln1_a"], lp["ln1_b"])
        x = x + mha(xn, memory, memory, src_mask, lp["src_attn"])
        xn = ln(x, lp["ln2_a"], lp["ln2_b"])
        h = jax.nn.relu(xn @ lp["ffn"]["w1"] + lp["ffn"]["b1"])
        x = x + h @ lp["ffn"]["w2"] + lp["ffn"]["b2"]
    return ln(x, params["norm_a"], params["norm_b"])


# --------------------------------------------------------------------------- #
# Deterministic parameter init (synthetic, PyTorch-like uniform for Linear)   #
# --------------------------------------------------------------------------- #
def _init_linear(key, din, dout):
    kw, kb = jax.random.split(key)
    bound = 1.0 / jnp.sqrt(jnp.float32(din))
    w = jax.random.uniform(kw, (din, dout), jnp.float32, -bound, bound)
    b = jax.random.uniform(kb, (dout,), jnp.float32, -bound, bound)
    return w, b


def make_params(key, D, H, Dff):
    keys = jax.random.split(key, 16)

    def mha_params(ks):
        wq, bq = _init_linear(ks[0], D, D)
        wk, bk = _init_linear(ks[1], D, D)
        wv, bv = _init_linear(ks[2], D, D)
        wo, bo = _init_linear(ks[3], D, D)
        return dict(wq=wq, bq=bq, wk=wk, bk=bk, wv=wv, bv=bv, wo=wo, bo=bo)

    w1, b1 = _init_linear(keys[8], D, Dff)
    w2, b2 = _init_linear(keys[9], Dff, D)

    layer = dict(
        self_attn=mha_params(keys[0:4]),
        src_attn=mha_params(keys[4:8]),
        ffn=dict(w1=w1, b1=b1, w2=w2, b2=b2),
        ln0_a=jnp.ones((D,), jnp.float32), ln0_b=jnp.zeros((D,), jnp.float32),
        ln1_a=jnp.ones((D,), jnp.float32), ln1_b=jnp.zeros((D,), jnp.float32),
        ln2_a=jnp.ones((D,), jnp.float32), ln2_b=jnp.zeros((D,), jnp.float32),
    )
    return dict(
        layer=layer,
        norm_a=jnp.ones((D,), jnp.float32),
        norm_b=jnp.zeros((D,), jnp.float32),
    )


# --------------------------------------------------------------------------- #
if __name__ == "__main__":
    B, T, S, D, H, Dff, N = 2, 8, 8, 32, 4, 64, 2

    key = jax.random.PRNGKey(0)
    kx, km, kp = jax.random.split(key, 3)

    x = jax.random.normal(kx, (B, T, D), jnp.float32)
    memory = jax.random.normal(km, (B, S, D), jnp.float32)
    src_mask = jnp.ones((B, 1, S), jnp.float32)                       # attend to all src
    tgt_mask = jnp.broadcast_to(
        jnp.tril(jnp.ones((T, T), jnp.float32))[None], (B, T, T)
    )                                                                 # causal mask

    params = make_params(kp, D, H, Dff)

    fwd = jax.jit(functools.partial(decoder_forward, N=N, H=H))
    out = fwd(x, memory, src_mask, tgt_mask, params)
    jax.block_until_ready(out)

    ref = _reference_forward(x, memory, src_mask, tgt_mask, params, N, H)
    assert out.shape == (B, T, D) and out.dtype == jnp.float32
    assert bool(jnp.all(jnp.isfinite(out)))
    assert bool(jnp.allclose(out, ref, rtol=1e-3, atol=1e-3))
    print("KERNEL_OK")
</pallas_src>

<mosaic_0001>
module attributes {stable_mosaic.version = 11 : i64} {
  func.func @_decoder_kernel(%arg0: i32, %arg1: memref<16x32xf32, #tpu.memory_space<vmem>>, %arg2: memref<16x32xf32, #tpu.memory_space<vmem>>, %arg3: memref<2x8x8xf32, #tpu.memory_space<vmem>>, %arg4: memref<2x8x8xf32, #tpu.memory_space<vmem>>, %arg5: memref<32x96xf32, #tpu.memory_space<vmem>>, %arg6: memref<1x96xf32, #tpu.memory_space<vmem>>, %arg7: memref<32x32xf32, #tpu.memory_space<vmem>>, %arg8: memref<1x32xf32, #tpu.memory_space<vmem>>, %arg9: memref<32x32xf32, #tpu.memory_space<vmem>>, %arg10: memref<1x32xf32, #tpu.memory_space<vmem>>, %arg11: memref<32x64xf32, #tpu.memory_space<vmem>>, %arg12: memref<1x64xf32, #tpu.memory_space<vmem>>, %arg13: memref<32x32xf32, #tpu.memory_space<vmem>>, %arg14: memref<1x32xf32, #tpu.memory_space<vmem>>, %arg15: memref<32x64xf32, #tpu.memory_space<vmem>>, %arg16: memref<1x64xf32, #tpu.memory_space<vmem>>, %arg17: memref<64x32xf32, #tpu.memory_space<vmem>>, %arg18: memref<1x32xf32, #tpu.memory_space<vmem>>, %arg19: memref<1x32xf32, #tpu.memory_space<vmem>>, %arg20: memref<1x32xf32, #tpu.memory_space<vmem>>, %arg21: memref<1x32xf32, #tpu.memory_space<vmem>>, %arg22: memref<1x32xf32, #tpu.memory_space<vmem>>, %arg23: memref<1x32xf32, #tpu.memory_space<vmem>>, %arg24: memref<1x32xf32, #tpu.memory_space<vmem>>, %arg25: memref<1x32xf32, #tpu.memory_space<vmem>>, %arg26: memref<1x32xf32, #tpu.memory_space<vmem>>, %arg27: memref<16x32xf32, #tpu.memory_space<vmem>>) attributes {dimension_semantics = [#tpu.dimension_semantics<arbitrary>], iteration_bounds = array<i64: 1>, scalar_prefetch = 0 : i64, scratch_operands = 0 : i64, tpu.core_type = #tpu.core_type<tc>, window_params = [{pipeline_mode = #tpu.pipeline_mode<synchronous>, transform_indices = @transform_0, window_bounds = array<i64: 16, 32>}, {pipeline_mode = #tpu.pipeline_mode<synchronous>, transform_indices = @transform_1, window_bounds = array<i64: 16, 32>}, {pipeline_mode = #tpu.pipeline_mode<synchronous>, transform_indices = @transform_2, window_bounds = array<i64: 2, 8, 8>}, {pipeline_mode = #tpu.pipeline_mode<synchronous>, transform_indices = @transform_3, window_bounds = array<i64: 2, 8, 8>}, {pipeline_mode = #tpu.pipeline_mode<synchronous>, transform_indices = @transform_4, window_bounds = array<i64: 32, 96>}, {pipeline_mode = #tpu.pipeline_mode<synchronous>, transform_indices = @transform_5, window_bounds = array<i64: 1, 96>}, {pipeline_mode = #tpu.pipeline_mode<synchronous>, transform_indices = @transform_6, window_bounds = array<i64: 32, 32>}, {pipeline_mode = #tpu.pipeline_mode<synchronous>, transform_indices = @transform_7, window_bounds = array<i64: 1, 32>}, {pipeline_mode = #tpu.pipeline_mode<synchronous>, transform_indices = @transform_8, window_bounds = array<i64: 32, 32>}, {pipeline_mode = #tpu.pipeline_mode<synchronous>, transform_indices = @transform_9, window_bounds = array<i64: 1, 32>}, {pipeline_mode = #tpu.pipeline_mode<synchronous>, transform_indices = @transform_10, window_bounds = array<i64: 32, 64>}, {pipeline_mode = #tpu.pipeline_mode<synchronous>, transform_indices = @transform_11, window_bounds = array<i64: 1, 64>}, {pipeline_mode = #tpu.pipeline_mode<synchronous>, transform_indices = @transform_12, window_bounds = array<i64: 32, 32>}, {pipeline_mode = #tpu.pipeline_mode<synchronous>, transform_indices = @transform_13, window_bounds = array<i64: 1, 32>}, {pipeline_mode = #tpu.pipeline_mode<synchronous>, transform_indices = @transform_14, window_bounds = array<i64: 32, 64>}, {pipeline_mode = #tpu.pipeline_mode<synchronous>, transform_indices = @transform_15, window_bounds = array<i64: 1, 64>}, {pipeline_mode = #tpu.pipeline_mode<synchronous>, transform_indices = @transform_16, window_bounds = array<i64: 64, 32>}, {pipeline_mode = #tpu.pipeline_mode<synchronous>, transform_indices = @transform_17, window_bounds = array<i64: 1, 32>}, {pipeline_mode = #tpu.pipeline_mode<synchronous>, transform_indices = @transform_18, window_bounds = array<i64: 1, 32>}, {pipeline_mode = #tpu.pipeline_mode<synchronous>, transform_indices = @transform_19, window_bounds = array<i64: 1, 32>}, {pipeline_mode = #tpu.pipeline_mode<synchronous>, transform_indices = @transform_20, window_bounds = array<i64: 1, 32>}, {pipeline_mode = #tpu.pipeline_mode<synchronous>, transform_indices = @transform_21, window_bounds = array<i64: 1, 32>}, {pipeline_mode = #tpu.pipeline_mode<synchronous>, transform_indices = @transform_22, window_bounds = array<i64: 1, 32>}, {pipeline_mode = #tpu.pipeline_mode<synchronous>, transform_indices = @transform_23, window_bounds = array<i64: 1, 32>}, {pipeline_mode = #tpu.pipeline_mode<synchronous>, transform_indices = @transform_24, window_bounds = array<i64: 1, 32>}, {pipeline_mode = #tpu.pipeline_mode<synchronous>, transform_indices = @transform_25, window_bounds = array<i64: 1, 32>}, {pipeline_mode = #tpu.pipeline_mode<synchronous>, transform_indices = @transform_26, window_bounds = array<i64: 16, 32>}]} {
    %c0 = arith.constant 0 : index
    %c0_0 = arith.constant 0 : index
    %c0_1 = arith.constant 0 : index
    %0 = vector.load %arg3[%c0, %c0_0, %c0_1] : memref<2x8x8xf32, #tpu.memory_space<vmem>>, vector<2x8x8xf32>
    %c0_2 = arith.constant 0 : index
    %c0_3 = arith.constant 0 : index
    %c0_4 = arith.constant 0 : index
    %1 = vector.load %arg4[%c0_2, %c0_3, %c0_4] : memref<2x8x8xf32, #tpu.memory_space<vmem>>, vector<2x8x8xf32>
    %c0_5 = arith.constant 0 : index
    %c0_6 = arith.constant 0 : index
    %2 = vector.load %arg5[%c0_5, %c0_6] : memref<32x96xf32, #tpu.memory_space<vmem>>, vector<32x96xf32>
    %c0_7 = arith.constant 0 : index
    %c0_8 = arith.constant 0 : index
    %3 = vector.load %arg6[%c0_7, %c0_8] : memref<1x96xf32, #tpu.memory_space<vmem>>, vector<1x96xf32>
    %c0_9 = arith.constant 0 : index
    %c0_10 = arith.constant 0 : index
    %4 = vector.load %arg7[%c0_9, %c0_10] : memref<32x32xf32, #tpu.memory_space<vmem>>, vector<32x32xf32>
    %c0_11 = arith.constant 0 : index
    %c0_12 = arith.constant 0 : index
    %5 = vector.load %arg8[%c0_11, %c0_12] : memref<1x32xf32, #tpu.memory_space<vmem>>, vector<1x32xf32>
    %c0_13 = arith.constant 0 : index
    %c0_14 = arith.constant 0 : index
    %6 = vector.load %arg9[%c0_13, %c0_14] : memref<32x32xf32, #tpu.memory_space<vmem>>, vector<32x32xf32>
    %c0_15 = arith.constant 0 : index
    %c0_16 = arith.constant 0 : index
    %7 = vector.load %arg10[%c0_15, %c0_16] : memref<1x32xf32, #tpu.memory_space<vmem>>, vector<1x32xf32>
    %c0_17 = arith.constant 0 : index
    %c0_18 = arith.constant 0 : index
    %8 = vector.load %arg13[%c0_17, %c0_18] : memref<32x32xf32, #tpu.memory_space<vmem>>, vector<32x32xf32>
    %c0_19 = arith.constant 0 : index
    %c0_20 = arith.constant 0 : index
    %9 = vector.load %arg14[%c0_19, %c0_20] : memref<1x32xf32, #tpu.memory_space<vmem>>, vector<1x32xf32>
    %c0_21 = arith.constant 0 : index
    %c0_22 = arith.constant 0 : index
    %10 = vector.load %arg15[%c0_21, %c0_22] : memref<32x64xf32, #tpu.memory_space<vmem>>, vector<32x64xf32>
    %c0_23 = arith.constant 0 : index
    %c0_24 = arith.constant 0 : index
    %11 = vector.load %arg16[%c0_23, %c0_24] : memref<1x64xf32, #tpu.memory_space<vmem>>, vector<1x64xf32>
    %c0_25 = arith.constant 0 : index
    %c0_26 = arith.constant 0 : index
    %12 = vector.load %arg17[%c0_25, %c0_26] : memref<64x32xf32, #tpu.memory_space<vmem>>, vector<64x32xf32>
    %c0_27 = arith.constant 0 : index
    %c0_28 = arith.constant 0 : index
    %13 = vector.load %arg18[%c0_27, %c0_28] : memref<1x32xf32, #tpu.memory_space<vmem>>, vector<1x32xf32>
    %c0_29 = arith.constant 0 : index
    %c0_30 = arith.constant 0 : index
    %14 = vector.load %arg19[%c0_29, %c0_30] : memref<1x32xf32, #tpu.memory_space<vmem>>, vector<1x32xf32>
    %c0_31 = arith.constant 0 : index
    %c0_32 = arith.constant 0 : index
    %15 = vector.load %arg20[%c0_31, %c0_32] : memref<1x32xf32, #tpu.memory_space<vmem>>, vector<1x32xf32>
    %c0_33 = arith.constant 0 : index
    %c0_34 = arith.constant 0 : index
    %16 = vector.load %arg21[%c0_33, %c0_34] : memref<1x32xf32, #tpu.memory_space<vmem>>, vector<1x32xf32>
    %c0_35 = arith.constant 0 : index
    %c0_36 = arith.constant 0 : index
    %17 = vector.load %arg22[%c0_35, %c0_36] : memref<1x32xf32, #tpu.memory_space<vmem>>, vector<1x32xf32>
    %c0_37 = arith.constant 0 : index
    %c0_38 = arith.constant 0 : index
    %18 = vector.load %arg23[%c0_37, %c0_38] : memref<1x32xf32, #tpu.memory_space<vmem>>, vector<1x32xf32>
    %c0_39 = arith.constant 0 : index
    %c0_40 = arith.constant 0 : index
    %19 = vector.load %arg24[%c0_39, %c0_40] : memref<1x32xf32, #tpu.memory_space<vmem>>, vector<1x32xf32>
    %c0_41 = arith.constant 0 : index
    %c0_42 = arith.constant 0 : index
    %20 = vector.load %arg2[%c0_41, %c0_42] : memref<16x32xf32, #tpu.memory_space<vmem>>, vector<16x32xf32>
    %c0_43 = arith.constant 0 : index
    %c0_44 = arith.constant 0 : index
    %21 = vector.load %arg11[%c0_43, %c0_44] : memref<32x64xf32, #tpu.memory_space<vmem>>, vector<32x64xf32>
    %cst = arith.constant dense<0.000000e+00> : vector<16x64xf32>
    %22 = tpu.matmul %20, %21, %cst {dimension_numbers = #tpu.dot_dimension_numbers<[1], [0], [0], [1], [0, 0, 1, 1], [], []>} : vector<16x32xf32>, vector<32x64xf32>, vector<16x64xf32> -> vector<16x64xf32>
    %c0_45 = arith.constant 0 : index
    %c0_46 = arith.constant 0 : index
    %23 = vector.load %arg12[%c0_45, %c0_46] : memref<1x64xf32, #tpu.memory_space<vmem>>, vector<1x64xf32>
    %24 = vector.broadcast %23 : vector<1x64xf32> to vector<16x64xf32>
    %25 = arith.addf %22, %24 : vector<16x64xf32>
    %26 = vector.extract_strided_slice %25 {offsets = [0, 0], sizes = [16, 32], strides = [1, 1]} : vector<16x64xf32> to vector<16x32xf32>
    %27 = vector.extract_strided_slice %25 {offsets = [0, 32], sizes = [16, 32], strides = [1, 1]} : vector<16x64xf32> to vector<16x32xf32>
    %c0_47 = arith.constant 0 : index
    %c0_48 = arith.constant 0 : index
    %28 = vector.load %arg1[%c0_47, %c0_48] : memref<16x32xf32, #tpu.memory_space<vmem>>, vector<16x32xf32>
    %cst_49 = arith.constant dense<0.000000e+00> : vector<16xf32>
    %29 = vector.multi_reduction <add>, %28, %cst_49 [1] : vector<16x32xf32> to vector<16xf32>
    %30 = vector.shape_cast %29 : vector<16xf32> to vector<16x1xf32>
    %cst_50 = arith.constant 3.200000e+01 : f32
    %31 = vector.broadcast %cst_50 : f32 to vector<16x1xf32>
    %32 = arith.divf %30, %31 : vector<16x1xf32>
    %33 = vector.broadcast %32 : vector<16x1xf32> to vector<16x32xf32>
    %34 = arith.subf %28, %33 : vector<16x32xf32>
    %35 = arith.mulf %34, %34 : vector<16x32xf32>
    %cst_51 = arith.constant dense<0.000000e+00> : vector<16xf32>
    %36 = vector.multi_reduction <add>, %35, %cst_51 [1] : vector<16x32xf32> to vector<16xf32>
    %37 = vector.shape_cast %36 : vector<16xf32> to vector<16x1xf32>
    %cst_52 = arith.constant 3.100000e+01 : f32
    %38 = vector.broadcast %cst_52 : f32 to vector<16x1xf32>
    %39 = arith.divf %37, %38 : vector<16x1xf32>
    %40 = math.sqrt %39 : vector<16x1xf32>
    %41 = vector.broadcast %14 : vector<1x32xf32> to vector<16x32xf32>
    %42 = arith.mulf %41, %34 : vector<16x32xf32>
    %cst_53 = arith.constant 9.99999997E-7 : f32
    %43 = vector.broadcast %cst_53 : f32 to vector<16x1xf32>
    %44 = arith.addf %40, %43 : vector<16x1xf32>
    %45 = vector.broadcast %44 : vector<16x1xf32> to vector<16x32xf32>
    %46 = arith.divf %42, %45 : vector<16x32xf32>
    %47 = vector.broadcast %15 : vector<1x32xf32> to vector<16x32xf32>
    %48 = arith.addf %46, %47 : vector<16x32xf32>
    %cst_54 = arith.constant dense<0.000000e+00> : vector<16x96xf32>
    %49 = tpu.matmul %48, %2, %cst_54 {dimension_numbers = #tpu.dot_dimension_numbers<[1], [0], [0], [1], [0, 0, 1, 1], [], []>} : vector<16x32xf32>, vector<32x96xf32>, vector<16x96xf32> -> vector<16x96xf32>
    %50 = vector.broadcast %3 : vector<1x96xf32> to vector<16x96xf32>
    %51 = arith.addf %49, %50 : vector<16x96xf32>
    %52 = vector.extract_strided_slice %51 {offsets = [0, 0], sizes = [16, 32], strides = [1, 1]} : vector<16x96xf32> to vector<16x32xf32>
    %53 = vector.extract_strided_slice %51 {offsets = [0, 32], sizes = [16, 32], strides = [1, 1]} : vector<16x96xf32> to vector<16x32xf32>
    %54 = vector.extract_strided_slice %51 {offsets = [0, 64], sizes = [16, 32], strides = [1, 1]} : vector<16x96xf32> to vector<16x32xf32>
    %55 = vector.shape_cast %52 : vector<16x32xf32> to vector<2x8x32xf32>
    %56 = vector.shape_cast %53 : vector<16x32xf32> to vector<2x8x32xf32>
    %57 = vector.shape_cast %54 : vector<16x32xf32> to vector<2x8x32xf32>
    %58 = vector.extract_strided_slice %55 {offsets = [0, 0, 0], sizes = [2, 8, 8], strides = [1, 1, 1]} : vector<2x8x32xf32> to vector<2x8x8xf32>
    %59 = vector.extract_strided_slice %56 {offsets = [0, 0, 0], sizes = [2, 8, 8], strides = [1, 1, 1]} : vector<2x8x32xf32> to vector<2x8x8xf32>
    %60 = vector.extract_strided_slice %57 {offsets = [0, 0, 0], sizes = [2, 8, 8], strides = [1, 1, 1]} : vector<2x8x32xf32> to vector<2x8x8xf32>
    "tpu.trace_start"() <{level = 10 : i32, message = "btd,bsd->bts"}> : () -> ()
    %cst_55 = arith.constant dense<0.000000e+00> : vector<2x8x8xf32>
    %61 = tpu.matmul %58, %59, %cst_55 {dimension_numbers = #tpu.dot_dimension_numbers<[2], [2], [1], [1], [0, 0, 0, 1, 1, 1], [0], [0]>} : vector<2x8x8xf32>, vector<2x8x8xf32>, vector<2x8x8xf32> -> vector<2x8x8xf32>
    "tpu.trace_stop"() : () -> ()
    %cst_56 = arith.constant 0.353553385 : f32
    %62 = vector.broadcast %cst_56 : f32 to vector<2x8x8xf32>
    %63 = arith.mulf %61, %62 : vector<2x8x8xf32>
    %cst_57 = arith.constant 0.000000e+00 : f32
    %64 = vector.broadcast %cst_57 : f32 to vector<2x8x8xf32>
    %65 = arith.cmpf oeq, %0, %64 : vector<2x8x8xf32>
    %cst_58 = arith.constant -1.000000e+09 : f32
    %66 = vector.broadcast %cst_58 : f32 to vector<2x8x8xf32>
    %67 = arith.select %65, %66, %63 : vector<2x8x8xi1>, vector<2x8x8xf32>
    %cst_59 = arith.constant dense<0xFF800000> : vector<2x8xf32>
    %68 = vector.multi_reduction <maximumf>, %67, %cst_59 [2] : vector<2x8x8xf32> to vector<2x8xf32>
    %69 = vector.shape_cast %68 : vector<2x8xf32> to vector<2x8x1xf32>
    %70 = vector.broadcast %69 : vector<2x8x1xf32> to vector<2x8x8xf32>
    %71 = arith.subf %67, %70 : vector<2x8x8xf32>
    %72 = math.exp %71 : vector<2x8x8xf32>
    %cst_60 = arith.constant dense<0.000000e+00> : vector<2x8xf32>
    %73 = vector.multi_reduction <add>, %72, %cst_60 [2] : vector<2x8x8xf32> to vector<2x8xf32>
    %74 = vector.shape_cast %73 : vector<2x8xf32> to vector<2x8x1xf32>
    %75 = vector.broadcast %74 : vector<2x8x1xf32> to vector<2x8x8xf32>
    %76 = arith.divf %72, %75 : vector<2x8x8xf32>
    "tpu.trace_start"() <{level = 10 : i32, message = "bts,bsd->btd"}> : () -> ()
    %cst_61 = arith.constant dense<0.000000e+00> : vector<2x8x8xf32>
    %77 = tpu.matmul %76, %60, %cst_61 {dimension_numbers = #tpu.dot_dimension_numbers<[2], [1], [1], [2], [0, 0, 0, 1, 1, 2], [0], [0]>} : vector<2x8x8xf32>, vector<2x8x8xf32>, vector<2x8x8xf32> -> vector<2x8x8xf32>
    "tpu.trace_stop"() : () -> ()
    %78 = vector.extract_strided_slice %55 {offsets = [0, 0, 8], sizes = [2, 8, 8], strides = [1, 1, 1]} : vector<2x8x32xf32> to vector<2x8x8xf32>
    %79 = vector.extract_strided_slice %56 {offsets = [0, 0, 8], sizes = [2, 8, 8], strides = [1, 1, 1]} : vector<2x8x32xf32> to vector<2x8x8xf32>
    %80 = vector.extract_strided_slice %57 {offsets = [0, 0, 8], sizes = [2, 8, 8], strides = [1, 1, 1]} : vector<2x8x32xf32> to vector<2x8x8xf32>
    "tpu.trace_start"() <{level = 10 : i32, message = "btd,bsd->bts"}> : () -> ()
    %cst_62 = arith.constant dense<0.000000e+00> : vector<2x8x8xf32>
    %81 = tpu.matmul %78, %79, %cst_62 {dimension_numbers = #tpu.dot_dimension_numbers<[2], [2], [1], [1], [0, 0, 0, 1, 1, 1], [0], [0]>} : vector<2x8x8xf32>, vector<2x8x8xf32>, vector<2x8x8xf32> -> vector<2x8x8xf32>
    "tpu.trace_stop"() : () -> ()
    %cst_63 = arith.constant 0.353553385 : f32
    %82 = vector.broadcast %cst_63 : f32 to vector<2x8x8xf32>
    %83 = arith.mulf %81, %82 : vector<2x8x8xf32>
    %cst_64 = arith.constant 0.000000e+00 : f32
    %84 = vector.broadcast %cst_64 : f32 to vector<2x8x8xf32>
    %85 = arith.cmpf oeq, %0, %84 : vector<2x8x8xf32>
    %cst_65 = arith.constant -1.000000e+09 : f32
    %86 = vector.broadcast %cst_65 : f32 to vector<2x8x8xf32>
    %87 = arith.select %85, %86, %83 : vector<2x8x8xi1>, vector<2x8x8xf32>
    %cst_66 = arith.constant dense<0xFF800000> : vector<2x8xf32>
    %88 = vector.multi_reduction <maximumf>, %87, %cst_66 [2] : vector<2x8x8xf32> to vector<2x8xf32>
    %89 = vector.shape_cast %88 : vector<2x8xf32> to vector<2x8x1xf32>
    %90 = vector.broadcast %89 : vector<2x8x1xf32> to vector<2x8x8xf32>
    %91 = arith.subf %87, %90 : vector<2x8x8xf32>
    %92 = math.exp %91 : vector<2x8x8xf32>
    %cst_67 = arith.constant dense<0.000000e+00> : vector<2x8xf32>
    %93 = vector.multi_reduction <add>, %92, %cst_67 [2] : vector<2x8x8xf32> to vector<2x8xf32>
    %94 = vector.shape_cast %93 : vector<2x8xf32> to vector<2x8x1xf32>
    %95 = vector.broadcast %94 : vector<2x8x1xf32> to vector<2x8x8xf32>
    %96 = arith.divf %92, %95 : vector<2x8x8xf32>
    "tpu.trace_start"() <{level = 10 : i32, message = "bts,bsd->btd"}> : () -> ()
    %cst_68 = arith.constant dense<0.000000e+00> : vector<2x8x8xf32>
    %97 = tpu.matmul %96, %80, %cst_68 {dimension_numbers = #tpu.dot_dimension_numbers<[2], [1], [1], [2], [0, 0, 0, 1, 1, 2], [0], [0]>} : vector<2x8x8xf32>, vector<2x8x8xf32>, vector<2x8x8xf32> -> vector<2x8x8xf32>
    "tpu.trace_stop"() : () -> ()
    %98 = vector.extract_strided_slice %55 {offsets = [0, 0, 16], sizes = [2, 8, 8], strides = [1, 1, 1]} : vector<2x8x32xf32> to vector<2x8x8xf32>
    %99 = vector.extract_strided_slice %56 {offsets = [0, 0, 16], sizes = [2, 8, 8], strides = [1, 1, 1]} : vector<2x8x32xf32> to vector<2x8x8xf32>
    %100 = vector.extract_strided_slice %57 {offsets = [0, 0, 16], sizes = [2, 8, 8], strides = [1, 1, 1]} : vector<2x8x32xf32> to vector<2x8x8xf32>
    "tpu.trace_start"() <{level = 10 : i32, message = "btd,bsd->bts"}> : () -> ()
    %cst_69 = arith.constant dense<0.000000e+00> : vector<2x8x8xf32>
    %101 = tpu.matmul %98, %99, %cst_69 {dimension_numbers = #tpu.dot_dimension_numbers<[2], [2], [1], [1], [0, 0, 0, 1, 1, 1], [0], [0]>} : vector<2x8x8xf32>, vector<2x8x8xf32>, vector<2x8x8xf32> -> vector<2x8x8xf32>
    "tpu.trace_stop"() : () -> ()
    %cst_70 = arith.constant 0.353553385 : f32
    %102 = vector.broadcast %cst_70 : f32 to vector<2x8x8xf32>
    %103 = arith.mulf %101, %102 : vector<2x8x8xf32>
    %cst_71 = arith.constant 0.000000e+00 : f32
    %104 = vector.broadcast %cst_71 : f32 to vector<2x8x8xf32>
    %105 = arith.cmpf oeq, %0, %104 : vector<2x8x8xf32>
    %cst_72 = arith.constant -1.000000e+09 : f32
    %106 = vector.broadcast %cst_72 : f32 to vector<2x8x8xf32>
    %107 = arith.select %105, %106, %103 : vector<2x8x8xi1>, vector<2x8x8xf32>
    %cst_73 = arith.constant dense<0xFF800000> : vector<2x8xf32>
    %108 = vector.multi_reduction <maximumf>, %107, %cst_73 [2] : vector<2x8x8xf32> to vector<2x8xf32>
    %109 = vector.shape_cast %108 : vector<2x8xf32> to vector<2x8x1xf32>
    %110 = vector.broadcast %109 : vector<2x8x1xf32> to vector<2x8x8xf32>
    %111 = arith.subf %107, %110 : vector<2x8x8xf32>
    %112 = math.exp %111 : vector<2x8x8xf32>
    %cst_74 = arith.constant dense<0.000000e+00> : vector<2x8xf32>
    %113 = vector.multi_reduction <add>, %112, %cst_74 [2] : vector<2x8x8xf32> to vector<2x8xf32>
    %114 = vector.shape_cast %113 : vector<2x8xf32> to vector<2x8x1xf32>
    %115 = vector.broadcast %114 : vector<2x8x1xf32> to vector<2x8x8xf32>
    %116 = arith.divf %112, %115 : vector<2x8x8xf32>
    "tpu.trace_start"() <{level = 10 : i32, message = "bts,bsd->btd"}> : () -> ()
    %cst_75 = arith.constant dense<0.000000e+00> : vector<2x8x8xf32>
    %117 = tpu.matmul %116, %100, %cst_75 {dimension_numbers = #tpu.dot_dimension_numbers<[2], [1], [1], [2], [0, 0, 0, 1, 1, 2], [0], [0]>} : vector<2x8x8xf32>, vector<2x8x8xf32>, vector<2x8x8xf32> -> vector<2x8x8xf32>
    "tpu.trace_stop"() : () -> ()
    %118 = vector.extract_strided_slice %55 {offsets = [0, 0, 24], sizes = [2, 8, 8], strides = [1, 1, 1]} : vector<2x8x32xf32> to vector<2x8x8xf32>
    %119 = vector.extract_strided_slice %56 {offsets = [0, 0, 24], sizes = [2, 8, 8], strides = [1, 1, 1]} : vector<2x8x32xf32> to vector<2x8x8xf32>
    %120 = vector.extract_strided_slice %57 {offsets = [0, 0, 24], sizes = [2, 8, 8], strides = [1, 1, 1]} : vector<2x8x32xf32> to vector<2x8x8xf32>
    "tpu.trace_start"() <{level = 10 : i32, message = "btd,bsd->bts"}> : () -> ()
    %cst_76 = arith.constant dense<0.000000e+00> : vector<2x8x8xf32>
    %121 = tpu.matmul %118, %119, %cst_76 {dimension_numbers = #tpu.dot_dimension_numbers<[2], [2], [1], [1], [0, 0, 0, 1, 1, 1], [0], [0]>} : vector<2x8x8xf32>, vector<2x8x8xf32>, vector<2x8x8xf32> -> vector<2x8x8xf32>
    "tpu.trace_stop"() : () -> ()
    %cst_77 = arith.constant 0.353553385 : f32
    %122 = vector.broadcast %cst_77 : f32 to vector<2x8x8xf32>
    %123 = arith.mulf %121, %122 : vector<2x8x8xf32>
    %cst_78 = arith.constant 0.000000e+00 : f32
    %124 = vector.broadcast %cst_78 : f32 to vector<2x8x8xf32>
    %125 = arith.cmpf oeq, %0, %124 : vector<2x8x8xf32>
    %cst_79 = arith.constant -1.000000e+09 : f32
    %126 = vector.broadcast %cst_79 : f32 to vector<2x8x8xf32>
    %127 = arith.select %125, %126, %123 : vector<2x8x8xi1>, vector<2x8x8xf32>
    %cst_80 = arith.constant dense<0xFF800000> : vector<2x8xf32>
    %128 = vector.multi_reduction <maximumf>, %127, %cst_80 [2] : vector<2x8x8xf32> to vector<2x8xf32>
    %129 = vector.shape_cast %128 : vector<2x8xf32> to vector<2x8x1xf32>
    %130 = vector.broadcast %129 : vector<2x8x1xf32> to vector<2x8x8xf32>
    %131 = arith.subf %127, %130 : vector<2x8x8xf32>
    %132 = math.exp %131 : vector<2x8x8xf32>
    %cst_81 = arith.constant dense<0.000000e+00> : vector<2x8xf32>
    %133 = vector.multi_reduction <add>, %132, %cst_81 [2] : vector<2x8x8xf32> to vector<2x8xf32>
    %134 = vector.shape_cast %133 : vector<2x8xf32> to vector<2x8x1xf32>
    %135 = vector.broadcast %134 : vector<2x8x1xf32> to vector<2x8x8xf32>
    %136 = arith.divf %132, %135 : vector<2x8x8xf32>
    "tpu.trace_start"() <{level = 10 : i32, message = "bts,bsd->btd"}> : () -> ()
    %cst_82 = arith.constant dense<0.000000e+00> : vector<2x8x8xf32>
    %137 = tpu.matmul %136, %120, %cst_82 {dimension_numbers = #tpu.dot_dimension_numbers<[2], [1], [1], [2], [0, 0, 0, 1, 1, 2], [0], [0]>} : vector<2x8x8xf32>, vector<2x8x8xf32>, vector<2x8x8xf32> -> vector<2x8x8xf32>
    "tpu.trace_stop"() : () -> ()
    %138 = tpu.concatenate %77, %97, %117, %137 in 2 : vector<2x8x8xf32>, vector<2x8x8xf32>, vector<2x8x8xf32>, vector<2x8x8xf32> -> vector<2x8x32xf32>
    %139 = vector.shape_cast %138 : vector<2x8x32xf32> to vector<16x32xf32>
    %cst_83 = arith.constant dense<0.000000e+00> : vector<16x32xf32>
    %140 = tpu.matmul %139, %4, %cst_83 {dimension_numbers = #tpu.dot_dimension_numbers<[1], [0], [0], [1], [0, 0, 1, 1], [], []>} : vector<16x32xf32>, vector<32x32xf32>, vector<16x32xf32> -> vector<16x32xf32>
    %141 = vector.broadcast %5 : vector<1x32xf32> to vector<16x32xf32>
    %142 = arith.addf %140, %141 : vector<16x32xf32>
    %143 = arith.addf %28, %142 : vector<16x32xf32>
    %cst_84 = arith.constant dense<0.000000e+00> : vector<16xf32>
    %144 = vector.multi_reduction <add>, %143, %cst_84 [1] : vector<16x32xf32> to vector<16xf32>
    %145 = vector.shape_cast %144 : vector<16xf32> to vector<16x1xf32>
    %cst_85 = arith.constant 3.200000e+01 : f32
    %146 = vector.broadcast %cst_85 : f32 to vector<16x1xf32>
    %147 = arith.divf %145, %146 : vector<16x1xf32>
    %148 = vector.broadcast %147 : vector<16x1xf32> to vector<16x32xf32>
    %149 = arith.subf %143, %148 : vector<16x32xf32>
    %150 = arith.mulf %149, %149 : vector<16x32xf32>
    %cst_86 = arith.constant dense<0.000000e+00> : vector<16xf32>
    %151 = vector.multi_reduction <add>, %150, %cst_86 [1] : vector<16x32xf32> to vector<16xf32>
    %152 = vector.shape_cast %151 : vector<16xf32> to vector<16x1xf32>
    %cst_87 = arith.constant 3.100000e+01 : f32
    %153 = vector.broadcast %cst_87 : f32 to vector<16x1xf32>
    %154 = arith.divf %152, %153 : vector<16x1xf32>
    %155 = math.sqrt %154 : vector<16x1xf32>
    %156 = vector.broadcast %16 : vector<1x32xf32> to vector<16x32xf32>
    %157 = arith.mulf %156, %149 : vector<16x32xf32>
    %cst_88 = arith.constant 9.99999997E-7 : f32
    %158 = vector.broadcast %cst_88 : f32 to vector<16x1xf32>
    %159 = arith.addf %155, %158 : vector<16x1xf32>
    %160 = vector.broadcast %159 : vector<16x1xf32> to vector<16x32xf32>
    %161 = arith.divf %157, %160 : vector<16x32xf32>
    %162 = vector.broadcast %17 : vector<1x32xf32> to vector<16x32xf32>
    %163 = arith.addf %161, %162 : vector<16x32xf32>
    %cst_89 = arith.constant dense<0.000000e+00> : vector<16x32xf32>
    %164 = tpu.matmul %163, %6, %cst_89 {dimension_numbers = #tpu.dot_dimension_numbers<[1], [0], [0], [1], [0, 0, 1, 1], [], []>} : vector<16x32xf32>, vector<32x32xf32>, vector<16x32xf32> -> vector<16x32xf32>
    %165 = vector.broadcast %7 : vector<1x32xf32> to vector<16x32xf32>
    %166 = arith.addf %164, %165 : vector<16x32xf32>
    %167 = vector.shape_cast %166 : vector<16x32xf32> to vector<2x8x32xf32>
    %168 = vector.shape_cast %26 : vector<16x32xf32> to vector<2x8x32xf32>
    %169 = vector.shape_cast %27 : vector<16x32xf32> to vector<2x8x32xf32>
    %170 = vector.extract_strided_slice %167 {offsets = [0, 0, 0], sizes = [2, 8, 8], strides = [1, 1, 1]} : vector<2x8x32xf32> to vector<2x8x8xf32>
    %171 = vector.extract_strided_slice %168 {offsets = [0, 0, 0], sizes = [2, 8, 8], strides = [1, 1, 1]} : vector<2x8x32xf32> to vector<2x8x8xf32>
    %172 = vector.extract_strided_slice %169 {offsets = [0, 0, 0], sizes = [2, 8, 8], strides = [1, 1, 1]} : vector<2x8x32xf32> to vector<2x8x8xf32>
    "tpu.trace_start"() <{level = 10 : i32, message = "btd,bsd->bts"}> : () -> ()
    %cst_90 = arith.constant dense<0.000000e+00> : vector<2x8x8xf32>
    %173 = tpu.matmul %170, %171, %cst_90 {dimension_numbers = #tpu.dot_dimension_numbers<[2], [2], [1], [1], [0, 0, 0, 1, 1, 1], [0], [0]>} : vector<2x8x8xf32>, vector<2x8x8xf32>, vector<2x8x8xf32> -> vector<2x8x8xf32>
    "tpu.trace_stop"() : () -> ()
    %cst_91 = arith.constant 0.353553385 : f32
    %174 = vector.broadcast %cst_91 : f32 to vector<2x8x8xf32>
    %175 = arith.mulf %173, %174 : vector<2x8x8xf32>
    %cst_92 = arith.constant 0.000000e+00 : f32
    %176 = vector.broadcast %cst_92 : f32 to vector<2x8x8xf32>
    %177 = arith.cmpf oeq, %1, %176 : vector<2x8x8xf32>
    %cst_93 = arith.constant -1.000000e+09 : f32
    %178 = vector.broadcast %cst_93 : f32 to vector<2x8x8xf32>
    %179 = arith.select %177, %178, %175 : vector<2x8x8xi1>, vector<2x8x8xf32>
    %cst_94 = arith.constant dense<0xFF800000> : vector<2x8xf32>
    %180 = vector.multi_reduction <maximumf>, %179, %cst_94 [2] : vector<2x8x8xf32> to vector<2x8xf32>
    %181 = vector.shape_cast %180 : vector<2x8xf32> to vector<2x8x1xf32>
    %182 = vector.broadcast %181 : vector<2x8x1xf32> to vector<2x8x8xf32>
    %183 = arith.subf %179, %182 : vector<2x8x8xf32>
    %184 = math.exp %183 : vector<2x8x8xf32>
    %cst_95 = arith.constant dense<0.000000e+00> : vector<2x8xf32>
    %185 = vector.multi_reduction <add>, %184, %cst_95 [2] : vector<2x8x8xf32> to vector<2x8xf32>
    %186 = vector.shape_cast %185 : vector<2x8xf32> to vector<2x8x1xf32>
    %187 = vector.broadcast %186 : vector<2x8x1xf32> to vector<2x8x8xf32>
    %188 = arith.divf %184, %187 : vector<2x8x8xf32>
    "tpu.trace_start"() <{level = 10 : i32, message = "bts,bsd->btd"}> : () -> ()
    %cst_96 = arith.constant dense<0.000000e+00> : vector<2x8x8xf32>
    %189 = tpu.matmul %188, %172, %cst_96 {dimension_numbers = #tpu.dot_dimension_numbers<[2], [1], [1], [2], [0, 0, 0, 1, 1, 2], [0], [0]>} : vector<2x8x8xf32>, vector<2x8x8xf32>, vector<2x8x8xf32> -> vector<2x8x8xf32>
    "tpu.trace_stop"() : () -> ()
    %190 = vector.extract_strided_slice %167 {offsets = [0, 0, 8], sizes = [2, 8, 8], strides = [1, 1, 1]} : vector<2x8x32xf32> to vector<2x8x8xf32>
    %191 = vector.extract_strided_slice %168 {offsets = [0, 0, 8], sizes = [2, 8, 8], strides = [1, 1, 1]} : vector<2x8x32xf32> to vector<2x8x8xf32>
    %192 = vector.extract_strided_slice %169 {offsets = [0, 0, 8], sizes = [2, 8, 8], strides = [1, 1, 1]} : vector<2x8x32xf32> to vector<2x8x8xf32>
    "tpu.trace_start"() <{level = 10 : i32, message = "btd,bsd->bts"}> : () -> ()
    %cst_97 = arith.constant dense<0.000000e+00> : vector<2x8x8xf32>
    %193 = tpu.matmul %190, %191, %cst_97 {dimension_numbers = #tpu.dot_dimension_numbers<[2], [2], [1], [1], [0, 0, 0, 1, 1, 1], [0], [0]>} : vector<2x8x8xf32>, vector<2x8x8xf32>, vector<2x8x8xf32> -> vector<2x8x8xf32>
    "tpu.trace_stop"() : () -> ()
    %cst_98 = arith.constant 0.353553385 : f32
    %194 = vector.broadcast %cst_98 : f32 to vector<2x8x8xf32>
    %195 = arith.mulf %193, %194 : vector<2x8x8xf32>
    %cst_99 = arith.constant 0.000000e+00 : f32
    %196 = vector.broadcast %cst_99 : f32 to vector<2x8x8xf32>
    %197 = arith.cmpf oeq, %1, %196 : vector<2x8x8xf32>
    %cst_100 = arith.constant -1.000000e+09 : f32
    %198 = vector.broadcast %cst_100 : f32 to vector<2x8x8xf32>
    %199 = arith.select %197, %198, %195 : vector<2x8x8xi1>, vector<2x8x8xf32>
    %cst_101 = arith.constant dense<0xFF800000> : vector<2x8xf32>
    %200 = vector.multi_reduction <maximumf>, %199, %cst_101 [2] : vector<2x8x8xf32> to vector<2x8xf32>
    %201 = vector.shape_cast %200 : vector<2x8xf32> to vector<2x8x1xf32>
    %202 = vector.broadcast %201 : vector<2x8x1xf32> to vector<2x8x8xf32>
    %203 = arith.subf %199, %202 : vector<2x8x8xf32>
    %204 = math.exp %203 : vector<2x8x8xf32>
    %cst_102 = arith.constant dense<0.000000e+00> : vector<2x8xf32>
    %205 = vector.multi_reduction <add>, %204, %cst_102 [2] : vector<2x8x8xf32> to vector<2x8xf32>
    %206 = vector.shape_cast %205 : vector<2x8xf32> to vector<2x8x1xf32>
    %207 = vector.broadcast %206 : vector<2x8x1xf32> to vector<2x8x8xf32>
    %208 = arith.divf %204, %207 : vector<2x8x8xf32>
    "tpu.trace_start"() <{level = 10 : i32, message = "bts,bsd->btd"}> : () -> ()
    %cst_103 = arith.constant dense<0.000000e+00> : vector<2x8x8xf32>
    %209 = tpu.matmul %208, %192, %cst_103 {dimension_numbers = #tpu.dot_dimension_numbers<[2], [1], [1], [2], [0, 0, 0, 1, 1, 2], [0], [0]>} : vector<2x8x8xf32>, vector<2x8x8xf32>, vector<2x8x8xf32> -> vector<2x8x8xf32>
    "tpu.trace_stop"() : () -> ()
    %210 = vector.extract_strided_slice %167 {offsets = [0, 0, 16], sizes = [2, 8, 8], strides = [1, 1, 1]} : vector<2x8x32xf32> to vector<2x8x8xf32>
    %211 = vector.extract_strided_slice %168 {offsets = [0, 0, 16], sizes = [2, 8, 8], strides = [1, 1, 1]} : vector<2x8x32xf32> to vector<2x8x8xf32>
    %212 = vector.extract_strided_slice %169 {offsets = [0, 0, 16], sizes = [2, 8, 8], strides = [1, 1, 1]} : vector<2x8x32xf32> to vector<2x8x8xf32>
    "tpu.trace_start"() <{level = 10 : i32, message = "btd,bsd->bts"}> : () -> ()
    %cst_104 = arith.constant dense<0.000000e+00> : vector<2x8x8xf32>
    %213 = tpu.matmul %210, %211, %cst_104 {dimension_numbers = #tpu.dot_dimension_numbers<[2], [2], [1], [1], [0, 0, 0, 1, 1, 1], [0], [0]>} : vector<2x8x8xf32>, vector<2x8x8xf32>, vector<2x8x8xf32> -> vector<2x8x8xf32>
    "tpu.trace_stop"() : () -> ()
    %cst_105 = arith.constant 0.353553385 : f32
    %214 = vector.broadcast %cst_105 : f32 to vector<2x8x8xf32>
    %215 = arith.mulf %213, %214 : vector<2x8x8xf32>
    %cst_106 = arith.constant 0.000000e+00 : f32
    %216 = vector.broadcast %cst_106 : f32 to vector<2x8x8xf32>
    %217 = arith.cmpf oeq, %1, %216 : vector<2x8x8xf32>
    %cst_107 = arith.constant -1.000000e+09 : f32
    %218 = vector.broadcast %cst_107 : f32 to vector<2x8x8xf32>
    %219 = arith.select %217, %218, %215 : vector<2x8x8xi1>, vector<2x8x8xf32>
    %cst_108 = arith.constant dense<0xFF800000> : vector<2x8xf32>
    %220 = vector.multi_reduction <maximumf>, %219, %cst_108 [2] : vector<2x8x8xf32> to vector<2x8xf32>
    %221 = vector.shape_cast %220 : vector<2x8xf32> to vector<2x8x1xf32>
    %222 = vector.broadcast %221 : vector<2x8x1xf32> to vector<2x8x8xf32>
    %223 = arith.subf %219, %222 : vector<2x8x8xf32>
    %224 = math.exp %223 : vector<2x8x8xf32>
    %cst_109 = arith.constant dense<0.000000e+00> : vector<2x8xf32>
    %225 = vector.multi_reduction <add>, %224, %cst_109 [2] : vector<2x8x8xf32> to vector<2x8xf32>
    %226 = vector.shape_cast %225 : vector<2x8xf32> to vector<2x8x1xf32>
    %227 = vector.broadcast %226 : vector<2x8x1xf32> to vector<2x8x8xf32>
    %228 = arith.divf %224, %227 : vector<2x8x8xf32>
    "tpu.trace_start"() <{level = 10 : i32, message = "bts,bsd->btd"}> : () -> ()
    %cst_110 = arith.constant dense<0.000000e+00> : vector<2x8x8xf32>
    %229 = tpu.matmul %228, %212, %cst_110 {dimension_numbers = #tpu.dot_dimension_numbers<[2], [1], [1], [2], [0, 0, 0, 1, 1, 2], [0], [0]>} : vector<2x8x8xf32>, vector<2x8x8xf32>, vector<2x8x8xf32> -> vector<2x8x8xf32>
    "tpu.trace_stop"() : () -> ()
    %230 = vector.extract_strided_slice %167 {offsets = [0, 0, 24], sizes = [2, 8, 8], strides = [1, 1, 1]} : vector<2x8x32xf32> to vector<2x8x8xf32>
    %231 = vector.extract_strided_slice %168 {offsets = [0, 0, 24], sizes = [2, 8, 8], strides = [1, 1, 1]} : vector<2x8x32xf32> to vector<2x8x8xf32>
    %232 = vector.extract_strided_slice %169 {offsets = [0, 0, 24], sizes = [2, 8, 8], strides = [1, 1, 1]} : vector<2x8x32xf32> to vector<2x8x8xf32>
    "tpu.trace_start"() <{level = 10 : i32, message = "btd,bsd->bts"}> : () -> ()
    %cst_111 = arith.constant dense<0.000000e+00> : vector<2x8x8xf32>
    %233 = tpu.matmul %230, %231, %cst_111 {dimension_numbers = #tpu.dot_dimension_numbers<[2], [2], [1], [1], [0, 0, 0, 1, 1, 1], [0], [0]>} : vector<2x8x8xf32>, vector<2x8x8xf32>, vector<2x8x8xf32> -> vector<2x8x8xf32>
    "tpu.trace_stop"() : () -> ()
    %cst_112 = arith.constant 0.353553385 : f32
    %234 = vector.broadcast %cst_112 : f32 to vector<2x8x8xf32>
    %235 = arith.mulf %233, %234 : vector<2x8x8xf32>
    %cst_113 = arith.constant 0.000000e+00 : f32
    %236 = vector.broadcast %cst_113 : f32 to vector<2x8x8xf32>
    %237 = arith.cmpf oeq, %1, %236 : vector<2x8x8xf32>
    %cst_114 = arith.constant -1.000000e+09 : f32
    %238 = vector.broadcast %cst_114 : f32 to vector<2x8x8xf32>
    %239 = arith.select %237, %238, %235 : vector<2x8x8xi1>, vector<2x8x8xf32>
    %cst_115 = arith.constant dense<0xFF800000> : vector<2x8xf32>
    %240 = vector.multi_reduction <maximumf>, %239, %cst_115 [2] : vector<2x8x8xf32> to vector<2x8xf32>
    %241 = vector.shape_cast %240 : vector<2x8xf32> to vector<2x8x1xf32>
    %242 = vector.broadcast %241 : vector<2x8x1xf32> to vector<2x8x8xf32>
    %243 = arith.subf %239, %242 : vector<2x8x8xf32>
    %244 = math.exp %243 : vector<2x8x8xf32>
    %cst_116 = arith.constant dense<0.000000e+00> : vector<2x8xf32>
    %245 = vector.multi_reduction <add>, %244, %cst_116 [2] : vector<2x8x8xf32> to vector<2x8xf32>
    %246 = vector.shape_cast %245 : vector<2x8xf32> to vector<2x8x1xf32>
    %247 = vector.broadcast %246 : vector<2x8x1xf32> to vector<2x8x8xf32>
    %248 = arith.divf %244, %247 : vector<2x8x8xf32>
    "tpu.trace_start"() <{level = 10 : i32, message = "bts,bsd->btd"}> : () -> ()
    %cst_117 = arith.constant dense<0.000000e+00> : vector<2x8x8xf32>
    %249 = tpu.matmul %248, %232, %cst_117 {dimension_numbers = #tpu.dot_dimension_numbers<[2], [1], [1], [2], [0, 0, 0, 1, 1, 2], [0], [0]>} : vector<2x8x8xf32>, vector<2x8x8xf32>, vector<2x8x8xf32> -> vector<2x8x8xf32>
    "tpu.trace_stop"() : () -> ()
    %250 = tpu.concatenate %189, %209, %229, %249 in 2 : vector<2x8x8xf32>, vector<2x8x8xf32>, vector<2x8x8xf32>, vector<2x8x8xf32> -> vector<2x8x32xf32>
    %251 = vector.shape_cast %250 : vector<2x8x32xf32> to vector<16x32xf32>
    %cst_118 = arith.constant dense<0.000000e+00> : vector<16x32xf32>
    %252 = tpu.matmul %251, %8, %cst_118 {dimension_numbers = #tpu.dot_dimension_numbers<[1], [0], [0], [1], [0, 0, 1, 1], [], []>} : vector<16x32xf32>, vector<32x32xf32>, vector<16x32xf32> -> vector<16x32xf32>
    %253 = vector.broadcast %9 : vector<1x32xf32> to vector<16x32xf32>
    %254 = arith.addf %252, %253 : vector<16x32xf32>
    %255 = arith.addf %143, %254 : vector<16x32xf32>
    %cst_119 = arith.constant dense<0.000000e+00> : vector<16xf32>
    %256 = vector.multi_reduction <add>, %255, %cst_119 [1] : vector<16x32xf32> to vector<16xf32>
    %257 = vector.shape_cast %256 : vector<16xf32> to vector<16x1xf32>
    %cst_120 = arith.constant 3.200000e+01 : f32
    %258 = vector.broadcast %cst_120 : f32 to vector<16x1xf32>
    %259 = arith.divf %257, %258 : vector<16x1xf32>
    %260 = vector.broadcast %259 : vector<16x1xf32> to vector<16x32xf32>
    %261 = arith.subf %255, %260 : vector<16x32xf32>
    %262 = arith.mulf %261, %261 : vector<16x32xf32>
    %cst_121 = arith.constant dense<0.000000e+00> : vector<16xf32>
    %263 = vector.multi_reduction <add>, %262, %cst_121 [1] : vector<16x32xf32> to vector<16xf32>
    %264 = vector.shape_cast %263 : vector<16xf32> to vector<16x1xf32>
    %cst_122 = arith.constant 3.100000e+01 : f32
    %265 = vector.broadcast %cst_122 : f32 to vector<16x1xf32>
    %266 = arith.divf %264, %265 : vector<16x1xf32>
    %267 = math.sqrt %266 : vector<16x1xf32>
    %268 = vector.broadcast %18 : vector<1x32xf32> to vector<16x32xf32>
    %269 = arith.mulf %268, %261 : vector<16x32xf32>
    %cst_123 = arith.constant 9.99999997E-7 : f32
    %270 = vector.broadcast %cst_123 : f32 to vector<16x1xf32>
    %271 = arith.addf %267, %270 : vector<16x1xf32>
    %272 = vector.broadcast %271 : vector<16x1xf32> to vector<16x32xf32>
    %273 = arith.divf %269, %272 : vector<16x32xf32>
    %274 = vector.broadcast %19 : vector<1x32xf32> to vector<16x32xf32>
    %275 = arith.addf %273, %274 : vector<16x32xf32>
    %cst_124 = arith.constant dense<0.000000e+00> : vector<16x64xf32>
    %276 = tpu.matmul %275, %10, %cst_124 {dimension_numbers = #tpu.dot_dimension_numbers<[1], [0], [0], [1], [0, 0, 1, 1], [], []>} : vector<16x32xf32>, vector<32x64xf32>, vector<16x64xf32> -> vector<16x64xf32>
    %277 = vector.broadcast %11 : vector<1x64xf32> to vector<16x64xf32>
    %278 = arith.addf %276, %277 : vector<16x64xf32>
    %cst_125 = arith.constant 0.000000e+00 : f32
    %279 = vector.broadcast %cst_125 : f32 to vector<16x64xf32>
    %280 = arith.maximumf %278, %279 : vector<16x64xf32>
    %cst_126 = arith.constant dense<0.000000e+00> : vector<16x32xf32>
    %281 = tpu.matmul %280, %12, %cst_126 {dimension_numbers = #tpu.dot_dimension_numbers<[1], [0], [0], [1], [0, 0, 1, 1], [], []>} : vector<16x64xf32>, vector<64x32xf32>, vector<16x32xf32> -> vector<16x32xf32>
    %282 = arith.addf %255, %281 : vector<16x32xf32>
    %283 = vector.broadcast %13 : vector<1x32xf32> to vector<16x32xf32>
    %284 = arith.addf %282, %283 : vector<16x32xf32>
    %cst_127 = arith.constant dense<0.000000e+00> : vector<16xf32>
    %285 = vector.multi_reduction <add>, %284, %cst_127 [1] : vector<16x32xf32> to vector<16xf32>
    %286 = vector.shape_cast %285 : vector<16xf32> to vector<16x1xf32>
    %cst_128 = arith.constant 3.200000e+01 : f32
    %287 = vector.broadcast %cst_128 : f32 to vector<16x1xf32>
    %288 = arith.divf %286, %287 : vector<16x1xf32>
    %289 = vector.broadcast %288 : vector<16x1xf32> to vector<16x32xf32>
    %290 = arith.subf %284, %289 : vector<16x32xf32>
    %291 = arith.mulf %290, %290 : vector<16x32xf32>
    %cst_129 = arith.constant dense<0.000000e+00> : vector<16xf32>
    %292 = vector.multi_reduction <add>, %291, %cst_129 [1] : vector<16x32xf32> to vector<16xf32>
    %293 = vector.shape_cast %292 : vector<16xf32> to vector<16x1xf32>
    %cst_130 = arith.constant 3.100000e+01 : f32
    %294 = vector.broadcast %cst_130 : f32 to vector<16x1xf32>
    %295 = arith.divf %293, %294 : vector<16x1xf32>
    %296 = math.sqrt %295 : vector<16x1xf32>
    %297 = vector.broadcast %14 : vector<1x32xf32> to vector<16x32xf32>
    %298 = arith.mulf %297, %290 : vector<16x32xf32>
    %cst_131 = arith.constant 9.99999997E-7 : f32
    %299 = vector.broadcast %cst_131 : f32 to vector<16x1xf32>
    %300 = arith.addf %296, %299 : vector<16x1xf32>
    %301 = vector.broadcast %300 : vector<16x1xf32> to vector<16x32xf32>
    %302 = arith.divf %298, %301 : vector<16x32xf32>
    %303 = vector.broadcast %15 : vector<1x32xf32> to vector<16x32xf32>
    %304 = arith.addf %302, %303 : vector<16x32xf32>
    %cst_132 = arith.constant dense<0.000000e+00> : vector<16x96xf32>
    %305 = tpu.matmul %304, %2, %cst_132 {dimension_numbers = #tpu.dot_dimension_numbers<[1], [0], [0], [1], [0, 0, 1, 1], [], []>} : vector<16x32xf32>, vector<32x96xf32>, vector<16x96xf32> -> vector<16x96xf32>
    %306 = vector.broadcast %3 : vector<1x96xf32> to vector<16x96xf32>
    %307 = arith.addf %305, %306 : vector<16x96xf32>
    %308 = vector.extract_strided_slice %307 {offsets = [0, 0], sizes = [16, 32], strides = [1, 1]} : vector<16x96xf32> to vector<16x32xf32>
    %309 = vector.extract_strided_slice %307 {offsets = [0, 32], sizes = [16, 32], strides = [1, 1]} : vector<16x96xf32> to vector<16x32xf32>
    %310 = vector.extract_strided_slice %307 {offsets = [0, 64], sizes = [16, 32], strides = [1, 1]} : vector<16x96xf32> to vector<16x32xf32>
    %311 = vector.shape_cast %308 : vector<16x32xf32> to vector<2x8x32xf32>
    %312 = vector.shape_cast %309 : vector<16x32xf32> to vector<2x8x32xf32>
    %313 = vector.shape_cast %310 : vector<16x32xf32> to vector<2x8x32xf32>
    %314 = vector.extract_strided_slice %311 {offsets = [0, 0, 0], sizes = [2, 8, 8], strides = [1, 1, 1]} : vector<2x8x32xf32> to vector<2x8x8xf32>
    %315 = vector.extract_strided_slice %312 {offsets = [0, 0, 0], sizes = [2, 8, 8], strides = [1, 1, 1]} : vector<2x8x32xf32> to vector<2x8x8xf32>
    %316 = vector.extract_strided_slice %313 {offsets = [0, 0, 0], sizes = [2, 8, 8], strides = [1, 1, 1]} : vector<2x8x32xf32> to vector<2x8x8xf32>
    "tpu.trace_start"() <{level = 10 : i32, message = "btd,bsd->bts"}> : () -> ()
    %cst_133 = arith.constant dense<0.000000e+00> : vector<2x8x8xf32>
    %317 = tpu.matmul %314, %315, %cst_133 {dimension_numbers = #tpu.dot_dimension_numbers<[2], [2], [1], [1], [0, 0, 0, 1, 1, 1], [0], [0]>} : vector<2x8x8xf32>, vector<2x8x8xf32>, vector<2x8x8xf32> -> vector<2x8x8xf32>
    "tpu.trace_stop"() : () -> ()
    %cst_134 = arith.constant 0.353553385 : f32
    %318 = vector.broadcast %cst_134 : f32 to vector<2x8x8xf32>
    %319 = arith.mulf %317, %318 : vector<2x8x8xf32>
    %cst_135 = arith.constant 0.000000e+00 : f32
    %320 = vector.broadcast %cst_135 : f32 to vector<2x8x8xf32>
    %321 = arith.cmpf oeq, %0, %320 : vector<2x8x8xf32>
    %cst_136 = arith.constant -1.000000e+09 : f32
    %322 = vector.broadcast %cst_136 : f32 to vector<2x8x8xf32>
    %323 = arith.select %321, %322, %319 : vector<2x8x8xi1>, vector<2x8x8xf32>
    %cst_137 = arith.constant dense<0xFF800000> : vector<2x8xf32>
    %324 = vector.multi_reduction <maximumf>, %323, %cst_137 [2] : vector<2x8x8xf32> to vector<2x8xf32>
    %325 = vector.shape_cast %324 : vector<2x8xf32> to vector<2x8x1xf32>
    %326 = vector.broadcast %325 : vector<2x8x1xf32> to vector<2x8x8xf32>
    %327 = arith.subf %323, %326 : vector<2x8x8xf32>
    %328 = math.exp %327 : vector<2x8x8xf32>
    %cst_138 = arith.constant dense<0.000000e+00> : vector<2x8xf32>
    %329 = vector.multi_reduction <add>, %328, %cst_138 [2] : vector<2x8x8xf32> to vector<2x8xf32>
    %330 = vector.shape_cast %329 : vector<2x8xf32> to vector<2x8x1xf32>
    %331 = vector.broadcast %330 : vector<2x8x1xf32> to vector<2x8x8xf32>
    %332 = arith.divf %328, %331 : vector<2x8x8xf32>
    "tpu.trace_start"() <{level = 10 : i32, message = "bts,bsd->btd"}> : () -> ()
    %cst_139 = arith.constant dense<0.000000e+00> : vector<2x8x8xf32>
    %333 = tpu.matmul %332, %316, %cst_139 {dimension_numbers = #tpu.dot_dimension_numbers<[2], [1], [1], [2], [0, 0, 0, 1, 1, 2], [0], [0]>} : vector<2x8x8xf32>, vector<2x8x8xf32>, vector<2x8x8xf32> -> vector<2x8x8xf32>
    "tpu.trace_stop"() : () -> ()
    %334 = vector.extract_strided_slice %311 {offsets = [0, 0, 8], sizes = [2, 8, 8], strides = [1, 1, 1]} : vector<2x8x32xf32> to vector<2x8x8xf32>
    %335 = vector.extract_strided_slice %312 {offsets = [0, 0, 8], sizes = [2, 8, 8], strides = [1, 1, 1]} : vector<2x8x32xf32> to vector<2x8x8xf32>
    %336 = vector.extract_strided_slice %313 {offsets = [0, 0, 8], sizes = [2, 8, 8], strides = [1, 1, 1]} : vector<2x8x32xf32> to vector<2x8x8xf32>
    "tpu.trace_start"() <{level = 10 : i32, message = "btd,bsd->bts"}> : () -> ()
    %cst_140 = arith.constant dense<0.000000e+00> : vector<2x8x8xf32>
    %337 = tpu.matmul %334, %335, %cst_140 {dimension_numbers = #tpu.dot_dimension_numbers<[2], [2], [1], [1], [0, 0, 0, 1, 1, 1], [0], [0]>} : vector<2x8x8xf32>, vector<2x8x8xf32>, vector<2x8x8xf32> -> vector<2x8x8xf32>
    "tpu.trace_stop"() : () -> ()
    %cst_141 = arith.constant 0.353553385 : f32
    %338 = vector.broadcast %cst_141 : f32 to vector<2x8x8xf32>
    %339 = arith.mulf %337, %338 : vector<2x8x8xf32>
    %cst_142 = arith.constant 0.000000e+00 : f32
    %340 = vector.broadcast %cst_142 : f32 to vector<2x8x8xf32>
    %341 = arith.cmpf oeq, %0, %340 : vector<2x8x8xf32>
    %cst_143 = arith.constant -1.000000e+09 : f32
    %342 = vector.broadcast %cst_143 : f32 to vector<2x8x8xf32>
    %343 = arith.select %341, %342, %339 : vector<2x8x8xi1>, vector<2x8x8xf32>
    %cst_144 = arith.constant dense<0xFF800000> : vector<2x8xf32>
    %344 = vector.multi_reduction <maximumf>, %343, %cst_144 [2] : vector<2x8x8xf32> to vector<2x8xf32>
    %345 = vector.shape_cast %344 : vector<2x8xf32> to vector<2x8x1xf32>
    %346 = vector.broadcast %345 : vector<2x8x1xf32> to vector<2x8x8xf32>
    %347 = arith.subf %343, %346 : vector<2x8x8xf32>
    %348 = math.exp %347 : vector<2x8x8xf32>
    %cst_145 = arith.constant dense<0.000000e+00> : vector<2x8xf32>
    %349 = vector.multi_reduction <add>, %348, %cst_145 [2] : vector<2x8x8xf32> to vector<2x8xf32>
    %350 = vector.shape_cast %349 : vector<2x8xf32> to vector<2x8x1xf32>
    %351 = vector.broadcast %350 : vector<2x8x1xf32> to vector<2x8x8xf32>
    %352 = arith.divf %348, %351 : vector<2x8x8xf32>
    "tpu.trace_start"() <{level = 10 : i32, message = "bts,bsd->btd"}> : () -> ()
    %cst_146 = arith.constant dense<0.000000e+00> : vector<2x8x8xf32>
    %353 = tpu.matmul %352, %336, %cst_146 {dimension_numbers = #tpu.dot_dimension_numbers<[2], [1], [1], [2], [0, 0, 0, 1, 1, 2], [0], [0]>} : vector<2x8x8xf32>, vector<2x8x8xf32>, vector<2x8x8xf32> -> vector<2x8x8xf32>
    "tpu.trace_stop"() : () -> ()
    %354 = vector.extract_strided_slice %311 {offsets = [0, 0, 16], sizes = [2, 8, 8], strides = [1, 1, 1]} : vector<2x8x32xf32> to vector<2x8x8xf32>
    %355 = vector.extract_strided_slice %312 {offsets = [0, 0, 16], sizes = [2, 8, 8], strides = [1, 1, 1]} : vector<2x8x32xf32> to vector<2x8x8xf32>
    %356 = vector.extract_strided_slice %313 {offsets = [0, 0, 16], sizes = [2, 8, 8], strides = [1, 1, 1]} : vector<2x8x32xf32> to vector<2x8x8xf32>
    "tpu.trace_start"() <{level = 10 : i32, message = "btd,bsd->bts"}> : () -> ()
    %cst_147 = arith.constant dense<0.000000e+00> : vector<2x8x8xf32>
    %357 = tpu.matmul %354, %355, %cst_147 {dimension_numbers = #tpu.dot_dimension_numbers<[2], [2], [1], [1], [0, 0, 0, 1, 1, 1], [0], [0]>} : vector<2x8x8xf32>, vector<2x8x8xf32>, vector<2x8x8xf32> -> vector<2x8x8xf32>
    "tpu.trace_stop"() : () -> ()
    %cst_148 = arith.constant 0.353553385 : f32
    %358 = vector.broadcast %cst_148 : f32 to vector<2x8x8xf32>
    %359 = arith.mulf %357, %358 : vector<2x8x8xf32>
    %cst_149 = arith.constant 0.000000e+00 : f32
    %360 = vector.broadcast %cst_149 : f32 to vector<2x8x8xf32>
    %361 = arith.cmpf oeq, %0, %360 : vector<2x8x8xf32>
    %cst_150 = arith.constant -1.000000e+09 : f32
    %362 = vector.broadcast %cst_150 : f32 to vector<2x8x8xf32>
    %363 = arith.select %361, %362, %359 : vector<2x8x8xi1>, vector<2x8x8xf32>
    %cst_151 = arith.constant dense<0xFF800000> : vector<2x8xf32>
    %364 = vector.multi_reduction <maximumf>, %363, %cst_151 [2] : vector<2x8x8xf32> to vector<2x8xf32>
    %365 = vector.shape_cast %364 : vector<2x8xf32> to vector<2x8x1xf32>
    %366 = vector.broadcast %365 : vector<2x8x1xf32> to vector<2x8x8xf32>
    %367 = arith.subf %363, %366 : vector<2x8x8xf32>
    %368 = math.exp %367 : vector<2x8x8xf32>
    %cst_152 = arith.constant dense<0.000000e+00> : vector<2x8xf32>
    %369 = vector.multi_reduction <add>, %368, %cst_152 [2] : vector<2x8x8xf32> to vector<2x8xf32>
    %370 = vector.shape_cast %369 : vector<2x8xf32> to vector<2x8x1xf32>
    %371 = vector.broadcast %370 : vector<2x8x1xf32> to vector<2x8x8xf32>
    %372 = arith.divf %368, %371 : vector<2x8x8xf32>
    "tpu.trace_start"() <{level = 10 : i32, message = "bts,bsd->btd"}> : () -> ()
    %cst_153 = arith.constant dense<0.000000e+00> : vector<2x8x8xf32>
    %373 = tpu.matmul %372, %356, %cst_153 {dimension_numbers = #tpu.dot_dimension_numbers<[2], [1], [1], [2], [0, 0, 0, 1, 1, 2], [0], [0]>} : vector<2x8x8xf32>, vector<2x8x8xf32>, vector<2x8x8xf32> -> vector<2x8x8xf32>
    "tpu.trace_stop"() : () -> ()
    %374 = vector.extract_strided_slice %311 {offsets = [0, 0, 24], sizes = [2, 8, 8], strides = [1, 1, 1]} : vector<2x8x32xf32> to vector<2x8x8xf32>
    %375 = vector.extract_strided_slice %312 {offsets = [0, 0, 24], sizes = [2, 8, 8], strides = [1, 1, 1]} : vector<2x8x32xf32> to vector<2x8x8xf32>
    %376 = vector.extract_strided_slice %313 {offsets = [0, 0, 24], sizes = [2, 8, 8], strides = [1, 1, 1]} : vector<2x8x32xf32> to vector<2x8x8xf32>
    "tpu.trace_start"() <{level = 10 : i32, message = "btd,bsd->bts"}> : () -> ()
    %cst_154 = arith.constant dense<0.000000e+00> : vector<2x8x8xf32>
    %377 = tpu.matmul %374, %375, %cst_154 {dimension_numbers = #tpu.dot_dimension_numbers<[2], [2], [1], [1], [0, 0, 0, 1, 1, 1], [0], [0]>} : vector<2x8x8xf32>, vector<2x8x8xf32>, vector<2x8x8xf32> -> vector<2x8x8xf32>
    "tpu.trace_stop"() : () -> ()
    %cst_155 = arith.constant 0.353553385 : f32
    %378 = vector.broadcast %cst_155 : f32 to vector<2x8x8xf32>
    %379 = arith.mulf %377, %378 : vector<2x8x8xf32>
    %cst_156 = arith.constant 0.000000e+00 : f32
    %380 = vector.broadcast %cst_156 : f32 to vector<2x8x8xf32>
    %381 = arith.cmpf oeq, %0, %380 : vector<2x8x8xf32>
    %cst_157 = arith.constant -1.000000e+09 : f32
    %382 = vector.broadcast %cst_157 : f32 to vector<2x8x8xf32>
    %383 = arith.select %381, %382, %379 : vector<2x8x8xi1>, vector<2x8x8xf32>
    %cst_158 = arith.constant dense<0xFF800000> : vector<2x8xf32>
    %384 = vector.multi_reduction <maximumf>, %383, %cst_158 [2] : vector<2x8x8xf32> to vector<2x8xf32>
    %385 = vector.shape_cast %384 : vector<2x8xf32> to vector<2x8x1xf32>
    %386 = vector.broadcast %385 : vector<2x8x1xf32> to vector<2x8x8xf32>
    %387 = arith.subf %383, %386 : vector<2x8x8xf32>
    %388 = math.exp %387 : vector<2x8x8xf32>
    %cst_159 = arith.constant dense<0.000000e+00> : vector<2x8xf32>
    %389 = vector.multi_reduction <add>, %388, %cst_159 [2] : vector<2x8x8xf32> to vector<2x8xf32>
    %390 = vector.shape_cast %389 : vector<2x8xf32> to vector<2x8x1xf32>
    %391 = vector.broadcast %390 : vector<2x8x1xf32> to vector<2x8x8xf32>
    %392 = arith.divf %388, %391 : vector<2x8x8xf32>
    "tpu.trace_start"() <{level = 10 : i32, message = "bts,bsd->btd"}> : () -> ()
    %cst_160 = arith.constant dense<0.000000e+00> : vector<2x8x8xf32>
    %393 = tpu.matmul %392, %376, %cst_160 {dimension_numbers = #tpu.dot_dimension_numbers<[2], [1], [1], [2], [0, 0, 0, 1, 1, 2], [0], [0]>} : vector<2x8x8xf32>, vector<2x8x8xf32>, vector<2x8x8xf32> -> vector<2x8x8xf32>
    "tpu.trace_stop"() : () -> ()
    %394 = tpu.concatenate %333, %353, %373, %393 in 2 : vector<2x8x8xf32>, vector<2x8x8xf32>, vector<2x8x8xf32>, vector<2x8x8xf32> -> vector<2x8x32xf32>
    %395 = vector.shape_cast %394 : vector<2x8x32xf32> to vector<16x32xf32>
    %cst_161 = arith.constant dense<0.000000e+00> : vector<16x32xf32>
    %396 = tpu.matmul %395, %4, %cst_161 {dimension_numbers = #tpu.dot_dimension_numbers<[1], [0], [0], [1], [0, 0, 1, 1], [], []>} : vector<16x32xf32>, vector<32x32xf32>, vector<16x32xf32> -> vector<16x32xf32>
    %397 = vector.broadcast %5 : vector<1x32xf32> to vector<16x32xf32>
    %398 = arith.addf %396, %397 : vector<16x32xf32>
    %399 = arith.addf %284, %398 : vector<16x32xf32>
    %cst_162 = arith.constant dense<0.000000e+00> : vector<16xf32>
    %400 = vector.multi_reduction <add>, %399, %cst_162 [1] : vector<16x32xf32> to vector<16xf32>
    %401 = vector.shape_cast %400 : vector<16xf32> to vector<16x1xf32>
    %cst_163 = arith.constant 3.200000e+01 : f32
    %402 = vector.broadcast %cst_163 : f32 to vector<16x1xf32>
    %403 = arith.divf %401, %402 : vector<16x1xf32>
    %404 = vector.broadcast %403 : vector<16x1xf32> to vector<16x32xf32>
    %405 = arith.subf %399, %404 : vector<16x32xf32>
    %406 = arith.mulf %405, %405 : vector<16x32xf32>
    %cst_164 = arith.constant dense<0.000000e+00> : vector<16xf32>
    %407 = vector.multi_reduction <add>, %406, %cst_164 [1] : vector<16x32xf32> to vector<16xf32>
    %408 = vector.shape_cast %407 : vector<16xf32> to vector<16x1xf32>
    %cst_165 = arith.constant 3.100000e+01 : f32
    %409 = vector.broadcast %cst_165 : f32 to vector<16x1xf32>
    %410 = arith.divf %408, %409 : vector<16x1xf32>
    %411 = math.sqrt %410 : vector<16x1xf32>
    %412 = vector.broadcast %16 : vector<1x32xf32> to vector<16x32xf32>
    %413 = arith.mulf %412, %405 : vector<16x32xf32>
    %cst_166 = arith.constant 9.99999997E-7 : f32
    %414 = vector.broadcast %cst_166 : f32 to vector<16x1xf32>
    %415 = arith.addf %411, %414 : vector<16x1xf32>
    %416 = vector.broadcast %415 : vector<16x1xf32> to vector<16x32xf32>
    %417 = arith.divf %413, %416 : vector<16x32xf32>
    %418 = vector.broadcast %17 : vector<1x32xf32> to vector<16x32xf32>
    %419 = arith.addf %417, %418 : vector<16x32xf32>
    %cst_167 = arith.constant dense<0.000000e+00> : vector<16x32xf32>
    %420 = tpu.matmul %419, %6, %cst_167 {dimension_numbers = #tpu.dot_dimension_numbers<[1], [0], [0], [1], [0, 0, 1, 1], [], []>} : vector<16x32xf32>, vector<32x32xf32>, vector<16x32xf32> -> vector<16x32xf32>
    %421 = vector.broadcast %7 : vector<1x32xf32> to vector<16x32xf32>
    %422 = arith.addf %420, %421 : vector<16x32xf32>
    %423 = vector.shape_cast %422 : vector<16x32xf32> to vector<2x8x32xf32>
    %424 = vector.shape_cast %26 : vector<16x32xf32> to vector<2x8x32xf32>
    %425 = vector.shape_cast %27 : vector<16x32xf32> to vector<2x8x32xf32>
    %426 = vector.extract_strided_slice %423 {offsets = [0, 0, 0], sizes = [2, 8, 8], strides = [1, 1, 1]} : vector<2x8x32xf32> to vector<2x8x8xf32>
    %427 = vector.extract_strided_slice %424 {offsets = [0, 0, 0], sizes = [2, 8, 8], strides = [1, 1, 1]} : vector<2x8x32xf32> to vector<2x8x8xf32>
    %428 = vector.extract_strided_slice %425 {offsets = [0, 0, 0], sizes = [2, 8, 8], strides = [1, 1, 1]} : vector<2x8x32xf32> to vector<2x8x8xf32>
    "tpu.trace_start"() <{level = 10 : i32, message = "btd,bsd->bts"}> : () -> ()
    %cst_168 = arith.constant dense<0.000000e+00> : vector<2x8x8xf32>
    %429 = tpu.matmul %426, %427, %cst_168 {dimension_numbers = #tpu.dot_dimension_numbers<[2], [2], [1], [1], [0, 0, 0, 1, 1, 1], [0], [0]>} : vector<2x8x8xf32>, vector<2x8x8xf32>, vector<2x8x8xf32> -> vector<2x8x8xf32>
    "tpu.trace_stop"() : () -> ()
    %cst_169 = arith.constant 0.353553385 : f32
    %430 = vector.broadcast %cst_169 : f32 to vector<2x8x8xf32>
    %431 = arith.mulf %429, %430 : vector<2x8x8xf32>
    %cst_170 = arith.constant 0.000000e+00 : f32
    %432 = vector.broadcast %cst_170 : f32 to vector<2x8x8xf32>
    %433 = arith.cmpf oeq, %1, %432 : vector<2x8x8xf32>
    %cst_171 = arith.constant -1.000000e+09 : f32
    %434 = vector.broadcast %cst_171 : f32 to vector<2x8x8xf32>
    %435 = arith.select %433, %434, %431 : vector<2x8x8xi1>, vector<2x8x8xf32>
    %cst_172 = arith.constant dense<0xFF800000> : vector<2x8xf32>
    %436 = vector.multi_reduction <maximumf>, %435, %cst_172 [2] : vector<2x8x8xf32> to vector<2x8xf32>
    %437 = vector.shape_cast %436 : vector<2x8xf32> to vector<2x8x1xf32>
    %438 = vector.broadcast %437 : vector<2x8x1xf32> to vector<2x8x8xf32>
    %439 = arith.subf %435, %438 : vector<2x8x8xf32>
    %440 = math.exp %439 : vector<2x8x8xf32>
    %cst_173 = arith.constant dense<0.000000e+00> : vector<2x8xf32>
    %441 = vector.multi_reduction <add>, %440, %cst_173 [2] : vector<2x8x8xf32> to vector<2x8xf32>
    %442 = vector.shape_cast %441 : vector<2x8xf32> to vector<2x8x1xf32>
    %443 = vector.broadcast %442 : vector<2x8x1xf32> to vector<2x8x8xf32>
    %444 = arith.divf %440, %443 : vector<2x8x8xf32>
    "tpu.trace_start"() <{level = 10 : i32, message = "bts,bsd->btd"}> : () -> ()
    %cst_174 = arith.constant dense<0.000000e+00> : vector<2x8x8xf32>
    %445 = tpu.matmul %444, %428, %cst_174 {dimension_numbers = #tpu.dot_dimension_numbers<[2], [1], [1], [2], [0, 0, 0, 1, 1, 2], [0], [0]>} : vector<2x8x8xf32>, vector<2x8x8xf32>, vector<2x8x8xf32> -> vector<2x8x8xf32>
    "tpu.trace_stop"() : () -> ()
    %446 = vector.extract_strided_slice %423 {offsets = [0, 0, 8], sizes = [2, 8, 8], strides = [1, 1, 1]} : vector<2x8x32xf32> to vector<2x8x8xf32>
    %447 = vector.extract_strided_slice %424 {offsets = [0, 0, 8], sizes = [2, 8, 8], strides = [1, 1, 1]} : vector<2x8x32xf32> to vector<2x8x8xf32>
    %448 = vector.extract_strided_slice %425 {offsets = [0, 0, 8], sizes = [2, 8, 8], strides = [1, 1, 1]} : vector<2x8x32xf32> to vector<2x8x8xf32>
    "tpu.trace_start"() <{level = 10 : i32, message = "btd,bsd->bts"}> : () -> ()
    %cst_175 = arith.constant dense<0.000000e+00> : vector<2x8x8xf32>
    %449 = tpu.matmul %446, %447, %cst_175 {dimension_numbers = #tpu.dot_dimension_numbers<[2], [2], [1], [1], [0, 0, 0, 1, 1, 1], [0], [0]>} : vector<2x8x8xf32>, vector<2x8x8xf32>, vector<2x8x8xf32> -> vector<2x8x8xf32>
    "tpu.trace_stop"() : () -> ()
    %cst_176 = arith.constant 0.353553385 : f32
    %450 = vector.broadcast %cst_176 : f32 to vector<2x8x8xf32>
    %451 = arith.mulf %449, %450 : vector<2x8x8xf32>
    %cst_177 = arith.constant 0.000000e+00 : f32
    %452 = vector.broadcast %cst_177 : f32 to vector<2x8x8xf32>
    %453 = arith.cmpf oeq, %1, %452 : vector<2x8x8xf32>
    %cst_178 = arith.constant -1.000000e+09 : f32
    %454 = vector.broadcast %cst_178 : f32 to vector<2x8x8xf32>
    %455 = arith.select %453, %454, %451 : vector<2x8x8xi1>, vector<2x8x8xf32>
    %cst_179 = arith.constant dense<0xFF800000> : vector<2x8xf32>
    %456 = vector.multi_reduction <maximumf>, %455, %cst_179 [2] : vector<2x8x8xf32> to vector<2x8xf32>
    %457 = vector.shape_cast %456 : vector<2x8xf32> to vector<2x8x1xf32>
    %458 = vector.broadcast %457 : vector<2x8x1xf32> to vector<2x8x8xf32>
    %459 = arith.subf %455, %458 : vector<2x8x8xf32>
    %460 = math.exp %459 : vector<2x8x8xf32>
    %cst_180 = arith.constant dense<0.000000e+00> : vector<2x8xf32>
    %461 = vector.multi_reduction <add>, %460, %cst_180 [2] : vector<2x8x8xf32> to vector<2x8xf32>
    %462 = vector.shape_cast %461 : vector<2x8xf32> to vector<2x8x1xf32>
    %463 = vector.broadcast %462 : vector<2x8x1xf32> to vector<2x8x8xf32>
    %464 = arith.divf %460, %463 : vector<2x8x8xf32>
    "tpu.trace_start"() <{level = 10 : i32, message = "bts,bsd->btd"}> : () -> ()
    %cst_181 = arith.constant dense<0.000000e+00> : vector<2x8x8xf32>
    %465 = tpu.matmul %464, %448, %cst_181 {dimension_numbers = #tpu.dot_dimension_numbers<[2], [1], [1], [2], [0, 0, 0, 1, 1, 2], [0], [0]>} : vector<2x8x8xf32>, vector<2x8x8xf32>, vector<2x8x8xf32> -> vector<2x8x8xf32>
    "tpu.trace_stop"() : () -> ()
    %466 = vector.extract_strided_slice %423 {offsets = [0, 0, 16], sizes = [2, 8, 8], strides = [1, 1, 1]} : vector<2x8x32xf32> to vector<2x8x8xf32>
    %467 = vector.extract_strided_slice %424 {offsets = [0, 0, 16], sizes = [2, 8, 8], strides = [1, 1, 1]} : vector<2x8x32xf32> to vector<2x8x8xf32>
    %468 = vector.extract_strided_slice %425 {offsets = [0, 0, 16], sizes = [2, 8, 8], strides = [1, 1, 1]} : vector<2x8x32xf32> to vector<2x8x8xf32>
    "tpu.trace_start"() <{level = 10 : i32, message = "btd,bsd->bts"}> : () -> ()
    %cst_182 = arith.constant dense<0.000000e+00> : vector<2x8x8xf32>
    %469 = tpu.matmul %466, %467, %cst_182 {dimension_numbers = #tpu.dot_dimension_numbers<[2], [2], [1], [1], [0, 0, 0, 1, 1, 1], [0], [0]>} : vector<2x8x8xf32>, vector<2x8x8xf32>, vector<2x8x8xf32> -> vector<2x8x8xf32>
    "tpu.trace_stop"() : () -> ()
    %cst_183 = arith.constant 0.353553385 : f32
    %470 = vector.broadcast %cst_183 : f32 to vector<2x8x8xf32>
    %471 = arith.mulf %469, %470 : vector<2x8x8xf32>
    %cst_184 = arith.constant 0.000000e+00 : f32
    %472 = vector.broadcast %cst_184 : f32 to vector<2x8x8xf32>
    %473 = arith.cmpf oeq, %1, %472 : vector<2x8x8xf32>
    %cst_185 = arith.constant -1.000000e+09 : f32
    %474 = vector.broadcast %cst_185 : f32 to vector<2x8x8xf32>
    %475 = arith.select %473, %474, %471 : vector<2x8x8xi1>, vector<2x8x8xf32>
    %cst_186 = arith.constant dense<0xFF800000> : vector<2x8xf32>
    %476 = vector.multi_reduction <maximumf>, %475, %cst_186 [2] : vector<2x8x8xf32> to vector<2x8xf32>
    %477 = vector.shape_cast %476 : vector<2x8xf32> to vector<2x8x1xf32>
    %478 = vector.broadcast %477 : vector<2x8x1xf32> to vector<2x8x8xf32>
    %479 = arith.subf %475, %478 : vector<2x8x8xf32>
    %480 = math.exp %479 : vector<2x8x8xf32>
    %cst_187 = arith.constant dense<0.000000e+00> : vector<2x8xf32>
    %481 = vector.multi_reduction <add>, %480, %cst_187 [2] : vector<2x8x8xf32> to vector<2x8xf32>
    %482 = vector.shape_cast %481 : vector<2x8xf32> to vector<2x8x1xf32>
    %483 = vector.broadcast %482 : vector<2x8x1xf32> to vector<2x8x8xf32>
    %484 = arith.divf %480, %483 : vector<2x8x8xf32>
    "tpu.trace_start"() <{level = 10 : i32, message = "bts,bsd->btd"}> : () -> ()
    %cst_188 = arith.constant dense<0.000000e+00> : vector<2x8x8xf32>
    %485 = tpu.matmul %484, %468, %cst_188 {dimension_numbers = #tpu.dot_dimension_numbers<[2], [1], [1], [2], [0, 0, 0, 1, 1, 2], [0], [0]>} : vector<2x8x8xf32>, vector<2x8x8xf32>, vector<2x8x8xf32> -> vector<2x8x8xf32>
    "tpu.trace_stop"() : () -> ()
    %486 = vector.extract_strided_slice %423 {offsets = [0, 0, 24], sizes = [2, 8, 8], strides = [1, 1, 1]} : vector<2x8x32xf32> to vector<2x8x8xf32>
    %487 = vector.extract_strided_slice %424 {offsets = [0, 0, 24], sizes = [2, 8, 8], strides = [1, 1, 1]} : vector<2x8x32xf32> to vector<2x8x8xf32>
    %488 = vector.extract_strided_slice %425 {offsets = [0, 0, 24], sizes = [2, 8, 8], strides = [1, 1, 1]} : vector<2x8x32xf32> to vector<2x8x8xf32>
    "tpu.trace_start"() <{level = 10 : i32, message = "btd,bsd->bts"}> : () -> ()
    %cst_189 = arith.constant dense<0.000000e+00> : vector<2x8x8xf32>
    %489 = tpu.matmul %486, %487, %cst_189 {dimension_numbers = #tpu.dot_dimension_numbers<[2], [2], [1], [1], [0, 0, 0, 1, 1, 1], [0], [0]>} : vector<2x8x8xf32>, vector<2x8x8xf32>, vector<2x8x8xf32> -> vector<2x8x8xf32>
    "tpu.trace_stop"() : () -> ()
    %cst_190 = arith.constant 0.353553385 : f32
    %490 = vector.broadcast %cst_190 : f32 to vector<2x8x8xf32>
    %491 = arith.mulf %489, %490 : vector<2x8x8xf32>
    %cst_191 = arith.constant 0.000000e+00 : f32
    %492 = vector.broadcast %cst_191 : f32 to vector<2x8x8xf32>
    %493 = arith.cmpf oeq, %1, %492 : vector<2x8x8xf32>
    %cst_192 = arith.constant -1.000000e+09 : f32
    %494 = vector.broadcast %cst_192 : f32 to vector<2x8x8xf32>
    %495 = arith.select %493, %494, %491 : vector<2x8x8xi1>, vector<2x8x8xf32>
    %cst_193 = arith.constant dense<0xFF800000> : vector<2x8xf32>
    %496 = vector.multi_reduction <maximumf>, %495, %cst_193 [2] : vector<2x8x8xf32> to vector<2x8xf32>
    %497 = vector.shape_cast %496 : vector<2x8xf32> to vector<2x8x1xf32>
    %498 = vector.broadcast %497 : vector<2x8x1xf32> to vector<2x8x8xf32>
    %499 = arith.subf %495, %498 : vector<2x8x8xf32>
    %500 = math.exp %499 : vector<2x8x8xf32>
    %cst_194 = arith.constant dense<0.000000e+00> : vector<2x8xf32>
    %501 = vector.multi_reduction <add>, %500, %cst_194 [2] : vector<2x8x8xf32> to vector<2x8xf32>
    %502 = vector.shape_cast %501 : vector<2x8xf32> to vector<2x8x1xf32>
    %503 = vector.broadcast %502 : vector<2x8x1xf32> to vector<2x8x8xf32>
    %504 = arith.divf %500, %503 : vector<2x8x8xf32>
    "tpu.trace_start"() <{level = 10 : i32, message = "bts,bsd->btd"}> : () -> ()
    %cst_195 = arith.constant dense<0.000000e+00> : vector<2x8x8xf32>
    %505 = tpu.matmul %504, %488, %cst_195 {dimension_numbers = #tpu.dot_dimension_numbers<[2], [1], [1], [2], [0, 0, 0, 1, 1, 2], [0], [0]>} : vector<2x8x8xf32>, vector<2x8x8xf32>, vector<2x8x8xf32> -> vector<2x8x8xf32>
    "tpu.trace_stop"() : () -> ()
    %506 = tpu.concatenate %445, %465, %485, %505 in 2 : vector<2x8x8xf32>, vector<2x8x8xf32>, vector<2x8x8xf32>, vector<2x8x8xf32> -> vector<2x8x32xf32>
    %507 = vector.shape_cast %506 : vector<2x8x32xf32> to vector<16x32xf32>
    %cst_196 = arith.constant dense<0.000000e+00> : vector<16x32xf32>
    %508 = tpu.matmul %507, %8, %cst_196 {dimension_numbers = #tpu.dot_dimension_numbers<[1], [0], [0], [1], [0, 0, 1, 1], [], []>} : vector<16x32xf32>, vector<32x32xf32>, vector<16x32xf32> -> vector<16x32xf32>
    %509 = vector.broadcast %9 : vector<1x32xf32> to vector<16x32xf32>
    %510 = arith.addf %508, %509 : vector<16x32xf32>
    %511 = arith.addf %399, %510 : vector<16x32xf32>
    %cst_197 = arith.constant dense<0.000000e+00> : vector<16xf32>
    %512 = vector.multi_reduction <add>, %511, %cst_197 [1] : vector<16x32xf32> to vector<16xf32>
    %513 = vector.shape_cast %512 : vector<16xf32> to vector<16x1xf32>
    %cst_198 = arith.constant 3.200000e+01 : f32
    %514 = vector.broadcast %cst_198 : f32 to vector<16x1xf32>
    %515 = arith.divf %513, %514 : vector<16x1xf32>
    %516 = vector.broadcast %515 : vector<16x1xf32> to vector<16x32xf32>
    %517 = arith.subf %511, %516 : vector<16x32xf32>
    %518 = arith.mulf %517, %517 : vector<16x32xf32>
    %cst_199 = arith.constant dense<0.000000e+00> : vector<16xf32>
    %519 = vector.multi_reduction <add>, %518, %cst_199 [1] : vector<16x32xf32> to vector<16xf32>
    %520 = vector.shape_cast %519 : vector<16xf32> to vector<16x1xf32>
    %cst_200 = arith.constant 3.100000e+01 : f32
    %521 = vector.broadcast %cst_200 : f32 to vector<16x1xf32>
    %522 = arith.divf %520, %521 : vector<16x1xf32>
    %523 = math.sqrt %522 : vector<16x1xf32>
    %524 = vector.broadcast %18 : vector<1x32xf32> to vector<16x32xf32>
    %525 = arith.mulf %524, %517 : vector<16x32xf32>
    %cst_201 = arith.constant 9.99999997E-7 : f32
    %526 = vector.broadcast %cst_201 : f32 to vector<16x1xf32>
    %527 = arith.addf %523, %526 : vector<16x1xf32>
    %528 = vector.broadcast %527 : vector<16x1xf32> to vector<16x32xf32>
    %529 = arith.divf %525, %528 : vector<16x32xf32>
    %530 = vector.broadcast %19 : vector<1x32xf32> to vector<16x32xf32>
    %531 = arith.addf %529, %530 : vector<16x32xf32>
    %cst_202 = arith.constant dense<0.000000e+00> : vector<16x64xf32>
    %532 = tpu.matmul %531, %10, %cst_202 {dimension_numbers = #tpu.dot_dimension_numbers<[1], [0], [0], [1], [0, 0, 1, 1], [], []>} : vector<16x32xf32>, vector<32x64xf32>, vector<16x64xf32> -> vector<16x64xf32>
    %533 = vector.broadcast %11 : vector<1x64xf32> to vector<16x64xf32>
    %534 = arith.addf %532, %533 : vector<16x64xf32>
    %cst_203 = arith.constant 0.000000e+00 : f32
    %535 = vector.broadcast %cst_203 : f32 to vector<16x64xf32>
    %536 = arith.maximumf %534, %535 : vector<16x64xf32>
    %cst_204 = arith.constant dense<0.000000e+00> : vector<16x32xf32>
    %537 = tpu.matmul %536, %12, %cst_204 {dimension_numbers = #tpu.dot_dimension_numbers<[1], [0], [0], [1], [0, 0, 1, 1], [], []>} : vector<16x64xf32>, vector<64x32xf32>, vector<16x32xf32> -> vector<16x32xf32>
    %538 = arith.addf %511, %537 : vector<16x32xf32>
    %539 = vector.broadcast %13 : vector<1x32xf32> to vector<16x32xf32>
    %540 = arith.addf %538, %539 : vector<16x32xf32>
    %c0_205 = arith.constant 0 : index
    %c0_206 = arith.constant 0 : index
    %541 = vector.load %arg25[%c0_205, %c0_206] : memref<1x32xf32, #tpu.memory_space<vmem>>, vector<1x32xf32>
    %c0_207 = arith.constant 0 : index
    %c0_208 = arith.constant 0 : index
    %542 = vector.load %arg26[%c0_207, %c0_208] : memref<1x32xf32, #tpu.memory_space<vmem>>, vector<1x32xf32>
    %cst_209 = arith.constant dense<0.000000e+00> : vector<16xf32>
    %543 = vector.multi_reduction <add>, %540, %cst_209 [1] : vector<16x32xf32> to vector<16xf32>
    %544 = vector.shape_cast %543 : vector<16xf32> to vector<16x1xf32>
    %cst_210 = arith.constant 3.200000e+01 : f32
    %545 = vector.broadcast %cst_210 : f32 to vector<16x1xf32>
    %546 = arith.divf %544, %545 : vector<16x1xf32>
    %547 = vector.broadcast %546 : vector<16x1xf32> to vector<16x32xf32>
    %548 = arith.subf %540, %547 : vector<16x32xf32>
    %549 = arith.mulf %548, %548 : vector<16x32xf32>
    %cst_211 = arith.constant dense<0.000000e+00> : vector<16xf32>
    %550 = vector.multi_reduction <add>, %549, %cst_211 [1] : vector<16x32xf32> to vector<16xf32>
    %551 = vector.shape_cast %550 : vector<16xf32> to vector<16x1xf32>
    %cst_212 = arith.constant 3.100000e+01 : f32
    %552 = vector.broadcast %cst_212 : f32 to vector<16x1xf32>
    %553 = arith.divf %551, %552 : vector<16x1xf32>
    %554 = math.sqrt %553 : vector<16x1xf32>
    %555 = vector.broadcast %541 : vector<1x32xf32> to vector<16x32xf32>
    %556 = arith.mulf %555, %548 : vector<16x32xf32>
    %cst_213 = arith.constant 9.99999997E-7 : f32
    %557 = vector.broadcast %cst_213 : f32 to vector<16x1xf32>
    %558 = arith.addf %554, %557 : vector<16x1xf32>
    %559 = vector.broadcast %558 : vector<16x1xf32> to vector<16x32xf32>
    %560 = arith.divf %556, %559 : vector<16x32xf32>
    %561 = vector.broadcast %542 : vector<1x32xf32> to vector<16x32xf32>
    %562 = arith.addf %560, %561 : vector<16x32xf32>
    %c0_214 = arith.constant 0 : index
    %c0_215 = arith.constant 0 : index
    %563 = vector.load %arg27[%c0_214, %c0_215] : memref<16x32xf32, #tpu.memory_space<vmem>>, vector<16x32xf32>
    tpu.vector_store %arg27[%c0_214, %c0_215], %562 {strides = array<i32>} : memref<16x32xf32, #tpu.memory_space<vmem>>, vector<16x32xf32>,
    return
  }
  func.func @transform_0(%arg0: i32) -> (i32, i32) {
    %c0_i32 = arith.constant 0 : i32
    %c0_i32_0 = arith.constant 0 : i32
    %c0_i32_1 = arith.constant 0 : i32
    return %c0_i32, %c0_i32_0 : i32, i32
  }
  func.func @transform_1(%arg0: i32) -> (i32, i32) {
    %c0_i32 = arith.constant 0 : i32
    %c0_i32_0 = arith.constant 0 : i32
    %c0_i32_1 = arith.constant 0 : i32
    return %c0_i32, %c0_i32_0 : i32, i32
  }
  func.func @transform_2(%arg0: i32) -> (i32, i32, i32) {
    %c0_i32 = arith.constant 0 : i32
    %c0_i32_0 = arith.constant 0 : i32
    %c0_i32_1 = arith.constant 0 : i32
    %c0_i32_2 = arith.constant 0 : i32
    return %c0_i32, %c0_i32_0, %c0_i32_1 : i32, i32, i32
  }
  func.func @transform_3(%arg0: i32) -> (i32, i32, i32) {
    %c0_i32 = arith.constant 0 : i32
    %c0_i32_0 = arith.constant 0 : i32
    %c0_i32_1 = arith.constant 0 : i32
    %c0_i32_2 = arith.constant 0 : i32
    return %c0_i32, %c0_i32_0, %c0_i32_1 : i32, i32, i32
  }
  func.func @transform_4(%arg0: i32) -> (i32, i32) {
    %c0_i32 = arith.constant 0 : i32
    %c0_i32_0 = arith.constant 0 : i32
    %c0_i32_1 = arith.constant 0 : i32
    return %c0_i32, %c0_i32_0 : i32, i32
  }
  func.func @transform_5(%arg0: i32) -> (i32, i32) {
    %c0_i32 = arith.constant 0 : i32
    %c0_i32_0 = arith.constant 0 : i32
    %c0_i32_1 = arith.constant 0 : i32
    return %c0_i32, %c0_i32_0 : i32, i32
  }
  func.func @transform_6(%arg0: i32) -> (i32, i32) {
    %c0_i32 = arith.constant 0 : i32
    %c0_i32_0 = arith.constant 0 : i32
    %c0_i32_1 = arith.constant 0 : i32
    return %c0_i32, %c0_i32_0 : i32, i32
  }
  func.func @transform_7(%arg0: i32) -> (i32, i32) {
    %c0_i32 = arith.constant 0 : i32
    %c0_i32_0 = arith.constant 0 : i32
    %c0_i32_1 = arith.constant 0 : i32
    return %c0_i32, %c0_i32_0 : i32, i32
  }
  func.func @transform_8(%arg0: i32) -> (i32, i32) {
    %c0_i32 = arith.constant 0 : i32
    %c0_i32_0 = arith.constant 0 : i32
    %c0_i32_1 = arith.constant 0 : i32
    return %c0_i32, %c0_i32_0 : i32, i32
  }
  func.func @transform_9(%arg0: i32) -> (i32, i32) {
    %c0_i32 = arith.constant 0 : i32
    %c0_i32_0 = arith.constant 0 : i32
    %c0_i32_1 = arith.constant 0 : i32
    return %c0_i32, %c0_i32_0 : i32, i32
  }
  func.func @transform_10(%arg0: i32) -> (i32, i32) {
    %c0_i32 = arith.constant 0 : i32
    %c0_i32_0 = arith.constant 0 : i32
    %c0_i32_1 = arith.constant 0 : i32
    return %c0_i32, %c0_i32_0 : i32, i32
  }
  func.func @transform_11(%arg0: i32) -> (i32, i32) {
    %c0_i32 = arith.constant 0 : i32
    %c0_i32_0 = arith.constant 0 : i32
    %c0_i32_1 = arith.constant 0 : i32
    return %c0_i32, %c0_i32_0 : i32, i32
  }
  func.func @transform_12(%arg0: i32) -> (i32, i32) {
    %c0_i32 = arith.constant 0 : i32
    %c0_i32_0 = arith.constant 0 : i32
    %c0_i32_1 = arith.constant 0 : i32
    return %c0_i32, %c0_i32_0 : i32, i32
  }
  func.func @transform_13(%arg0: i32) -> (i32, i32) {
    %c0_i32 = arith.constant 0 : i32
    %c0_i32_0 = arith.constant 0 : i32
    %c0_i32_1 = arith.constant 0 : i32
    return %c0_i32, %c0_i32_0 : i32, i32
  }
  func.func @transform_14(%arg0: i32) -> (i32, i32) {
    %c0_i32 = arith.constant 0 : i32
    %c0_i32_0 = arith.constant 0 : i32
    %c0_i32_1 = arith.constant 0 : i32
    return %c0_i32, %c0_i32_0 : i32, i32
  }
  func.func @transform_15(%arg0: i32) -> (i32, i32) {
    %c0_i32 = arith.constant 0 : i32
    %c0_i32_0 = arith.constant 0 : i32
    %c0_i32_1 = arith.constant 0 : i32
    return %c0_i32, %c0_i32_0 : i32, i32
  }
  func.func @transform_16(%arg0: i32) -> (i32, i32) {
    %c0_i32 = arith.constant 0 : i32
    %c0_i32_0 = arith.constant 0 : i32
    %c0_i32_1 = arith.constant 0 : i32
    return %c0_i32, %c0_i32_0 : i32, i32
  }
  func.func @transform_17(%arg0: i32) -> (i32, i32) {
    %c0_i32 = arith.constant 0 : i32
    %c0_i32_0 = arith.constant 0 : i32
    %c0_i32_1 = arith.constant 0 : i32
    return %c0_i32, %c0_i32_0 : i32, i32
  }
  func.func @transform_18(%arg0: i32) -> (i32, i32) {
    %c0_i32 = arith.constant 0 : i32
    %c0_i32_0 = arith.constant 0 : i32
    %c0_i32_1 = arith.constant 0 : i32
    return %c0_i32, %c0_i32_0 : i32, i32
  }
  func.func @transform_19(%arg0: i32) -> (i32, i32) {
    %c0_i32 = arith.constant 0 : i32
    %c0_i32_0 = arith.constant 0 : i32
    %c0_i32_1 = arith.constant 0 : i32
    return %c0_i32, %c0_i32_0 : i32, i32
  }
  func.func @transform_20(%arg0: i32) -> (i32, i32) {
    %c0_i32 = arith.constant 0 : i32
    %c0_i32_0 = arith.constant 0 : i32
    %c0_i32_1 = arith.constant 0 : i32
    return %c0_i32, %c0_i32_0 : i32, i32
  }
  func.func @transform_21(%arg0: i32) -> (i32, i32) {
    %c0_i32 = arith.constant 0 : i32
    %c0_i32_0 = arith.constant 0 : i32
    %c0_i32_1 = arith.constant 0 : i32
    return %c0_i32, %c0_i32_0 : i32, i32
  }
  func.func @transform_22(%arg0: i32) -> (i32, i32) {
    %c0_i32 = arith.constant 0 : i32
    %c0_i32_0 = arith.constant 0 : i32
    %c0_i32_1 = arith.constant 0 : i32
    return %c0_i32, %c0_i32_0 : i32, i32
  }
  func.func @transform_23(%arg0: i32) -> (i32, i32) {
    %c0_i32 = arith.constant 0 : i32
    %c0_i32_0 = arith.constant 0 : i32
    %c0_i32_1 = arith.constant 0 : i32
    return %c0_i32, %c0_i32_0 : i32, i32
  }
  func.func @transform_24(%arg0: i32) -> (i32, i32) {
    %c0_i32 = arith.constant 0 : i32
    %c0_i32_0 = arith.constant 0 : i32
    %c0_i32_1 = arith.constant 0 : i32
    return %c0_i32, %c0_i32_0 : i32, i32
  }
  func.func @transform_25(%arg0: i32) -> (i32, i32) {
    %c0_i32 = arith.constant 0 : i32
    %c0_i32_0 = arith.constant 0 : i32
    %c0_i32_1 = arith.constant 0 : i32
    return %c0_i32, %c0_i32_0 : i32, i32
  }
  func.func @transform_26(%arg0: i32) -> (i32, i32) {
    %c0_i32 = arith.constant 0 : i32
    %c0_i32_0 = arith.constant 0 : i32
    %c0_i32_1 = arith.constant 0 : i32
    return %c0_i32, %c0_i32_0 : i32, i32
  }
}

</mosaic_0001>

<llo_original>
// kernel: decoder_forward.1
$region0: #{decoder_forward.1}
  #allocation0 [shape = 'u32[]', space=smem, size = 0x4, offset = 0x4, fixed_abs, tag = 'smem constant byte address 0x4 - core index']
  #allocation1 [shape = 'u32[144,128]{1,0:T(1,128)}', space=vmem, size = 0x12000, scoped, tag = 'internal scratch']
  %s0 = inlined_call_operand.vmem [shape: f32[16,32], index: 0, kind: input, shape index: {}]
  %s1 = inlined_call_operand.vmem [shape: f32[16,32], index: 1, kind: input, shape index: {}]
  %s2 = inlined_call_operand.vmem [shape: f32[2,8,8], index: 2, kind: input, shape index: {}]
  %s3 = inlined_call_operand.vmem [shape: f32[2,8,8], index: 3, kind: input, shape index: {}]
  %s4 = inlined_call_operand.vmem [shape: f32[32,96], index: 4, kind: input, shape index: {}]
  %s5 = inlined_call_operand.vmem [shape: f32[1,96], index: 5, kind: input, shape index: {}]
  %s6 = inlined_call_operand.vmem [shape: f32[32,32], index: 6, kind: input, shape index: {}]
  %s7 = inlined_call_operand.vmem [shape: f32[1,32], index: 7, kind: input, shape index: {}]
  %s8 = inlined_call_operand.vmem [shape: f32[32,32], index: 8, kind: input, shape index: {}]
  %s9 = inlined_call_operand.vmem [shape: f32[1,32], index: 9, kind: input, shape index: {}]
  %s10 = inlined_call_operand.vmem [shape: f32[32,64], index: 10, kind: input, shape index: {}]
  %s11 = inlined_call_operand.vmem [shape: f32[1,64], index: 11, kind: input, shape index: {}]
  %s12 = inlined_call_operand.vmem [shape: f32[32,32], index: 12, kind: input, shape index: {}]
  %s13 = inlined_call_operand.vmem [shape: f32[1,32], index: 13, kind: input, shape index: {}]
  %s14 = inlined_call_operand.vmem [shape: f32[32,64], index: 14, kind: input, shape index: {}]
  %s15 = inlined_call_operand.vmem [shape: f32[1,64], index: 15, kind: input, shape index: {}]
  %s16 = inlined_call_operand.vmem [shape: f32[64,32], index: 16, kind: input, shape index: {}]
  %s17 = inlined_call_operand.vmem [shape: f32[1,32], index: 17, kind: input, shape index: {}]
  %s18 = inlined_call_operand.vmem [shape: f32[1,32], index: 18, kind: input, shape index: {}]
  %s19 = inlined_call_operand.vmem [shape: f32[1,32], index: 19, kind: input, shape index: {}]
  %s20 = inlined_call_operand.vmem [shape: f32[1,32], index: 20, kind: input, shape index: {}]
  %s21 = inlined_call_operand.vmem [shape: f32[1,32], index: 21, kind: input, shape index: {}]
  %s22 = inlined_call_operand.vmem [shape: f32[1,32], index: 22, kind: input, shape index: {}]
  %s23 = inlined_call_operand.vmem [shape: f32[1,32], index: 23, kind: input, shape index: {}]
  %s24 = inlined_call_operand.vmem [shape: f32[1,32], index: 24, kind: input, shape index: {}]
  %s25 = inlined_call_operand.vmem [shape: f32[1,32], index: 25, kind: input, shape index: {}]
  %s26 = inlined_call_operand.hbm [shape: f32[16,32], index: 26, kind: output, shape index: {}]
  %s27 = sld [smem:[#allocation0]]
  $region114: #{decoder_forward.1} parent=0
    _
  %s29 = ssub.s32 1, %s27
  %s30 = scalar_select 0, %s29, %s27
  $region1: #{decoder_forward.1} parent=0
    #allocation2 [shape = 'u8[8192]{0}', space=vmem, size = 0x2000, scoped, tag = 'output window, operand 0, single buffered']
    #allocation3 [shape = 's32[1]{0}', space=sflag, size = 0x4, scoped, tag = 'scoped memory for decoder_forward.1']
    %31 = vsyncpa [#allocation3], 0
    // Predicated region
    $region2: #{decoder_forward.1} parent=1 // pred_check
      _
    $region3: #{decoder_forward.1} parent=1 // pred_check_branch
      %33 = sbr.rel (0) target = $region5
    $region4: #{decoder_forward.1} parent=1 // pred_region
      _
    $region5: #{decoder_forward.1} parent=1 // pred_fallthru
      _
    // Predicated region
    $region6: #{decoder_forward.1} parent=1 // pred_check
      _
    $region7: #{decoder_forward.1} parent=1 // pred_check_branch
      %35 = sbr.rel (0) target = $region9
    $region8: #{decoder_forward.1} parent=1 // pred_region
      _
    $region9: #{decoder_forward.1} parent=1 // pred_fallthru
      _
    // Predicated region
    $region10: #{decoder_forward.1} parent=1 // pred_check
      _
    $region11: #{decoder_forward.1} parent=1 // pred_check_branch
      %37 = sbr.rel (0) target = $region13
    $region12: #{decoder_forward.1} parent=1 // pred_region
      _
    $region13: #{decoder_forward.1} parent=1 // pred_fallthru
      _
    // Predicated region
    $region14: #{decoder_forward.1} parent=1 // pred_check
      _
    $region15: #{decoder_forward.1} parent=1 // pred_check_branch
      %39 = sbr.rel (0) target = $region17
    $region16: #{decoder_forward.1} parent=1 // pred_region
      _
    $region17: #{decoder_forward.1} parent=1 // pred_fallthru
      _
    // Predicated region
    $region18: #{decoder_forward.1} parent=1 // pred_check
      _
    $region19: #{decoder_forward.1} parent=1 // pred_check_branch
      %41 = sbr.rel (0) target = $region21
    $region20: #{decoder_forward.1} parent=1 // pred_region
      _
    $region21: #{decoder_forward.1} parent=1 // pred_fallthru
      _
    // Predicated region
    $region22: #{decoder_forward.1} parent=1 // pred_check
      _
    $region23: #{decoder_forward.1} parent=1 // pred_check_branch
      %43 = sbr.rel (0) target = $region25
    $region24: #{decoder_forward.1} parent=1 // pred_region
      _
    $region25: #{decoder_forward.1} parent=1 // pred_fallthru
      _
    // Predicated region
    $region26: #{decoder_forward.1} parent=1 // pred_check
      _
    $region27: #{decoder_forward.1} parent=1 // pred_check_branch
      %45 = sbr.rel (0) target = $region29
    $region28: #{decoder_forward.1} parent=1 // pred_region
      _
    $region29: #{decoder_forward.1} parent=1 // pred_fallthru
      _
    // Predicated region
    $region30: #{decoder_forward.1} parent=1 // pred_check
      _
    $region31: #{decoder_forward.1} parent=1 // pred_check_branch
      %47 = sbr.rel (0) target = $region33
    $region32: #{decoder_forward.1} parent=1 // pred_region
      _
    $region33: #{decoder_forward.1} parent=1 // pred_fallthru
      _
    // Predicated region
    $region34: #{decoder_forward.1} parent=1 // pred_check
      _
    $region35: #{decoder_forward.1} parent=1 // pred_check_branch
      %49 = sbr.rel (0) target = $region37
    $region36: #{decoder_forward.1} parent=1 // pred_region
      _
    $region37: #{decoder_forward.1} parent=1 // pred_fallthru
      _
    // Predicated region
    $region38: #{decoder_forward.1} parent=1 // pred_check
      _
    $region39: #{decoder_forward.1} parent=1 // pred_check_branch
      %51 = sbr.rel (0) target = $region41
    $region40: #{decoder_forward.1} parent=1 // pred_region
      _
    $region41: #{decoder_forward.1} parent=1 // pred_fallthru
      _
    // Predicated region
    $region42: #{decoder_forward.1} parent=1 // pred_check
      _
    $region43: #{decoder_forward.1} parent=1 // pred_check_branch
      %53 = sbr.rel (0) target = $region45
    $region44: #{decoder_forward.1} parent=1 // pred_region
      _
    $region45: #{decoder_forward.1} parent=1 // pred_fallthru
      _
    // Predicated region
    $region46: #{decoder_forward.1} parent=1 // pred_check
      _
    $region47: #{decoder_forward.1} parent=1 // pred_check_branch
      %55 = sbr.rel (0) target = $region49
    $region48: #{decoder_forward.1} parent=1 // pred_region
      _
    $region49: #{decoder_forward.1} parent=1 // pred_fallthru
      _
    // Predicated region
    $region50: #{decoder_forward.1} parent=1 // pred_check
      _
    $region51: #{decoder_forward.1} parent=1 // pred_check_branch
      %57 = sbr.rel (0) target = $region53
    $region52: #{decoder_forward.1} parent=1 // pred_region
      _
    $region53: #{decoder_forward.1} parent=1 // pred_fallthru
      _
    // Predicated region
    $region54: #{decoder_forward.1} parent=1 // pred_check
      _
    $region55: #{decoder_forward.1} parent=1 // pred_check_branch
      %59 = sbr.rel (0) target = $region57
    $region56: #{decoder_forward.1} parent=1 // pred_region
      _
    $region57: #{decoder_forward.1} parent=1 // pred_fallthru
      _
    // Predicated region
    $region58: #{decoder_forward.1} parent=1 // pred_check
      _
    $region59: #{decoder_forward.1} parent=1 // pred_check_branch
      %61 = sbr.rel (0) target = $region61
    $region60: #{decoder_forward.1} parent=1 // pred_region
      _
    $region61: #{decoder_forward.1} parent=1 // pred_fallthru
      _
    // Predicated region
    $region62: #{decoder_forward.1} parent=1 // pred_check
      _
    $region63: #{decoder_forward.1} parent=1 // pred_check_branch
      %63 = sbr.rel (0) target = $region65
    $region64: #{decoder_forward.1} parent=1 // pred_region
      _
    $region65: #{decoder_forward.1} parent=1 // pred_fallthru
      _
    // Predicated region
    $region66: #{decoder_forward.1} parent=1 // pred_check
      _
    $region67: #{decoder_forward.1} parent=1 // pred_check_branch
      %65 = sbr.rel (0) target = $region69
    $region68: #{decoder_forward.1} parent=1 // pred_region
      _
    $region69: #{decoder_forward.1} parent=1 // pred_fallthru
      _
    // Predicated region
    $region70: #{decoder_forward.1} parent=1 // pred_check
      _
    $region71: #{decoder_forward.1} parent=1 // pred_check_branch
      %67 = sbr.rel (0) target = $region73
    $region72: #{decoder_forward.1} parent=1 // pred_region
      _
    $region73: #{decoder_forward.1} parent=1 // pred_fallthru
      _
    // Predicated region
    $region74: #{decoder_forward.1} parent=1 // pred_check
      _
    $region75: #{decoder_forward.1} parent=1 // pred_check_branch
      %69 = sbr.rel (0) target = $region77
    $region76: #{decoder_forward.1} parent=1 // pred_region
      _
    $region77: #{decoder_forward.1} parent=1 // pred_fallthru
      _
    // Predicated region
    $region78: #{decoder_forward.1} parent=1 // pred_check
      _
    $region79: #{decoder_forward.1} parent=1 // pred_check_branch
      %71 = sbr.rel (0) target = $region81
    $region80: #{decoder_forward.1} parent=1 // pred_region
      _
    $region81: #{decoder_forward.1} parent=1 // pred_fallthru
      _
    // Predicated region
    $region82: #{decoder_forward.1} parent=1 // pred_check
      _
    $region83: #{decoder_forward.1} parent=1 // pred_check_branch
      %73 = sbr.rel (0) target = $region85
    $region84: #{decoder_forward.1} parent=1 // pred_region
      _
    $region85: #{decoder_forward.1} parent=1 // pred_fallthru
      _
    // Predicated region
    $region86: #{decoder_forward.1} parent=1 // pred_check
      _
    $region87: #{decoder_forward.1} parent=1 // pred_check_branch
      %75 = sbr.rel (0) target = $region89
    $region88: #{decoder_forward.1} parent=1 // pred_region
      _
    $region89: #{decoder_forward.1} parent=1 // pred_fallthru
      _
    // Predicated region
    $region90: #{decoder_forward.1} parent=1 // pred_check
      _
    $region91: #{decoder_forward.1} parent=1 // pred_check_branch
      %77 = sbr.rel (0) target = $region93
    $region92: #{decoder_forward.1} parent=1 // pred_region
      _
    $region93: #{decoder_forward.1} parent=1 // pred_fallthru
      _
    // Predicated region
    $region94: #{decoder_forward.1} parent=1 // pred_check
      _
    $region95: #{decoder_forward.1} parent=1 // pred_check_branch
      %79 = sbr.rel (0) target = $region97
    $region96: #{decoder_forward.1} parent=1 // pred_region
      _
    $region97: #{decoder_forward.1} parent=1 // pred_fallthru
      _
    // Predicated region
    $region98: #{decoder_forward.1} parent=1 // pred_check
      _
    $region99: #{decoder_forward.1} parent=1 // pred_check_branch
      %81 = sbr.rel (0) target = $region101
    $region100: #{decoder_forward.1} parent=1 // pred_region
      _
    $region101: #{decoder_forward.1} parent=1 // pred_fallthru
      _
    // Predicated region
    $region102: #{decoder_forward.1} parent=1 // pred_check
      _
    $region103: #{decoder_forward.1} parent=1 // pred_check_branch
      %83 = sbr.rel (0) target = $region105
    $region104: #{decoder_forward.1} parent=1 // pred_region
      _
    $region105: #{decoder_forward.1} parent=1 // pred_fallthru
      _
    %v84 = vld [vmem:[%s2] sm:$0xff]
    %v85 = vld [vmem:[%s2 + $0x8] sm:$0xff]
    %v86 = vld [vmem:[%s3] sm:$0xff]
    %v87 = vld [vmem:[%s3 + $0x8] sm:$0xff]
    %v88 = vld [vmem:[%s4] sm:$0xff]
    %v89 = vld [vmem:[%s4 + $0x8] sm:$0xff]
    %v90 = vld [vmem:[%s4 + $0x10] sm:$0xff]
    %v91 = vld [vmem:[%s4 + $0x18] sm:$0xff]
    %v92 = vld [vmem:[%s5] sm:$0x1]
    %v93 = vld [vmem:[%s6] sm:$0xff]
    %v94 = vld [vmem:[%s6 + $0x8] sm:$0xff]
    %v95 = vld [vmem:[%s6 + $0x10] sm:$0xff]
    %v96 = vld [vmem:[%s6 + $0x18] sm:$0xff]
    %v97 = vld [vmem:[%s7] sm:$0x1]
    %v98 = vld [vmem:[%s8] sm:$0xff]
    %v99 = vld [vmem:[%s8 + $0x8] sm:$0xff]
    %v100 = vld [vmem:[%s8 + $0x10] sm:$0xff]
    %v101 = vld [vmem:[%s8 + $0x18] sm:$0xff]
    %v102 = vld [vmem:[%s9] sm:$0x1]
    %v103 = vld [vmem:[%s12] sm:$0xff]
    %v104 = vld [vmem:[%s12 + $0x8] sm:$0xff]
    %v105 = vld [vmem:[%s12 + $0x10] sm:$0xff]
    %v106 = vld [vmem:[%s12 + $0x18] sm:$0xff]
    %v107 = vld [vmem:[%s13] sm:$0x1]
    %v108 = vld [vmem:[%s14] sm:$0xff]
    %v109 = vld [vmem:[%s14 + $0x8] sm:$0xff]
    %v110 = vld [vmem:[%s14 + $0x10] sm:$0xff]
    %v111 = vld [vmem:[%s14 + $0x18] sm:$0xff]
    %v112 = vld [vmem:[%s15] sm:$0x1]
    %v113 = vld [vmem:[%s16] sm:$0xff]
    %v114 = vld [vmem:[%s16 + $0x8] sm:$0xff]
    %v115 = vld [vmem:[%s16 + $0x10] sm:$0xff]
    %v116 = vld [vmem:[%s16 + $0x18] sm:$0xff]
    %v117 = vld [vmem:[%s16 + $0x20] sm:$0xff]
    %v118 = vld [vmem:[%s16 + $0x28] sm:$0xff]
    %v119 = vld [vmem:[%s16 + $0x30] sm:$0xff]
    %v120 = vld [vmem:[%s16 + $0x38] sm:$0xff]
    %v121 = vld [vmem:[%s17] sm:$0x1]
    %v122 = vld [vmem:[%s18] sm:$0x1]
    %v123 = vld [vmem:[%s19] sm:$0x1]
    %v124 = vld [vmem:[%s20] sm:$0x1]
    %v125 = vld [vmem:[%s21] sm:$0x1]
    %v126 = vld [vmem:[%s22] sm:$0x1]
    %v127 = vld [vmem:[%s23] sm:$0x1]
    %v128 = vld [vmem:[%s1] sm:$0xff]
    %v129 = vld [vmem:[%s1 + $0x8] sm:$0xff]
    %v130 = vld [vmem:[%s10] sm:$0xff]
    %v131 = vld [vmem:[%s10 + $0x8] sm:$0xff]
    %v132 = vld [vmem:[%s10 + $0x10] sm:$0xff]
    %v133 = vld [vmem:[%s10 + $0x18] sm:$0xff]
    %v134 = vld [vmem:[%s11] sm:$0x1]
    %v136 = vlaneseq
    %v137 = vshrl.u32 %v136, 7
    %v138 = vsub.s32 0, %v137
    %v139 = vrot.slane %v134, %v138
    %vm141 = vcmask 261120
    %v143 = vsel %vm141, %v128, 0
    %v146 = vsel %vm141, %v129, 0
    %148 = vmatprep.subr.mxu0 0.0
    %149 = vmatpush1.msra.mxu0 %v130
    %150 = vmatprep.subr.mxu0 0.0
    %151 = vmatpush1.msra.mxu0 %v131
    %152 = vmatprep.subr.mxu0 0.0
    %153 = vmatpush1.msra.mxu0 %v132
    %154 = vmatprep.subr.mxu0 0.0
    %155 = vmatpush1.msra.mxu0 %v133
    %156 = vmatprep.subr.mxu0 0.0
    %157 = vmatpush1.msra.mxu0 0.0
    %158 = vmatprep.subr.mxu0 0.0
    %159 = vmatpush1.msra.mxu0 0.0
    %160 = vmatprep.subr.mxu0 0.0
    %161 = vmatpush1.msra.mxu0 0.0
    %162 = vmatprep.subr.mxu0 0.0
    %163 = vmatpush1.msra.mxu0 0.0
    %164 = vmatprep.subr.mxu0 0.0
    %165 = vmatpush1.msra.mxu0 0.0
    %166 = vmatprep.subr.mxu0 0.0
    %167 = vmatpush1.msra.mxu0 0.0
    %168 = vmatprep.subr.mxu0 0.0
    %169 = vmatpush1.msra.mxu0 0.0
    %170 = vmatprep.subr.mxu0 0.0
    %171 = vmatpush1.msra.mxu0 0.0
    %172 = vmatprep.subr.mxu0 0.0
    %173 = vmatpush1.msra.mxu0 0.0
    %174 = vmatprep.subr.mxu0 0.0
    %175 = vmatpush1.msra.mxu0 0.0
    %176 = vmatprep.subr.mxu0 0.0
    %177 = vmatpush1.msra.mxu0 0.0
    %178 = vmatprep.subr.mxu0 0.0
    %179 = vmatpush1.msra.mxu0 0.0
    %180 = vmatprep.subr.mxu0 0.0
    %181 = vmatpush1.msra.mxu0 0.0
    %182 = vmatprep.subr.mxu0 0.0
    %183 = vmatpush1.msra.mxu0 0.0
    %184 = vmatprep.subr.mxu0 0.0
    %185 = vmatpush1.msra.mxu0 0.0
    %186 = vmatprep.subr.mxu0 0.0
    %187 = vmatpush1.msra.mxu0 0.0
    %188 = vmatprep.subr.mxu0 0.0
    %189 = vmatpush1.msra.mxu0 0.0
    %190 = vmatprep.subr.mxu0 0.0
    %191 = vmatpush1.msra.mxu0 0.0
    %192 = vmatprep.subr.mxu0 0.0
    %193 = vmatpush1.msra.mxu0 0.0
    %194 = vmatprep.subr.mxu0 0.0
    %195 = vmatpush1.msra.mxu0 0.0
    %196 = vmatprep.subr.mxu0 0.0
    %197 = vmatpush1.msra.mxu0 0.0
    %198 = vmatprep.subr.mxu0 0.0
    %199 = vmatpush1.msra.mxu0 0.0
    %200 = vmatprep.subr.mxu0 0.0
    %201 = vmatpush1.msra.mxu0 0.0
    %202 = vmatprep.subr.mxu0 0.0
    %203 = vmatpush1.msra.mxu0 0.0
    %204 = vmatprep.subr.mxu0 0.0
    %205 = vmatpush1.msra.mxu0 0.0
    %206 = vmatprep.subr.mxu0 0.0
    %207 = vmatpush1.msra.mxu0 0.0
    %208 = vmatprep.subr.mxu0 0.0
    %209 = vmatpush1.msra.mxu0 0.0
    %210 = vmatprep.subr.mxu0 0.0
    %211 = vmatpush1.msra.mxu0 0.0
    %212 = vmatprep.mubr.f32.mxu0 0.0
    %213 = vmatmul.mubr.f32.gmra.mrb[0].mxu0 %v143
    %v214 = vpop.f32.mrb[0].mxu0
    %v215 = vadd.f32 %v139, %v214
    %v216 = vpop.f32.mrb[0].mxu0
    %217 = vmatprep.mubr.f32.mxu0 0.0
    %218 = vmatmul.mubr.f32.gmra.mrb[0].mxu0 %v146
    %v219 = vpop.f32.mrb[0].mxu0
    %v220 = vadd.f32 %v139, %v219
    %v221 = vpop.f32.mrb[0].mxu0
    %222 = vdwg.mxu0
    %v223 = vld [vmem:[%s0] sm:$0xff]
    %v224 = vld [vmem:[%s0 + $0x8] sm:$0xff]
    %v225 = vsel %vm141, %v223, 0.0
    %226 = vadd.xlane.f32.xlu0 %v225
    %v227 = vpop.xlane.xlu0 %226
    %v228 = vsel %vm141, %v224, 0.0
    %229 = vadd.xlane.f32.xlu0 %v228
    %v230 = vpop.xlane.xlu0 %229
    %v231 = vrcp.pop 32.0
    %v232 = vmul.f32 %v227, %v231
    %v233 = vmul.f32 %v230, %v231
    %v234 = vsub.f32 %v223, %v232
    %v235 = vsub.f32 %v224, %v233
    %v236 = vmul.f32 %v234, %v234
    %v237 = vmul.f32 %v235, %v235
    %v238 = vsel %vm141, %v236, 0.0
    %239 = vadd.xlane.f32.xlu0 %v238
    %v240 = vpop.xlane.xlu0 %239
    %v241 = vsel %vm141, %v237, 0.0
    %242 = vadd.xlane.f32.xlu0 %v241
    %v243 = vpop.xlane.xlu0 %242
    %v244 = vrcp.pop 31.0
    %v245 = vmul.f32 %v240, %v244
    %v246 = vmul.f32 %v243, %v244
    %v247 = vrsqrt.pop %v245
    %v248 = vmul.f32 %v245, %v247
    %vm249 = vcmp.eq.f32.partialorder %v245, inf
    %v250 = vsel %vm249, %v245, %v248
    %vm251 = vcmp.eq.f32.partialorder %v245, 0.0
    %v252 = vand.u32 %v245, 2147483648
    %v253 = vsel %vm251, %v252, %v250
    %v254 = vrsqrt.pop %v246
    %v255 = vmul.f32 %v246, %v254
    %vm256 = vcmp.eq.f32.partialorder %v246, inf
    %v257 = vsel %vm256, %v246, %v255
    %vm258 = vcmp.eq.f32.partialorder %v246, 0.0
    %v259 = vand.u32 %v246, 2147483648
    %v260 = vsel %vm258, %v259, %v257
    %v262 = vlaneseq
    %v263 = vshrl.u32 %v262, 7
    %v264 = vsub.s32 0, %v263
    %v265 = vrot.slane %v122, %v264
    %v267 = vmul.f32 %v265, %v234
    %v268 = vmul.f32 %v265, %v235
    %v269 = vadd.f32 %v253, 1e-06
    %v270 = vadd.f32 %v260, 1e-06
    %v271 = vrcp.pop %v269
    %v272 = vmul.f32 %v267, %v271
    %v273 = vrcp.pop %v270
    %v274 = vmul.f32 %v268, %v273
    %v276 = vlaneseq
    %v277 = vshrl.u32 %v276, 7
    %v278 = vsub.s32 0, %v277
    %v279 = vrot.slane %v123, %v278
    %v281 = vadd.f32 %v272, %v279
    %v282 = vadd.f32 %v274, %v279
    %v284 = vlaneseq
    %v285 = vshrl.u32 %v284, 7
    %v286 = vsub.s32 0, %v285
    %v287 = vrot.slane %v92, %v286
    %v290 = vsel %vm141, %v281, 0
    %v293 = vsel %vm141, %v282, 0
    %295 = vmatprep.subr.mxu0 0.0
    %296 = vmatpush1.msra.mxu0 %v88
    %297 = vmatprep.subr.mxu0 0.0
    %298 = vmatpush1.msra.mxu0 %v89
    %299 = vmatprep.subr.mxu0 0.0
    %300 = vmatpush1.msra.mxu0 %v90
    %301 = vmatprep.subr.mxu0 0.0
    %302 = vmatpush1.msra.mxu0 %v91
    %303 = vmatprep.subr.mxu0 0.0
    %304 = vmatpush1.msra.mxu0 0.0
    %305 = vmatprep.subr.mxu0 0.0
    %306 = vmatpush1.msra.mxu0 0.0
    %307 = vmatprep.subr.mxu0 0.0
    %308 = vmatpush1.msra.mxu0 0.0
    %309 = vmatprep.subr.mxu0 0.0
    %310 = vmatpush1.msra.mxu0 0.0
    %311 = vmatprep.subr.mxu0 0.0
    %312 = vmatpush1.msra.mxu0 0.0
    %313 = vmatprep.subr.mxu0 0.0
    %314 = vmatpush1.msra.mxu0 0.0
    %315 = vmatprep.subr.mxu0 0.0
    %316 = vmatpush1.msra.mxu0 0.0
    %317 = vmatprep.subr.mxu0 0.0
    %318 = vmatpush1.msra.mxu0 0.0
    %319 = vmatprep.subr.mxu0 0.0
    %320 = vmatpush1.msra.mxu0 0.0
    %321 = vmatprep.subr.mxu0 0.0
    %322 = vmatpush1.msra.mxu0 0.0
    %323 = vmatprep.subr.mxu0 0.0
    %324 = vmatpush1.msra.mxu0 0.0
    %325 = vmatprep.subr.mxu0 0.0
    %326 = vmatpush1.msra.mxu0 0.0
    %327 = vmatprep.subr.mxu0 0.0
    %328 = vmatpush1.msra.mxu0 0.0
    %329 = vmatprep.subr.mxu0 0.0
    %330 = vmatpush1.msra.mxu0 0.0
    %331 = vmatprep.subr.mxu0 0.0
    %332 = vmatpush1.msra.mxu0 0.0
    %333 = vmatprep.subr.mxu0 0.0
    %334 = vmatpush1.msra.mxu0 0.0
    %335 = vmatprep.subr.mxu0 0.0
    %336 = vmatpush1.msra.mxu0 0.0
    %337 = vmatprep.subr.mxu0 0.0
    %338 = vmatpush1.msra.mxu0 0.0
    %339 = vmatprep.subr.mxu0 0.0
    %340 = vmatpush1.msra.mxu0 0.0
    %341 = vmatprep.subr.mxu0 0.0
    %342 = vmatpush1.msra.mxu0 0.0
    %343 = vmatprep.subr.mxu0 0.0
    %344 = vmatpush1.msra.mxu0 0.0
    %345 = vmatprep.subr.mxu0 0.0
    %346 = vmatpush1.msra.mxu0 0.0
    %347 = vmatprep.subr.mxu0 0.0
    %348 = vmatpush1.msra.mxu0 0.0
    %349 = vmatprep.subr.mxu0 0.0
    %350 = vmatpush1.msra.mxu0 0.0
    %351 = vmatprep.subr.mxu0 0.0
    %352 = vmatpush1.msra.mxu0 0.0
    %353 = vmatprep.subr.mxu0 0.0
    %354 = vmatpush1.msra.mxu0 0.0
    %355 = vmatprep.subr.mxu0 0.0
    %356 = vmatpush1.msra.mxu0 0.0
    %357 = vmatprep.subr.mxu0 0.0
    %358 = vmatpush1.msra.mxu0 0.0
    %359 = vmatprep.mubr.f32.mxu0 0.0
    %360 = vmatmul.mubr.f32.gmra.mrb[0].mxu0 %v290
    %v361 = vpop.f32.mrb[0].mxu0
    %v362 = vadd.f32 %v287, %v361
    %v363 = vpop.f32.mrb[0].mxu0
    %364 = vmatprep.mubr.f32.mxu0 0.0
    %365 = vmatmul.mubr.f32.gmra.mrb[0].mxu0 %v293
    %v366 = vpop.f32.mrb[0].mxu0
    %v367 = vadd.f32 %v287, %v366
    %v368 = vpop.f32.mrb[0].mxu0
    %369 = vdwg.mxu0
    %371 = vrot.lane.b32.xlu0 %v362, 96
    %v372 = vpop.permute.xlu0 %371
    %vm373 = vcmask 64512
    %v374 = vsel %vm373, %v362, 0
    %v376 = vsel %vm373, %v372, 0
    %378 = vmatprep.subr.mxu0 0.0
    %379 = vmatpush1.xpose.msra.mxu0 %v376
    %380 = vmatprep.subr.mxu0 0.0
    %381 = vmatpush1.xpose.msra.mxu0 0.0
    %382 = vmatprep.subr.mxu0 0.0
    %383 = vmatpush1.xpose.msra.mxu0 0.0
    %384 = vmatprep.subr.mxu0 0.0
    %385 = vmatpush1.xpose.msra.mxu0 0.0
    %386 = vmatprep.subr.mxu0 0.0
    %387 = vmatpush1.xpose.msra.mxu0 0.0
    %388 = vmatprep.subr.mxu0 0.0
    %389 = vmatpush1.xpose.msra.mxu0 0.0
    %390 = vmatprep.subr.mxu0 0.0
    %391 = vmatpush1.xpose.msra.mxu0 0.0
    %392 = vmatprep.subr.mxu0 0.0
    %393 = vmatpush1.xpose.msra.mxu0 0.0
    %394 = vmatprep.subr.mxu0 0.0
    %395 = vmatpush1.xpose.msra.mxu0 0.0
    %396 = vmatprep.subr.mxu0 0.0
    %397 = vmatpush1.xpose.msra.mxu0 0.0
    %398 = vmatprep.subr.mxu0 0.0
    %399 = vmatpush1.xpose.msra.mxu0 0.0
    %400 = vmatprep.subr.mxu0 0.0
    %401 = vmatpush1.xpose.msra.mxu0 0.0
    %402 = vmatprep.subr.mxu0 0.0
    %403 = vmatpush1.xpose.msra.mxu0 0.0
    %404 = vmatprep.subr.mxu0 0.0
    %405 = vmatpush1.xpose.msra.mxu0 0.0
    %406 = vmatprep.subr.mxu0 0.0
    %407 = vmatpush1.xpose.msra.mxu0 0.0
    %408 = vmatprep.subr.mxu0 0.0
    %409 = vmatpush1.xpose.msra.mxu0 0.0
    %410 = vmatprep.subr.mxu0 0.0
    %411 = vmatpush1.xpose.msra.mxu0 0.0
    %412 = vmatprep.subr.mxu0 0.0
    %413 = vmatpush1.xpose.msra.mxu0 0.0
    %414 = vmatprep.subr.mxu0 0.0
    %415 = vmatpush1.xpose.msra.mxu0 0.0
    %416 = vmatprep.subr.mxu0 0.0
    %417 = vmatpush1.xpose.msra.mxu0 0.0
    %418 = vmatprep.subr.mxu0 0.0
    %419 = vmatpush1.xpose.msra.mxu0 0.0
    %420 = vmatprep.subr.mxu0 0.0
    %421 = vmatpush1.xpose.msra.mxu0 0.0
    %422 = vmatprep.subr.mxu0 0.0
    %423 = vmatpush1.xpose.msra.mxu0 0.0
    %424 = vmatprep.subr.mxu0 0.0
    %425 = vmatpush1.xpose.msra.mxu0 0.0
    %426 = vmatprep.subr.mxu0 0.0
    %427 = vmatpush1.xpose.msra.mxu0 0.0
    %428 = vmatprep.subr.mxu0 0.0
    %429 = vmatpush1.xpose.msra.mxu0 0.0
    %430 = vmatprep.subr.mxu0 0.0
    %431 = vmatpush1.xpose.msra.mxu0 0.0
    %432 = vmatprep.subr.mxu0 0.0
    %433 = vmatpush1.xpose.msra.mxu0 0.0
    %434 = vmatprep.subr.mxu0 0.0
    %435 = vmatpush1.xpose.msra.mxu0 0.0
    %436 = vmatprep.subr.mxu0 0.0
    %437 = vmatpush1.xpose.msra.mxu0 0.0
    %438 = vmatprep.subr.mxu0 0.0
    %439 = vmatpush1.xpose.msra.mxu0 0.0
    %440 = vmatprep.subr.mxu0 0.0
    %441 = vmatpush1.xpose.msra.mxu0 0.0
    %442 = vmatprep.mubr.f32.mxu0 0.0
    %443 = vmatmul.mubr.f32.gmra.mrb[0].mxu0 %v374
    %v444 = vpop.f32.mrb[0].mxu0
    %v445 = vadd.f32 0.0, %v444
    %v446 = vpop.f32.mrb[0].mxu0
    %447 = vdwg.mxu0
    %449 = vrot.lane.b32.xlu0 %v367, 96
    %v450 = vpop.permute.xlu0 %449
    %v451 = vsel %vm373, %v367, 0
    %v453 = vsel %vm373, %v450, 0
    %455 = vmatprep.subr.mxu0 0.0
    %456 = vmatpush1.xpose.msra.mxu0 %v453
    %457 = vmatprep.subr.mxu0 0.0
    %458 = vmatpush1.xpose.msra.mxu0 0.0
    %459 = vmatprep.subr.mxu0 0.0
    %460 = vmatpush1.xpose.msra.mxu0 0.0
    %461 = vmatprep.subr.mxu0 0.0
    %462 = vmatpush1.xpose.msra.mxu0 0.0
    %463 = vmatprep.subr.mxu0 0.0
    %464 = vmatpush1.xpose.msra.mxu0 0.0
    %465 = vmatprep.subr.mxu0 0.0
    %466 = vmatpush1.xpose.msra.mxu0 0.0
    %467 = vmatprep.subr.mxu0 0.0
    %468 = vmatpush1.xpose.msra.mxu0 0.0
    %469 = vmatprep.subr.mxu0 0.0
    %470 = vmatpush1.xpose.msra.mxu0 0.0
    %471 = vmatprep.subr.mxu0 0.0
    %472 = vmatpush1.xpose.msra.mxu0 0.0
    %473 = vmatprep.subr.mxu0 0.0
    %474 = vmatpush1.xpose.msra.mxu0 0.0
    %475 = vmatprep.subr.mxu0 0.0
    %476 = vmatpush1.xpose.msra.mxu0 0.0
    %477 = vmatprep.subr.mxu0 0.0
    %478 = vmatpush1.xpose.msra.mxu0 0.0
    %479 = vmatprep.subr.mxu0 0.0
    %480 = vmatpush1.xpose.msra.mxu0 0.0
    %481 = vmatprep.subr.mxu0 0.0
    %482 = vmatpush1.xpose.msra.mxu0 0.0
    %483 = vmatprep.subr.mxu0 0.0
    %484 = vmatpush1.xpose.msra.mxu0 0.0
    %485 = vmatprep.subr.mxu0 0.0
    %486 = vmatpush1.xpose.msra.mxu0 0.0
    %487 = vmatprep.subr.mxu0 0.0
    %488 = vmatpush1.xpose.msra.mxu0 0.0
    %489 = vmatprep.subr.mxu0 0.0
    %490 = vmatpush1.xpose.msra.mxu0 0.0
    %491 = vmatprep.subr.mxu0 0.0
    %492 = vmatpush1.xpose.msra.mxu0 0.0
    %493 = vmatprep.subr.mxu0 0.0
    %494 = vmatpush1.xpose.msra.mxu0 0.0
    %495 = vmatprep.subr.mxu0 0.0
    %496 = vmatpush1.xpose.msra.mxu0 0.0
    %497 = vmatprep.subr.mxu0 0.0
    %498 = vmatpush1.xpose.msra.mxu0 0.0
    %499 = vmatprep.subr.mxu0 0.0
    %500 = vmatpush1.xpose.msra.mxu0 0.0
    %501 = vmatprep.subr.mxu0 0.0
    %502 = vmatpush1.xpose.msra.mxu0 0.0
    %503 = vmatprep.subr.mxu0 0.0
    %504 = vmatpush1.xpose.msra.mxu0 0.0
    %505 = vmatprep.subr.mxu0 0.0
    %506 = vmatpush1.xpose.msra.mxu0 0.0
    %507 = vmatprep.subr.mxu0 0.0
    %508 = vmatpush1.xpose.msra.mxu0 0.0
    %509 = vmatprep.subr.mxu0 0.0
    %510 = vmatpush1.xpose.msra.mxu0 0.0
    %511 = vmatprep.subr.mxu0 0.0
    %512 = vmatpush1.xpose.msra.mxu0 0.0
    %513 = vmatprep.subr.mxu0 0.0
    %514 = vmatpush1.xpose.msra.mxu0 0.0
    %515 = vmatprep.subr.mxu0 0.0
    %516 = vmatpush1.xpose.msra.mxu0 0.0
    %517 = vmatprep.subr.mxu0 0.0
    %518 = vmatpush1.xpose.msra.mxu0 0.0
    %519 = vmatprep.mubr.f32.mxu0 0.0
    %520 = vmatmul.mubr.f32.gmra.mrb[0].mxu0 %v451
    %v521 = vpop.f32.mrb[0].mxu0
    %v522 = vadd.f32 0.0, %v521
    %v523 = vpop.f32.mrb[0].mxu0
    %524 = vdwg.mxu0
    %v525 = vmul.f32 %v445, 0.35355338
    %v526 = vmul.f32 %v522, 0.35355338
    %vm527 = vcmp.eq.f32.partialorder %v84, 0.0
    %vm528 = vcmp.eq.f32.partialorder %v85, 0.0
    %v529 = vsel %vm527, -1e+09, %v525
    %v530 = vsel %vm528, -1e+09, %v526
    %v531 = vsel %vm373, %v529, -inf
    %532 = vmax.xlane.f32.xlu0 %v531
    %v533 = vpop.xlane.xlu0 %532
    %v534 = vsel %vm373, %v530, -inf
    %535 = vmax.xlane.f32.xlu0 %v534
    %v536 = vpop.xlane.xlu0 %535
    %v537 = vsub.f32 %v529, %v533
    %v538 = vsub.f32 %v530, %v536
    %v539 = vmul.f32 %v537, 1.442695
    %v540 = vpow.pop %v539
    %v541 = vmul.f32 %v538, 1.442695
    %v542 = vpow.pop %v541
    %v543 = vsel %vm373, %v540, 0.0
    %544 = vadd.xlane.f32.xlu0 %v543
    %v545 = vpop.xlane.xlu0 %544
    %v546 = vsel %vm373, %v542, 0.0
    %547 = vadd.xlane.f32.xlu0 %v546
    %v548 = vpop.xlane.xlu0 %547
    %v549 = vrcp.pop %v545
    %v550 = vmul.f32 %v540, %v549
    %v551 = vrcp.pop %v548
    %v552 = vmul.f32 %v542, %v551
    %553 = vrot.lane.b32.xlu0 %v362, 64
    %v554 = vpop.permute.xlu0 %553
    %v557 = vsel %vm373, %v550, 0
    %559 = vmatprep.subr.mxu0 0.0
    %560 = vmatpush1.msra.mxu0 %v554
    %561 = vmatprep.subr.mxu0 0.0
    %562 = vmatpush1.msra.mxu0 0.0
    %563 = vmatprep.subr.mxu0 0.0
    %564 = vmatpush1.msra.mxu0 0.0
    %565 = vmatprep.subr.mxu0 0.0
    %566 = vmatpush1.msra.mxu0 0.0
    %567 = vmatprep.subr.mxu0 0.0
    %568 = vmatpush1.msra.mxu0 0.0
    %569 = vmatprep.subr.mxu0 0.0
    %570 = vmatpush1.msra.mxu0 0.0
    %571 = vmatprep.subr.mxu0 0.0
    %572 = vmatpush1.msra.mxu0 0.0
    %573 = vmatprep.subr.mxu0 0.0
    %574 = vmatpush1.msra.mxu0 0.0
    %575 = vmatprep.subr.mxu0 0.0
    %576 = vmatpush1.msra.mxu0 0.0
    %577 = vmatprep.subr.mxu0 0.0
    %578 = vmatpush1.msra.mxu0 0.0
    %579 = vmatprep.subr.mxu0 0.0
    %580 = vmatpush1.msra.mxu0 0.0
    %581 = vmatprep.subr.mxu0 0.0
    %582 = vmatpush1.msra.mxu0 0.0
    %583 = vmatprep.subr.mxu0 0.0
    %584 = vmatpush1.msra.mxu0 0.0
    %585 = vmatprep.subr.mxu0 0.0
    %586 = vmatpush1.msra.mxu0 0.0
    %587 = vmatprep.subr.mxu0 0.0
    %588 = vmatpush1.msra.mxu0 0.0
    %589 = vmatprep.subr.mxu0 0.0
    %590 = vmatpush1.msra.mxu0 0.0
    %591 = vmatprep.subr.mxu0 0.0
    %592 = vmatpush1.msra.mxu0 0.0
    %593 = vmatprep.subr.mxu0 0.0
    %594 = vmatpush1.msra.mxu0 0.0
    %595 = vmatprep.subr.mxu0 0.0
    %596 = vmatpush1.msra.mxu0 0.0
    %597 = vmatprep.subr.mxu0 0.0
    %598 = vmatpush1.msra.mxu0 0.0
    %599 = vmatprep.subr.mxu0 0.0
    %600 = vmatpush1.msra.mxu0 0.0
    %601 = vmatprep.subr.mxu0 0.0
    %602 = vmatpush1.msra.mxu0 0.0
    %603 = vmatprep.subr.mxu0 0.0
    %604 = vmatpush1.msra.mxu0 0.0
    %605 = vmatprep.subr.mxu0 0.0
    %606 = vmatpush1.msra.mxu0 0.0
    %607 = vmatprep.subr.mxu0 0.0
    %608 = vmatpush1.msra.mxu0 0.0
    %609 = vmatprep.subr.mxu0 0.0
    %610 = vmatpush1.msra.mxu0 0.0
    %611 = vmatprep.subr.mxu0 0.0
    %612 = vmatpush1.msra.mxu0 0.0
    %613 = vmatprep.subr.mxu0 0.0
    %614 = vmatpush1.msra.mxu0 0.0
    %615 = vmatprep.subr.mxu0 0.0
    %616 = vmatpush1.msra.mxu0 0.0
    %617 = vmatprep.subr.mxu0 0.0
    %618 = vmatpush1.msra.mxu0 0.0
    %619 = vmatprep.subr.mxu0 0.0
    %620 = vmatpush1.msra.mxu0 0.0
    %621 = vmatprep.subr.mxu0 0.0
    %622 = vmatpush1.msra.mxu0 0.0
    %623 = vmatprep.mubr.f32.mxu0 0.0
    %624 = vmatmul.mubr.f32.gmra.mrb[0].mxu0 %v557
    %v625 = vpop.f32.mrb[0].mxu0
    %v626 = vadd.f32 0.0, %v625
    %v627 = vpop.f32.mrb[0].mxu0
    %628 = vdwg.mxu0
    %629 = vrot.lane.b32.xlu0 %v367, 64
    %v630 = vpop.permute.xlu0 %629
    %v633 = vsel %vm373, %v552, 0
    %635 = vmatprep.subr.mxu0 0.0
    %636 = vmatpush1.msra.mxu0 %v630
    %637 = vmatprep.subr.mxu0 0.0
    %638 = vmatpush1.msra.mxu0 0.0
    %639 = vmatprep.subr.mxu0 0.0
    %640 = vmatpush1.msra.mxu0 0.0
    %641 = vmatprep.subr.mxu0 0.0
    %642 = vmatpush1.msra.mxu0 0.0
    %643 = vmatprep.subr.mxu0 0.0
    %644 = vmatpush1.msra.mxu0 0.0
    %645 = vmatprep.subr.mxu0 0.0
    %646 = vmatpush1.msra.mxu0 0.0
    %647 = vmatprep.subr.mxu0 0.0
    %648 = vmatpush1.msra.mxu0 0.0
    %649 = vmatprep.subr.mxu0 0.0
    %650 = vmatpush1.msra.mxu0 0.0
    %651 = vmatprep.subr.mxu0 0.0
    %652 = vmatpush1.msra.mxu0 0.0
    %653 = vmatprep.subr.mxu0 0.0
    %654 = vmatpush1.msra.mxu0 0.0
    %655 = vmatprep.subr.mxu0 0.0
    %656 = vmatpush1.msra.mxu0 0.0
    %657 = vmatprep.subr.mxu0 0.0
    %658 = vmatpush1.msra.mxu0 0.0
    %659 = vmatprep.subr.mxu0 0.0
    %660 = vmatpush1.msra.mxu0 0.0
    %661 = vmatprep.subr.mxu0 0.0
    %662 = vmatpush1.msra.mxu0 0.0
    %663 = vmatprep.subr.mxu0 0.0
    %664 = vmatpush1.msra.mxu0 0.0
    %665 = vmatprep.subr.mxu0 0.0
    %666 = vmatpush1.msra.mxu0 0.0
    %667 = vmatprep.subr.mxu0 0.0
    %668 = vmatpush1.msra.mxu0 0.0
    %669 = vmatprep.subr.mxu0 0.0
    %670 = vmatpush1.msra.mxu0 0.0
    %671 = vmatprep.subr.mxu0 0.0
    %672 = vmatpush1.msra.mxu0 0.0
    %673 = vmatprep.subr.mxu0 0.0
    %674 = vmatpush1.msra.mxu0 0.0
    %675 = vmatprep.subr.mxu0 0.0
    %676 = vmatpush1.msra.mxu0 0.0
    %677 = vmatprep.subr.mxu0 0.0
    %678 = vmatpush1.msra.mxu0 0.0
    %679 = vmatprep.subr.mxu0 0.0
    %680 = vmatpush1.msra.mxu0 0.0
    %681 = vmatprep.subr.mxu0 0.0
    %682 = vmatpush1.msra.mxu0 0.0
    %683 = vmatprep.subr.mxu0 0.0
    %684 = vmatpush1.msra.mxu0 0.0
    %685 = vmatprep.subr.mxu0 0.0
    %686 = vmatpush1.msra.mxu0 0.0
    %687 = vmatprep.subr.mxu0 0.0
    %688 = vmatpush1.msra.mxu0 0.0
    %689 = vmatprep.subr.mxu0 0.0
    %690 = vmatpush1.msra.mxu0 0.0
    %691 = vmatprep.subr.mxu0 0.0
    %692 = vmatpush1.msra.mxu0 0.0
    %693 = vmatprep.subr.mxu0 0.0
    %694 = vmatpush1.msra.mxu0 0.0
    %695 = vmatprep.subr.mxu0 0.0
    %696 = vmatpush1.msra.mxu0 0.0
    %697 = vmatprep.subr.mxu0 0.0
    %698 = vmatpush1.msra.mxu0 0.0
    %699 = vmatprep.mubr.f32.mxu0 0.0
    %700 = vmatmul.mubr.f32.gmra.mrb[0].mxu0 %v633
    %v701 = vpop.f32.mrb[0].mxu0
    %v702 = vadd.f32 0.0, %v701
    %v703 = vpop.f32.mrb[0].mxu0
    %704 = vdwg.mxu0
    %705 = vrot.lane.b32.xlu0 %v362, 120
    %v706 = vpop.permute.xlu0 %705
    %707 = vrot.lane.b32.xlu0 %v362, 88
    %v708 = vpop.permute.xlu0 %707
    %v709 = vsel %vm373, %v706, 0
    %v711 = vsel %vm373, %v708, 0
    %713 = vmatprep.subr.mxu0 0.0
    %714 = vmatpush1.xpose.msra.mxu0 %v711
    %715 = vmatprep.subr.mxu0 0.0
    %716 = vmatpush1.xpose.msra.mxu0 0.0
    %717 = vmatprep.subr.mxu0 0.0
    %718 = vmatpush1.xpose.msra.mxu0 0.0
    %719 = vmatprep.subr.mxu0 0.0
    %720 = vmatpush1.xpose.msra.mxu0 0.0
    %721 = vmatprep.subr.mxu0 0.0
    %722 = vmatpush1.xpose.msra.mxu0 0.0
    %723 = vmatprep.subr.mxu0 0.0
    %724 = vmatpush1.xpose.msra.mxu0 0.0
    %725 = vmatprep.subr.mxu0 0.0
    %726 = vmatpush1.xpose.msra.mxu0 0.0
    %727 = vmatprep.subr.mxu0 0.0
    %728 = vmatpush1.xpose.msra.mxu0 0.0
    %729 = vmatprep.subr.mxu0 0.0
    %730 = vmatpush1.xpose.msra.mxu0 0.0
    %731 = vmatprep.subr.mxu0 0.0
    %732 = vmatpush1.xpose.msra.mxu0 0.0
    %733 = vmatprep.subr.mxu0 0.0
    %734 = vmatpush1.xpose.msra.mxu0 0.0
    %735 = vmatprep.subr.mxu0 0.0
    %736 = vmatpush1.xpose.msra.mxu0 0.0
    %737 = vmatprep.subr.mxu0 0.0
    %738 = vmatpush1.xpose.msra.mxu0 0.0
    %739 = vmatprep.subr.mxu0 0.0
    %740 = vmatpush1.xpose.msra.mxu0 0.0
    %741 = vmatprep.subr.mxu0 0.0
    %742 = vmatpush1.xpose.msra.mxu0 0.0
    %743 = vmatprep.subr.mxu0 0.0
    %744 = vmatpush1.xpose.msra.mxu0 0.0
    %745 = vmatprep.subr.mxu0 0.0
    %746 = vmatpush1.xpose.msra.mxu0 0.0
    %747 = vmatprep.subr.mxu0 0.0
    %748 = vmatpush1.xpose.msra.mxu0 0.0
    %749 = vmatprep.subr.mxu0 0.0
    %750 = vmatpush1.xpose.msra.mxu0 0.0
    %751 = vmatprep.subr.mxu0 0.0
    %752 = vmatpush1.xpose.msra.mxu0 0.0
    %753 = vmatprep.subr.mxu0 0.0
    %754 = vmatpush1.xpose.msra.mxu0 0.0
    %755 = vmatprep.subr.mxu0 0.0
    %756 = vmatpush1.xpose.msra.mxu0 0.0
    %757 = vmatprep.subr.mxu0 0.0
    %758 = vmatpush1.xpose.msra.mxu0 0.0
    %759 = vmatprep.subr.mxu0 0.0
    %760 = vmatpush1.xpose.msra.mxu0 0.0
    %761 = vmatprep.subr.mxu0 0.0
    %762 = vmatpush1.xpose.msra.mxu0 0.0
    %763 = vmatprep.subr.mxu0 0.0
    %764 = vmatpush1.xpose.msra.mxu0 0.0
    %765 = vmatprep.subr.mxu0 0.0
    %766 = vmatpush1.xpose.msra.mxu0 0.0
    %767 = vmatprep.subr.mxu0 0.0
    %768 = vmatpush1.xpose.msra.mxu0 0.0
    %769 = vmatprep.subr.mxu0 0.0
    %770 = vmatpush1.xpose.msra.mxu0 0.0
    %771 = vmatprep.subr.mxu0 0.0
    %772 = vmatpush1.xpose.msra.mxu0 0.0
    %773 = vmatprep.subr.mxu0 0.0
    %774 = vmatpush1.xpose.msra.mxu0 0.0
    %775 = vmatprep.subr.mxu0 0.0
    %776 = vmatpush1.xpose.msra.mxu0 0.0
    %777 = vmatprep.mubr.f32.mxu0 0.0
    %778 = vmatmul.mubr.f32.gmra.mrb[0].mxu0 %v709
    %v779 = vpop.f32.mrb[0].mxu0
    %v780 = vadd.f32 0.0, %v779
    %v781 = vpop.f32.mrb[0].mxu0
    %782 = vdwg.mxu0
    %783 = vrot.lane.b32.xlu0 %v367, 120
    %v784 = vpop.permute.xlu0 %783
    %785 = vrot.lane.b32.xlu0 %v367, 88
    %v786 = vpop.permute.xlu0 %785
    %v787 = vsel %vm373, %v784, 0
    %v789 = vsel %vm373, %v786, 0
    %791 = vmatprep.subr.mxu0 0.0
    %792 = vmatpush1.xpose.msra.mxu0 %v789
    %793 = vmatprep.subr.mxu0 0.0
    %794 = vmatpush1.xpose.msra.mxu0 0.0
    %795 = vmatprep.subr.mxu0 0.0
    %796 = vmatpush1.xpose.msra.mxu0 0.0
    %797 = vmatprep.subr.mxu0 0.0
    %798 = vmatpush1.xpose.msra.mxu0 0.0
    %799 = vmatprep.subr.mxu0 0.0
    %800 = vmatpush1.xpose.msra.mxu0 0.0
    %801 = vmatprep.subr.mxu0 0.0
    %802 = vmatpush1.xpose.msra.mxu0 0.0
    %803 = vmatprep.subr.mxu0 0.0
    %804 = vmatpush1.xpose.msra.mxu0 0.0
    %805 = vmatprep.subr.mxu0 0.0
    %806 = vmatpush1.xpose.msra.mxu0 0.0
    %807 = vmatprep.subr.mxu0 0.0
    %808 = vmatpush1.xpose.msra.mxu0 0.0
    %809 = vmatprep.subr.mxu0 0.0
    %810 = vmatpush1.xpose.msra.mxu0 0.0
    %811 = vmatprep.subr.mxu0 0.0
    %812 = vmatpush1.xpose.msra.mxu0 0.0
    %813 = vmatprep.subr.mxu0 0.0
    %814 = vmatpush1.xpose.msra.mxu0 0.0
    %815 = vmatprep.subr.mxu0 0.0
    %816 = vmatpush1.xpose.msra.mxu0 0.0
    %817 = vmatprep.subr.mxu0 0.0
    %818 = vmatpush1.xpose.msra.mxu0 0.0
    %819 = vmatprep.subr.mxu0 0.0
    %820 = vmatpush1.xpose.msra.mxu0 0.0
    %821 = vmatprep.subr.mxu0 0.0
    %822 = vmatpush1.xpose.msra.mxu0 0.0
    %823 = vmatprep.subr.mxu0 0.0
    %824 = vmatpush1.xpose.msra.mxu0 0.0
    %825 = vmatprep.subr.mxu0 0.0
    %826 = vmatpush1.xpose.msra.mxu0 0.0
    %827 = vmatprep.subr.mxu0 0.0
    %828 = vmatpush1.xpose.msra.mxu0 0.0
    %829 = vmatprep.subr.mxu0 0.0
    %830 = vmatpush1.xpose.msra.mxu0 0.0
    %831 = vmatprep.subr.mxu0 0.0
    %832 = vmatpush1.xpose.msra.mxu0 0.0
    %833 = vmatprep.subr.mxu0 0.0
    %834 = vmatpush1.xpose.msra.mxu0 0.0
    %835 = vmatprep.subr.mxu0 0.0
    %836 = vmatpush1.xpose.msra.mxu0 0.0
    %837 = vmatprep.subr.mxu0 0.0
    %838 = vmatpush1.xpose.msra.mxu0 0.0
    %839 = vmatprep.subr.mxu0 0.0
    %840 = vmatpush1.xpose.msra.mxu0 0.0
    %841 = vmatprep.subr.mxu0 0.0
    %842 = vmatpush1.xpose.msra.mxu0 0.0
    %843 = vmatprep.subr.mxu0 0.0
    %844 = vmatpush1.xpose.msra.mxu0 0.0
    %845 = vmatprep.subr.mxu0 0.0
    %846 = vmatpush1.xpose.msra.mxu0 0.0
    %847 = vmatprep.subr.mxu0 0.0
    %848 = vmatpush1.xpose.msra.mxu0 0.0
    %849 = vmatprep.subr.mxu0 0.0
    %850 = vmatpush1.xpose.msra.mxu0 0.0
    %851 = vmatprep.subr.mxu0 0.0
    %852 = vmatpush1.xpose.msra.mxu0 0.0
    %853 = vmatprep.subr.mxu0 0.0
    %854 = vmatpush1.xpose.msra.mxu0 0.0
    %855 = vmatprep.mubr.f32.mxu0 0.0
    %856 = vmatmul.mubr.f32.gmra.mrb[0].mxu0 %v787
    %v857 = vpop.f32.mrb[0].mxu0
    %v858 = vadd.f32 0.0, %v857
    %v859 = vpop.f32.mrb[0].mxu0
    %860 = vdwg.mxu0
    %v861 = vmul.f32 %v780, 0.35355338
    %v862 = vmul.f32 %v858, 0.35355338
    %v863 = vsel %vm527, -1e+09, %v861
    %v864 = vsel %vm528, -1e+09, %v862
    %v865 = vsel %vm373, %v863, -inf
    %866 = vmax.xlane.f32.xlu0 %v865
    %v867 = vpop.xlane.xlu0 %866
    %v868 = vsel %vm373, %v864, -inf
    %869 = vmax.xlane.f32.xlu0 %v868
    %v870 = vpop.xlane.xlu0 %869
    %v871 = vsub.f32 %v863, %v867
    %v872 = vsub.f32 %v864, %v870
    %v873 = vmul.f32 %v871, 1.442695
    %v874 = vpow.pop %v873
    %v875 = vmul.f32 %v872, 1.442695
    %v876 = vpow.pop %v875
    %v877 = vsel %vm373, %v874, 0.0
    %878 = vadd.xlane.f32.xlu0 %v877
    %v879 = vpop.xlane.xlu0 %878
    %v880 = vsel %vm373, %v876, 0.0
    %881 = vadd.xlane.f32.xlu0 %v880
    %v882 = vpop.xlane.xlu0 %881
    %v883 = vrcp.pop %v879
    %v884 = vmul.f32 %v874, %v883
    %v885 = vrcp.pop %v882
    %v886 = vmul.f32 %v876, %v885
    %887 = vrot.lane.b32.xlu0 %v362, 56
    %v888 = vpop.permute.xlu0 %887
    %v891 = vsel %vm373, %v884, 0
    %893 = vmatprep.subr.mxu0 0.0
    %894 = vmatpush1.msra.mxu0 %v888
    %895 = vmatprep.subr.mxu0 0.0
    %896 = vmatpush1.msra.mxu0 0.0
    %897 = vmatprep.subr.mxu0 0.0
    %898 = vmatpush1.msra.mxu0 0.0
    %899 = vmatprep.subr.mxu0 0.0
    %900 = vmatpush1.msra.mxu0 0.0
    %901 = vmatprep.subr.mxu0 0.0
    %902 = vmatpush1.msra.mxu0 0.0
    %903 = vmatprep.subr.mxu0 0.0
    %904 = vmatpush1.msra.mxu0 0.0
    %905 = vmatprep.subr.mxu0 0.0
    %906 = vmatpush1.msra.mxu0 0.0
    %907 = vmatprep.subr.mxu0 0.0
    %908 = vmatpush1.msra.mxu0 0.0
    %909 = vmatprep.subr.mxu0 0.0
    %910 = vmatpush1.msra.mxu0 0.0
    %911 = vmatprep.subr.mxu0 0.0
    %912 = vmatpush1.msra.mxu0 0.0
    %913 = vmatprep.subr.mxu0 0.0
    %914 = vmatpush1.msra.mxu0 0.0
    %915 = vmatprep.subr.mxu0 0.0
    %916 = vmatpush1.msra.mxu0 0.0
    %917 = vmatprep.subr.mxu0 0.0
    %918 = vmatpush1.msra.mxu0 0.0
    %919 = vmatprep.subr.mxu0 0.0
    %920 = vmatpush1.msra.mxu0 0.0
    %921 = vmatprep.subr.mxu0 0.0
    %922 = vmatpush1.msra.mxu0 0.0
    %923 = vmatprep.subr.mxu0 0.0
    %924 = vmatpush1.msra.mxu0 0.0
    %925 = vmatprep.subr.mxu0 0.0
    %926 = vmatpush1.msra.mxu0 0.0
    %927 = vmatprep.subr.mxu0 0.0
    %928 = vmatpush1.msra.mxu0 0.0
    %929 = vmatprep.subr.mxu0 0.0
    %930 = vmatpush1.msra.mxu0 0.0
    %931 = vmatprep.subr.mxu0 0.0
    %932 = vmatpush1.msra.mxu0 0.0
    %933 = vmatprep.subr.mxu0 0.0
    %934 = vmatpush1.msra.mxu0 0.0
    %935 = vmatprep.subr.mxu0 0.0
    %936 = vmatpush1.msra.mxu0 0.0
    %937 = vmatprep.subr.mxu0 0.0
    %938 = vmatpush1.msra.mxu0 0.0
    %939 = vmatprep.subr.mxu0 0.0
    %940 = vmatpush1.msra.mxu0 0.0
    %941 = vmatprep.subr.mxu0 0.0
    %942 = vmatpush1.msra.mxu0 0.0
    %943 = vmatprep.subr.mxu0 0.0
    %944 = vmatpush1.msra.mxu0 0.0
    %945 = vmatprep.subr.mxu0 0.0
    %946 = vmatpush1.msra.mxu0 0.0
    %947 = vmatprep.subr.mxu0 0.0
    %948 = vmatpush1.msra.mxu0 0.0
    %949 = vmatprep.subr.mxu0 0.0
    %950 = vmatpush1.msra.mxu0 0.0
    %951 = vmatprep.subr.mxu0 0.0
    %952 = vmatpush1.msra.mxu0 0.0
    %953 = vmatprep.subr.mxu0 0.0
    %954 = vmatpush1.msra.mxu0 0.0
    %955 = vmatprep.subr.mxu0 0.0
    %956 = vmatpush1.msra.mxu0 0.0
    %957 = vmatprep.mubr.f32.mxu0 0.0
    %958 = vmatmul.mubr.f32.gmra.mrb[0].mxu0 %v891
    %v959 = vpop.f32.mrb[0].mxu0
    %v960 = vadd.f32 0.0, %v959
    %v961 = vpop.f32.mrb[0].mxu0
    %962 = vdwg.mxu0
    %963 = vrot.lane.b32.xlu0 %v367, 56
    %v964 = vpop.permute.xlu0 %963
    %v967 = vsel %vm373, %v886, 0
    %969 = vmatprep.subr.mxu0 0.0
    %970 = vmatpush1.msra.mxu0 %v964
    %971 = vmatprep.subr.mxu0 0.0
    %972 = vmatpush1.msra.mxu0 0.0
    %973 = vmatprep.subr.mxu0 0.0
    %974 = vmatpush1.msra.mxu0 0.0
    %975 = vmatprep.subr.mxu0 0.0
    %976 = vmatpush1.msra.mxu0 0.0
    %977 = vmatprep.subr.mxu0 0.0
    %978 = vmatpush1.msra.mxu0 0.0
    %979 = vmatprep.subr.mxu0 0.0
    %980 = vmatpush1.msra.mxu0 0.0
    %981 = vmatprep.subr.mxu0 0.0
    %982 = vmatpush1.msra.mxu0 0.0
    %983 = vmatprep.subr.mxu0 0.0
    %984 = vmatpush1.msra.mxu0 0.0
    %985 = vmatprep.subr.mxu0 0.0
    %986 = vmatpush1.msra.mxu0 0.0
    %987 = vmatprep.subr.mxu0 0.0
    %988 = vmatpush1.msra.mxu0 0.0
    %989 = vmatprep.subr.mxu0 0.0
    %990 = vmatpush1.msra.mxu0 0.0
    %991 = vmatprep.subr.mxu0 0.0
    %992 = vmatpush1.msra.mxu0 0.0
    %993 = vmatprep.subr.mxu0 0.0
    %994 = vmatpush1.msra.mxu0 0.0
    %995 = vmatprep.subr.mxu0 0.0
    %996 = vmatpush1.msra.mxu0 0.0
    %997 = vmatprep.subr.mxu0 0.0
    %998 = vmatpush1.msra.mxu0 0.0
    %999 = vmatprep.subr.mxu0 0.0
    %1000 = vmatpush1.msra.mxu0 0.0
    %1001 = vmatprep.subr.mxu0 0.0
    %1002 = vmatpush1.msra.mxu0 0.0
    %1003 = vmatprep.subr.mxu0 0.0
    %1004 = vmatpush1.msra.mxu0 0.0
    %1005 = vmatprep.subr.mxu0 0.0
    %1006 = vmatpush1.msra.mxu0 0.0
    %1007 = vmatprep.subr.mxu0 0.0
    %1008 = vmatpush1.msra.mxu0 0.0
    %1009 = vmatprep.subr.mxu0 0.0
    %1010 = vmatpush1.msra.mxu0 0.0
    %1011 = vmatprep.subr.mxu0 0.0
    %1012 = vmatpush1.msra.mxu0 0.0
    %1013 = vmatprep.subr.mxu0 0.0
    %1014 = vmatpush1.msra.mxu0 0.0
    %1015 = vmatprep.subr.mxu0 0.0
    %1016 = vmatpush1.msra.mxu0 0.0
    %1017 = vmatprep.subr.mxu0 0.0
    %1018 = vmatpush1.msra.mxu0 0.0
    %1019 = vmatprep.subr.mxu0 0.0
    %1020 = vmatpush1.msra.mxu0 0.0
    %1021 = vmatprep.subr.mxu0 0.0
    %1022 = vmatpush1.msra.mxu0 0.0
    %1023 = vmatprep.subr.mxu0 0.0
    %1024 = vmatpush1.msra.mxu0 0.0
    %1025 = vmatprep.subr.mxu0 0.0
    %1026 = vmatpush1.msra.mxu0 0.0
    %1027 = vmatprep.subr.mxu0 0.0
    %1028 = vmatpush1.msra.mxu0 0.0
    %1029 = vmatprep.subr.mxu0 0.0
    %1030 = vmatpush1.msra.mxu0 0.0
    %1031 = vmatprep.subr.mxu0 0.0
    %1032 = vmatpush1.msra.mxu0 0.0
    %1033 = vmatprep.mubr.f32.mxu0 0.0
    %1034 = vmatmul.mubr.f32.gmra.mrb[0].mxu0 %v967
    %v1035 = vpop.f32.mrb[0].mxu0
    %v1036 = vadd.f32 0.0, %v1035
    %v1037 = vpop.f32.mrb[0].mxu0
    %1038 = vdwg.mxu0
    %1039 = vrot.lane.b32.xlu0 %v362, 112
    %v1040 = vpop.permute.xlu0 %1039
    %1041 = vrot.lane.b32.xlu0 %v362, 80
    %v1042 = vpop.permute.xlu0 %1041
    %v1043 = vsel %vm373, %v1040, 0
    %v1045 = vsel %vm373, %v1042, 0
    %1047 = vmatprep.subr.mxu0 0.0
    %1048 = vmatpush1.xpose.msra.mxu0 %v1045
    %1049 = vmatprep.subr.mxu0 0.0
    %1050 = vmatpush1.xpose.msra.mxu0 0.0
    %1051 = vmatprep.subr.mxu0 0.0
    %1052 = vmatpush1.xpose.msra.mxu0 0.0
    %1053 = vmatprep.subr.mxu0 0.0
    %1054 = vmatpush1.xpose.msra.mxu0 0.0
    %1055 = vmatprep.subr.mxu0 0.0
    %1056 = vmatpush1.xpose.msra.mxu0 0.0
    %1057 = vmatprep.subr.mxu0 0.0
    %1058 = vmatpush1.xpose.msra.mxu0 0.0
    %1059 = vmatprep.subr.mxu0 0.0
    %1060 = vmatpush1.xpose.msra.mxu0 0.0
    %1061 = vmatprep.subr.mxu0 0.0
    %1062 = vmatpush1.xpose.msra.mxu0 0.0
    %1063 = vmatprep.subr.mxu0 0.0
    %1064 = vmatpush1.xpose.msra.mxu0 0.0
    %1065 = vmatprep.subr.mxu0 0.0
    %1066 = vmatpush1.xpose.msra.mxu0 0.0
    %1067 = vmatprep.subr.mxu0 0.0
    %1068 = vmatpush1.xpose.msra.mxu0 0.0
    %1069 = vmatprep.subr.mxu0 0.0
    %1070 = vmatpush1.xpose.msra.mxu0 0.0
    %1071 = vmatprep.subr.mxu0 0.0
    %1072 = vmatpush1.xpose.msra.mxu0 0.0
    %1073 = vmatprep.subr.mxu0 0.0
    %1074 = vmatpush1.xpose.msra.mxu0 0.0
    %1075 = vmatprep.subr.mxu0 0.0
    %1076 = vmatpush1.xpose.msra.mxu0 0.0
    %1077 = vmatprep.subr.mxu0 0.0
    %1078 = vmatpush1.xpose.msra.mxu0 0.0
    %1079 = vmatprep.subr.mxu0 0.0
    %1080 = vmatpush1.xpose.msra.mxu0 0.0
    %1081 = vmatprep.subr.mxu0 0.0
    %1082 = vmatpush1.xpose.msra.mxu0 0.0
    %1083 = vmatprep.subr.mxu0 0.0
    %1084 = vmatpush1.xpose.msra.mxu0 0.0
    %1085 = vmatprep.subr.mxu0 0.0
    %1086 = vmatpush1.xpose.msra.mxu0 0.0
    %1087 = vmatprep.subr.mxu0 0.0
    %1088 = vmatpush1.xpose.msra.mxu0 0.0
    %1089 = vmatprep.subr.mxu0 0.0
    %1090 = vmatpush1.xpose.msra.mxu0 0.0
    %1091 = vmatprep.subr.mxu0 0.0
    %1092 = vmatpush1.xpose.msra.mxu0 0.0
    %1093 = vmatprep.subr.mxu0 0.0
    %1094 = vmatpush1.xpose.msra.mxu0 0.0
    %1095 = vmatprep.subr.mxu0 0.0
    %1096 = vmatpush1.xpose.msra.mxu0 0.0
    %1097 = vmatprep.subr.mxu0 0.0
    %1098 = vmatpush1.xpose.msra.mxu0 0.0
    %1099 = vmatprep.subr.mxu0 0.0
    %1100 = vmatpush1.xpose.msra.mxu0 0.0
    %1101 = vmatprep.subr.mxu0 0.0
    %1102 = vmatpush1.xpose.msra.mxu0 0.0
    %1103 = vmatprep.subr.mxu0 0.0
    %1104 = vmatpush1.xpose.msra.mxu0 0.0
    %1105 = vmatprep.subr.mxu0 0.0
    %1106 = vmatpush1.xpose.msra.mxu0 0.0
    %1107 = vmatprep.subr.mxu0 0.0
    %1108 = vmatpush1.xpose.msra.mxu0 0.0
    %1109 = vmatprep.subr.mxu0 0.0
    %1110 = vmatpush1.xpose.msra.mxu0 0.0
    %1111 = vmatprep.mubr.f32.mxu0 0.0
    %1112 = vmatmul.mubr.f32.gmra.mrb[0].mxu0 %v1043
    %v1113 = vpop.f32.mrb[0].mxu0
    %v1114 = vadd.f32 0.0, %v1113
    %v1115 = vpop.f32.mrb[0].mxu0
    %1116 = vdwg.mxu0
    %1117 = vrot.lane.b32.xlu0 %v367, 112
    %v1118 = vpop.permute.xlu0 %1117
    %1119 = vrot.lane.b32.xlu0 %v367, 80
    %v1120 = vpop.permute.xlu0 %1119
    %v1121 = vsel %vm373, %v1118, 0
    %v1123 = vsel %vm373, %v1120, 0
    %1125 = vmatprep.subr.mxu0 0.0
    %1126 = vmatpush1.xpose.msra.mxu0 %v1123
    %1127 = vmatprep.subr.mxu0 0.0
    %1128 = vmatpush1.xpose.msra.mxu0 0.0
    %1129 = vmatprep.subr.mxu0 0.0
    %1130 = vmatpush1.xpose.msra.mxu0 0.0
    %1131 = vmatprep.subr.mxu0 0.0
    %1132 = vmatpush1.xpose.msra.mxu0 0.0
    %1133 = vmatprep.subr.mxu0 0.0
    %1134 = vmatpush1.xpose.msra.mxu0 0.0
    %1135 = vmatprep.subr.mxu0 0.0
    %1136 = vmatpush1.xpose.msra.mxu0 0.0
    %1137 = vmatprep.subr.mxu0 0.0
    %1138 = vmatpush1.xpose.msra.mxu0 0.0
    %1139 = vmatprep.subr.mxu0 0.0
    %1140 = vmatpush1.xpose.msra.mxu0 0.0
    %1141 = vmatprep.subr.mxu0 0.0
    %1142 = vmatpush1.xpose.msra.mxu0 0.0
    %1143 = vmatprep.subr.mxu0 0.0
    %1144 = vmatpush1.xpose.msra.mxu0 0.0
    %1145 = vmatprep.subr.mxu0 0.0
    %1146 = vmatpush1.xpose.msra.mxu0 0.0
    %1147 = vmatprep.subr.mxu0 0.0
    %1148 = vmatpush1.xpose.msra.mxu0 0.0
    %1149 = vmatprep.subr.mxu0 0.0
    %1150 = vmatpush1.xpose.msra.mxu0 0.0
    %1151 = vmatprep.subr.mxu0 0.0
    %1152 = vmatpush1.xpose.msra.mxu0 0.0
    %1153 = vmatprep.subr.mxu0 0.0
    %1154 = vmatpush1.xpose.msra.mxu0 0.0
    %1155 = vmatprep.subr.mxu0 0.0
    %1156 = vmatpush1.xpose.msra.mxu0 0.0
    %1157 = vmatprep.subr.mxu0 0.0
    %1158 = vmatpush1.xpose.msra.mxu0 0.0
    %1159 = vmatprep.subr.mxu0 0.0
    %1160 = vmatpush1.xpose.msra.mxu0 0.0
    %1161 = vmatprep.subr.mxu0 0.0
    %1162 = vmatpush1.xpose.msra.mxu0 0.0
    %1163 = vmatprep.subr.mxu0 0.0
    %1164 = vmatpush1.xpose.msra.mxu0 0.0
    %1165 = vmatprep.subr.mxu0 0.0
    %1166 = vmatpush1.xpose.msra.mxu0 0.0
    %1167 = vmatprep.subr.mxu0 0.0
    %1168 = vmatpush1.xpose.msra.mxu0 0.0
    %1169 = vmatprep.subr.mxu0 0.0
    %1170 = vmatpush1.xpose.msra.mxu0 0.0
    %1171 = vmatprep.subr.mxu0 0.0
    %1172 = vmatpush1.xpose.msra.mxu0 0.0
    %1173 = vmatprep.subr.mxu0 0.0
    %1174 = vmatpush1.xpose.msra.mxu0 0.0
    %1175 = vmatprep.subr.mxu0 0.0
    %1176 = vmatpush1.xpose.msra.mxu0 0.0
    %1177 = vmatprep.subr.mxu0 0.0
    %1178 = vmatpush1.xpose.msra.mxu0 0.0
    %1179 = vmatprep.subr.mxu0 0.0
    %1180 = vmatpush1.xpose.msra.mxu0 0.0
    %1181 = vmatprep.subr.mxu0 0.0
    %1182 = vmatpush1.xpose.msra.mxu0 0.0
    %1183 = vmatprep.subr.mxu0 0.0
    %1184 = vmatpush1.xpose.msra.mxu0 0.0
    %1185 = vmatprep.subr.mxu0 0.0
    %1186 = vmatpush1.xpose.msra.mxu0 0.0
    %1187 = vmatprep.subr.mxu0 0.0
    %1188 = vmatpush1.xpose.msra.mxu0 0.0
    %1189 = vmatprep.mubr.f32.mxu0 0.0
    %1190 = vmatmul.mubr.f32.gmra.mrb[0].mxu0 %v1121
    %v1191 = vpop.f32.mrb[0].mxu0
    %v1192 = vadd.f32 0.0, %v1191
    %v1193 = vpop.f32.mrb[0].mxu0
    %1194 = vdwg.mxu0
    %v1195 = vmul.f32 %v1114, 0.35355338
    %v1196 = vmul.f32 %v1192, 0.35355338
    %v1197 = vsel %vm527, -1e+09, %v1195
    %v1198 = vsel %vm528, -1e+09, %v1196
    %v1199 = vsel %vm373, %v1197, -inf
    %1200 = vmax.xlane.f32.xlu0 %v1199
    %v1201 = vpop.xlane.xlu0 %1200
    %v1202 = vsel %vm373, %v1198, -inf
    %1203 = vmax.xlane.f32.xlu0 %v1202
    %v1204 = vpop.xlane.xlu0 %1203
    %v1205 = vsub.f32 %v1197, %v1201
    %v1206 = vsub.f32 %v1198, %v1204
    %v1207 = vmul.f32 %v1205, 1.442695
    %v1208 = vpow.pop %v1207
    %v1209 = vmul.f32 %v1206, 1.442695
    %v1210 = vpow.pop %v1209
    %v1211 = vsel %vm373, %v1208, 0.0
    %1212 = vadd.xlane.f32.xlu0 %v1211
    %v1213 = vpop.xlane.xlu0 %1212
    %v1214 = vsel %vm373, %v1210, 0.0
    %1215 = vadd.xlane.f32.xlu0 %v1214
    %v1216 = vpop.xlane.xlu0 %1215
    %v1217 = vrcp.pop %v1213
    %v1218 = vmul.f32 %v1208, %v1217
    %v1219 = vrcp.pop %v1216
    %v1220 = vmul.f32 %v1210, %v1219
    %1221 = vrot.lane.b32.xlu0 %v362, 48
    %v1222 = vpop.permute.xlu0 %1221
    %v1225 = vsel %vm373, %v1218, 0
    %1227 = vmatprep.subr.mxu0 0.0
    %1228 = vmatpush1.msra.mxu0 %v1222
    %1229 = vmatprep.subr.mxu0 0.0
    %1230 = vmatpush1.msra.mxu0 0.0
    %1231 = vmatprep.subr.mxu0 0.0
    %1232 = vmatpush1.msra.mxu0 0.0
    %1233 = vmatprep.subr.mxu0 0.0
    %1234 = vmatpush1.msra.mxu0 0.0
    %1235 = vmatprep.subr.mxu0 0.0
    %1236 = vmatpush1.msra.mxu0 0.0
    %1237 = vmatprep.subr.mxu0 0.0
    %1238 = vmatpush1.msra.mxu0 0.0
    %1239 = vmatprep.subr.mxu0 0.0
    %1240 = vmatpush1.msra.mxu0 0.0
    %1241 = vmatprep.subr.mxu0 0.0
    %1242 = vmatpush1.msra.mxu0 0.0
    %1243 = vmatprep.subr.mxu0 0.0
    %1244 = vmatpush1.msra.mxu0 0.0
    %1245 = vmatprep.subr.mxu0 0.0
    %1246 = vmatpush1.msra.mxu0 0.0
    %1247 = vmatprep.subr.mxu0 0.0
    %1248 = vmatpush1.msra.mxu0 0.0
    %1249 = vmatprep.subr.mxu0 0.0
    %1250 = vmatpush1.msra.mxu0 0.0
    %1251 = vmatprep.subr.mxu0 0.0
    %1252 = vmatpush1.msra.mxu0 0.0
    %1253 = vmatprep.subr.mxu0 0.0
    %1254 = vmatpush1.msra.mxu0 0.0
    %1255 = vmatprep.subr.mxu0 0.0
    %1256 = vmatpush1.msra.mxu0 0.0
    %1257 = vmatprep.subr.mxu0 0.0
    %1258 = vmatpush1.msra.mxu0 0.0
    %1259 = vmatprep.subr.mxu0 0.0
    %1260 = vmatpush1.msra.mxu0 0.0
    %1261 = vmatprep.subr.mxu0 0.0
    %1262 = vmatpush1.msra.mxu0 0.0
    %1263 = vmatprep.subr.mxu0 0.0
    %1264 = vmatpush1.msra.mxu0 0.0
    %1265 = vmatprep.subr.mxu0 0.0
    %1266 = vmatpush1.msra.mxu0 0.0
    %1267 = vmatprep.subr.mxu0 0.0
    %1268 = vmatpush1.msra.mxu0 0.0
    %1269 = vmatprep.subr.mxu0 0.0
    %1270 = vmatpush1.msra.mxu0 0.0
    %1271 = vmatprep.subr.mxu0 0.0
    %1272 = vmatpush1.msra.mxu0 0.0
    %1273 = vmatprep.subr.mxu0 0.0
    %1274 = vmatpush1.msra.mxu0 0.0
    %1275 = vmatprep.subr.mxu0 0.0
    %1276 = vmatpush1.msra.mxu0 0.0
    %1277 = vmatprep.subr.mxu0 0.0
    %1278 = vmatpush1.msra.mxu0 0.0
    %1279 = vmatprep.subr.mxu0 0.0
    %1280 = vmatpush1.msra.mxu0 0.0
    %1281 = vmatprep.subr.mxu0 0.0
    %1282 = vmatpush1.msra.mxu0 0.0
    %1283 = vmatprep.subr.mxu0 0.0
    %1284 = vmatpush1.msra.mxu0 0.0
    %1285 = vmatprep.subr.mxu0 0.0
    %1286 = vmatpush1.msra.mxu0 0.0
    %1287 = vmatprep.subr.mxu0 0.0
    %1288 = vmatpush1.msra.mxu0 0.0
    %1289 = vmatprep.subr.mxu0 0.0
    %1290 = vmatpush1.msra.mxu0 0.0
    %1291 = vmatprep.mubr.f32.mxu0 0.0
    %1292 = vmatmul.mubr.f32.gmra.mrb[0].mxu0 %v1225
    %v1293 = vpop.f32.mrb[0].mxu0
    %v1294 = vadd.f32 0.0, %v1293
    %v1295 = vpop.f32.mrb[0].mxu0
    %1296 = vdwg.mxu0
    %1297 = vrot.lane.b32.xlu0 %v367, 48
    %v1298 = vpop.permute.xlu0 %1297
    %v1301 = vsel %vm373, %v1220, 0
    %1303 = vmatprep.subr.mxu0 0.0
    %1304 = vmatpush1.msra.mxu0 %v1298
    %1305 = vmatprep.subr.mxu0 0.0
    %1306 = vmatpush1.msra.mxu0 0.0
    %1307 = vmatprep.subr.mxu0 0.0
    %1308 = vmatpush1.msra.mxu0 0.0
    %1309 = vmatprep.subr.mxu0 0.0
    %1310 = vmatpush1.msra.mxu0 0.0
    %1311 = vmatprep.subr.mxu0 0.0
    %1312 = vmatpush1.msra.mxu0 0.0
    %1313 = vmatprep.subr.mxu0 0.0
    %1314 = vmatpush1.msra.mxu0 0.0
    %1315 = vmatprep.subr.mxu0 0.0
    %1316 = vmatpush1.msra.mxu0 0.0
    %1317 = vmatprep.subr.mxu0 0.0
    %1318 = vmatpush1.msra.mxu0 0.0
    %1319 = vmatprep.subr.mxu0 0.0
    %1320 = vmatpush1.msra.mxu0 0.0
    %1321 = vmatprep.subr.mxu0 0.0
    %1322 = vmatpush1.msra.mxu0 0.0
    %1323 = vmatprep.subr.mxu0 0.0
    %1324 = vmatpush1.msra.mxu0 0.0
    %1325 = vmatprep.subr.mxu0 0.0
    %1326 = vmatpush1.msra.mxu0 0.0
    %1327 = vmatprep.subr.mxu0 0.0
    %1328 = vmatpush1.msra.mxu0 0.0
    %1329 = vmatprep.subr.mxu0 0.0
    %1330 = vmatpush1.msra.mxu0 0.0
    %1331 = vmatprep.subr.mxu0 0.0
    %1332 = vmatpush1.msra.mxu0 0.0
    %1333 = vmatprep.subr.mxu0 0.0
    %1334 = vmatpush1.msra.mxu0 0.0
    %1335 = vmatprep.subr.mxu0 0.0
    %1336 = vmatpush1.msra.mxu0 0.0
    %1337 = vmatprep.subr.mxu0 0.0
    %1338 = vmatpush1.msra.mxu0 0.0
    %1339 = vmatprep.subr.mxu0 0.0
    %1340 = vmatpush1.msra.mxu0 0.0
    %1341 = vmatprep.subr.mxu0 0.0
    %1342 = vmatpush1.msra.mxu0 0.0
    %1343 = vmatprep.subr.mxu0 0.0
    %1344 = vmatpush1.msra.mxu0 0.0
    %1345 = vmatprep.subr.mxu0 0.0
    %1346 = vmatpush1.msra.mxu0 0.0
    %1347 = vmatprep.subr.mxu0 0.0
    %1348 = vmatpush1.msra.mxu0 0.0
    %1349 = vmatprep.subr.mxu0 0.0
    %1350 = vmatpush1.msra.mxu0 0.0
    %1351 = vmatprep.subr.mxu0 0.0
    %1352 = vmatpush1.msra.mxu0 0.0
    %1353 = vmatprep.subr.mxu0 0.0
    %1354 = vmatpush1.msra.mxu0 0.0
    %1355 = vmatprep.subr.mxu0 0.0
    %1356 = vmatpush1.msra.mxu0 0.0
    %1357 = vmatprep.subr.mxu0 0.0
    %1358 = vmatpush1.msra.mxu0 0.0
    %1359 = vmatprep.subr.mxu0 0.0
    %1360 = vmatpush1.msra.mxu0 0.0
    %1361 = vmatprep.subr.mxu0 0.0
    %1362 = vmatpush1.msra.mxu0 0.0
    %1363 = vmatprep.subr.mxu0 0.0
    %1364 = vmatpush1.msra.mxu0 0.0
    %1365 = vmatprep.subr.mxu0 0.0
    %1366 = vmatpush1.msra.mxu0 0.0
    %1367 = vmatprep.mubr.f32.mxu0 0.0
    %1368 = vmatmul.mubr.f32.gmra.mrb[0].mxu0 %v1301
    %v1369 = vpop.f32.mrb[0].mxu0
    %v1370 = vadd.f32 0.0, %v1369
    %v1371 = vpop.f32.mrb[0].mxu0
    %1372 = vdwg.mxu0
    %1373 = vrot.lane.b32.xlu0 %v362, 104
    %v1374 = vpop.permute.xlu0 %1373
    %1375 = vrot.lane.b32.xlu0 %v362, 72
    %v1376 = vpop.permute.xlu0 %1375
    %v1377 = vsel %vm373, %v1374, 0
    %v1379 = vsel %vm373, %v1376, 0
    %1381 = vmatprep.subr.mxu0 0.0
    %1382 = vmatpush1.xpose.msra.mxu0 %v1379
    %1383 = vmatprep.subr.mxu0 0.0
    %1384 = vmatpush1.xpose.msra.mxu0 0.0
    %1385 = vmatprep.subr.mxu0 0.0
    %1386 = vmatpush1.xpose.msra.mxu0 0.0
    %1387 = vmatprep.subr.mxu0 0.0
    %1388 = vmatpush1.xpose.msra.mxu0 0.0
    %1389 = vmatprep.subr.mxu0 0.0
    %1390 = vmatpush1.xpose.msra.mxu0 0.0
    %1391 = vmatprep.subr.mxu0 0.0
    %1392 = vmatpush1.xpose.msra.mxu0 0.0
    %1393 = vmatprep.subr.mxu0 0.0
    %1394 = vmatpush1.xpose.msra.mxu0 0.0
    %1395 = vmatprep.subr.mxu0 0.0
    %1396 = vmatpush1.xpose.msra.mxu0 0.0
    %1397 = vmatprep.subr.mxu0 0.0
    %1398 = vmatpush1.xpose.msra.mxu0 0.0
    %1399 = vmatprep.subr.mxu0 0.0
    %1400 = vmatpush1.xpose.msra.mxu0 0.0
    %1401 = vmatprep.subr.mxu0 0.0
    %1402 = vmatpush1.xpose.msra.mxu0 0.0
    %1403 = vmatprep.subr.mxu0 0.0
    %1404 = vmatpush1.xpose.msra.mxu0 0.0
    %1405 = vmatprep.subr.mxu0 0.0
    %1406 = vmatpush1.xpose.msra.mxu0 0.0
    %1407 = vmatprep.subr.mxu0 0.0
    %1408 = vmatpush1.xpose.msra.mxu0 0.0
    %1409 = vmatprep.subr.mxu0 0.0
    %1410 = vmatpush1.xpose.msra.mxu0 0.0
    %1411 = vmatprep.subr.mxu0 0.0
    %1412 = vmatpush1.xpose.msra.mxu0 0.0
    %1413 = vmatprep.subr.mxu0 0.0
    %1414 = vmatpush1.xpose.msra.mxu0 0.0
    %1415 = vmatprep.subr.mxu0 0.0
    %1416 = vmatpush1.xpose.msra.mxu0 0.0
    %1417 = vmatprep.subr.mxu0 0.0
    %1418 = vmatpush1.xpose.msra.mxu0 0.0
    %1419 = vmatprep.subr.mxu0 0.0
    %1420 = vmatpush1.xpose.msra.mxu0 0.0
    %1421 = vmatprep.subr.mxu0 0.0
    %1422 = vmatpush1.xpose.msra.mxu0 0.0
    %1423 = vmatprep.subr.mxu0 0.0
    %1424 = vmatpush1.xpose.msra.mxu0 0.0
    %1425 = vmatprep.subr.mxu0 0.0
    %1426 = vmatpush1.xpose.msra.mxu0 0.0
    %1427 = vmatprep.subr.mxu0 0.0
    %1428 = vmatpush1.xpose.msra.mxu0 0.0
    %1429 = vmatprep.subr.mxu0 0.0
    %1430 = vmatpush1.xpose.msra.mxu0 0.0
    %1431 = vmatprep.subr.mxu0 0.0
    %1432 = vmatpush1.xpose.msra.mxu0 0.0
    %1433 = vmatprep.subr.mxu0 0.0
    %1434 = vmatpush1.xpose.msra.mxu0 0.0
    %1435 = vmatprep.subr.mxu0 0.0
    %1436 = vmatpush1.xpose.msra.mxu0 0.0
    %1437 = vmatprep.subr.mxu0 0.0
    %1438 = vmatpush1.xpose.msra.mxu0 0.0
    %1439 = vmatprep.subr.mxu0 0.0
    %1440 = vmatpush1.xpose.msra.mxu0 0.0
    %1441 = vmatprep.subr.mxu0 0.0
    %1442 = vmatpush1.xpose.msra.mxu0 0.0
    %1443 = vmatprep.subr.mxu0 0.0
    %1444 = vmatpush1.xpose.msra.mxu0 0.0
    %1445 = vmatprep.mubr.f32.mxu0 0.0
    %1446 = vmatmul.mubr.f32.gmra.mrb[0].mxu0 %v1377
    %v1447 = vpop.f32.mrb[0].mxu0
    %v1448 = vadd.f32 0.0, %v1447
    %v1449 = vpop.f32.mrb[0].mxu0
    %1450 = vdwg.mxu0
    %1451 = vrot.lane.b32.xlu0 %v367, 104
    %v1452 = vpop.permute.xlu0 %1451
    %1453 = vrot.lane.b32.xlu0 %v367, 72
    %v1454 = vpop.permute.xlu0 %1453
    %v1455 = vsel %vm373, %v1452, 0
    %v1457 = vsel %vm373, %v1454, 0
    %1459 = vmatprep.subr.mxu0 0.0
    %1460 = vmatpush1.xpose.msra.mxu0 %v1457
    %1461 = vmatprep.subr.mxu0 0.0
    %1462 = vmatpush1.xpose.msra.mxu0 0.0
    %1463 = vmatprep.subr.mxu0 0.0
    %1464 = vmatpush1.xpose.msra.mxu0 0.0
    %1465 = vmatprep.subr.mxu0 0.0
    %1466 = vmatpush1.xpose.msra.mxu0 0.0
    %1467 = vmatprep.subr.mxu0 0.0
    %1468 = vmatpush1.xpose.msra.mxu0 0.0
    %1469 = vmatprep.subr.mxu0 0.0
    %1470 = vmatpush1.xpose.msra.mxu0 0.0
    %1471 = vmatprep.subr.mxu0 0.0
    %1472 = vmatpush1.xpose.msra.mxu0 0.0
    %1473 = vmatprep.subr.mxu0 0.0
    %1474 = vmatpush1.xpose.msra.mxu0 0.0
    %1475 = vmatprep.subr.mxu0 0.0
    %1476 = vmatpush1.xpose.msra.mxu0 0.0
    %1477 = vmatprep.subr.mxu0 0.0
    %1478 = vmatpush1.xpose.msra.mxu0 0.0
    %1479 = vmatprep.subr.mxu0 0.0
    %1480 = vmatpush1.xpose.msra.mxu0 0.0
    %1481 = vmatprep.subr.mxu0 0.0
    %1482 = vmatpush1.xpose.msra.mxu0 0.0
    %1483 = vmatprep.subr.mxu0 0.0
    %1484 = vmatpush1.xpose.msra.mxu0 0.0
    %1485 = vmatprep.subr.mxu0 0.0
    %1486 = vmatpush1.xpose.msra.mxu0 0.0
    %1487 = vmatprep.subr.mxu0 0.0
    %1488 = vmatpush1.xpose.msra.mxu0 0.0
    %1489 = vmatprep.subr.mxu0 0.0
    %1490 = vmatpush1.xpose.msra.mxu0 0.0
    %1491 = vmatprep.subr.mxu0 0.0
    %1492 = vmatpush1.xpose.msra.mxu0 0.0
    %1493 = vmatprep.subr.mxu0 0.0
    %1494 = vmatpush1.xpose.msra.mxu0 0.0
    %1495 = vmatprep.subr.mxu0 0.0
    %1496 = vmatpush1.xpose.msra.mxu0 0.0
    %1497 = vmatprep.subr.mxu0 0.0
    %1498 = vmatpush1.xpose.msra.mxu0 0.0
    %1499 = vmatprep.subr.mxu0 0.0
    %1500 = vmatpush1.xpose.msra.mxu0 0.0
    %1501 = vmatprep.subr.mxu0 0.0
    %1502 = vmatpush1.xpose.msra.mxu0 0.0
    %1503 = vmatprep.subr.mxu0 0.0
    %1504 = vmatpush1.xpose.msra.mxu0 0.0
    %1505 = vmatprep.subr.mxu0 0.0
    %1506 = vmatpush1.xpose.msra.mxu0 0.0
    %1507 = vmatprep.subr.mxu0 0.0
    %1508 = vmatpush1.xpose.msra.mxu0 0.0
    %1509 = vmatprep.subr.mxu0 0.0
    %1510 = vmatpush1.xpose.msra.mxu0 0.0
    %1511 = vmatprep.subr.mxu0 0.0
    %1512 = vmatpush1.xpose.msra.mxu0 0.0
    %1513 = vmatprep.subr.mxu0 0.0
    %1514 = vmatpush1.xpose.msra.mxu0 0.0
    %1515 = vmatprep.subr.mxu0 0.0
    %1516 = vmatpush1.xpose.msra.mxu0 0.0
    %1517 = vmatprep.subr.mxu0 0.0
    %1518 = vmatpush1.xpose.msra.mxu0 0.0
    %1519 = vmatprep.subr.mxu0 0.0
    %1520 = vmatpush1.xpose.msra.mxu0 0.0
    %1521 = vmatprep.subr.mxu0 0.0
    %1522 = vmatpush1.xpose.msra.mxu0 0.0
    %1523 = vmatprep.mubr.f32.mxu0 0.0
    %1524 = vmatmul.mubr.f32.gmra.mrb[0].mxu0 %v1455
    %v1525 = vpop.f32.mrb[0].mxu0
    %v1526 = vadd.f32 0.0, %v1525
    %v1527 = vpop.f32.mrb[0].mxu0
    %1528 = vdwg.mxu0
    %v1529 = vmul.f32 %v1448, 0.35355338
    %v1530 = vmul.f32 %v1526, 0.35355338
    %v1531 = vsel %vm527, -1e+09, %v1529
    %v1532 = vsel %vm528, -1e+09, %v1530
    %v1533 = vsel %vm373, %v1531, -inf
    %1534 = vmax.xlane.f32.xlu0 %v1533
    %v1535 = vpop.xlane.xlu0 %1534
    %v1536 = vsel %vm373, %v1532, -inf
    %1537 = vmax.xlane.f32.xlu0 %v1536
    %v1538 = vpop.xlane.xlu0 %1537
    %v1539 = vsub.f32 %v1531, %v1535
    %v1540 = vsub.f32 %v1532, %v1538
    %v1541 = vmul.f32 %v1539, 1.442695
    %v1542 = vpow.pop %v1541
    %v1543 = vmul.f32 %v1540, 1.442695
    %v1544 = vpow.pop %v1543
    %v1545 = vsel %vm373, %v1542, 0.0
    %1546 = vadd.xlane.f32.xlu0 %v1545
    %v1547 = vpop.xlane.xlu0 %1546
    %v1548 = vsel %vm373, %v1544, 0.0
    %1549 = vadd.xlane.f32.xlu0 %v1548
    %v1550 = vpop.xlane.xlu0 %1549
    %v1551 = vrcp.pop %v1547
    %v1552 = vmul.f32 %v1542, %v1551
    %v1553 = vrcp.pop %v1550
    %v1554 = vmul.f32 %v1544, %v1553
    %1555 = vrot.lane.b32.xlu0 %v362, 40
    %v1556 = vpop.permute.xlu0 %1555
    %v1559 = vsel %vm373, %v1552, 0
    %1561 = vmatprep.subr.mxu0 0.0
    %1562 = vmatpush1.msra.mxu0 %v1556
    %1563 = vmatprep.subr.mxu0 0.0
    %1564 = vmatpush1.msra.mxu0 0.0
    %1565 = vmatprep.subr.mxu0 0.0
    %1566 = vmatpush1.msra.mxu0 0.0
    %1567 = vmatprep.subr.mxu0 0.0
    %1568 = vmatpush1.msra.mxu0 0.0
    %1569 = vmatprep.subr.mxu0 0.0
    %1570 = vmatpush1.msra.mxu0 0.0
    %1571 = vmatprep.subr.mxu0 0.0
    %1572 = vmatpush1.msra.mxu0 0.0
    %1573 = vmatprep.subr.mxu0 0.0
    %1574 = vmatpush1.msra.mxu0 0.0
    %1575 = vmatprep.subr.mxu0 0.0
    %1576 = vmatpush1.msra.mxu0 0.0
    %1577 = vmatprep.subr.mxu0 0.0
    %1578 = vmatpush1.msra.mxu0 0.0
    %1579 = vmatprep.subr.mxu0 0.0
    %1580 = vmatpush1.msra.mxu0 0.0
    %1581 = vmatprep.subr.mxu0 0.0
    %1582 = vmatpush1.msra.mxu0 0.0
    %1583 = vmatprep.subr.mxu0 0.0
    %1584 = vmatpush1.msra.mxu0 0.0
    %1585 = vmatprep.subr.mxu0 0.0
    %1586 = vmatpush1.msra.mxu0 0.0
    %1587 = vmatprep.subr.mxu0 0.0
    %1588 = vmatpush1.msra.mxu0 0.0
    %1589 = vmatprep.subr.mxu0 0.0
    %1590 = vmatpush1.msra.mxu0 0.0
    %1591 = vmatprep.subr.mxu0 0.0
    %1592 = vmatpush1.msra.mxu0 0.0
    %1593 = vmatprep.subr.mxu0 0.0
    %1594 = vmatpush1.msra.mxu0 0.0
    %1595 = vmatprep.subr.mxu0 0.0
    %1596 = vmatpush1.msra.mxu0 0.0
    %1597 = vmatprep.subr.mxu0 0.0
    %1598 = vmatpush1.msra.mxu0 0.0
    %1599 = vmatprep.subr.mxu0 0.0
    %1600 = vmatpush1.msra.mxu0 0.0
    %1601 = vmatprep.subr.mxu0 0.0
    %1602 = vmatpush1.msra.mxu0 0.0
    %1603 = vmatprep.subr.mxu0 0.0
    %1604 = vmatpush1.msra.mxu0 0.0
    %1605 = vmatprep.subr.mxu0 0.0
    %1606 = vmatpush1.msra.mxu0 0.0
    %1607 = vmatprep.subr.mxu0 0.0
    %1608 = vmatpush1.msra.mxu0 0.0
    %1609 = vmatprep.subr.mxu0 0.0
    %1610 = vmatpush1.msra.mxu0 0.0
    %1611 = vmatprep.subr.mxu0 0.0
    %1612 = vmatpush1.msra.mxu0 0.0
    %1613 = vmatprep.subr.mxu0 0.0
    %1614 = vmatpush1.msra.mxu0 0.0
    %1615 = vmatprep.subr.mxu0 0.0
    %1616 = vmatpush1.msra.mxu0 0.0
    %1617 = vmatprep.subr.mxu0 0.0
    %1618 = vmatpush1.msra.mxu0 0.0
    %1619 = vmatprep.subr.mxu0 0.0
    %1620 = vmatpush1.msra.mxu0 0.0
    %1621 = vmatprep.subr.mxu0 0.0
    %1622 = vmatpush1.msra.mxu0 0.0
    %1623 = vmatprep.subr.mxu0 0.0
    %1624 = vmatpush1.msra.mxu0 0.0
    %1625 = vmatprep.mubr.f32.mxu0 0.0
    %1626 = vmatmul.mubr.f32.gmra.mrb[0].mxu0 %v1559
    %v1627 = vpop.f32.mrb[0].mxu0
    %v1628 = vadd.f32 0.0, %v1627
    %v1629 = vpop.f32.mrb[0].mxu0
    %1630 = vdwg.mxu0
    %1631 = vrot.lane.b32.xlu0 %v367, 40
    %v1632 = vpop.permute.xlu0 %1631
    %v1635 = vsel %vm373, %v1554, 0
    %1637 = vmatprep.subr.mxu0 0.0
    %1638 = vmatpush1.msra.mxu0 %v1632
    %1639 = vmatprep.subr.mxu0 0.0
    %1640 = vmatpush1.msra.mxu0 0.0
    %1641 = vmatprep.subr.mxu0 0.0
    %1642 = vmatpush1.msra.mxu0 0.0
    %1643 = vmatprep.subr.mxu0 0.0
    %1644 = vmatpush1.msra.mxu0 0.0
    %1645 = vmatprep.subr.mxu0 0.0
    %1646 = vmatpush1.msra.mxu0 0.0
    %1647 = vmatprep.subr.mxu0 0.0
    %1648 = vmatpush1.msra.mxu0 0.0
    %1649 = vmatprep.subr.mxu0 0.0
    %1650 = vmatpush1.msra.mxu0 0.0
    %1651 = vmatprep.subr.mxu0 0.0
    %1652 = vmatpush1.msra.mxu0 0.0
    %1653 = vmatprep.subr.mxu0 0.0
    %1654 = vmatpush1.msra.mxu0 0.0
    %1655 = vmatprep.subr.mxu0 0.0
    %1656 = vmatpush1.msra.mxu0 0.0
    %1657 = vmatprep.subr.mxu0 0.0
    %1658 = vmatpush1.msra.mxu0 0.0
    %1659 = vmatprep.subr.mxu0 0.0
    %1660 = vmatpush1.msra.mxu0 0.0
    %1661 = vmatprep.subr.mxu0 0.0
    %1662 = vmatpush1.msra.mxu0 0.0
    %1663 = vmatprep.subr.mxu0 0.0
    %1664 = vmatpush1.msra.mxu0 0.0
    %1665 = vmatprep.subr.mxu0 0.0
    %1666 = vmatpush1.msra.mxu0 0.0
    %1667 = vmatprep.subr.mxu0 0.0
    %1668 = vmatpush1.msra.mxu0 0.0
    %1669 = vmatprep.subr.mxu0 0.0
    %1670 = vmatpush1.msra.mxu0 0.0
    %1671 = vmatprep.subr.mxu0 0.0
    %1672 = vmatpush1.msra.mxu0 0.0
    %1673 = vmatprep.subr.mxu0 0.0
    %1674 = vmatpush1.msra.mxu0 0.0
    %1675 = vmatprep.subr.mxu0 0.0
    %1676 = vmatpush1.msra.mxu0 0.0
    %1677 = vmatprep.subr.mxu0 0.0
    %1678 = vmatpush1.msra.mxu0 0.0
    %1679 = vmatprep.subr.mxu0 0.0
    %1680 = vmatpush1.msra.mxu0 0.0
    %1681 = vmatprep.subr.mxu0 0.0
    %1682 = vmatpush1.msra.mxu0 0.0
    %1683 = vmatprep.subr.mxu0 0.0
    %1684 = vmatpush1.msra.mxu0 0.0
    %1685 = vmatprep.subr.mxu0 0.0
    %1686 = vmatpush1.msra.mxu0 0.0
    %1687 = vmatprep.subr.mxu0 0.0
    %1688 = vmatpush1.msra.mxu0 0.0
    %1689 = vmatprep.subr.mxu0 0.0
    %1690 = vmatpush1.msra.mxu0 0.0
    %1691 = vmatprep.subr.mxu0 0.0
    %1692 = vmatpush1.msra.mxu0 0.0
    %1693 = vmatprep.subr.mxu0 0.0
    %1694 = vmatpush1.msra.mxu0 0.0
    %1695 = vmatprep.subr.mxu0 0.0
    %1696 = vmatpush1.msra.mxu0 0.0
    %1697 = vmatprep.subr.mxu0 0.0
    %1698 = vmatpush1.msra.mxu0 0.0
    %1699 = vmatprep.subr.mxu0 0.0
    %1700 = vmatpush1.msra.mxu0 0.0
    %1701 = vmatprep.mubr.f32.mxu0 0.0
    %1702 = vmatmul.mubr.f32.gmra.mrb[0].mxu0 %v1635
    %v1703 = vpop.f32.mrb[0].mxu0
    %v1704 = vadd.f32 0.0, %v1703
    %v1705 = vpop.f32.mrb[0].mxu0
    %1706 = vdwg.mxu0
    %1709 = vrot.lane.b32.xlu0 %v960, 8
    %v1710 = vpop.permute.xlu0 %1709
    %1711 = vrot.lane.b32.xlu0 %v1036, 8
    %v1712 = vpop.permute.xlu0 %1711
    %1717 = vrot.lane.b32.xlu0 %v1294, 16
    %v1718 = vpop.permute.xlu0 %1717
    %1719 = vrot.lane.b32.xlu0 %v1370, 16
    %v1720 = vpop.permute.xlu0 %1719
    %1725 = vrot.lane.b32.xlu0 %v1628, 24
    %v1726 = vpop.permute.xlu0 %1725
    %1727 = vrot.lane.b32.xlu0 %v1704, 24
    %v1728 = vpop.permute.xlu0 %1727
    %v1731 = vsel %vm373, %v626, %v1710
    %v1732 = vsel %vm373, %v702, %v1712
    %vm1733 = vcmask 130048
    %v1734 = vsel %vm1733, %v1731, %v1718
    %v1735 = vsel %vm1733, %v1732, %v1720
    %vm1736 = vcmask 195584
    %v1737 = vsel %vm1736, %v1734, %v1726
    %v1738 = vsel %vm1736, %v1735, %v1728
    %v1740 = vlaneseq
    %v1741 = vshrl.u32 %v1740, 7
    %v1742 = vsub.s32 0, %v1741
    %v1743 = vrot.slane %v97, %v1742
    %v1746 = vsel %vm141, %v1737, 0
    %v1749 = vsel %vm141, %v1738, 0
    %1751 = vmatprep.subr.mxu0 0.0
    %1752 = vmatpush1.msra.mxu0 %v93
    %1753 = vmatprep.subr.mxu0 0.0
    %1754 = vmatpush1.msra.mxu0 %v94
    %1755 = vmatprep.subr.mxu0 0.0
    %1756 = vmatpush1.msra.mxu0 %v95
    %1757 = vmatprep.subr.mxu0 0.0
    %1758 = vmatpush1.msra.mxu0 %v96
    %1759 = vmatprep.subr.mxu0 0.0
    %1760 = vmatpush1.msra.mxu0 0.0
    %1761 = vmatprep.subr.mxu0 0.0
    %1762 = vmatpush1.msra.mxu0 0.0
    %1763 = vmatprep.subr.mxu0 0.0
    %1764 = vmatpush1.msra.mxu0 0.0
    %1765 = vmatprep.subr.mxu0 0.0
    %1766 = vmatpush1.msra.mxu0 0.0
    %1767 = vmatprep.subr.mxu0 0.0
    %1768 = vmatpush1.msra.mxu0 0.0
    %1769 = vmatprep.subr.mxu0 0.0
    %1770 = vmatpush1.msra.mxu0 0.0
    %1771 = vmatprep.subr.mxu0 0.0
    %1772 = vmatpush1.msra.mxu0 0.0
    %1773 = vmatprep.subr.mxu0 0.0
    %1774 = vmatpush1.msra.mxu0 0.0
    %1775 = vmatprep.subr.mxu0 0.0
    %1776 = vmatpush1.msra.mxu0 0.0
    %1777 = vmatprep.subr.mxu0 0.0
    %1778 = vmatpush1.msra.mxu0 0.0
    %1779 = vmatprep.subr.mxu0 0.0
    %1780 = vmatpush1.msra.mxu0 0.0
    %1781 = vmatprep.subr.mxu0 0.0
    %1782 = vmatpush1.msra.mxu0 0.0
    %1783 = vmatprep.subr.mxu0 0.0
    %1784 = vmatpush1.msra.mxu0 0.0
    %1785 = vmatprep.subr.mxu0 0.0
    %1786 = vmatpush1.msra.mxu0 0.0
    %1787 = vmatprep.subr.mxu0 0.0
    %1788 = vmatpush1.msra.mxu0 0.0
    %1789 = vmatprep.subr.mxu0 0.0
    %1790 = vmatpush1.msra.mxu0 0.0
    %1791 = vmatprep.subr.mxu0 0.0
    %1792 = vmatpush1.msra.mxu0 0.0
    %1793 = vmatprep.subr.mxu0 0.0
    %1794 = vmatpush1.msra.mxu0 0.0
    %1795 = vmatprep.subr.mxu0 0.0
    %1796 = vmatpush1.msra.mxu0 0.0
    %1797 = vmatprep.subr.mxu0 0.0
    %1798 = vmatpush1.msra.mxu0 0.0
    %1799 = vmatprep.subr.mxu0 0.0
    %1800 = vmatpush1.msra.mxu0 0.0
    %1801 = vmatprep.subr.mxu0 0.0
    %1802 = vmatpush1.msra.mxu0 0.0
    %1803 = vmatprep.subr.mxu0 0.0
    %1804 = vmatpush1.msra.mxu0 0.0
    %1805 = vmatprep.subr.mxu0 0.0
    %1806 = vmatpush1.msra.mxu0 0.0
    %1807 = vmatprep.subr.mxu0 0.0
    %1808 = vmatpush1.msra.mxu0 0.0
    %1809 = vmatprep.subr.mxu0 0.0
    %1810 = vmatpush1.msra.mxu0 0.0
    %1811 = vmatprep.subr.mxu0 0.0
    %1812 = vmatpush1.msra.mxu0 0.0
    %1813 = vmatprep.subr.mxu0 0.0
    %1814 = vmatpush1.msra.mxu0 0.0
    %1815 = vmatprep.mubr.f32.mxu0 0.0
    %1816 = vmatmul.mubr.f32.gmra.mrb[0].mxu0 %v1746
    %v1817 = vpop.f32.mrb[0].mxu0
    %v1818 = vadd.f32 %v1743, %v1817
    %v1819 = vpop.f32.mrb[0].mxu0
    %1820 = vmatprep.mubr.f32.mxu0 0.0
    %1821 = vmatmul.mubr.f32.gmra.mrb[0].mxu0 %v1749
    %v1822 = vpop.f32.mrb[0].mxu0
    %v1823 = vadd.f32 %v1743, %v1822
    %v1824 = vpop.f32.mrb[0].mxu0
    %1825 = vdwg.mxu0
    %v1826 = vadd.f32 %v223, %v1818
    %v1827 = vadd.f32 %v224, %v1823
    %v1828 = vsel %vm141, %v1826, 0.0
    %1829 = vadd.xlane.f32.xlu0 %v1828
    %v1830 = vpop.xlane.xlu0 %1829
    %v1831 = vsel %vm141, %v1827, 0.0
    %1832 = vadd.xlane.f32.xlu0 %v1831
    %v1833 = vpop.xlane.xlu0 %1832
    %v1834 = vmul.f32 %v1830, %v231
    %v1835 = vmul.f32 %v1833, %v231
    %v1836 = vsub.f32 %v1826, %v1834
    %v1837 = vsub.f32 %v1827, %v1835
    %v1838 = vmul.f32 %v1836, %v1836
    %v1839 = vmul.f32 %v1837, %v1837
    %v1840 = vsel %vm141, %v1838, 0.0
    %1841 = vadd.xlane.f32.xlu0 %v1840
    %v1842 = vpop.xlane.xlu0 %1841
    %v1843 = vsel %vm141, %v1839, 0.0
    %1844 = vadd.xlane.f32.xlu0 %v1843
    %v1845 = vpop.xlane.xlu0 %1844
    %v1846 = vmul.f32 %v1842, %v244
    %v1847 = vmul.f32 %v1845, %v244
    %v1848 = vrsqrt.pop %v1846
    %v1849 = vmul.f32 %v1846, %v1848
    %vm1850 = vcmp.eq.f32.partialorder %v1846, inf
    %v1851 = vsel %vm1850, %v1846, %v1849
    %vm1852 = vcmp.eq.f32.partialorder %v1846, 0.0
    %v1853 = vand.u32 %v1846, 2147483648
    %v1854 = vsel %vm1852, %v1853, %v1851
    %v1855 = vrsqrt.pop %v1847
    %v1856 = vmul.f32 %v1847, %v1855
    %vm1857 = vcmp.eq.f32.partialorder %v1847, inf
    %v1858 = vsel %vm1857, %v1847, %v1856
    %vm1859 = vcmp.eq.f32.partialorder %v1847, 0.0
    %v1860 = vand.u32 %v1847, 2147483648
    %v1861 = vsel %vm1859, %v1860, %v1858
    %v1863 = vlaneseq
    %v1864 = vshrl.u32 %v1863, 7
    %v1865 = vsub.s32 0, %v1864
    %v1866 = vrot.slane %v124, %v1865
    %v1868 = vmul.f32 %v1866, %v1836
    %v1869 = vmul.f32 %v1866, %v1837
    %v1870 = vadd.f32 %v1854, 1e-06
    %v1871 = vadd.f32 %v1861, 1e-06
    %v1872 = vrcp.pop %v1870
    %v1873 = vmul.f32 %v1868, %v1872
    %v1874 = vrcp.pop %v1871
    %v1875 = vmul.f32 %v1869, %v1874
    %v1877 = vlaneseq
    %v1878 = vshrl.u32 %v1877, 7
    %v1879 = vsub.s32 0, %v1878
    %v1880 = vrot.slane %v125, %v1879
    %v1882 = vadd.f32 %v1873, %v1880
    %v1883 = vadd.f32 %v1875, %v1880
    %v1885 = vlaneseq
    %v1886 = vshrl.u32 %v1885, 7
    %v1887 = vsub.s32 0, %v1886
    %v1888 = vrot.slane %v102, %v1887
    %v1891 = vsel %vm141, %v1882, 0
    %v1894 = vsel %vm141, %v1883, 0
    %1896 = vmatprep.subr.mxu0 0.0
    %1897 = vmatpush1.msra.mxu0 %v98
    %1898 = vmatprep.subr.mxu0 0.0
    %1899 = vmatpush1.msra.mxu0 %v99
    %1900 = vmatprep.subr.mxu0 0.0
    %1901 = vmatpush1.msra.mxu0 %v100
    %1902 = vmatprep.subr.mxu0 0.0
    %1903 = vmatpush1.msra.mxu0 %v101
    %1904 = vmatprep.subr.mxu0 0.0
    %1905 = vmatpush1.msra.mxu0 0.0
    %1906 = vmatprep.subr.mxu0 0.0
    %1907 = vmatpush1.msra.mxu0 0.0
    %1908 = vmatprep.subr.mxu0 0.0
    %1909 = vmatpush1.msra.mxu0 0.0
    %1910 = vmatprep.subr.mxu0 0.0
    %1911 = vmatpush1.msra.mxu0 0.0
    %1912 = vmatprep.subr.mxu0 0.0
    %1913 = vmatpush1.msra.mxu0 0.0
    %1914 = vmatprep.subr.mxu0 0.0
    %1915 = vmatpush1.msra.mxu0 0.0
    %1916 = vmatprep.subr.mxu0 0.0
    %1917 = vmatpush1.msra.mxu0 0.0
    %1918 = vmatprep.subr.mxu0 0.0
    %1919 = vmatpush1.msra.mxu0 0.0
    %1920 = vmatprep.subr.mxu0 0.0
    %1921 = vmatpush1.msra.mxu0 0.0
    %1922 = vmatprep.subr.mxu0 0.0
    %1923 = vmatpush1.msra.mxu0 0.0
    %1924 = vmatprep.subr.mxu0 0.0
    %1925 = vmatpush1.msra.mxu0 0.0
    %1926 = vmatprep.subr.mxu0 0.0
    %1927 = vmatpush1.msra.mxu0 0.0
    %1928 = vmatprep.subr.mxu0 0.0
    %1929 = vmatpush1.msra.mxu0 0.0
    %1930 = vmatprep.subr.mxu0 0.0
    %1931 = vmatpush1.msra.mxu0 0.0
    %1932 = vmatprep.subr.mxu0 0.0
    %1933 = vmatpush1.msra.mxu0 0.0
    %1934 = vmatprep.subr.mxu0 0.0
    %1935 = vmatpush1.msra.mxu0 0.0
    %1936 = vmatprep.subr.mxu0 0.0
    %1937 = vmatpush1.msra.mxu0 0.0
    %1938 = vmatprep.subr.mxu0 0.0
    %1939 = vmatpush1.msra.mxu0 0.0
    %1940 = vmatprep.subr.mxu0 0.0
    %1941 = vmatpush1.msra.mxu0 0.0
    %1942 = vmatprep.subr.mxu0 0.0
    %1943 = vmatpush1.msra.mxu0 0.0
    %1944 = vmatprep.subr.mxu0 0.0
    %1945 = vmatpush1.msra.mxu0 0.0
    %1946 = vmatprep.subr.mxu0 0.0
    %1947 = vmatpush1.msra.mxu0 0.0
    %1948 = vmatprep.subr.mxu0 0.0
    %1949 = vmatpush1.msra.mxu0 0.0
    %1950 = vmatprep.subr.mxu0 0.0
    %1951 = vmatpush1.msra.mxu0 0.0
    %1952 = vmatprep.subr.mxu0 0.0
    %1953 = vmatpush1.msra.mxu0 0.0
    %1954 = vmatprep.subr.mxu0 0.0
    %1955 = vmatpush1.msra.mxu0 0.0
    %1956 = vmatprep.subr.mxu0 0.0
    %1957 = vmatpush1.msra.mxu0 0.0
    %1958 = vmatprep.subr.mxu0 0.0
    %1959 = vmatpush1.msra.mxu0 0.0
    %1960 = vmatprep.mubr.f32.mxu0 0.0
    %1961 = vmatmul.mubr.f32.gmra.mrb[0].mxu0 %v1891
    %v1962 = vpop.f32.mrb[0].mxu0
    %v1963 = vadd.f32 %v1888, %v1962
    %v1964 = vpop.f32.mrb[0].mxu0
    %1965 = vmatprep.mubr.f32.mxu0 0.0
    %1966 = vmatmul.mubr.f32.gmra.mrb[0].mxu0 %v1894
    %v1967 = vpop.f32.mrb[0].mxu0
    %v1968 = vadd.f32 %v1888, %v1967
    %v1969 = vpop.f32.mrb[0].mxu0
    %1970 = vdwg.mxu0
    %v1972 = vsel %vm373, %v1963, 0
    %v1975 = vsel %vm373, %v215, 0
    %1977 = vmatprep.subr.mxu0 0.0
    %1978 = vmatpush1.xpose.msra.mxu0 %v1975
    %1979 = vmatprep.subr.mxu0 0.0
    %1980 = vmatpush1.xpose.msra.mxu0 0.0
    %1981 = vmatprep.subr.mxu0 0.0
    %1982 = vmatpush1.xpose.msra.mxu0 0.0
    %1983 = vmatprep.subr.mxu0 0.0
    %1984 = vmatpush1.xpose.msra.mxu0 0.0
    %1985 = vmatprep.subr.mxu0 0.0
    %1986 = vmatpush1.xpose.msra.mxu0 0.0
    %1987 = vmatprep.subr.mxu0 0.0
    %1988 = vmatpush1.xpose.msra.mxu0 0.0
    %1989 = vmatprep.subr.mxu0 0.0
    %1990 = vmatpush1.xpose.msra.mxu0 0.0
    %1991 = vmatprep.subr.mxu0 0.0
    %1992 = vmatpush1.xpose.msra.mxu0 0.0
    %1993 = vmatprep.subr.mxu0 0.0
    %1994 = vmatpush1.xpose.msra.mxu0 0.0
    %1995 = vmatprep.subr.mxu0 0.0
    %1996 = vmatpush1.xpose.msra.mxu0 0.0
    %1997 = vmatprep.subr.mxu0 0.0
    %1998 = vmatpush1.xpose.msra.mxu0 0.0
    %1999 = vmatprep.subr.mxu0 0.0
    %2000 = vmatpush1.xpose.msra.mxu0 0.0
    %2001 = vmatprep.subr.mxu0 0.0
    %2002 = vmatpush1.xpose.msra.mxu0 0.0
    %2003 = vmatprep.subr.mxu0 0.0
    %2004 = vmatpush1.xpose.msra.mxu0 0.0
    %2005 = vmatprep.subr.mxu0 0.0
    %2006 = vmatpush1.xpose.msra.mxu0 0.0
    %2007 = vmatprep.subr.mxu0 0.0
    %2008 = vmatpush1.xpose.msra.mxu0 0.0
    %2009 = vmatprep.subr.mxu0 0.0
    %2010 = vmatpush1.xpose.msra.mxu0 0.0
    %2011 = vmatprep.subr.mxu0 0.0
    %2012 = vmatpush1.xpose.msra.mxu0 0.0
    %2013 = vmatprep.subr.mxu0 0.0
    %2014 = vmatpush1.xpose.msra.mxu0 0.0
    %2015 = vmatprep.subr.mxu0 0.0
    %2016 = vmatpush1.xpose.msra.mxu0 0.0
    %2017 = vmatprep.subr.mxu0 0.0
    %2018 = vmatpush1.xpose.msra.mxu0 0.0
    %2019 = vmatprep.subr.mxu0 0.0
    %2020 = vmatpush1.xpose.msra.mxu0 0.0
    %2021 = vmatprep.subr.mxu0 0.0
    %2022 = vmatpush1.xpose.msra.mxu0 0.0
    %2023 = vmatprep.subr.mxu0 0.0
    %2024 = vmatpush1.xpose.msra.mxu0 0.0
    %2025 = vmatprep.subr.mxu0 0.0
    %2026 = vmatpush1.xpose.msra.mxu0 0.0
    %2027 = vmatprep.subr.mxu0 0.0
    %2028 = vmatpush1.xpose.msra.mxu0 0.0
    %2029 = vmatprep.subr.mxu0 0.0
    %2030 = vmatpush1.xpose.msra.mxu0 0.0
    %2031 = vmatprep.subr.mxu0 0.0
    %2032 = vmatpush1.xpose.msra.mxu0 0.0
    %2033 = vmatprep.subr.mxu0 0.0
    %2034 = vmatpush1.xpose.msra.mxu0 0.0
    %2035 = vmatprep.subr.mxu0 0.0
    %2036 = vmatpush1.xpose.msra.mxu0 0.0
    %2037 = vmatprep.subr.mxu0 0.0
    %2038 = vmatpush1.xpose.msra.mxu0 0.0
    %2039 = vmatprep.subr.mxu0 0.0
    %2040 = vmatpush1.xpose.msra.mxu0 0.0
    %2041 = vmatprep.mubr.f32.mxu0 0.0
    %2042 = vmatmul.mubr.f32.gmra.mrb[0].mxu0 %v1972
    %v2043 = vpop.f32.mrb[0].mxu0
    %v2044 = vadd.f32 0.0, %v2043
    %v2045 = vpop.f32.mrb[0].mxu0
    %2046 = vdwg.mxu0
    %v2048 = vsel %vm373, %v1968, 0
    %v2051 = vsel %vm373, %v220, 0
    %2053 = vmatprep.subr.mxu0 0.0
    %2054 = vmatpush1.xpose.msra.mxu0 %v2051
    %2055 = vmatprep.subr.mxu0 0.0
    %2056 = vmatpush1.xpose.msra.mxu0 0.0
    %2057 = vmatprep.subr.mxu0 0.0
    %2058 = vmatpush1.xpose.msra.mxu0 0.0
    %2059 = vmatprep.subr.mxu0 0.0
    %2060 = vmatpush1.xpose.msra.mxu0 0.0
    %2061 = vmatprep.subr.mxu0 0.0
    %2062 = vmatpush1.xpose.msra.mxu0 0.0
    %2063 = vmatprep.subr.mxu0 0.0
    %2064 = vmatpush1.xpose.msra.mxu0 0.0
    %2065 = vmatprep.subr.mxu0 0.0
    %2066 = vmatpush1.xpose.msra.mxu0 0.0
    %2067 = vmatprep.subr.mxu0 0.0
    %2068 = vmatpush1.xpose.msra.mxu0 0.0
    %2069 = vmatprep.subr.mxu0 0.0
    %2070 = vmatpush1.xpose.msra.mxu0 0.0
    %2071 = vmatprep.subr.mxu0 0.0
    %2072 = vmatpush1.xpose.msra.mxu0 0.0
    %2073 = vmatprep.subr.mxu0 0.0
    %2074 = vmatpush1.xpose.msra.mxu0 0.0
    %2075 = vmatprep.subr.mxu0 0.0
    %2076 = vmatpush1.xpose.msra.mxu0 0.0
    %2077 = vmatprep.subr.mxu0 0.0
    %2078 = vmatpush1.xpose.msra.mxu0 0.0
    %2079 = vmatprep.subr.mxu0 0.0
    %2080 = vmatpush1.xpose.msra.mxu0 0.0
    %2081 = vmatprep.subr.mxu0 0.0
    %2082 = vmatpush1.xpose.msra.mxu0 0.0
    %2083 = vmatprep.subr.mxu0 0.0
    %2084 = vmatpush1.xpose.msra.mxu0 0.0
    %2085 = vmatprep.subr.mxu0 0.0
    %2086 = vmatpush1.xpose.msra.mxu0 0.0
    %2087 = vmatprep.subr.mxu0 0.0
    %2088 = vmatpush1.xpose.msra.mxu0 0.0
    %2089 = vmatprep.subr.mxu0 0.0
    %2090 = vmatpush1.xpose.msra.mxu0 0.0
    %2091 = vmatprep.subr.mxu0 0.0
    %2092 = vmatpush1.xpose.msra.mxu0 0.0
    %2093 = vmatprep.subr.mxu0 0.0
    %2094 = vmatpush1.xpose.msra.mxu0 0.0
    %2095 = vmatprep.subr.mxu0 0.0
    %2096 = vmatpush1.xpose.msra.mxu0 0.0
    %2097 = vmatprep.subr.mxu0 0.0
    %2098 = vmatpush1.xpose.msra.mxu0 0.0
    %2099 = vmatprep.subr.mxu0 0.0
    %2100 = vmatpush1.xpose.msra.mxu0 0.0
    %2101 = vmatprep.subr.mxu0 0.0
    %2102 = vmatpush1.xpose.msra.mxu0 0.0
    %2103 = vmatprep.subr.mxu0 0.0
    %2104 = vmatpush1.xpose.msra.mxu0 0.0
    %2105 = vmatprep.subr.mxu0 0.0
    %2106 = vmatpush1.xpose.msra.mxu0 0.0
    %2107 = vmatprep.subr.mxu0 0.0
    %2108 = vmatpush1.xpose.msra.mxu0 0.0
    %2109 = vmatprep.subr.mxu0 0.0
    %2110 = vmatpush1.xpose.msra.mxu0 0.0
    %2111 = vmatprep.subr.mxu0 0.0
    %2112 = vmatpush1.xpose.msra.mxu0 0.0
    %2113 = vmatprep.subr.mxu0 0.0
    %2114 = vmatpush1.xpose.msra.mxu0 0.0
    %2115 = vmatprep.subr.mxu0 0.0
    %2116 = vmatpush1.xpose.msra.mxu0 0.0
    %2117 = vmatprep.mubr.f32.mxu0 0.0
    %2118 = vmatmul.mubr.f32.gmra.mrb[0].mxu0 %v2048
    %v2119 = vpop.f32.mrb[0].mxu0
    %v2120 = vadd.f32 0.0, %v2119
    %v2121 = vpop.f32.mrb[0].mxu0
    %2122 = vdwg.mxu0
    %v2123 = vmul.f32 %v2044, 0.35355338
    %v2124 = vmul.f32 %v2120, 0.35355338
    %vm2125 = vcmp.eq.f32.partialorder %v86, 0.0
    %vm2126 = vcmp.eq.f32.partialorder %v87, 0.0
    %v2127 = vsel %vm2125, -1e+09, %v2123
    %v2128 = vsel %vm2126, -1e+09, %v2124
    %v2129 = vsel %vm373, %v2127, -inf
    %2130 = vmax.xlane.f32.xlu0 %v2129
    %v2131 = vpop.xlane.xlu0 %2130
    %v2132 = vsel %vm373, %v2128, -inf
    %2133 = vmax.xlane.f32.xlu0 %v2132
    %v2134 = vpop.xlane.xlu0 %2133
    %v2135 = vsub.f32 %v2127, %v2131
    %v2136 = vsub.f32 %v2128, %v2134
    %v2137 = vmul.f32 %v2135, 1.442695
    %v2138 = vpow.pop %v2137
    %v2139 = vmul.f32 %v2136, 1.442695
    %v2140 = vpow.pop %v2139
    %v2141 = vsel %vm373, %v2138, 0.0
    %2142 = vadd.xlane.f32.xlu0 %v2141
    %v2143 = vpop.xlane.xlu0 %2142
    %v2144 = vsel %vm373, %v2140, 0.0
    %2145 = vadd.xlane.f32.xlu0 %v2144
    %v2146 = vpop.xlane.xlu0 %2145
    %v2147 = vrcp.pop %v2143
    %v2148 = vmul.f32 %v2138, %v2147
    %v2149 = vrcp.pop %v2146
    %v2150 = vmul.f32 %v2140, %v2149
    %2151 = vrot.lane.b32.xlu0 %v215, 96
    %v2152 = vpop.permute.xlu0 %2151
    %v2155 = vsel %vm373, %v2148, 0
    %2157 = vmatprep.subr.mxu0 0.0
    %2158 = vmatpush1.msra.mxu0 %v2152
    %2159 = vmatprep.subr.mxu0 0.0
    %2160 = vmatpush1.msra.mxu0 0.0
    %2161 = vmatprep.subr.mxu0 0.0
    %2162 = vmatpush1.msra.mxu0 0.0
    %2163 = vmatprep.subr.mxu0 0.0
    %2164 = vmatpush1.msra.mxu0 0.0
    %2165 = vmatprep.subr.mxu0 0.0
    %2166 = vmatpush1.msra.mxu0 0.0
    %2167 = vmatprep.subr.mxu0 0.0
    %2168 = vmatpush1.msra.mxu0 0.0
    %2169 = vmatprep.subr.mxu0 0.0
    %2170 = vmatpush1.msra.mxu0 0.0
    %2171 = vmatprep.subr.mxu0 0.0
    %2172 = vmatpush1.msra.mxu0 0.0
    %2173 = vmatprep.subr.mxu0 0.0
    %2174 = vmatpush1.msra.mxu0 0.0
    %2175 = vmatprep.subr.mxu0 0.0
    %2176 = vmatpush1.msra.mxu0 0.0
    %2177 = vmatprep.subr.mxu0 0.0
    %2178 = vmatpush1.msra.mxu0 0.0
    %2179 = vmatprep.subr.mxu0 0.0
    %2180 = vmatpush1.msra.mxu0 0.0
    %2181 = vmatprep.subr.mxu0 0.0
    %2182 = vmatpush1.msra.mxu0 0.0
    %2183 = vmatprep.subr.mxu0 0.0
    %2184 = vmatpush1.msra.mxu0 0.0
    %2185 = vmatprep.subr.mxu0 0.0
    %2186 = vmatpush1.msra.mxu0 0.0
    %2187 = vmatprep.subr.mxu0 0.0
    %2188 = vmatpush1.msra.mxu0 0.0
    %2189 = vmatprep.subr.mxu0 0.0
    %2190 = vmatpush1.msra.mxu0 0.0
    %2191 = vmatprep.subr.mxu0 0.0
    %2192 = vmatpush1.msra.mxu0 0.0
    %2193 = vmatprep.subr.mxu0 0.0
    %2194 = vmatpush1.msra.mxu0 0.0
    %2195 = vmatprep.subr.mxu0 0.0
    %2196 = vmatpush1.msra.mxu0 0.0
    %2197 = vmatprep.subr.mxu0 0.0
    %2198 = vmatpush1.msra.mxu0 0.0
    %2199 = vmatprep.subr.mxu0 0.0
    %2200 = vmatpush1.msra.mxu0 0.0
    %2201 = vmatprep.subr.mxu0 0.0
    %2202 = vmatpush1.msra.mxu0 0.0
    %2203 = vmatprep.subr.mxu0 0.0
    %2204 = vmatpush1.msra.mxu0 0.0
    %2205 = vmatprep.subr.mxu0 0.0
    %2206 = vmatpush1.msra.mxu0 0.0
    %2207 = vmatprep.subr.mxu0 0.0
    %2208 = vmatpush1.msra.mxu0 0.0
    %2209 = vmatprep.subr.mxu0 0.0
    %2210 = vmatpush1.msra.mxu0 0.0
    %2211 = vmatprep.subr.mxu0 0.0
    %2212 = vmatpush1.msra.mxu0 0.0
    %2213 = vmatprep.subr.mxu0 0.0
    %2214 = vmatpush1.msra.mxu0 0.0
    %2215 = vmatprep.subr.mxu0 0.0
    %2216 = vmatpush1.msra.mxu0 0.0
    %2217 = vmatprep.subr.mxu0 0.0
    %2218 = vmatpush1.msra.mxu0 0.0
    %2219 = vmatprep.subr.mxu0 0.0
    %2220 = vmatpush1.msra.mxu0 0.0
    %2221 = vmatprep.mubr.f32.mxu0 0.0
    %2222 = vmatmul.mubr.f32.gmra.mrb[0].mxu0 %v2155
    %v2223 = vpop.f32.mrb[0].mxu0
    %v2224 = vadd.f32 0.0, %v2223
    %v2225 = vpop.f32.mrb[0].mxu0
    %2226 = vdwg.mxu0
    %2227 = vrot.lane.b32.xlu0 %v220, 96
    %v2228 = vpop.permute.xlu0 %2227
    %v2231 = vsel %vm373, %v2150, 0
    %2233 = vmatprep.subr.mxu0 0.0
    %2234 = vmatpush1.msra.mxu0 %v2228
    %2235 = vmatprep.subr.mxu0 0.0
    %2236 = vmatpush1.msra.mxu0 0.0
    %2237 = vmatprep.subr.mxu0 0.0
    %2238 = vmatpush1.msra.mxu0 0.0
    %2239 = vmatprep.subr.mxu0 0.0
    %2240 = vmatpush1.msra.mxu0 0.0
    %2241 = vmatprep.subr.mxu0 0.0
    %2242 = vmatpush1.msra.mxu0 0.0
    %2243 = vmatprep.subr.mxu0 0.0
    %2244 = vmatpush1.msra.mxu0 0.0
    %2245 = vmatprep.subr.mxu0 0.0
    %2246 = vmatpush1.msra.mxu0 0.0
    %2247 = vmatprep.subr.mxu0 0.0
    %2248 = vmatpush1.msra.mxu0 0.0
    %2249 = vmatprep.subr.mxu0 0.0
    %2250 = vmatpush1.msra.mxu0 0.0
    %2251 = vmatprep.subr.mxu0 0.0
    %2252 = vmatpush1.msra.mxu0 0.0
    %2253 = vmatprep.subr.mxu0 0.0
    %2254 = vmatpush1.msra.mxu0 0.0
    %2255 = vmatprep.subr.mxu0 0.0
    %2256 = vmatpush1.msra.mxu0 0.0
    %2257 = vmatprep.subr.mxu0 0.0
    %2258 = vmatpush1.msra.mxu0 0.0
    %2259 = vmatprep.subr.mxu0 0.0
    %2260 = vmatpush1.msra.mxu0 0.0
    %2261 = vmatprep.subr.mxu0 0.0
    %2262 = vmatpush1.msra.mxu0 0.0
    %2263 = vmatprep.subr.mxu0 0.0
    %2264 = vmatpush1.msra.mxu0 0.0
    %2265 = vmatprep.subr.mxu0 0.0
    %2266 = vmatpush1.msra.mxu0 0.0
    %2267 = vmatprep.subr.mxu0 0.0
    %2268 = vmatpush1.msra.mxu0 0.0
    %2269 = vmatprep.subr.mxu0 0.0
    %2270 = vmatpush1.msra.mxu0 0.0
    %2271 = vmatprep.subr.mxu0 0.0
    %2272 = vmatpush1.msra.mxu0 0.0
    %2273 = vmatprep.subr.mxu0 0.0
    %2274 = vmatpush1.msra.mxu0 0.0
    %2275 = vmatprep.subr.mxu0 0.0
    %2276 = vmatpush1.msra.mxu0 0.0
    %2277 = vmatprep.subr.mxu0 0.0
    %2278 = vmatpush1.msra.mxu0 0.0
    %2279 = vmatprep.subr.mxu0 0.0
    %2280 = vmatpush1.msra.mxu0 0.0
    %2281 = vmatprep.subr.mxu0 0.0
    %2282 = vmatpush1.msra.mxu0 0.0
    %2283 = vmatprep.subr.mxu0 0.0
    %2284 = vmatpush1.msra.mxu0 0.0
    %2285 = vmatprep.subr.mxu0 0.0
    %2286 = vmatpush1.msra.mxu0 0.0
    %2287 = vmatprep.subr.mxu0 0.0
    %2288 = vmatpush1.msra.mxu0 0.0
    %2289 = vmatprep.subr.mxu0 0.0
    %2290 = vmatpush1.msra.mxu0 0.0
    %2291 = vmatprep.subr.mxu0 0.0
    %2292 = vmatpush1.msra.mxu0 0.0
    %2293 = vmatprep.subr.mxu0 0.0
    %2294 = vmatpush1.msra.mxu0 0.0
    %2295 = vmatprep.subr.mxu0 0.0
    %2296 = vmatpush1.msra.mxu0 0.0
    %2297 = vmatprep.mubr.f32.mxu0 0.0
    %2298 = vmatmul.mubr.f32.gmra.mrb[0].mxu0 %v2231
    %v2299 = vpop.f32.mrb[0].mxu0
    %v2300 = vadd.f32 0.0, %v2299
    %v2301 = vpop.f32.mrb[0].mxu0
    %2302 = vdwg.mxu0
    %2303 = vrot.lane.b32.xlu0 %v1963, 120
    %v2304 = vpop.permute.xlu0 %2303
    %2305 = vrot.lane.b32.xlu0 %v215, 120
    %v2306 = vpop.permute.xlu0 %2305
    %v2307 = vsel %vm373, %v2304, 0
    %v2309 = vsel %vm373, %v2306, 0
    %2311 = vmatprep.subr.mxu0 0.0
    %2312 = vmatpush1.xpose.msra.mxu0 %v2309
    %2313 = vmatprep.subr.mxu0 0.0
    %2314 = vmatpush1.xpose.msra.mxu0 0.0
    %2315 = vmatprep.subr.mxu0 0.0
    %2316 = vmatpush1.xpose.msra.mxu0 0.0
    %2317 = vmatprep.subr.mxu0 0.0
    %2318 = vmatpush1.xpose.msra.mxu0 0.0
    %2319 = vmatprep.subr.mxu0 0.0
    %2320 = vmatpush1.xpose.msra.mxu0 0.0
    %2321 = vmatprep.subr.mxu0 0.0
    %2322 = vmatpush1.xpose.msra.mxu0 0.0
    %2323 = vmatprep.subr.mxu0 0.0
    %2324 = vmatpush1.xpose.msra.mxu0 0.0
    %2325 = vmatprep.subr.mxu0 0.0
    %2326 = vmatpush1.xpose.msra.mxu0 0.0
    %2327 = vmatprep.subr.mxu0 0.0
    %2328 = vmatpush1.xpose.msra.mxu0 0.0
    %2329 = vmatprep.subr.mxu0 0.0
    %2330 = vmatpush1.xpose.msra.mxu0 0.0
    %2331 = vmatprep.subr.mxu0 0.0
    %2332 = vmatpush1.xpose.msra.mxu0 0.0
    %2333 = vmatprep.subr.mxu0 0.0
    %2334 = vmatpush1.xpose.msra.mxu0 0.0
    %2335 = vmatprep.subr.mxu0 0.0
    %2336 = vmatpush1.xpose.msra.mxu0 0.0
    %2337 = vmatprep.subr.mxu0 0.0
    %2338 = vmatpush1.xpose.msra.mxu0 0.0
    %2339 = vmatprep.subr.mxu0 0.0
    %2340 = vmatpush1.xpose.msra.mxu0 0.0
    %2341 = vmatprep.subr.mxu0 0.0
    %2342 = vmatpush1.xpose.msra.mxu0 0.0
    %2343 = vmatprep.subr.mxu0 0.0
    %2344 = vmatpush1.xpose.msra.mxu0 0.0
    %2345 = vmatprep.subr.mxu0 0.0
    %2346 = vmatpush1.xpose.msra.mxu0 0.0
    %2347 = vmatprep.subr.mxu0 0.0
    %2348 = vmatpush1.xpose.msra.mxu0 0.0
    %2349 = vmatprep.subr.mxu0 0.0
    %2350 = vmatpush1.xpose.msra.mxu0 0.0
    %2351 = vmatprep.subr.mxu0 0.0
    %2352 = vmatpush1.xpose.msra.mxu0 0.0
    %2353 = vmatprep.subr.mxu0 0.0
    %2354 = vmatpush1.xpose.msra.mxu0 0.0
    %2355 = vmatprep.subr.mxu0 0.0
    %2356 = vmatpush1.xpose.msra.mxu0 0.0
    %2357 = vmatprep.subr.mxu0 0.0
    %2358 = vmatpush1.xpose.msra.mxu0 0.0
    %2359 = vmatprep.subr.mxu0 0.0
    %2360 = vmatpush1.xpose.msra.mxu0 0.0
    %2361 = vmatprep.subr.mxu0 0.0
    %2362 = vmatpush1.xpose.msra.mxu0 0.0
    %2363 = vmatprep.subr.mxu0 0.0
    %2364 = vmatpush1.xpose.msra.mxu0 0.0
    %2365 = vmatprep.subr.mxu0 0.0
    %2366 = vmatpush1.xpose.msra.mxu0 0.0
    %2367 = vmatprep.subr.mxu0 0.0
    %2368 = vmatpush1.xpose.msra.mxu0 0.0
    %2369 = vmatprep.subr.mxu0 0.0
    %2370 = vmatpush1.xpose.msra.mxu0 0.0
    %2371 = vmatprep.subr.mxu0 0.0
    %2372 = vmatpush1.xpose.msra.mxu0 0.0
    %2373 = vmatprep.subr.mxu0 0.0
    %2374 = vmatpush1.xpose.msra.mxu0 0.0
    %2375 = vmatprep.mubr.f32.mxu0 0.0
    %2376 = vmatmul.mubr.f32.gmra.mrb[0].mxu0 %v2307
    %v2377 = vpop.f32.mrb[0].mxu0
    %v2378 = vadd.f32 0.0, %v2377
    %v2379 = vpop.f32.mrb[0].mxu0
    %2380 = vdwg.mxu0
    %2381 = vrot.lane.b32.xlu0 %v1968, 120
    %v2382 = vpop.permute.xlu0 %2381
    %2383 = vrot.lane.b32.xlu0 %v220, 120
    %v2384 = vpop.permute.xlu0 %2383
    %v2385 = vsel %vm373, %v2382, 0
    %v2387 = vsel %vm373, %v2384, 0
    %2389 = vmatprep.subr.mxu0 0.0
    %2390 = vmatpush1.xpose.msra.mxu0 %v2387
    %2391 = vmatprep.subr.mxu0 0.0
    %2392 = vmatpush1.xpose.msra.mxu0 0.0
    %2393 = vmatprep.subr.mxu0 0.0
    %2394 = vmatpush1.xpose.msra.mxu0 0.0
    %2395 = vmatprep.subr.mxu0 0.0
    %2396 = vmatpush1.xpose.msra.mxu0 0.0
    %2397 = vmatprep.subr.mxu0 0.0
    %2398 = vmatpush1.xpose.msra.mxu0 0.0
    %2399 = vmatprep.subr.mxu0 0.0
    %2400 = vmatpush1.xpose.msra.mxu0 0.0
    %2401 = vmatprep.subr.mxu0 0.0
    %2402 = vmatpush1.xpose.msra.mxu0 0.0
    %2403 = vmatprep.subr.mxu0 0.0
    %2404 = vmatpush1.xpose.msra.mxu0 0.0
    %2405 = vmatprep.subr.mxu0 0.0
    %2406 = vmatpush1.xpose.msra.mxu0 0.0
    %2407 = vmatprep.subr.mxu0 0.0
    %2408 = vmatpush1.xpose.msra.mxu0 0.0
    %2409 = vmatprep.subr.mxu0 0.0
    %2410 = vmatpush1.xpose.msra.mxu0 0.0
    %2411 = vmatprep.subr.mxu0 0.0
    %2412 = vmatpush1.xpose.msra.mxu0 0.0
    %2413 = vmatprep.subr.mxu0 0.0
    %2414 = vmatpush1.xpose.msra.mxu0 0.0
    %2415 = vmatprep.subr.mxu0 0.0
    %2416 = vmatpush1.xpose.msra.mxu0 0.0
    %2417 = vmatprep.subr.mxu0 0.0
    %2418 = vmatpush1.xpose.msra.mxu0 0.0
    %2419 = vmatprep.subr.mxu0 0.0
    %2420 = vmatpush1.xpose.msra.mxu0 0.0
    %2421 = vmatprep.subr.mxu0 0.0
    %2422 = vmatpush1.xpose.msra.mxu0 0.0
    %2423 = vmatprep.subr.mxu0 0.0
    %2424 = vmatpush1.xpose.msra.mxu0 0.0
    %2425 = vmatprep.subr.mxu0 0.0
    %2426 = vmatpush1.xpose.msra.mxu0 0.0
    %2427 = vmatprep.subr.mxu0 0.0
    %2428 = vmatpush1.xpose.msra.mxu0 0.0
    %2429 = vmatprep.subr.mxu0 0.0
    %2430 = vmatpush1.xpose.msra.mxu0 0.0
    %2431 = vmatprep.subr.mxu0 0.0
    %2432 = vmatpush1.xpose.msra.mxu0 0.0
    %2433 = vmatprep.subr.mxu0 0.0
    %2434 = vmatpush1.xpose.msra.mxu0 0.0
    %2435 = vmatprep.subr.mxu0 0.0
    %2436 = vmatpush1.xpose.msra.mxu0 0.0
    %2437 = vmatprep.subr.mxu0 0.0
    %2438 = vmatpush1.xpose.msra.mxu0 0.0
    %2439 = vmatprep.subr.mxu0 0.0
    %2440 = vmatpush1.xpose.msra.mxu0 0.0
    %2441 = vmatprep.subr.mxu0 0.0
    %2442 = vmatpush1.xpose.msra.mxu0 0.0
    %2443 = vmatprep.subr.mxu0 0.0
    %2444 = vmatpush1.xpose.msra.mxu0 0.0
    %2445 = vmatprep.subr.mxu0 0.0
    %2446 = vmatpush1.xpose.msra.mxu0 0.0
    %2447 = vmatprep.subr.mxu0 0.0
    %2448 = vmatpush1.xpose.msra.mxu0 0.0
    %2449 = vmatprep.subr.mxu0 0.0
    %2450 = vmatpush1.xpose.msra.mxu0 0.0
    %2451 = vmatprep.subr.mxu0 0.0
    %2452 = vmatpush1.xpose.msra.mxu0 0.0
    %2453 = vmatprep.mubr.f32.mxu0 0.0
    %2454 = vmatmul.mubr.f32.gmra.mrb[0].mxu0 %v2385
    %v2455 = vpop.f32.mrb[0].mxu0
    %v2456 = vadd.f32 0.0, %v2455
    %v2457 = vpop.f32.mrb[0].mxu0
    %2458 = vdwg.mxu0
    %v2459 = vmul.f32 %v2378, 0.35355338
    %v2460 = vmul.f32 %v2456, 0.35355338
    %v2461 = vsel %vm2125, -1e+09, %v2459
    %v2462 = vsel %vm2126, -1e+09, %v2460
    %v2463 = vsel %vm373, %v2461, -inf
    %2464 = vmax.xlane.f32.xlu0 %v2463
    %v2465 = vpop.xlane.xlu0 %2464
    %v2466 = vsel %vm373, %v2462, -inf
    %2467 = vmax.xlane.f32.xlu0 %v2466
    %v2468 = vpop.xlane.xlu0 %2467
    %v2469 = vsub.f32 %v2461, %v2465
    %v2470 = vsub.f32 %v2462, %v2468
    %v2471 = vmul.f32 %v2469, 1.442695
    %v2472 = vpow.pop %v2471
    %v2473 = vmul.f32 %v2470, 1.442695
    %v2474 = vpow.pop %v2473
    %v2475 = vsel %vm373, %v2472, 0.0
    %2476 = vadd.xlane.f32.xlu0 %v2475
    %v2477 = vpop.xlane.xlu0 %2476
    %v2478 = vsel %vm373, %v2474, 0.0
    %2479 = vadd.xlane.f32.xlu0 %v2478
    %v2480 = vpop.xlane.xlu0 %2479
    %v2481 = vrcp.pop %v2477
    %v2482 = vmul.f32 %v2472, %v2481
    %v2483 = vrcp.pop %v2480
    %v2484 = vmul.f32 %v2474, %v2483
    %2485 = vrot.lane.b32.xlu0 %v215, 88
    %v2486 = vpop.permute.xlu0 %2485
    %v2489 = vsel %vm373, %v2482, 0
    %2491 = vmatprep.subr.mxu0 0.0
    %2492 = vmatpush1.msra.mxu0 %v2486
    %2493 = vmatprep.subr.mxu0 0.0
    %2494 = vmatpush1.msra.mxu0 0.0
    %2495 = vmatprep.subr.mxu0 0.0
    %2496 = vmatpush1.msra.mxu0 0.0
    %2497 = vmatprep.subr.mxu0 0.0
    %2498 = vmatpush1.msra.mxu0 0.0
    %2499 = vmatprep.subr.mxu0 0.0
    %2500 = vmatpush1.msra.mxu0 0.0
    %2501 = vmatprep.subr.mxu0 0.0
    %2502 = vmatpush1.msra.mxu0 0.0
    %2503 = vmatprep.subr.mxu0 0.0
    %2504 = vmatpush1.msra.mxu0 0.0
    %2505 = vmatprep.subr.mxu0 0.0
    %2506 = vmatpush1.msra.mxu0 0.0
    %2507 = vmatprep.subr.mxu0 0.0
    %2508 = vmatpush1.msra.mxu0 0.0
    %2509 = vmatprep.subr.mxu0 0.0
    %2510 = vmatpush1.msra.mxu0 0.0
    %2511 = vmatprep.subr.mxu0 0.0
    %2512 = vmatpush1.msra.mxu0 0.0
    %2513 = vmatprep.subr.mxu0 0.0
    %2514 = vmatpush1.msra.mxu0 0.0
    %2515 = vmatprep.subr.mxu0 0.0
    %2516 = vmatpush1.msra.mxu0 0.0
    %2517 = vmatprep.subr.mxu0 0.0
    %2518 = vmatpush1.msra.mxu0 0.0
    %2519 = vmatprep.subr.mxu0 0.0
    %2520 = vmatpush1.msra.mxu0 0.0
    %2521 = vmatprep.subr.mxu0 0.0
    %2522 = vmatpush1.msra.mxu0 0.0
    %2523 = vmatprep.subr.mxu0 0.0
    %2524 = vmatpush1.msra.mxu0 0.0
    %2525 = vmatprep.subr.mxu0 0.0
    %2526 = vmatpush1.msra.mxu0 0.0
    %2527 = vmatprep.subr.mxu0 0.0
    %2528 = vmatpush1.msra.mxu0 0.0
    %2529 = vmatprep.subr.mxu0 0.0
    %2530 = vmatpush1.msra.mxu0 0.0
    %2531 = vmatprep.subr.mxu0 0.0
    %2532 = vmatpush1.msra.mxu0 0.0
    %2533 = vmatprep.subr.mxu0 0.0
    %2534 = vmatpush1.msra.mxu0 0.0
    %2535 = vmatprep.subr.mxu0 0.0
    %2536 = vmatpush1.msra.mxu0 0.0
    %2537 = vmatprep.subr.mxu0 0.0
    %2538 = vmatpush1.msra.mxu0 0.0
    %2539 = vmatprep.subr.mxu0 0.0
    %2540 = vmatpush1.msra.mxu0 0.0
    %2541 = vmatprep.subr.mxu0 0.0
    %2542 = vmatpush1.msra.mxu0 0.0
    %2543 = vmatprep.subr.mxu0 0.0
    %2544 = vmatpush1.msra.mxu0 0.0
    %2545 = vmatprep.subr.mxu0 0.0
    %2546 = vmatpush1.msra.mxu0 0.0
    %2547 = vmatprep.subr.mxu0 0.0
    %2548 = vmatpush1.msra.mxu0 0.0
    %2549 = vmatprep.subr.mxu0 0.0
    %2550 = vmatpush1.msra.mxu0 0.0
    %2551 = vmatprep.subr.mxu0 0.0
    %2552 = vmatpush1.msra.mxu0 0.0
    %2553 = vmatprep.subr.mxu0 0.0
    %2554 = vmatpush1.msra.mxu0 0.0
    %2555 = vmatprep.mubr.f32.mxu0 0.0
    %2556 = vmatmul.mubr.f32.gmra.mrb[0].mxu0 %v2489
    %v2557 = vpop.f32.mrb[0].mxu0
    %v2558 = vadd.f32 0.0, %v2557
    %v2559 = vpop.f32.mrb[0].mxu0
    %2560 = vdwg.mxu0
    %2561 = vrot.lane.b32.xlu0 %v220, 88
    %v2562 = vpop.permute.xlu0 %2561
    %v2565 = vsel %vm373, %v2484, 0
    %2567 = vmatprep.subr.mxu0 0.0
    %2568 = vmatpush1.msra.mxu0 %v2562
    %2569 = vmatprep.subr.mxu0 0.0
    %2570 = vmatpush1.msra.mxu0 0.0
    %2571 = vmatprep.subr.mxu0 0.0
    %2572 = vmatpush1.msra.mxu0 0.0
    %2573 = vmatprep.subr.mxu0 0.0
    %2574 = vmatpush1.msra.mxu0 0.0
    %2575 = vmatprep.subr.mxu0 0.0
    %2576 = vmatpush1.msra.mxu0 0.0
    %2577 = vmatprep.subr.mxu0 0.0
    %2578 = vmatpush1.msra.mxu0 0.0
    %2579 = vmatprep.subr.mxu0 0.0
    %2580 = vmatpush1.msra.mxu0 0.0
    %2581 = vmatprep.subr.mxu0 0.0
    %2582 = vmatpush1.msra.mxu0 0.0
    %2583 = vmatprep.subr.mxu0 0.0
    %2584 = vmatpush1.msra.mxu0 0.0
    %2585 = vmatprep.subr.mxu0 0.0
    %2586 = vmatpush1.msra.mxu0 0.0
    %2587 = vmatprep.subr.mxu0 0.0
    %2588 = vmatpush1.msra.mxu0 0.0
    %2589 = vmatprep.subr.mxu0 0.0
    %2590 = vmatpush1.msra.mxu0 0.0
    %2591 = vmatprep.subr.mxu0 0.0
    %2592 = vmatpush1.msra.mxu0 0.0
    %2593 = vmatprep.subr.mxu0 0.0
    %2594 = vmatpush1.msra.mxu0 0.0
    %2595 = vmatprep.subr.mxu0 0.0
    %2596 = vmatpush1.msra.mxu0 0.0
    %2597 = vmatprep.subr.mxu0 0.0
    %2598 = vmatpush1.msra.mxu0 0.0
    %2599 = vmatprep.subr.mxu0 0.0
    %2600 = vmatpush1.msra.mxu0 0.0
    %2601 = vmatprep.subr.mxu0 0.0
    %2602 = vmatpush1.msra.mxu0 0.0
    %2603 = vmatprep.subr.mxu0 0.0
    %2604 = vmatpush1.msra.mxu0 0.0
    %2605 = vmatprep.subr.mxu0 0.0
    %2606 = vmatpush1.msra.mxu0 0.0
    %2607 = vmatprep.subr.mxu0 0.0
    %2608 = vmatpush1.msra.mxu0 0.0
    %2609 = vmatprep.subr.mxu0 0.0
    %2610 = vmatpush1.msra.mxu0 0.0
    %2611 = vmatprep.subr.mxu0 0.0
    %2612 = vmatpush1.msra.mxu0 0.0
    %2613 = vmatprep.subr.mxu0 0.0
    %2614 = vmatpush1.msra.mxu0 0.0
    %2615 = vmatprep.subr.mxu0 0.0
    %2616 = vmatpush1.msra.mxu0 0.0
    %2617 = vmatprep.subr.mxu0 0.0
    %2618 = vmatpush1.msra.mxu0 0.0
    %2619 = vmatprep.subr.mxu0 0.0
    %2620 = vmatpush1.msra.mxu0 0.0
    %2621 = vmatprep.subr.mxu0 0.0
    %2622 = vmatpush1.msra.mxu0 0.0
    %2623 = vmatprep.subr.mxu0 0.0
    %2624 = vmatpush1.msra.mxu0 0.0
    %2625 = vmatprep.subr.mxu0 0.0
    %2626 = vmatpush1.msra.mxu0 0.0
    %2627 = vmatprep.subr.mxu0 0.0
    %2628 = vmatpush1.msra.mxu0 0.0
    %2629 = vmatprep.subr.mxu0 0.0
    %2630 = vmatpush1.msra.mxu0 0.0
    %2631 = vmatprep.mubr.f32.mxu0 0.0
    %2632 = vmatmul.mubr.f32.gmra.mrb[0].mxu0 %v2565
    %v2633 = vpop.f32.mrb[0].mxu0
    %v2634 = vadd.f32 0.0, %v2633
    %v2635 = vpop.f32.mrb[0].mxu0
    %2636 = vdwg.mxu0
    %2637 = vrot.lane.b32.xlu0 %v1963, 112
    %v2638 = vpop.permute.xlu0 %2637
    %2639 = vrot.lane.b32.xlu0 %v215, 112
    %v2640 = vpop.permute.xlu0 %2639
    %v2641 = vsel %vm373, %v2638, 0
    %v2643 = vsel %vm373, %v2640, 0
    %2645 = vmatprep.subr.mxu0 0.0
    %2646 = vmatpush1.xpose.msra.mxu0 %v2643
    %2647 = vmatprep.subr.mxu0 0.0
    %2648 = vmatpush1.xpose.msra.mxu0 0.0
    %2649 = vmatprep.subr.mxu0 0.0
    %2650 = vmatpush1.xpose.msra.mxu0 0.0
    %2651 = vmatprep.subr.mxu0 0.0
    %2652 = vmatpush1.xpose.msra.mxu0 0.0
    %2653 = vmatprep.subr.mxu0 0.0
    %2654 = vmatpush1.xpose.msra.mxu0 0.0
    %2655 = vmatprep.subr.mxu0 0.0
    %2656 = vmatpush1.xpose.msra.mxu0 0.0
    %2657 = vmatprep.subr.mxu0 0.0
    %2658 = vmatpush1.xpose.msra.mxu0 0.0
    %2659 = vmatprep.subr.mxu0 0.0
    %2660 = vmatpush1.xpose.msra.mxu0 0.0
    %2661 = vmatprep.subr.mxu0 0.0
    %2662 = vmatpush1.xpose.msra.mxu0 0.0
    %2663 = vmatprep.subr.mxu0 0.0
    %2664 = vmatpush1.xpose.msra.mxu0 0.0
    %2665 = vmatprep.subr.mxu0 0.0
    %2666 = vmatpush1.xpose.msra.mxu0 0.0
    %2667 = vmatprep.subr.mxu0 0.0
    %2668 = vmatpush1.xpose.msra.mxu0 0.0
    %2669 = vmatprep.subr.mxu0 0.0
    %2670 = vmatpush1.xpose.msra.mxu0 0.0
    %2671 = vmatprep.subr.mxu0 0.0
    %2672 = vmatpush1.xpose.msra.mxu0 0.0
    %2673 = vmatprep.subr.mxu0 0.0
    %2674 = vmatpush1.xpose.msra.mxu0 0.0
    %2675 = vmatprep.subr.mxu0 0.0
    %2676 = vmatpush1.xpose.msra.mxu0 0.0
    %2677 = vmatprep.subr.mxu0 0.0
    %2678 = vmatpush1.xpose.msra.mxu0 0.0
    %2679 = vmatprep.subr.mxu0 0.0
    %2680 = vmatpush1.xpose.msra.mxu0 0.0
    %2681 = vmatprep.subr.mxu0 0.0
    %2682 = vmatpush1.xpose.msra.mxu0 0.0
    %2683 = vmatprep.subr.mxu0 0.0
    %2684 = vmatpush1.xpose.msra.mxu0 0.0
    %2685 = vmatprep.subr.mxu0 0.0
    %2686 = vmatpush1.xpose.msra.mxu0 0.0
    %2687 = vmatprep.subr.mxu0 0.0
    %2688 = vmatpush1.xpose.msra.mxu0 0.0
    %2689 = vmatprep.subr.mxu0 0.0
    %2690 = vmatpush1.xpose.msra.mxu0 0.0
    %2691 = vmatprep.subr.mxu0 0.0
    %2692 = vmatpush1.xpose.msra.mxu0 0.0
    %2693 = vmatprep.subr.mxu0 0.0
    %2694 = vmatpush1.xpose.msra.mxu0 0.0
    %2695 = vmatprep.subr.mxu0 0.0
    %2696 = vmatpush1.xpose.msra.mxu0 0.0
    %2697 = vmatprep.subr.mxu0 0.0
    %2698 = vmatpush1.xpose.msra.mxu0 0.0
    %2699 = vmatprep.subr.mxu0 0.0
    %2700 = vmatpush1.xpose.msra.mxu0 0.0
    %2701 = vmatprep.subr.mxu0 0.0
    %2702 = vmatpush1.xpose.msra.mxu0 0.0
    %2703 = vmatprep.subr.mxu0 0.0
    %2704 = vmatpush1.xpose.msra.mxu0 0.0
    %2705 = vmatprep.subr.mxu0 0.0
    %2706 = vmatpush1.xpose.msra.mxu0 0.0
    %2707 = vmatprep.subr.mxu0 0.0
    %2708 = vmatpush1.xpose.msra.mxu0 0.0
    %2709 = vmatprep.mubr.f32.mxu0 0.0
    %2710 = vmatmul.mubr.f32.gmra.mrb[0].mxu0 %v2641
    %v2711 = vpop.f32.mrb[0].mxu0
    %v2712 = vadd.f32 0.0, %v2711
    %v2713 = vpop.f32.mrb[0].mxu0
    %2714 = vdwg.mxu0
    %2715 = vrot.lane.b32.xlu0 %v1968, 112
    %v2716 = vpop.permute.xlu0 %2715
    %2717 = vrot.lane.b32.xlu0 %v220, 112
    %v2718 = vpop.permute.xlu0 %2717
    %v2719 = vsel %vm373, %v2716, 0
    %v2721 = vsel %vm373, %v2718, 0
    %2723 = vmatprep.subr.mxu0 0.0
    %2724 = vmatpush1.xpose.msra.mxu0 %v2721
    %2725 = vmatprep.subr.mxu0 0.0
    %2726 = vmatpush1.xpose.msra.mxu0 0.0
    %2727 = vmatprep.subr.mxu0 0.0
    %2728 = vmatpush1.xpose.msra.mxu0 0.0
    %2729 = vmatprep.subr.mxu0 0.0
    %2730 = vmatpush1.xpose.msra.mxu0 0.0
    %2731 = vmatprep.subr.mxu0 0.0
    %2732 = vmatpush1.xpose.msra.mxu0 0.0
    %2733 = vmatprep.subr.mxu0 0.0
    %2734 = vmatpush1.xpose.msra.mxu0 0.0
    %2735 = vmatprep.subr.mxu0 0.0
    %2736 = vmatpush1.xpose.msra.mxu0 0.0
    %2737 = vmatprep.subr.mxu0 0.0
    %2738 = vmatpush1.xpose.msra.mxu0 0.0
    %2739 = vmatprep.subr.mxu0 0.0
    %2740 = vmatpush1.xpose.msra.mxu0 0.0
    %2741 = vmatprep.subr.mxu0 0.0
    %2742 = vmatpush1.xpose.msra.mxu0 0.0
    %2743 = vmatprep.subr.mxu0 0.0
    %2744 = vmatpush1.xpose.msra.mxu0 0.0
    %2745 = vmatprep.subr.mxu0 0.0
    %2746 = vmatpush1.xpose.msra.mxu0 0.0
    %2747 = vmatprep.subr.mxu0 0.0
    %2748 = vmatpush1.xpose.msra.mxu0 0.0
    %2749 = vmatprep.subr.mxu0 0.0
    %2750 = vmatpush1.xpose.msra.mxu0 0.0
    %2751 = vmatprep.subr.mxu0 0.0
    %2752 = vmatpush1.xpose.msra.mxu0 0.0
    %2753 = vmatprep.subr.mxu0 0.0
    %2754 = vmatpush1.xpose.msra.mxu0 0.0
    %2755 = vmatprep.subr.mxu0 0.0
    %2756 = vmatpush1.xpose.msra.mxu0 0.0
    %2757 = vmatprep.subr.mxu0 0.0
    %2758 = vmatpush1.xpose.msra.mxu0 0.0
    %2759 = vmatprep.subr.mxu0 0.0
    %2760 = vmatpush1.xpose.msra.mxu0 0.0
    %2761 = vmatprep.subr.mxu0 0.0
    %2762 = vmatpush1.xpose.msra.mxu0 0.0
    %2763 = vmatprep.subr.mxu0 0.0
    %2764 = vmatpush1.xpose.msra.mxu0 0.0
    %2765 = vmatprep.subr.mxu0 0.0
    %2766 = vmatpush1.xpose.msra.mxu0 0.0
    %2767 = vmatprep.subr.mxu0 0.0
    %2768 = vmatpush1.xpose.msra.mxu0 0.0
    %2769 = vmatprep.subr.mxu0 0.0
    %2770 = vmatpush1.xpose.msra.mxu0 0.0
    %2771 = vmatprep.subr.mxu0 0.0
    %2772 = vmatpush1.xpose.msra.mxu0 0.0
    %2773 = vmatprep.subr.mxu0 0.0
    %2774 = vmatpush1.xpose.msra.mxu0 0.0
    %2775 = vmatprep.subr.mxu0 0.0
    %2776 = vmatpush1.xpose.msra.mxu0 0.0
    %2777 = vmatprep.subr.mxu0 0.0
    %2778 = vmatpush1.xpose.msra.mxu0 0.0
    %2779 = vmatprep.subr.mxu0 0.0
    %2780 = vmatpush1.xpose.msra.mxu0 0.0
    %2781 = vmatprep.subr.mxu0 0.0
    %2782 = vmatpush1.xpose.msra.mxu0 0.0
    %2783 = vmatprep.subr.mxu0 0.0
    %2784 = vmatpush1.xpose.msra.mxu0 0.0
    %2785 = vmatprep.subr.mxu0 0.0
    %2786 = vmatpush1.xpose.msra.mxu0 0.0
    %2787 = vmatprep.mubr.f32.mxu0 0.0
    %2788 = vmatmul.mubr.f32.gmra.mrb[0].mxu0 %v2719
    %v2789 = vpop.f32.mrb[0].mxu0
    %v2790 = vadd.f32 0.0, %v2789
    %v2791 = vpop.f32.mrb[0].mxu0
    %2792 = vdwg.mxu0
    %v2793 = vmul.f32 %v2712, 0.35355338
    %v2794 = vmul.f32 %v2790, 0.35355338
    %v2795 = vsel %vm2125, -1e+09, %v2793
    %v2796 = vsel %vm2126, -1e+09, %v2794
    %v2797 = vsel %vm373, %v2795, -inf
    %2798 = vmax.xlane.f32.xlu0 %v2797
    %v2799 = vpop.xlane.xlu0 %2798
    %v2800 = vsel %vm373, %v2796, -inf
    %2801 = vmax.xlane.f32.xlu0 %v2800
    %v2802 = vpop.xlane.xlu0 %2801
    %v2803 = vsub.f32 %v2795, %v2799
    %v2804 = vsub.f32 %v2796, %v2802
    %v2805 = vmul.f32 %v2803, 1.442695
    %v2806 = vpow.pop %v2805
    %v2807 = vmul.f32 %v2804, 1.442695
    %v2808 = vpow.pop %v2807
    %v2809 = vsel %vm373, %v2806, 0.0
    %2810 = vadd.xlane.f32.xlu0 %v2809
    %v2811 = vpop.xlane.xlu0 %2810
    %v2812 = vsel %vm373, %v2808, 0.0
    %2813 = vadd.xlane.f32.xlu0 %v2812
    %v2814 = vpop.xlane.xlu0 %2813
    %v2815 = vrcp.pop %v2811
    %v2816 = vmul.f32 %v2806, %v2815
    %v2817 = vrcp.pop %v2814
    %v2818 = vmul.f32 %v2808, %v2817
    %2819 = vrot.lane.b32.xlu0 %v215, 80
    %v2820 = vpop.permute.xlu0 %2819
    %v2823 = vsel %vm373, %v2816, 0
    %2825 = vmatprep.subr.mxu0 0.0
    %2826 = vmatpush1.msra.mxu0 %v2820
    %2827 = vmatprep.subr.mxu0 0.0
    %2828 = vmatpush1.msra.mxu0 0.0
    %2829 = vmatprep.subr.mxu0 0.0
    %2830 = vmatpush1.msra.mxu0 0.0
    %2831 = vmatprep.subr.mxu0 0.0
    %2832 = vmatpush1.msra.mxu0 0.0
    %2833 = vmatprep.subr.mxu0 0.0
    %2834 = vmatpush1.msra.mxu0 0.0
    %2835 = vmatprep.subr.mxu0 0.0
    %2836 = vmatpush1.msra.mxu0 0.0
    %2837 = vmatprep.subr.mxu0 0.0
    %2838 = vmatpush1.msra.mxu0 0.0
    %2839 = vmatprep.subr.mxu0 0.0
    %2840 = vmatpush1.msra.mxu0 0.0
    %2841 = vmatprep.subr.mxu0 0.0
    %2842 = vmatpush1.msra.mxu0 0.0
    %2843 = vmatprep.subr.mxu0 0.0
    %2844 = vmatpush1.msra.mxu0 0.0
    %2845 = vmatprep.subr.mxu0 0.0
    %2846 = vmatpush1.msra.mxu0 0.0
    %2847 = vmatprep.subr.mxu0 0.0
    %2848 = vmatpush1.msra.mxu0 0.0
    %2849 = vmatprep.subr.mxu0 0.0
    %2850 = vmatpush1.msra.mxu0 0.0
    %2851 = vmatprep.subr.mxu0 0.0
    %2852 = vmatpush1.msra.mxu0 0.0
    %2853 = vmatprep.subr.mxu0 0.0
    %2854 = vmatpush1.msra.mxu0 0.0
    %2855 = vmatprep.subr.mxu0 0.0
    %2856 = vmatpush1.msra.mxu0 0.0
    %2857 = vmatprep.subr.mxu0 0.0
    %2858 = vmatpush1.msra.mxu0 0.0
    %2859 = vmatprep.subr.mxu0 0.0
    %2860 = vmatpush1.msra.mxu0 0.0
    %2861 = vmatprep.subr.mxu0 0.0
    %2862 = vmatpush1.msra.mxu0 0.0
    %2863 = vmatprep.subr.mxu0 0.0
    %2864 = vmatpush1.msra.mxu0 0.0
    %2865 = vmatprep.subr.mxu0 0.0
    %2866 = vmatpush1.msra.mxu0 0.0
    %2867 = vmatprep.subr.mxu0 0.0
    %2868 = vmatpush1.msra.mxu0 0.0
    %2869 = vmatprep.subr.mxu0 0.0
    %2870 = vmatpush1.msra.mxu0 0.0
    %2871 = vmatprep.subr.mxu0 0.0
    %2872 = vmatpush1.msra.mxu0 0.0
    %2873 = vmatprep.subr.mxu0 0.0
    %2874 = vmatpush1.msra.mxu0 0.0
    %2875 = vmatprep.subr.mxu0 0.0
    %2876 = vmatpush1.msra.mxu0 0.0
    %2877 = vmatprep.subr.mxu0 0.0
    %2878 = vmatpush1.msra.mxu0 0.0
    %2879 = vmatprep.subr.mxu0 0.0
    %2880 = vmatpush1.msra.mxu0 0.0
    %2881 = vmatprep.subr.mxu0 0.0
    %2882 = vmatpush1.msra.mxu0 0.0
    %2883 = vmatprep.subr.mxu0 0.0
    %2884 = vmatpush1.msra.mxu0 0.0
    %2885 = vmatprep.subr.mxu0 0.0
    %2886 = vmatpush1.msra.mxu0 0.0
    %2887 = vmatprep.subr.mxu0 0.0
    %2888 = vmatpush1.msra.mxu0 0.0
    %2889 = vmatprep.mubr.f32.mxu0 0.0
    %2890 = vmatmul.mubr.f32.gmra.mrb[0].mxu0 %v2823
    %v2891 = vpop.f32.mrb[0].mxu0
    %v2892 = vadd.f32 0.0, %v2891
    %v2893 = vpop.f32.mrb[0].mxu0
    %2894 = vdwg.mxu0
    %2895 = vrot.lane.b32.xlu0 %v220, 80
    %v2896 = vpop.permute.xlu0 %2895
    %v2899 = vsel %vm373, %v2818, 0
    %2901 = vmatprep.subr.mxu0 0.0
    %2902 = vmatpush1.msra.mxu0 %v2896
    %2903 = vmatprep.subr.mxu0 0.0
    %2904 = vmatpush1.msra.mxu0 0.0
    %2905 = vmatprep.subr.mxu0 0.0
    %2906 = vmatpush1.msra.mxu0 0.0
    %2907 = vmatprep.subr.mxu0 0.0
    %2908 = vmatpush1.msra.mxu0 0.0
    %2909 = vmatprep.subr.mxu0 0.0
    %2910 = vmatpush1.msra.mxu0 0.0
    %2911 = vmatprep.subr.mxu0 0.0
    %2912 = vmatpush1.msra.mxu0 0.0
    %2913 = vmatprep.subr.mxu0 0.0
    %2914 = vmatpush1.msra.mxu0 0.0
    %2915 = vmatprep.subr.mxu0 0.0
    %2916 = vmatpush1.msra.mxu0 0.0
    %2917 = vmatprep.subr.mxu0 0.0
    %2918 = vmatpush1.msra.mxu0 0.0
    %2919 = vmatprep.subr.mxu0 0.0
    %2920 = vmatpush1.msra.mxu0 0.0
    %2921 = vmatprep.subr.mxu0 0.0
    %2922 = vmatpush1.msra.mxu0 0.0
    %2923 = vmatprep.subr.mxu0 0.0
    %2924 = vmatpush1.msra.mxu0 0.0
    %2925 = vmatprep.subr.mxu0 0.0
    %2926 = vmatpush1.msra.mxu0 0.0
    %2927 = vmatprep.subr.mxu0 0.0
    %2928 = vmatpush1.msra.mxu0 0.0
    %2929 = vmatprep.subr.mxu0 0.0
    %2930 = vmatpush1.msra.mxu0 0.0
    %2931 = vmatprep.subr.mxu0 0.0
    %2932 = vmatpush1.msra.mxu0 0.0
    %2933 = vmatprep.subr.mxu0 0.0
    %2934 = vmatpush1.msra.mxu0 0.0
    %2935 = vmatprep.subr.mxu0 0.0
    %2936 = vmatpush1.msra.mxu0 0.0
    %2937 = vmatprep.subr.mxu0 0.0
    %2938 = vmatpush1.msra.mxu0 0.0
    %2939 = vmatprep.subr.mxu0 0.0
    %2940 = vmatpush1.msra.mxu0 0.0
    %2941 = vmatprep.subr.mxu0 0.0
    %2942 = vmatpush1.msra.mxu0 0.0
    %2943 = vmatprep.subr.mxu0 0.0
    %2944 = vmatpush1.msra.mxu0 0.0
    %2945 = vmatprep.subr.mxu0 0.0
    %2946 = vmatpush1.msra.mxu0 0.0
    %2947 = vmatprep.subr.mxu0 0.0
    %2948 = vmatpush1.msra.mxu0 0.0
    %2949 = vmatprep.subr.mxu0 0.0
    %2950 = vmatpush1.msra.mxu0 0.0
    %2951 = vmatprep.subr.mxu0 0.0
    %2952 = vmatpush1.msra.mxu0 0.0
    %2953 = vmatprep.subr.mxu0 0.0
    %2954 = vmatpush1.msra.mxu0 0.0
    %2955 = vmatprep.subr.mxu0 0.0
    %2956 = vmatpush1.msra.mxu0 0.0
    %2957 = vmatprep.subr.mxu0 0.0
    %2958 = vmatpush1.msra.mxu0 0.0
    %2959 = vmatprep.subr.mxu0 0.0
    %2960 = vmatpush1.msra.mxu0 0.0
    %2961 = vmatprep.subr.mxu0 0.0
    %2962 = vmatpush1.msra.mxu0 0.0
    %2963 = vmatprep.subr.mxu0 0.0
    %2964 = vmatpush1.msra.mxu0 0.0
    %2965 = vmatprep.mubr.f32.mxu0 0.0
    %2966 = vmatmul.mubr.f32.gmra.mrb[0].mxu0 %v2899
    %v2967 = vpop.f32.mrb[0].mxu0
    %v2968 = vadd.f32 0.0, %v2967
    %v2969 = vpop.f32.mrb[0].mxu0
    %2970 = vdwg.mxu0
    %2971 = vrot.lane.b32.xlu0 %v1963, 104
    %v2972 = vpop.permute.xlu0 %2971
    %2973 = vrot.lane.b32.xlu0 %v215, 104
    %v2974 = vpop.permute.xlu0 %2973
    %v2975 = vsel %vm373, %v2972, 0
    %v2977 = vsel %vm373, %v2974, 0
    %2979 = vmatprep.subr.mxu0 0.0
    %2980 = vmatpush1.xpose.msra.mxu0 %v2977
    %2981 = vmatprep.subr.mxu0 0.0
    %2982 = vmatpush1.xpose.msra.mxu0 0.0
    %2983 = vmatprep.subr.mxu0 0.0
    %2984 = vmatpush1.xpose.msra.mxu0 0.0
    %2985 = vmatprep.subr.mxu0 0.0
    %2986 = vmatpush1.xpose.msra.mxu0 0.0
    %2987 = vmatprep.subr.mxu0 0.0
    %2988 = vmatpush1.xpose.msra.mxu0 0.0
    %2989 = vmatprep.subr.mxu0 0.0
    %2990 = vmatpush1.xpose.msra.mxu0 0.0
    %2991 = vmatprep.subr.mxu0 0.0
    %2992 = vmatpush1.xpose.msra.mxu0 0.0
    %2993 = vmatprep.subr.mxu0 0.0
    %2994 = vmatpush1.xpose.msra.mxu0 0.0
    %2995 = vmatprep.subr.mxu0 0.0
    %2996 = vmatpush1.xpose.msra.mxu0 0.0
    %2997 = vmatprep.subr.mxu0 0.0
    %2998 = vmatpush1.xpose.msra.mxu0 0.0
    %2999 = vmatprep.subr.mxu0 0.0
    %3000 = vmatpush1.xpose.msra.mxu0 0.0
    %3001 = vmatprep.subr.mxu0 0.0
    %3002 = vmatpush1.xpose.msra.mxu0 0.0
    %3003 = vmatprep.subr.mxu0 0.0
    %3004 = vmatpush1.xpose.msra.mxu0 0.0
    %3005 = vmatprep.subr.mxu0 0.0
    %3006 = vmatpush1.xpose.msra.mxu0 0.0
    %3007 = vmatprep.subr.mxu0 0.0
    %3008 = vmatpush1.xpose.msra.mxu0 0.0
    %3009 = vmatprep.subr.mxu0 0.0
    %3010 = vmatpush1.xpose.msra.mxu0 0.0
    %3011 = vmatprep.subr.mxu0 0.0
    %3012 = vmatpush1.xpose.msra.mxu0 0.0
    %3013 = vmatprep.subr.mxu0 0.0
    %3014 = vmatpush1.xpose.msra.mxu0 0.0
    %3015 = vmatprep.subr.mxu0 0.0
    %3016 = vmatpush1.xpose.msra.mxu0 0.0
    %3017 = vmatprep.subr.mxu0 0.0
    %3018 = vmatpush1.xpose.msra.mxu0 0.0
    %3019 = vmatprep.subr.mxu0 0.0
    %3020 = vmatpush1.xpose.msra.mxu0 0.0
    %3021 = vmatprep.subr.mxu0 0.0
    %3022 = vmatpush1.xpose.msra.mxu0 0.0
    %3023 = vmatprep.subr.mxu0 0.0
    %3024 = vmatpush1.xpose.msra.mxu0 0.0
    %3025 = vmatprep.subr.mxu0 0.0
    %3026 = vmatpush1.xpose.msra.mxu0 0.0
    %3027 = vmatprep.subr.mxu0 0.0
    %3028 = vmatpush1.xpose.msra.mxu0 0.0
    %3029 = vmatprep.subr.mxu0 0.0
    %3030 = vmatpush1.xpose.msra.mxu0 0.0
    %3031 = vmatprep.subr.mxu0 0.0
    %3032 = vmatpush1.xpose.msra.mxu0 0.0
    %3033 = vmatprep.subr.mxu0 0.0
    %3034 = vmatpush1.xpose.msra.mxu0 0.0
    %3035 = vmatprep.subr.mxu0 0.0
    %3036 = vmatpush1.xpose.msra.mxu0 0.0
    %3037 = vmatprep.subr.mxu0 0.0
    %3038 = vmatpush1.xpose.msra.mxu0 0.0
    %3039 = vmatprep.subr.mxu0 0.0
    %3040 = vmatpush1.xpose.msra.mxu0 0.0
    %3041 = vmatprep.subr.mxu0 0.0
    %3042 = vmatpush1.xpose.msra.mxu0 0.0
    %3043 = vmatprep.mubr.f32.mxu0 0.0
    %3044 = vmatmul.mubr.f32.gmra.mrb[0].mxu0 %v2975
    %v3045 = vpop.f32.mrb[0].mxu0
    %v3046 = vadd.f32 0.0, %v3045
    %v3047 = vpop.f32.mrb[0].mxu0
    %3048 = vdwg.mxu0
    %3049 = vrot.lane.b32.xlu0 %v1968, 104
    %v3050 = vpop.permute.xlu0 %3049
    %3051 = vrot.lane.b32.xlu0 %v220, 104
    %v3052 = vpop.permute.xlu0 %3051
    %v3053 = vsel %vm373, %v3050, 0
    %v3055 = vsel %vm373, %v3052, 0
    %3057 = vmatprep.subr.mxu0 0.0
    %3058 = vmatpush1.xpose.msra.mxu0 %v3055
    %3059 = vmatprep.subr.mxu0 0.0
    %3060 = vmatpush1.xpose.msra.mxu0 0.0
    %3061 = vmatprep.subr.mxu0 0.0
    %3062 = vmatpush1.xpose.msra.mxu0 0.0
    %3063 = vmatprep.subr.mxu0 0.0
    %3064 = vmatpush1.xpose.msra.mxu0 0.0
    %3065 = vmatprep.subr.mxu0 0.0
    %3066 = vmatpush1.xpose.msra.mxu0 0.0
    %3067 = vmatprep.subr.mxu0 0.0
    %3068 = vmatpush1.xpose.msra.mxu0 0.0
    %3069 = vmatprep.subr.mxu0 0.0
    %3070 = vmatpush1.xpose.msra.mxu0 0.0
    %3071 = vmatprep.subr.mxu0 0.0
    %3072 = vmatpush1.xpose.msra.mxu0 0.0
    %3073 = vmatprep.subr.mxu0 0.0
    %3074 = vmatpush1.xpose.msra.mxu0 0.0
    %3075 = vmatprep.subr.mxu0 0.0
    %3076 = vmatpush1.xpose.msra.mxu0 0.0
    %3077 = vmatprep.subr.mxu0 0.0
    %3078 = vmatpush1.xpose.msra.mxu0 0.0
    %3079 = vmatprep.subr.mxu0 0.0
    %3080 = vmatpush1.xpose.msra.mxu0 0.0
    %3081 = vmatprep.subr.mxu0 0.0
    %3082 = vmatpush1.xpose.msra.mxu0 0.0
    %3083 = vmatprep.subr.mxu0 0.0
    %3084 = vmatpush1.xpose.msra.mxu0 0.0
    %3085 = vmatprep.subr.mxu0 0.0
    %3086 = vmatpush1.xpose.msra.mxu0 0.0
    %3087 = vmatprep.subr.mxu0 0.0
    %3088 = vmatpush1.xpose.msra.mxu0 0.0
    %3089 = vmatprep.subr.mxu0 0.0
    %3090 = vmatpush1.xpose.msra.mxu0 0.0
    %3091 = vmatprep.subr.mxu0 0.0
    %3092 = vmatpush1.xpose.msra.mxu0 0.0
    %3093 = vmatprep.subr.mxu0 0.0
    %3094 = vmatpush1.xpose.msra.mxu0 0.0
    %3095 = vmatprep.subr.mxu0 0.0
    %3096 = vmatpush1.xpose.msra.mxu0 0.0
    %3097 = vmatprep.subr.mxu0 0.0
    %3098 = vmatpush1.xpose.msra.mxu0 0.0
    %3099 = vmatprep.subr.mxu0 0.0
    %3100 = vmatpush1.xpose.msra.mxu0 0.0
    %3101 = vmatprep.subr.mxu0 0.0
    %3102 = vmatpush1.xpose.msra.mxu0 0.0
    %3103 = vmatprep.subr.mxu0 0.0
    %3104 = vmatpush1.xpose.msra.mxu0 0.0
    %3105 = vmatprep.subr.mxu0 0.0
    %3106 = vmatpush1.xpose.msra.mxu0 0.0
    %3107 = vmatprep.subr.mxu0 0.0
    %3108 = vmatpush1.xpose.msra.mxu0 0.0
    %3109 = vmatprep.subr.mxu0 0.0
    %3110 = vmatpush1.xpose.msra.mxu0 0.0
    %3111 = vmatprep.subr.mxu0 0.0
    %3112 = vmatpush1.xpose.msra.mxu0 0.0
    %3113 = vmatprep.subr.mxu0 0.0
    %3114 = vmatpush1.xpose.msra.mxu0 0.0
    %3115 = vmatprep.subr.mxu0 0.0
    %3116 = vmatpush1.xpose.msra.mxu0 0.0
    %3117 = vmatprep.subr.mxu0 0.0
    %3118 = vmatpush1.xpose.msra.mxu0 0.0
    %3119 = vmatprep.subr.mxu0 0.0
    %3120 = vmatpush1.xpose.msra.mxu0 0.0
    %3121 = vmatprep.mubr.f32.mxu0 0.0
    %3122 = vmatmul.mubr.f32.gmra.mrb[0].mxu0 %v3053
    %v3123 = vpop.f32.mrb[0].mxu0
    %v3124 = vadd.f32 0.0, %v3123
    %v3125 = vpop.f32.mrb[0].mxu0
    %3126 = vdwg.mxu0
    %v3127 = vmul.f32 %v3046, 0.35355338
    %v3128 = vmul.f32 %v3124, 0.35355338
    %v3129 = vsel %vm2125, -1e+09, %v3127
    %v3130 = vsel %vm2126, -1e+09, %v3128
    %v3131 = vsel %vm373, %v3129, -inf
    %3132 = vmax.xlane.f32.xlu0 %v3131
    %v3133 = vpop.xlane.xlu0 %3132
    %v3134 = vsel %vm373, %v3130, -inf
    %3135 = vmax.xlane.f32.xlu0 %v3134
    %v3136 = vpop.xlane.xlu0 %3135
    %v3137 = vsub.f32 %v3129, %v3133
    %v3138 = vsub.f32 %v3130, %v3136
    %v3139 = vmul.f32 %v3137, 1.442695
    %v3140 = vpow.pop %v3139
    %v3141 = vmul.f32 %v3138, 1.442695
    %v3142 = vpow.pop %v3141
    %v3143 = vsel %vm373, %v3140, 0.0
    %3144 = vadd.xlane.f32.xlu0 %v3143
    %v3145 = vpop.xlane.xlu0 %3144
    %v3146 = vsel %vm373, %v3142, 0.0
    %3147 = vadd.xlane.f32.xlu0 %v3146
    %v3148 = vpop.xlane.xlu0 %3147
    %v3149 = vrcp.pop %v3145
    %v3150 = vmul.f32 %v3140, %v3149
    %v3151 = vrcp.pop %v3148
    %v3152 = vmul.f32 %v3142, %v3151
    %3153 = vrot.lane.b32.xlu0 %v215, 72
    %v3154 = vpop.permute.xlu0 %3153
    %v3157 = vsel %vm373, %v3150, 0
    %3159 = vmatprep.subr.mxu0 0.0
    %3160 = vmatpush1.msra.mxu0 %v3154
    %3161 = vmatprep.subr.mxu0 0.0
    %3162 = vmatpush1.msra.mxu0 0.0
    %3163 = vmatprep.subr.mxu0 0.0
    %3164 = vmatpush1.msra.mxu0 0.0
    %3165 = vmatprep.subr.mxu0 0.0
    %3166 = vmatpush1.msra.mxu0 0.0
    %3167 = vmatprep.subr.mxu0 0.0
    %3168 = vmatpush1.msra.mxu0 0.0
    %3169 = vmatprep.subr.mxu0 0.0
    %3170 = vmatpush1.msra.mxu0 0.0
    %3171 = vmatprep.subr.mxu0 0.0
    %3172 = vmatpush1.msra.mxu0 0.0
    %3173 = vmatprep.subr.mxu0 0.0
    %3174 = vmatpush1.msra.mxu0 0.0
    %3175 = vmatprep.subr.mxu0 0.0
    %3176 = vmatpush1.msra.mxu0 0.0
    %3177 = vmatprep.subr.mxu0 0.0
    %3178 = vmatpush1.msra.mxu0 0.0
    %3179 = vmatprep.subr.mxu0 0.0
    %3180 = vmatpush1.msra.mxu0 0.0
    %3181 = vmatprep.subr.mxu0 0.0
    %3182 = vmatpush1.msra.mxu0 0.0
    %3183 = vmatprep.subr.mxu0 0.0
    %3184 = vmatpush1.msra.mxu0 0.0
    %3185 = vmatprep.subr.mxu0 0.0
    %3186 = vmatpush1.msra.mxu0 0.0
    %3187 = vmatprep.subr.mxu0 0.0
    %3188 = vmatpush1.msra.mxu0 0.0
    %3189 = vmatprep.subr.mxu0 0.0
    %3190 = vmatpush1.msra.mxu0 0.0
    %3191 = vmatprep.subr.mxu0 0.0
    %3192 = vmatpush1.msra.mxu0 0.0
    %3193 = vmatprep.subr.mxu0 0.0
    %3194 = vmatpush1.msra.mxu0 0.0
    %3195 = vmatprep.subr.mxu0 0.0
    %3196 = vmatpush1.msra.mxu0 0.0
    %3197 = vmatprep.subr.mxu0 0.0
    %3198 = vmatpush1.msra.mxu0 0.0
    %3199 = vmatprep.subr.mxu0 0.0
    %3200 = vmatpush1.msra.mxu0 0.0
    %3201 = vmatprep.subr.mxu0 0.0
    %3202 = vmatpush1.msra.mxu0 0.0
    %3203 = vmatprep.subr.mxu0 0.0
    %3204 = vmatpush1.msra.mxu0 0.0
    %3205 = vmatprep.subr.mxu0 0.0
    %3206 = vmatpush1.msra.mxu0 0.0
    %3207 = vmatprep.subr.mxu0 0.0
    %3208 = vmatpush1.msra.mxu0 0.0
    %3209 = vmatprep.subr.mxu0 0.0
    %3210 = vmatpush1.msra.mxu0 0.0
    %3211 = vmatprep.subr.mxu0 0.0
    %3212 = vmatpush1.msra.mxu0 0.0
    %3213 = vmatprep.subr.mxu0 0.0
    %3214 = vmatpush1.msra.mxu0 0.0
    %3215 = vmatprep.subr.mxu0 0.0
    %3216 = vmatpush1.msra.mxu0 0.0
    %3217 = vmatprep.subr.mxu0 0.0
    %3218 = vmatpush1.msra.mxu0 0.0
    %3219 = vmatprep.subr.mxu0 0.0
    %3220 = vmatpush1.msra.mxu0 0.0
    %3221 = vmatprep.subr.mxu0 0.0
    %3222 = vmatpush1.msra.mxu0 0.0
    %3223 = vmatprep.mubr.f32.mxu0 0.0
    %3224 = vmatmul.mubr.f32.gmra.mrb[0].mxu0 %v3157
    %v3225 = vpop.f32.mrb[0].mxu0
    %v3226 = vadd.f32 0.0, %v3225
    %v3227 = vpop.f32.mrb[0].mxu0
    %3228 = vdwg.mxu0
    %3229 = vrot.lane.b32.xlu0 %v220, 72
    %v3230 = vpop.permute.xlu0 %3229
    %v3233 = vsel %vm373, %v3152, 0
    %3235 = vmatprep.subr.mxu0 0.0
    %3236 = vmatpush1.msra.mxu0 %v3230
    %3237 = vmatprep.subr.mxu0 0.0
    %3238 = vmatpush1.msra.mxu0 0.0
    %3239 = vmatprep.subr.mxu0 0.0
    %3240 = vmatpush1.msra.mxu0 0.0
    %3241 = vmatprep.subr.mxu0 0.0
    %3242 = vmatpush1.msra.mxu0 0.0
    %3243 = vmatprep.subr.mxu0 0.0
    %3244 = vmatpush1.msra.mxu0 0.0
    %3245 = vmatprep.subr.mxu0 0.0
    %3246 = vmatpush1.msra.mxu0 0.0
    %3247 = vmatprep.subr.mxu0 0.0
    %3248 = vmatpush1.msra.mxu0 0.0
    %3249 = vmatprep.subr.mxu0 0.0
    %3250 = vmatpush1.msra.mxu0 0.0
    %3251 = vmatprep.subr.mxu0 0.0
    %3252 = vmatpush1.msra.mxu0 0.0
    %3253 = vmatprep.subr.mxu0 0.0
    %3254 = vmatpush1.msra.mxu0 0.0
    %3255 = vmatprep.subr.mxu0 0.0
    %3256 = vmatpush1.msra.mxu0 0.0
    %3257 = vmatprep.subr.mxu0 0.0
    %3258 = vmatpush1.msra.mxu0 0.0
    %3259 = vmatprep.subr.mxu0 0.0
    %3260 = vmatpush1.msra.mxu0 0.0
    %3261 = vmatprep.subr.mxu0 0.0
    %3262 = vmatpush1.msra.mxu0 0.0
    %3263 = vmatprep.subr.mxu0 0.0
    %3264 = vmatpush1.msra.mxu0 0.0
    %3265 = vmatprep.subr.mxu0 0.0
    %3266 = vmatpush1.msra.mxu0 0.0
    %3267 = vmatprep.subr.mxu0 0.0
    %3268 = vmatpush1.msra.mxu0 0.0
    %3269 = vmatprep.subr.mxu0 0.0
    %3270 = vmatpush1.msra.mxu0 0.0
    %3271 = vmatprep.subr.mxu0 0.0
    %3272 = vmatpush1.msra.mxu0 0.0
    %3273 = vmatprep.subr.mxu0 0.0
    %3274 = vmatpush1.msra.mxu0 0.0
    %3275 = vmatprep.subr.mxu0 0.0
    %3276 = vmatpush1.msra.mxu0 0.0
    %3277 = vmatprep.subr.mxu0 0.0
    %3278 = vmatpush1.msra.mxu0 0.0
    %3279 = vmatprep.subr.mxu0 0.0
    %3280 = vmatpush1.msra.mxu0 0.0
    %3281 = vmatprep.subr.mxu0 0.0
    %3282 = vmatpush1.msra.mxu0 0.0
    %3283 = vmatprep.subr.mxu0 0.0
    %3284 = vmatpush1.msra.mxu0 0.0
    %3285 = vmatprep.subr.mxu0 0.0
    %3286 = vmatpush1.msra.mxu0 0.0
    %3287 = vmatprep.subr.mxu0 0.0
    %3288 = vmatpush1.msra.mxu0 0.0
    %3289 = vmatprep.subr.mxu0 0.0
    %3290 = vmatpush1.msra.mxu0 0.0
    %3291 = vmatprep.subr.mxu0 0.0
    %3292 = vmatpush1.msra.mxu0 0.0
    %3293 = vmatprep.subr.mxu0 0.0
    %3294 = vmatpush1.msra.mxu0 0.0
    %3295 = vmatprep.subr.mxu0 0.0
    %3296 = vmatpush1.msra.mxu0 0.0
    %3297 = vmatprep.subr.mxu0 0.0
    %3298 = vmatpush1.msra.mxu0 0.0
    %3299 = vmatprep.mubr.f32.mxu0 0.0
    %3300 = vmatmul.mubr.f32.gmra.mrb[0].mxu0 %v3233
    %v3301 = vpop.f32.mrb[0].mxu0
    %v3302 = vadd.f32 0.0, %v3301
    %v3303 = vpop.f32.mrb[0].mxu0
    %3304 = vdwg.mxu0
    %3307 = vrot.lane.b32.xlu0 %v2558, 8
    %v3308 = vpop.permute.xlu0 %3307
    %3309 = vrot.lane.b32.xlu0 %v2634, 8
    %v3310 = vpop.permute.xlu0 %3309
    %3315 = vrot.lane.b32.xlu0 %v2892, 16
    %v3316 = vpop.permute.xlu0 %3315
    %3317 = vrot.lane.b32.xlu0 %v2968, 16
    %v3318 = vpop.permute.xlu0 %3317
    %3323 = vrot.lane.b32.xlu0 %v3226, 24
    %v3324 = vpop.permute.xlu0 %3323
    %3325 = vrot.lane.b32.xlu0 %v3302, 24
    %v3326 = vpop.permute.xlu0 %3325
    %v3329 = vsel %vm373, %v2224, %v3308
    %v3330 = vsel %vm373, %v2300, %v3310
    %v3331 = vsel %vm1733, %v3329, %v3316
    %v3332 = vsel %vm1733, %v3330, %v3318
    %v3333 = vsel %vm1736, %v3331, %v3324
    %v3334 = vsel %vm1736, %v3332, %v3326
    %v3336 = vlaneseq
    %v3337 = vshrl.u32 %v3336, 7
    %v3338 = vsub.s32 0, %v3337
    %v3339 = vrot.slane %v107, %v3338
    %v3342 = vsel %vm141, %v3333, 0
    %v3345 = vsel %vm141, %v3334, 0
    %3347 = vmatprep.subr.mxu0 0.0
    %3348 = vmatpush1.msra.mxu0 %v103
    %3349 = vmatprep.subr.mxu0 0.0
    %3350 = vmatpush1.msra.mxu0 %v104
    %3351 = vmatprep.subr.mxu0 0.0
    %3352 = vmatpush1.msra.mxu0 %v105
    %3353 = vmatprep.subr.mxu0 0.0
    %3354 = vmatpush1.msra.mxu0 %v106
    %3355 = vmatprep.subr.mxu0 0.0
    %3356 = vmatpush1.msra.mxu0 0.0
    %3357 = vmatprep.subr.mxu0 0.0
    %3358 = vmatpush1.msra.mxu0 0.0
    %3359 = vmatprep.subr.mxu0 0.0
    %3360 = vmatpush1.msra.mxu0 0.0
    %3361 = vmatprep.subr.mxu0 0.0
    %3362 = vmatpush1.msra.mxu0 0.0
    %3363 = vmatprep.subr.mxu0 0.0
    %3364 = vmatpush1.msra.mxu0 0.0
    %3365 = vmatprep.subr.mxu0 0.0
    %3366 = vmatpush1.msra.mxu0 0.0
    %3367 = vmatprep.subr.mxu0 0.0
    %3368 = vmatpush1.msra.mxu0 0.0
    %3369 = vmatprep.subr.mxu0 0.0
    %3370 = vmatpush1.msra.mxu0 0.0
    %3371 = vmatprep.subr.mxu0 0.0
    %3372 = vmatpush1.msra.mxu0 0.0
    %3373 = vmatprep.subr.mxu0 0.0
    %3374 = vmatpush1.msra.mxu0 0.0
    %3375 = vmatprep.subr.mxu0 0.0
    %3376 = vmatpush1.msra.mxu0 0.0
    %3377 = vmatprep.subr.mxu0 0.0
    %3378 = vmatpush1.msra.mxu0 0.0
    %3379 = vmatprep.subr.mxu0 0.0
    %3380 = vmatpush1.msra.mxu0 0.0
    %3381 = vmatprep.subr.mxu0 0.0
    %3382 = vmatpush1.msra.mxu0 0.0
    %3383 = vmatprep.subr.mxu0 0.0
    %3384 = vmatpush1.msra.mxu0 0.0
    %3385 = vmatprep.subr.mxu0 0.0
    %3386 = vmatpush1.msra.mxu0 0.0
    %3387 = vmatprep.subr.mxu0 0.0
    %3388 = vmatpush1.msra.mxu0 0.0
    %3389 = vmatprep.subr.mxu0 0.0
    %3390 = vmatpush1.msra.mxu0 0.0
    %3391 = vmatprep.subr.mxu0 0.0
    %3392 = vmatpush1.msra.mxu0 0.0
    %3393 = vmatprep.subr.mxu0 0.0
    %3394 = vmatpush1.msra.mxu0 0.0
    %3395 = vmatprep.subr.mxu0 0.0
    %3396 = vmatpush1.msra.mxu0 0.0
    %3397 = vmatprep.subr.mxu0 0.0
    %3398 = vmatpush1.msra.mxu0 0.0
    %3399 = vmatprep.subr.mxu0 0.0
    %3400 = vmatpush1.msra.mxu0 0.0
    %3401 = vmatprep.subr.mxu0 0.0
    %3402 = vmatpush1.msra.mxu0 0.0
    %3403 = vmatprep.subr.mxu0 0.0
    %3404 = vmatpush1.msra.mxu0 0.0
    %3405 = vmatprep.subr.mxu0 0.0
    %3406 = vmatpush1.msra.mxu0 0.0
    %3407 = vmatprep.subr.mxu0 0.0
    %3408 = vmatpush1.msra.mxu0 0.0
    %3409 = vmatprep.subr.mxu0 0.0
    %3410 = vmatpush1.msra.mxu0 0.0
    %3411 = vmatprep.mubr.f32.mxu0 0.0
    %3412 = vmatmul.mubr.f32.gmra.mrb[0].mxu0 %v3342
    %v3413 = vpop.f32.mrb[0].mxu0
    %v3414 = vadd.f32 %v3339, %v3413
    %v3415 = vpop.f32.mrb[0].mxu0
    %3416 = vmatprep.mubr.f32.mxu0 0.0
    %3417 = vmatmul.mubr.f32.gmra.mrb[0].mxu0 %v3345
    %v3418 = vpop.f32.mrb[0].mxu0
    %v3419 = vadd.f32 %v3339, %v3418
    %v3420 = vpop.f32.mrb[0].mxu0
    %3421 = vdwg.mxu0
    %v3422 = vadd.f32 %v1826, %v3414
    %v3423 = vadd.f32 %v1827, %v3419
    %v3424 = vsel %vm141, %v3422, 0.0
    %3425 = vadd.xlane.f32.xlu0 %v3424
    %v3426 = vpop.xlane.xlu0 %3425
    %v3427 = vsel %vm141, %v3423, 0.0
    %3428 = vadd.xlane.f32.xlu0 %v3427
    %v3429 = vpop.xlane.xlu0 %3428
    %v3430 = vmul.f32 %v3426, %v231
    %v3431 = vmul.f32 %v3429, %v231
    %v3432 = vsub.f32 %v3422, %v3430
    %v3433 = vsub.f32 %v3423, %v3431
    %v3434 = vmul.f32 %v3432, %v3432
    %v3435 = vmul.f32 %v3433, %v3433
    %v3436 = vsel %vm141, %v3434, 0.0
    %3437 = vadd.xlane.f32.xlu0 %v3436
    %v3438 = vpop.xlane.xlu0 %3437
    %v3439 = vsel %vm141, %v3435, 0.0
    %3440 = vadd.xlane.f32.xlu0 %v3439
    %v3441 = vpop.xlane.xlu0 %3440
    %v3442 = vmul.f32 %v3438, %v244
    %v3443 = vmul.f32 %v3441, %v244
    %v3444 = vrsqrt.pop %v3442
    %v3445 = vmul.f32 %v3442, %v3444
    %vm3446 = vcmp.eq.f32.partialorder %v3442, inf
    %v3447 = vsel %vm3446, %v3442, %v3445
    %vm3448 = vcmp.eq.f32.partialorder %v3442, 0.0
    %v3449 = vand.u32 %v3442, 2147483648
    %v3450 = vsel %vm3448, %v3449, %v3447
    %v3451 = vrsqrt.pop %v3443
    %v3452 = vmul.f32 %v3443, %v3451
    %vm3453 = vcmp.eq.f32.partialorder %v3443, inf
    %v3454 = vsel %vm3453, %v3443, %v3452
    %vm3455 = vcmp.eq.f32.partialorder %v3443, 0.0
    %v3456 = vand.u32 %v3443, 2147483648
    %v3457 = vsel %vm3455, %v3456, %v3454
    %v3459 = vlaneseq
    %v3460 = vshrl.u32 %v3459, 7
    %v3461 = vsub.s32 0, %v3460
    %v3462 = vrot.slane %v126, %v3461
    %v3464 = vmul.f32 %v3462, %v3432
    %v3465 = vmul.f32 %v3462, %v3433
    %v3466 = vadd.f32 %v3450, 1e-06
    %v3467 = vadd.f32 %v3457, 1e-06
    %v3468 = vrcp.pop %v3466
    %v3469 = vmul.f32 %v3464, %v3468
    %v3470 = vrcp.pop %v3467
    %v3471 = vmul.f32 %v3465, %v3470
    %v3473 = vlaneseq
    %v3474 = vshrl.u32 %v3473, 7
    %v3475 = vsub.s32 0, %v3474
    %v3476 = vrot.slane %v127, %v3475
    %v3478 = vadd.f32 %v3469, %v3476
    %v3479 = vadd.f32 %v3471, %v3476
    %v3481 = vlaneseq
    %v3482 = vshrl.u32 %v3481, 7
    %v3483 = vsub.s32 0, %v3482
    %v3484 = vrot.slane %v112, %v3483
    %v3487 = vsel %vm141, %v3478, 0
    %v3490 = vsel %vm141, %v3479, 0
    %3492 = vmatprep.subr.mxu0 0.0
    %3493 = vmatpush1.msra.mxu0 %v108
    %3494 = vmatprep.subr.mxu0 0.0
    %3495 = vmatpush1.msra.mxu0 %v109
    %3496 = vmatprep.subr.mxu0 0.0
    %3497 = vmatpush1.msra.mxu0 %v110
    %3498 = vmatprep.subr.mxu0 0.0
    %3499 = vmatpush1.msra.mxu0 %v111
    %3500 = vmatprep.subr.mxu0 0.0
    %3501 = vmatpush1.msra.mxu0 0.0
    %3502 = vmatprep.subr.mxu0 0.0
    %3503 = vmatpush1.msra.mxu0 0.0
    %3504 = vmatprep.subr.mxu0 0.0
    %3505 = vmatpush1.msra.mxu0 0.0
    %3506 = vmatprep.subr.mxu0 0.0
    %3507 = vmatpush1.msra.mxu0 0.0
    %3508 = vmatprep.subr.mxu0 0.0
    %3509 = vmatpush1.msra.mxu0 0.0
    %3510 = vmatprep.subr.mxu0 0.0
    %3511 = vmatpush1.msra.mxu0 0.0
    %3512 = vmatprep.subr.mxu0 0.0
    %3513 = vmatpush1.msra.mxu0 0.0
    %3514 = vmatprep.subr.mxu0 0.0
    %3515 = vmatpush1.msra.mxu0 0.0
    %3516 = vmatprep.subr.mxu0 0.0
    %3517 = vmatpush1.msra.mxu0 0.0
    %3518 = vmatprep.subr.mxu0 0.0
    %3519 = vmatpush1.msra.mxu0 0.0
    %3520 = vmatprep.subr.mxu0 0.0
    %3521 = vmatpush1.msra.mxu0 0.0
    %3522 = vmatprep.subr.mxu0 0.0
    %3523 = vmatpush1.msra.mxu0 0.0
    %3524 = vmatprep.subr.mxu0 0.0
    %3525 = vmatpush1.msra.mxu0 0.0
    %3526 = vmatprep.subr.mxu0 0.0
    %3527 = vmatpush1.msra.mxu0 0.0
    %3528 = vmatprep.subr.mxu0 0.0
    %3529 = vmatpush1.msra.mxu0 0.0
    %3530 = vmatprep.subr.mxu0 0.0
    %3531 = vmatpush1.msra.mxu0 0.0
    %3532 = vmatprep.subr.mxu0 0.0
    %3533 = vmatpush1.msra.mxu0 0.0
    %3534 = vmatprep.subr.mxu0 0.0
    %3535 = vmatpush1.msra.mxu0 0.0
    %3536 = vmatprep.subr.mxu0 0.0
    %3537 = vmatpush1.msra.mxu0 0.0
    %3538 = vmatprep.subr.mxu0 0.0
    %3539 = vmatpush1.msra.mxu0 0.0
    %3540 = vmatprep.subr.mxu0 0.0
    %3541 = vmatpush1.msra.mxu0 0.0
    %3542 = vmatprep.subr.mxu0 0.0
    %3543 = vmatpush1.msra.mxu0 0.0
    %3544 = vmatprep.subr.mxu0 0.0
    %3545 = vmatpush1.msra.mxu0 0.0
    %3546 = vmatprep.subr.mxu0 0.0
    %3547 = vmatpush1.msra.mxu0 0.0
    %3548 = vmatprep.subr.mxu0 0.0
    %3549 = vmatpush1.msra.mxu0 0.0
    %3550 = vmatprep.subr.mxu0 0.0
    %3551 = vmatpush1.msra.mxu0 0.0
    %3552 = vmatprep.subr.mxu0 0.0
    %3553 = vmatpush1.msra.mxu0 0.0
    %3554 = vmatprep.subr.mxu0 0.0
    %3555 = vmatpush1.msra.mxu0 0.0
    %3556 = vmatprep.mubr.f32.mxu0 0.0
    %3557 = vmatmul.mubr.f32.gmra.mrb[0].mxu0 %v3487
    %v3558 = vpop.f32.mrb[0].mxu0
    %v3559 = vadd.f32 %v3484, %v3558
    %v3560 = vpop.f32.mrb[0].mxu0
    %3561 = vmatprep.mubr.f32.mxu0 0.0
    %3562 = vmatmul.mubr.f32.gmra.mrb[0].mxu0 %v3490
    %v3563 = vpop.f32.mrb[0].mxu0
    %v3564 = vadd.f32 %v3484, %v3563
    %v3565 = vpop.f32.mrb[0].mxu0
    %3566 = vdwg.mxu0
    %v3567 = vmax.f32 %v3559, 0.0
    %v3568 = vmax.f32 %v3564, 0.0
    %vm3569 = vcmask 523264
    %v3571 = vsel %vm3569, %v3567, 0
    %v3574 = vsel %vm3569, %v3568, 0
    %3576 = vmatprep.subr.mxu0 0.0
    %3577 = vmatpush1.msra.mxu0 %v113
    %3578 = vmatprep.subr.mxu0 0.0
    %3579 = vmatpush1.msra.mxu0 %v114
    %3580 = vmatprep.subr.mxu0 0.0
    %3581 = vmatpush1.msra.mxu0 %v115
    %3582 = vmatprep.subr.mxu0 0.0
    %3583 = vmatpush1.msra.mxu0 %v116
    %3584 = vmatprep.subr.mxu0 0.0
    %3585 = vmatpush1.msra.mxu0 %v117
    %3586 = vmatprep.subr.mxu0 0.0
    %3587 = vmatpush1.msra.mxu0 %v118
    %3588 = vmatprep.subr.mxu0 0.0
    %3589 = vmatpush1.msra.mxu0 %v119
    %3590 = vmatprep.subr.mxu0 0.0
    %3591 = vmatpush1.msra.mxu0 %v120
    %3592 = vmatprep.subr.mxu0 0.0
    %3593 = vmatpush1.msra.mxu0 0.0
    %3594 = vmatprep.subr.mxu0 0.0
    %3595 = vmatpush1.msra.mxu0 0.0
    %3596 = vmatprep.subr.mxu0 0.0
    %3597 = vmatpush1.msra.mxu0 0.0
    %3598 = vmatprep.subr.mxu0 0.0
    %3599 = vmatpush1.msra.mxu0 0.0
    %3600 = vmatprep.subr.mxu0 0.0
    %3601 = vmatpush1.msra.mxu0 0.0
    %3602 = vmatprep.subr.mxu0 0.0
    %3603 = vmatpush1.msra.mxu0 0.0
    %3604 = vmatprep.subr.mxu0 0.0
    %3605 = vmatpush1.msra.mxu0 0.0
    %3606 = vmatprep.subr.mxu0 0.0
    %3607 = vmatpush1.msra.mxu0 0.0
    %3608 = vmatprep.subr.mxu0 0.0
    %3609 = vmatpush1.msra.mxu0 0.0
    %3610 = vmatprep.subr.mxu0 0.0
    %3611 = vmatpush1.msra.mxu0 0.0
    %3612 = vmatprep.subr.mxu0 0.0
    %3613 = vmatpush1.msra.mxu0 0.0
    %3614 = vmatprep.subr.mxu0 0.0
    %3615 = vmatpush1.msra.mxu0 0.0
    %3616 = vmatprep.subr.mxu0 0.0
    %3617 = vmatpush1.msra.mxu0 0.0
    %3618 = vmatprep.subr.mxu0 0.0
    %3619 = vmatpush1.msra.mxu0 0.0
    %3620 = vmatprep.subr.mxu0 0.0
    %3621 = vmatpush1.msra.mxu0 0.0
    %3622 = vmatprep.subr.mxu0 0.0
    %3623 = vmatpush1.msra.mxu0 0.0
    %3624 = vmatprep.subr.mxu0 0.0
    %3625 = vmatpush1.msra.mxu0 0.0
    %3626 = vmatprep.subr.mxu0 0.0
    %3627 = vmatpush1.msra.mxu0 0.0
    %3628 = vmatprep.subr.mxu0 0.0
    %3629 = vmatpush1.msra.mxu0 0.0
    %3630 = vmatprep.subr.mxu0 0.0
    %3631 = vmatpush1.msra.mxu0 0.0
    %3632 = vmatprep.subr.mxu0 0.0
    %3633 = vmatpush1.msra.mxu0 0.0
    %3634 = vmatprep.subr.mxu0 0.0
    %3635 = vmatpush1.msra.mxu0 0.0
    %3636 = vmatprep.subr.mxu0 0.0
    %3637 = vmatpush1.msra.mxu0 0.0
    %3638 = vmatprep.subr.mxu0 0.0
    %3639 = vmatpush1.msra.mxu0 0.0
    %3640 = vmatprep.mubr.f32.mxu0 0.0
    %3641 = vmatmul.mubr.f32.gmra.mrb[0].mxu0 %v3571
    %v3642 = vpop.f32.mrb[0].mxu0
    %v3643 = vadd.f32 0.0, %v3642
    %v3644 = vpop.f32.mrb[0].mxu0
    %3645 = vmatprep.mubr.f32.mxu0 0.0
    %3646 = vmatmul.mubr.f32.gmra.mrb[0].mxu0 %v3574
    %v3647 = vpop.f32.mrb[0].mxu0
    %v3648 = vadd.f32 0.0, %v3647
    %v3649 = vpop.f32.mrb[0].mxu0
    %3650 = vdwg.mxu0
    %v3651 = vadd.f32 %v3422, %v3643
    %v3652 = vadd.f32 %v3423, %v3648
    %v3654 = vlaneseq
    %v3655 = vshrl.u32 %v3654, 7
    %v3656 = vsub.s32 0, %v3655
    %v3657 = vrot.slane %v121, %v3656
    %v3659 = vadd.f32 %v3651, %v3657
    %v3660 = vadd.f32 %v3652, %v3657
    %v3661 = vsel %vm141, %v3659, 0.0
    %3662 = vadd.xlane.f32.xlu0 %v3661
    %v3663 = vpop.xlane.xlu0 %3662
    %v3664 = vsel %vm141, %v3660, 0.0
    %3665 = vadd.xlane.f32.xlu0 %v3664
    %v3666 = vpop.xlane.xlu0 %3665
    %v3667 = vmul.f32 %v3663, %v231
    %v3668 = vmul.f32 %v3666, %v231
    %v3669 = vsub.f32 %v3659, %v3667
    %v3670 = vsub.f32 %v3660, %v3668
    %v3671 = vmul.f32 %v3669, %v3669
    %v3672 = vmul.f32 %v3670, %v3670
    %v3673 = vsel %vm141, %v3671, 0.0
    %3674 = vadd.xlane.f32.xlu0 %v3673
    %v3675 = vpop.xlane.xlu0 %3674
    %v3676 = vsel %vm141, %v3672, 0.0
    %3677 = vadd.xlane.f32.xlu0 %v3676
    %v3678 = vpop.xlane.xlu0 %3677
    %v3679 = vmul.f32 %v3675, %v244
    %v3680 = vmul.f32 %v3678, %v244
    %v3681 = vrsqrt.pop %v3679
    %v3682 = vmul.f32 %v3679, %v3681
    %vm3683 = vcmp.eq.f32.partialorder %v3679, inf
    %v3684 = vsel %vm3683, %v3679, %v3682
    %vm3685 = vcmp.eq.f32.partialorder %v3679, 0.0
    %v3686 = vand.u32 %v3679, 2147483648
    %v3687 = vsel %vm3685, %v3686, %v3684
    %v3688 = vrsqrt.pop %v3680
    %v3689 = vmul.f32 %v3680, %v3688
    %vm3690 = vcmp.eq.f32.partialorder %v3680, inf
    %v3691 = vsel %vm3690, %v3680, %v3689
    %vm3692 = vcmp.eq.f32.partialorder %v3680, 0.0
    %v3693 = vand.u32 %v3680, 2147483648
    %v3694 = vsel %vm3692, %v3693, %v3691
    %v3695 = vmul.f32 %v265, %v3669
    %v3696 = vmul.f32 %v265, %v3670
    %v3697 = vadd.f32 %v3687, 1e-06
    %v3698 = vadd.f32 %v3694, 1e-06
    %v3699 = vrcp.pop %v3697
    %v3700 = vmul.f32 %v3695, %v3699
    %v3701 = vrcp.pop %v3698
    %v3702 = vmul.f32 %v3696, %v3701
    %v3703 = vadd.f32 %v3700, %v279
    %v3704 = vadd.f32 %v3702, %v279
    %v3706 = vsel %vm141, %v3703, 0
    %v3709 = vsel %vm141, %v3704, 0
    %3711 = vmatprep.subr.mxu0 0.0
    %3712 = vmatpush1.msra.mxu0 %v88
    %3713 = vmatprep.subr.mxu0 0.0
    %3714 = vmatpush1.msra.mxu0 %v89
    %3715 = vmatprep.subr.mxu0 0.0
    %3716 = vmatpush1.msra.mxu0 %v90
    %3717 = vmatprep.subr.mxu0 0.0
    %3718 = vmatpush1.msra.mxu0 %v91
    %3719 = vmatprep.subr.mxu0 0.0
    %3720 = vmatpush1.msra.mxu0 0.0
    %3721 = vmatprep.subr.mxu0 0.0
    %3722 = vmatpush1.msra.mxu0 0.0
    %3723 = vmatprep.subr.mxu0 0.0
    %3724 = vmatpush1.msra.mxu0 0.0
    %3725 = vmatprep.subr.mxu0 0.0
    %3726 = vmatpush1.msra.mxu0 0.0
    %3727 = vmatprep.subr.mxu0 0.0
    %3728 = vmatpush1.msra.mxu0 0.0
    %3729 = vmatprep.subr.mxu0 0.0
    %3730 = vmatpush1.msra.mxu0 0.0
    %3731 = vmatprep.subr.mxu0 0.0
    %3732 = vmatpush1.msra.mxu0 0.0
    %3733 = vmatprep.subr.mxu0 0.0
    %3734 = vmatpush1.msra.mxu0 0.0
    %3735 = vmatprep.subr.mxu0 0.0
    %3736 = vmatpush1.msra.mxu0 0.0
    %3737 = vmatprep.subr.mxu0 0.0
    %3738 = vmatpush1.msra.mxu0 0.0
    %3739 = vmatprep.subr.mxu0 0.0
    %3740 = vmatpush1.msra.mxu0 0.0
    %3741 = vmatprep.subr.mxu0 0.0
    %3742 = vmatpush1.msra.mxu0 0.0
    %3743 = vmatprep.subr.mxu0 0.0
    %3744 = vmatpush1.msra.mxu0 0.0
    %3745 = vmatprep.subr.mxu0 0.0
    %3746 = vmatpush1.msra.mxu0 0.0
    %3747 = vmatprep.subr.mxu0 0.0
    %3748 = vmatpush1.msra.mxu0 0.0
    %3749 = vmatprep.subr.mxu0 0.0
    %3750 = vmatpush1.msra.mxu0 0.0
    %3751 = vmatprep.subr.mxu0 0.0
    %3752 = vmatpush1.msra.mxu0 0.0
    %3753 = vmatprep.subr.mxu0 0.0
    %3754 = vmatpush1.msra.mxu0 0.0
    %3755 = vmatprep.subr.mxu0 0.0
    %3756 = vmatpush1.msra.mxu0 0.0
    %3757 = vmatprep.subr.mxu0 0.0
    %3758 = vmatpush1.msra.mxu0 0.0
    %3759 = vmatprep.subr.mxu0 0.0
    %3760 = vmatpush1.msra.mxu0 0.0
    %3761 = vmatprep.subr.mxu0 0.0
    %3762 = vmatpush1.msra.mxu0 0.0
    %3763 = vmatprep.subr.mxu0 0.0
    %3764 = vmatpush1.msra.mxu0 0.0
    %3765 = vmatprep.subr.mxu0 0.0
    %3766 = vmatpush1.msra.mxu0 0.0
    %3767 = vmatprep.subr.mxu0 0.0
    %3768 = vmatpush1.msra.mxu0 0.0
    %3769 = vmatprep.subr.mxu0 0.0
    %3770 = vmatpush1.msra.mxu0 0.0
    %3771 = vmatprep.subr.mxu0 0.0
    %3772 = vmatpush1.msra.mxu0 0.0
    %3773 = vmatprep.subr.mxu0 0.0
    %3774 = vmatpush1.msra.mxu0 0.0
    %3775 = vmatprep.mubr.f32.mxu0 0.0
    %3776 = vmatmul.mubr.f32.gmra.mrb[0].mxu0 %v3706
    %v3777 = vpop.f32.mrb[0].mxu0
    %v3778 = vadd.f32 %v287, %v3777
    %v3779 = vpop.f32.mrb[0].mxu0
    %3780 = vmatprep.mubr.f32.mxu0 0.0
    %3781 = vmatmul.mubr.f32.gmra.mrb[0].mxu0 %v3709
    %v3782 = vpop.f32.mrb[0].mxu0
    %v3783 = vadd.f32 %v287, %v3782
    %v3784 = vpop.f32.mrb[0].mxu0
    %3785 = vdwg.mxu0
    %3787 = vrot.lane.b32.xlu0 %v3778, 96
    %v3788 = vpop.permute.xlu0 %3787
    %v3789 = vsel %vm373, %v3778, 0
    %v3791 = vsel %vm373, %v3788, 0
    %3793 = vmatprep.subr.mxu0 0.0
    %3794 = vmatpush1.xpose.msra.mxu0 %v3791
    %3795 = vmatprep.subr.mxu0 0.0
    %3796 = vmatpush1.xpose.msra.mxu0 0.0
    %3797 = vmatprep.subr.mxu0 0.0
    %3798 = vmatpush1.xpose.msra.mxu0 0.0
    %3799 = vmatprep.subr.mxu0 0.0
    %3800 = vmatpush1.xpose.msra.mxu0 0.0
    %3801 = vmatprep.subr.mxu0 0.0
    %3802 = vmatpush1.xpose.msra.mxu0 0.0
    %3803 = vmatprep.subr.mxu0 0.0
    %3804 = vmatpush1.xpose.msra.mxu0 0.0
    %3805 = vmatprep.subr.mxu0 0.0
    %3806 = vmatpush1.xpose.msra.mxu0 0.0
    %3807 = vmatprep.subr.mxu0 0.0
    %3808 = vmatpush1.xpose.msra.mxu0 0.0
    %3809 = vmatprep.subr.mxu0 0.0
    %3810 = vmatpush1.xpose.msra.mxu0 0.0
    %3811 = vmatprep.subr.mxu0 0.0
    %3812 = vmatpush1.xpose.msra.mxu0 0.0
    %3813 = vmatprep.subr.mxu0 0.0
    %3814 = vmatpush1.xpose.msra.mxu0 0.0
    %3815 = vmatprep.subr.mxu0 0.0
    %3816 = vmatpush1.xpose.msra.mxu0 0.0
    %3817 = vmatprep.subr.mxu0 0.0
    %3818 = vmatpush1.xpose.msra.mxu0 0.0
    %3819 = vmatprep.subr.mxu0 0.0
    %3820 = vmatpush1.xpose.msra.mxu0 0.0
    %3821 = vmatprep.subr.mxu0 0.0
    %3822 = vmatpush1.xpose.msra.mxu0 0.0
    %3823 = vmatprep.subr.mxu0 0.0
    %3824 = vmatpush1.xpose.msra.mxu0 0.0
    %3825 = vmatprep.subr.mxu0 0.0
    %3826 = vmatpush1.xpose.msra.mxu0 0.0
    %3827 = vmatprep.subr.mxu0 0.0
    %3828 = vmatpush1.xpose.msra.mxu0 0.0
    %3829 = vmatprep.subr.mxu0 0.0
    %3830 = vmatpush1.xpose.msra.mxu0 0.0
    %3831 = vmatprep.subr.mxu0 0.0
    %3832 = vmatpush1.xpose.msra.mxu0 0.0
    %3833 = vmatprep.subr.mxu0 0.0
    %3834 = vmatpush1.xpose.msra.mxu0 0.0
    %3835 = vmatprep.subr.mxu0 0.0
    %3836 = vmatpush1.xpose.msra.mxu0 0.0
    %3837 = vmatprep.subr.mxu0 0.0
    %3838 = vmatpush1.xpose.msra.mxu0 0.0
    %3839 = vmatprep.subr.mxu0 0.0
    %3840 = vmatpush1.xpose.msra.mxu0 0.0
    %3841 = vmatprep.subr.mxu0 0.0
    %3842 = vmatpush1.xpose.msra.mxu0 0.0
    %3843 = vmatprep.subr.mxu0 0.0
    %3844 = vmatpush1.xpose.msra.mxu0 0.0
    %3845 = vmatprep.subr.mxu0 0.0
    %3846 = vmatpush1.xpose.msra.mxu0 0.0
    %3847 = vmatprep.subr.mxu0 0.0
    %3848 = vmatpush1.xpose.msra.mxu0 0.0
    %3849 = vmatprep.subr.mxu0 0.0
    %3850 = vmatpush1.xpose.msra.mxu0 0.0
    %3851 = vmatprep.subr.mxu0 0.0
    %3852 = vmatpush1.xpose.msra.mxu0 0.0
    %3853 = vmatprep.subr.mxu0 0.0
    %3854 = vmatpush1.xpose.msra.mxu0 0.0
    %3855 = vmatprep.subr.mxu0 0.0
    %3856 = vmatpush1.xpose.msra.mxu0 0.0
    %3857 = vmatprep.mubr.f32.mxu0 0.0
    %3858 = vmatmul.mubr.f32.gmra.mrb[0].mxu0 %v3789
    %v3859 = vpop.f32.mrb[0].mxu0
    %v3860 = vadd.f32 0.0, %v3859
    %v3861 = vpop.f32.mrb[0].mxu0
    %3862 = vdwg.mxu0
    %3864 = vrot.lane.b32.xlu0 %v3783, 96
    %v3865 = vpop.permute.xlu0 %3864
    %v3866 = vsel %vm373, %v3783, 0
    %v3868 = vsel %vm373, %v3865, 0
    %3870 = vmatprep.subr.mxu0 0.0
    %3871 = vmatpush1.xpose.msra.mxu0 %v3868
    %3872 = vmatprep.subr.mxu0 0.0
    %3873 = vmatpush1.xpose.msra.mxu0 0.0
    %3874 = vmatprep.subr.mxu0 0.0
    %3875 = vmatpush1.xpose.msra.mxu0 0.0
    %3876 = vmatprep.subr.mxu0 0.0
    %3877 = vmatpush1.xpose.msra.mxu0 0.0
    %3878 = vmatprep.subr.mxu0 0.0
    %3879 = vmatpush1.xpose.msra.mxu0 0.0
    %3880 = vmatprep.subr.mxu0 0.0
    %3881 = vmatpush1.xpose.msra.mxu0 0.0
    %3882 = vmatprep.subr.mxu0 0.0
    %3883 = vmatpush1.xpose.msra.mxu0 0.0
    %3884 = vmatprep.subr.mxu0 0.0
    %3885 = vmatpush1.xpose.msra.mxu0 0.0
    %3886 = vmatprep.subr.mxu0 0.0
    %3887 = vmatpush1.xpose.msra.mxu0 0.0
    %3888 = vmatprep.subr.mxu0 0.0
    %3889 = vmatpush1.xpose.msra.mxu0 0.0
    %3890 = vmatprep.subr.mxu0 0.0
    %3891 = vmatpush1.xpose.msra.mxu0 0.0
    %3892 = vmatprep.subr.mxu0 0.0
    %3893 = vmatpush1.xpose.msra.mxu0 0.0
    %3894 = vmatprep.subr.mxu0 0.0
    %3895 = vmatpush1.xpose.msra.mxu0 0.0
    %3896 = vmatprep.subr.mxu0 0.0
    %3897 = vmatpush1.xpose.msra.mxu0 0.0
    %3898 = vmatprep.subr.mxu0 0.0
    %3899 = vmatpush1.xpose.msra.mxu0 0.0
    %3900 = vmatprep.subr.mxu0 0.0
    %3901 = vmatpush1.xpose.msra.mxu0 0.0
    %3902 = vmatprep.subr.mxu0 0.0
    %3903 = vmatpush1.xpose.msra.mxu0 0.0
    %3904 = vmatprep.subr.mxu0 0.0
    %3905 = vmatpush1.xpose.msra.mxu0 0.0
    %3906 = vmatprep.subr.mxu0 0.0
    %3907 = vmatpush1.xpose.msra.mxu0 0.0
    %3908 = vmatprep.subr.mxu0 0.0
    %3909 = vmatpush1.xpose.msra.mxu0 0.0
    %3910 = vmatprep.subr.mxu0 0.0
    %3911 = vmatpush1.xpose.msra.mxu0 0.0
    %3912 = vmatprep.subr.mxu0 0.0
    %3913 = vmatpush1.xpose.msra.mxu0 0.0
    %3914 = vmatprep.subr.mxu0 0.0
    %3915 = vmatpush1.xpose.msra.mxu0 0.0
    %3916 = vmatprep.subr.mxu0 0.0
    %3917 = vmatpush1.xpose.msra.mxu0 0.0
    %3918 = vmatprep.subr.mxu0 0.0
    %3919 = vmatpush1.xpose.msra.mxu0 0.0
    %3920 = vmatprep.subr.mxu0 0.0
    %3921 = vmatpush1.xpose.msra.mxu0 0.0
    %3922 = vmatprep.subr.mxu0 0.0
    %3923 = vmatpush1.xpose.msra.mxu0 0.0
    %3924 = vmatprep.subr.mxu0 0.0
    %3925 = vmatpush1.xpose.msra.mxu0 0.0
    %3926 = vmatprep.subr.mxu0 0.0
    %3927 = vmatpush1.xpose.msra.mxu0 0.0
    %3928 = vmatprep.subr.mxu0 0.0
    %3929 = vmatpush1.xpose.msra.mxu0 0.0
    %3930 = vmatprep.subr.mxu0 0.0
    %3931 = vmatpush1.xpose.msra.mxu0 0.0
    %3932 = vmatprep.subr.mxu0 0.0
    %3933 = vmatpush1.xpose.msra.mxu0 0.0
    %3934 = vmatprep.mubr.f32.mxu0 0.0
    %3935 = vmatmul.mubr.f32.gmra.mrb[0].mxu0 %v3866
    %v3936 = vpop.f32.mrb[0].mxu0
    %v3937 = vadd.f32 0.0, %v3936
    %v3938 = vpop.f32.mrb[0].mxu0
    %3939 = vdwg.mxu0
    %v3940 = vmul.f32 %v3860, 0.35355338
    %v3941 = vmul.f32 %v3937, 0.35355338
    %v3942 = vsel %vm527, -1e+09, %v3940
    %v3943 = vsel %vm528, -1e+09, %v3941
    %v3944 = vsel %vm373, %v3942, -inf
    %3945 = vmax.xlane.f32.xlu0 %v3944
    %v3946 = vpop.xlane.xlu0 %3945
    %v3947 = vsel %vm373, %v3943, -inf
    %3948 = vmax.xlane.f32.xlu0 %v3947
    %v3949 = vpop.xlane.xlu0 %3948
    %v3950 = vsub.f32 %v3942, %v3946
    %v3951 = vsub.f32 %v3943, %v3949
    %v3952 = vmul.f32 %v3950, 1.442695
    %v3953 = vpow.pop %v3952
    %v3954 = vmul.f32 %v3951, 1.442695
    %v3955 = vpow.pop %v3954
    %v3956 = vsel %vm373, %v3953, 0.0
    %3957 = vadd.xlane.f32.xlu0 %v3956
    %v3958 = vpop.xlane.xlu0 %3957
    %v3959 = vsel %vm373, %v3955, 0.0
    %3960 = vadd.xlane.f32.xlu0 %v3959
    %v3961 = vpop.xlane.xlu0 %3960
    %v3962 = vrcp.pop %v3958
    %v3963 = vmul.f32 %v3953, %v3962
    %v3964 = vrcp.pop %v3961
    %v3965 = vmul.f32 %v3955, %v3964
    %3966 = vrot.lane.b32.xlu0 %v3778, 64
    %v3967 = vpop.permute.xlu0 %3966
    %v3970 = vsel %vm373, %v3963, 0
    %3972 = vmatprep.subr.mxu0 0.0
    %3973 = vmatpush1.msra.mxu0 %v3967
    %3974 = vmatprep.subr.mxu0 0.0
    %3975 = vmatpush1.msra.mxu0 0.0
    %3976 = vmatprep.subr.mxu0 0.0
    %3977 = vmatpush1.msra.mxu0 0.0
    %3978 = vmatprep.subr.mxu0 0.0
    %3979 = vmatpush1.msra.mxu0 0.0
    %3980 = vmatprep.subr.mxu0 0.0
    %3981 = vmatpush1.msra.mxu0 0.0
    %3982 = vmatprep.subr.mxu0 0.0
    %3983 = vmatpush1.msra.mxu0 0.0
    %3984 = vmatprep.subr.mxu0 0.0
    %3985 = vmatpush1.msra.mxu0 0.0
    %3986 = vmatprep.subr.mxu0 0.0
    %3987 = vmatpush1.msra.mxu0 0.0
    %3988 = vmatprep.subr.mxu0 0.0
    %3989 = vmatpush1.msra.mxu0 0.0
    %3990 = vmatprep.subr.mxu0 0.0
    %3991 = vmatpush1.msra.mxu0 0.0
    %3992 = vmatprep.subr.mxu0 0.0
    %3993 = vmatpush1.msra.mxu0 0.0
    %3994 = vmatprep.subr.mxu0 0.0
    %3995 = vmatpush1.msra.mxu0 0.0
    %3996 = vmatprep.subr.mxu0 0.0
    %3997 = vmatpush1.msra.mxu0 0.0
    %3998 = vmatprep.subr.mxu0 0.0
    %3999 = vmatpush1.msra.mxu0 0.0
    %4000 = vmatprep.subr.mxu0 0.0
    %4001 = vmatpush1.msra.mxu0 0.0
    %4002 = vmatprep.subr.mxu0 0.0
    %4003 = vmatpush1.msra.mxu0 0.0
    %4004 = vmatprep.subr.mxu0 0.0
    %4005 = vmatpush1.msra.mxu0 0.0
    %4006 = vmatprep.subr.mxu0 0.0
    %4007 = vmatpush1.msra.mxu0 0.0
    %4008 = vmatprep.subr.mxu0 0.0
    %4009 = vmatpush1.msra.mxu0 0.0
    %4010 = vmatprep.subr.mxu0 0.0
    %4011 = vmatpush1.msra.mxu0 0.0
    %4012 = vmatprep.subr.mxu0 0.0
    %4013 = vmatpush1.msra.mxu0 0.0
    %4014 = vmatprep.subr.mxu0 0.0
    %4015 = vmatpush1.msra.mxu0 0.0
    %4016 = vmatprep.subr.mxu0 0.0
    %4017 = vmatpush1.msra.mxu0 0.0
    %4018 = vmatprep.subr.mxu0 0.0
    %4019 = vmatpush1.msra.mxu0 0.0
    %4020 = vmatprep.subr.mxu0 0.0
    %4021 = vmatpush1.msra.mxu0 0.0
    %4022 = vmatprep.subr.mxu0 0.0
    %4023 = vmatpush1.msra.mxu0 0.0
    %4024 = vmatprep.subr.mxu0 0.0
    %4025 = vmatpush1.msra.mxu0 0.0
    %4026 = vmatprep.subr.mxu0 0.0
    %4027 = vmatpush1.msra.mxu0 0.0
    %4028 = vmatprep.subr.mxu0 0.0
    %4029 = vmatpush1.msra.mxu0 0.0
    %4030 = vmatprep.subr.mxu0 0.0
    %4031 = vmatpush1.msra.mxu0 0.0
    %4032 = vmatprep.subr.mxu0 0.0
    %4033 = vmatpush1.msra.mxu0 0.0
    %4034 = vmatprep.subr.mxu0 0.0
    %4035 = vmatpush1.msra.mxu0 0.0
    %4036 = vmatprep.mubr.f32.mxu0 0.0
    %4037 = vmatmul.mubr.f32.gmra.mrb[0].mxu0 %v3970
    %v4038 = vpop.f32.mrb[0].mxu0
    %v4039 = vadd.f32 0.0, %v4038
    %v4040 = vpop.f32.mrb[0].mxu0
    %4041 = vdwg.mxu0
    %4042 = vrot.lane.b32.xlu0 %v3783, 64
    %v4043 = vpop.permute.xlu0 %4042
    %v4046 = vsel %vm373, %v3965, 0
    %4048 = vmatprep.subr.mxu0 0.0
    %4049 = vmatpush1.msra.mxu0 %v4043
    %4050 = vmatprep.subr.mxu0 0.0
    %4051 = vmatpush1.msra.mxu0 0.0
    %4052 = vmatprep.subr.mxu0 0.0
    %4053 = vmatpush1.msra.mxu0 0.0
    %4054 = vmatprep.subr.mxu0 0.0
    %4055 = vmatpush1.msra.mxu0 0.0
    %4056 = vmatprep.subr.mxu0 0.0
    %4057 = vmatpush1.msra.mxu0 0.0
    %4058 = vmatprep.subr.mxu0 0.0
    %4059 = vmatpush1.msra.mxu0 0.0
    %4060 = vmatprep.subr.mxu0 0.0
    %4061 = vmatpush1.msra.mxu0 0.0
    %4062 = vmatprep.subr.mxu0 0.0
    %4063 = vmatpush1.msra.mxu0 0.0
    %4064 = vmatprep.subr.mxu0 0.0
    %4065 = vmatpush1.msra.mxu0 0.0
    %4066 = vmatprep.subr.mxu0 0.0
    %4067 = vmatpush1.msra.mxu0 0.0
    %4068 = vmatprep.subr.mxu0 0.0
    %4069 = vmatpush1.msra.mxu0 0.0
    %4070 = vmatprep.subr.mxu0 0.0
    %4071 = vmatpush1.msra.mxu0 0.0
    %4072 = vmatprep.subr.mxu0 0.0
    %4073 = vmatpush1.msra.mxu0 0.0
    %4074 = vmatprep.subr.mxu0 0.0
    %4075 = vmatpush1.msra.mxu0 0.0
    %4076 = vmatprep.subr.mxu0 0.0
    %4077 = vmatpush1.msra.mxu0 0.0
    %4078 = vmatprep.subr.mxu0 0.0
    %4079 = vmatpush1.msra.mxu0 0.0
    %4080 = vmatprep.subr.mxu0 0.0
    %4081 = vmatpush1.msra.mxu0 0.0
    %4082 = vmatprep.subr.mxu0 0.0
    %4083 = vmatpush1.msra.mxu0 0.0
    %4084 = vmatprep.subr.mxu0 0.0
    %4085 = vmatpush1.msra.mxu0 0.0
    %4086 = vmatprep.subr.mxu0 0.0
    %4087 = vmatpush1.msra.mxu0 0.0
    %4088 = vmatprep.subr.mxu0 0.0
    %4089 = vmatpush1.msra.mxu0 0.0
    %4090 = vmatprep.subr.mxu0 0.0
    %4091 = vmatpush1.msra.mxu0 0.0
    %4092 = vmatprep.subr.mxu0 0.0
    %4093 = vmatpush1.msra.mxu0 0.0
    %4094 = vmatprep.subr.mxu0 0.0
    %4095 = vmatpush1.msra.mxu0 0.0
    %4096 = vmatprep.subr.mxu0 0.0
    %4097 = vmatpush1.msra.mxu0 0.0
    %4098 = vmatprep.subr.mxu0 0.0
    %4099 = vmatpush1.msra.mxu0 0.0
    %4100 = vmatprep.subr.mxu0 0.0
    %4101 = vmatpush1.msra.mxu0 0.0
    %4102 = vmatprep.subr.mxu0 0.0
    %4103 = vmatpush1.msra.mxu0 0.0
    %4104 = vmatprep.subr.mxu0 0.0
    %4105 = vmatpush1.msra.mxu0 0.0
    %4106 = vmatprep.subr.mxu0 0.0
    %4107 = vmatpush1.msra.mxu0 0.0
    %4108 = vmatprep.subr.mxu0 0.0
    %4109 = vmatpush1.msra.mxu0 0.0
    %4110 = vmatprep.subr.mxu0 0.0
    %4111 = vmatpush1.msra.mxu0 0.0
    %4112 = vmatprep.mubr.f32.mxu0 0.0
    %4113 = vmatmul.mubr.f32.gmra.mrb[0].mxu0 %v4046
    %v4114 = vpop.f32.mrb[0].mxu0
    %v4115 = vadd.f32 0.0, %v4114
    %v4116 = vpop.f32.mrb[0].mxu0
    %4117 = vdwg.mxu0
    %4118 = vrot.lane.b32.xlu0 %v3778, 120
    %v4119 = vpop.permute.xlu0 %4118
    %4120 = vrot.lane.b32.xlu0 %v3778, 88
    %v4121 = vpop.permute.xlu0 %4120
    %v4122 = vsel %vm373, %v4119, 0
    %v4124 = vsel %vm373, %v4121, 0
    %4126 = vmatprep.subr.mxu0 0.0
    %4127 = vmatpush1.xpose.msra.mxu0 %v4124
    %4128 = vmatprep.subr.mxu0 0.0
    %4129 = vmatpush1.xpose.msra.mxu0 0.0
    %4130 = vmatprep.subr.mxu0 0.0
    %4131 = vmatpush1.xpose.msra.mxu0 0.0
    %4132 = vmatprep.subr.mxu0 0.0
    %4133 = vmatpush1.xpose.msra.mxu0 0.0
    %4134 = vmatprep.subr.mxu0 0.0
    %4135 = vmatpush1.xpose.msra.mxu0 0.0
    %4136 = vmatprep.subr.mxu0 0.0
    %4137 = vmatpush1.xpose.msra.mxu0 0.0
    %4138 = vmatprep.subr.mxu0 0.0
    %4139 = vmatpush1.xpose.msra.mxu0 0.0
    %4140 = vmatprep.subr.mxu0 0.0
    %4141 = vmatpush1.xpose.msra.mxu0 0.0
    %4142 = vmatprep.subr.mxu0 0.0
    %4143 = vmatpush1.xpose.msra.mxu0 0.0
    %4144 = vmatprep.subr.mxu0 0.0
    %4145 = vmatpush1.xpose.msra.mxu0 0.0
    %4146 = vmatprep.subr.mxu0 0.0
    %4147 = vmatpush1.xpose.msra.mxu0 0.0
    %4148 = vmatprep.subr.mxu0 0.0
    %4149 = vmatpush1.xpose.msra.mxu0 0.0
    %4150 = vmatprep.subr.mxu0 0.0
    %4151 = vmatpush1.xpose.msra.mxu0 0.0
    %4152 = vmatprep.subr.mxu0 0.0
    %4153 = vmatpush1.xpose.msra.mxu0 0.0
    %4154 = vmatprep.subr.mxu0 0.0
    %4155 = vmatpush1.xpose.msra.mxu0 0.0
    %4156 = vmatprep.subr.mxu0 0.0
    %4157 = vmatpush1.xpose.msra.mxu0 0.0
    %4158 = vmatprep.subr.mxu0 0.0
    %4159 = vmatpush1.xpose.msra.mxu0 0.0
    %4160 = vmatprep.subr.mxu0 0.0
    %4161 = vmatpush1.xpose.msra.mxu0 0.0
    %4162 = vmatprep.subr.mxu0 0.0
    %4163 = vmatpush1.xpose.msra.mxu0 0.0
    %4164 = vmatprep.subr.mxu0 0.0
    %4165 = vmatpush1.xpose.msra.mxu0 0.0
    %4166 = vmatprep.subr.mxu0 0.0
    %4167 = vmatpush1.xpose.msra.mxu0 0.0
    %4168 = vmatprep.subr.mxu0 0.0
    %4169 = vmatpush1.xpose.msra.mxu0 0.0
    %4170 = vmatprep.subr.mxu0 0.0
    %4171 = vmatpush1.xpose.msra.mxu0 0.0
    %4172 = vmatprep.subr.mxu0 0.0
    %4173 = vmatpush1.xpose.msra.mxu0 0.0
    %4174 = vmatprep.subr.mxu0 0.0
    %4175 = vmatpush1.xpose.msra.mxu0 0.0
    %4176 = vmatprep.subr.mxu0 0.0
    %4177 = vmatpush1.xpose.msra.mxu0 0.0
    %4178 = vmatprep.subr.mxu0 0.0
    %4179 = vmatpush1.xpose.msra.mxu0 0.0
    %4180 = vmatprep.subr.mxu0 0.0
    %4181 = vmatpush1.xpose.msra.mxu0 0.0
    %4182 = vmatprep.subr.mxu0 0.0
    %4183 = vmatpush1.xpose.msra.mxu0 0.0
    %4184 = vmatprep.subr.mxu0 0.0
    %4185 = vmatpush1.xpose.msra.mxu0 0.0
    %4186 = vmatprep.subr.mxu0 0.0
    %4187 = vmatpush1.xpose.msra.mxu0 0.0
    %4188 = vmatprep.subr.mxu0 0.0
    %4189 = vmatpush1.xpose.msra.mxu0 0.0
    %4190 = vmatprep.mubr.f32.mxu0 0.0
    %4191 = vmatmul.mubr.f32.gmra.mrb[0].mxu0 %v4122
    %v4192 = vpop.f32.mrb[0].mxu0
    %v4193 = vadd.f32 0.0, %v4192
    %v4194 = vpop.f32.mrb[0].mxu0
    %4195 = vdwg.mxu0
    %4196 = vrot.lane.b32.xlu0 %v3783, 120
    %v4197 = vpop.permute.xlu0 %4196
    %4198 = vrot.lane.b32.xlu0 %v3783, 88
    %v4199 = vpop.permute.xlu0 %4198
    %v4200 = vsel %vm373, %v4197, 0
    %v4202 = vsel %vm373, %v4199, 0
    %4204 = vmatprep.subr.mxu0 0.0
    %4205 = vmatpush1.xpose.msra.mxu0 %v4202
    %4206 = vmatprep.subr.mxu0 0.0
    %4207 = vmatpush1.xpose.msra.mxu0 0.0
    %4208 = vmatprep.subr.mxu0 0.0
    %4209 = vmatpush1.xpose.msra.mxu0 0.0
    %4210 = vmatprep.subr.mxu0 0.0
    %4211 = vmatpush1.xpose.msra.mxu0 0.0
    %4212 = vmatprep.subr.mxu0 0.0
    %4213 = vmatpush1.xpose.msra.mxu0 0.0
    %4214 = vmatprep.subr.mxu0 0.0
    %4215 = vmatpush1.xpose.msra.mxu0 0.0
    %4216 = vmatprep.subr.mxu0 0.0
    %4217 = vmatpush1.xpose.msra.mxu0 0.0
    %4218 = vmatprep.subr.mxu0 0.0
    %4219 = vmatpush1.xpose.msra.mxu0 0.0
    %4220 = vmatprep.subr.mxu0 0.0
    %4221 = vmatpush1.xpose.msra.mxu0 0.0
    %4222 = vmatprep.subr.mxu0 0.0
    %4223 = vmatpush1.xpose.msra.mxu0 0.0
    %4224 = vmatprep.subr.mxu0 0.0
    %4225 = vmatpush1.xpose.msra.mxu0 0.0
    %4226 = vmatprep.subr.mxu0 0.0
    %4227 = vmatpush1.xpose.msra.mxu0 0.0
    %4228 = vmatprep.subr.mxu0 0.0
    %4229 = vmatpush1.xpose.msra.mxu0 0.0
    %4230 = vmatprep.subr.mxu0 0.0
    %4231 = vmatpush1.xpose.msra.mxu0 0.0
    %4232 = vmatprep.subr.mxu0 0.0
    %4233 = vmatpush1.xpose.msra.mxu0 0.0
    %4234 = vmatprep.subr.mxu0 0.0
    %4235 = vmatpush1.xpose.msra.mxu0 0.0
    %4236 = vmatprep.subr.mxu0 0.0
    %4237 = vmatpush1.xpose.msra.mxu0 0.0
    %4238 = vmatprep.subr.mxu0 0.0
    %4239 = vmatpush1.xpose.msra.mxu0 0.0
    %4240 = vmatprep.subr.mxu0 0.0
    %4241 = vmatpush1.xpose.msra.mxu0 0.0
    %4242 = vmatprep.subr.mxu0 0.0
    %4243 = vmatpush1.xpose.msra.mxu0 0.0
    %4244 = vmatprep.subr.mxu0 0.0
    %4245 = vmatpush1.xpose.msra.mxu0 0.0
    %4246 = vmatprep.subr.mxu0 0.0
    %4247 = vmatpush1.xpose.msra.mxu0 0.0
    %4248 = vmatprep.subr.mxu0 0.0
    %4249 = vmatpush1.xpose.msra.mxu0 0.0
    %4250 = vmatprep.subr.mxu0 0.0
    %4251 = vmatpush1.xpose.msra.mxu0 0.0
    %4252 = vmatprep.subr.mxu0 0.0
    %4253 = vmatpush1.xpose.msra.mxu0 0.0
    %4254 = vmatprep.subr.mxu0 0.0
    %4255 = vmatpush1.xpose.msra.mxu0 0.0
    %4256 = vmatprep.subr.mxu0 0.0
    %4257 = vmatpush1.xpose.msra.mxu0 0.0
    %4258 = vmatprep.subr.mxu0 0.0
    %4259 = vmatpush1.xpose.msra.mxu0 0.0
    %4260 = vmatprep.subr.mxu0 0.0
    %4261 = vmatpush1.xpose.msra.mxu0 0.0
    %4262 = vmatprep.subr.mxu0 0.0
    %4263 = vmatpush1.xpose.msra.mxu0 0.0
    %4264 = vmatprep.subr.mxu0 0.0
    %4265 = vmatpush1.xpose.msra.mxu0 0.0
    %4266 = vmatprep.subr.mxu0 0.0
    %4267 = vmatpush1.xpose.msra.mxu0 0.0
    %4268 = vmatprep.mubr.f32.mxu0 0.0
    %4269 = vmatmul.mubr.f32.gmra.mrb[0].mxu0 %v4200
    %v4270 = vpop.f32.mrb[0].mxu0
    %v4271 = vadd.f32 0.0, %v4270
    %v4272 = vpop.f32.mrb[0].mxu0
    %4273 = vdwg.mxu0
    %v4274 = vmul.f32 %v4193, 0.35355338
    %v4275 = vmul.f32 %v4271, 0.35355338
    %v4276 = vsel %vm527, -1e+09, %v4274
    %v4277 = vsel %vm528, -1e+09, %v4275
    %v4278 = vsel %vm373, %v4276, -inf
    %4279 = vmax.xlane.f32.xlu0 %v4278
    %v4280 = vpop.xlane.xlu0 %4279
    %v4281 = vsel %vm373, %v4277, -inf
    %4282 = vmax.xlane.f32.xlu0 %v4281
    %v4283 = vpop.xlane.xlu0 %4282
    %v4284 = vsub.f32 %v4276, %v4280
    %v4285 = vsub.f32 %v4277, %v4283
    %v4286 = vmul.f32 %v4284, 1.442695
    %v4287 = vpow.pop %v4286
    %v4288 = vmul.f32 %v4285, 1.442695
    %v4289 = vpow.pop %v4288
    %v4290 = vsel %vm373, %v4287, 0.0
    %4291 = vadd.xlane.f32.xlu0 %v4290
    %v4292 = vpop.xlane.xlu0 %4291
    %v4293 = vsel %vm373, %v4289, 0.0
    %4294 = vadd.xlane.f32.xlu0 %v4293
    %v4295 = vpop.xlane.xlu0 %4294
    %v4296 = vrcp.pop %v4292
    %v4297 = vmul.f32 %v4287, %v4296
    %v4298 = vrcp.pop %v4295
    %v4299 = vmul.f32 %v4289, %v4298
    %4300 = vrot.lane.b32.xlu0 %v3778, 56
    %v4301 = vpop.permute.xlu0 %4300
    %v4304 = vsel %vm373, %v4297, 0
    %4306 = vmatprep.subr.mxu0 0.0
    %4307 = vmatpush1.msra.mxu0 %v4301
    %4308 = vmatprep.subr.mxu0 0.0
    %4309 = vmatpush1.msra.mxu0 0.0
    %4310 = vmatprep.subr.mxu0 0.0
    %4311 = vmatpush1.msra.mxu0 0.0
    %4312 = vmatprep.subr.mxu0 0.0
    %4313 = vmatpush1.msra.mxu0 0.0
    %4314 = vmatprep.subr.mxu0 0.0
    %4315 = vmatpush1.msra.mxu0 0.0
    %4316 = vmatprep.subr.mxu0 0.0
    %4317 = vmatpush1.msra.mxu0 0.0
    %4318 = vmatprep.subr.mxu0 0.0
    %4319 = vmatpush1.msra.mxu0 0.0
    %4320 = vmatprep.subr.mxu0 0.0
    %4321 = vmatpush1.msra.mxu0 0.0
    %4322 = vmatprep.subr.mxu0 0.0
    %4323 = vmatpush1.msra.mxu0 0.0
    %4324 = vmatprep.subr.mxu0 0.0
    %4325 = vmatpush1.msra.mxu0 0.0
    %4326 = vmatprep.subr.mxu0 0.0
    %4327 = vmatpush1.msra.mxu0 0.0
    %4328 = vmatprep.subr.mxu0 0.0
    %4329 = vmatpush1.msra.mxu0 0.0
    %4330 = vmatprep.subr.mxu0 0.0
    %4331 = vmatpush1.msra.mxu0 0.0
    %4332 = vmatprep.subr.mxu0 0.0
    %4333 = vmatpush1.msra.mxu0 0.0
    %4334 = vmatprep.subr.mxu0 0.0
    %4335 = vmatpush1.msra.mxu0 0.0
    %4336 = vmatprep.subr.mxu0 0.0
    %4337 = vmatpush1.msra.mxu0 0.0
    %4338 = vmatprep.subr.mxu0 0.0
    %4339 = vmatpush1.msra.mxu0 0.0
    %4340 = vmatprep.subr.mxu0 0.0
    %4341 = vmatpush1.msra.mxu0 0.0
    %4342 = vmatprep.subr.mxu0 0.0
    %4343 = vmatpush1.msra.mxu0 0.0
    %4344 = vmatprep.subr.mxu0 0.0
    %4345 = vmatpush1.msra.mxu0 0.0
    %4346 = vmatprep.subr.mxu0 0.0
    %4347 = vmatpush1.msra.mxu0 0.0
    %4348 = vmatprep.subr.mxu0 0.0
    %4349 = vmatpush1.msra.mxu0 0.0
    %4350 = vmatprep.subr.mxu0 0.0
    %4351 = vmatpush1.msra.mxu0 0.0
    %4352 = vmatprep.subr.mxu0 0.0
    %4353 = vmatpush1.msra.mxu0 0.0
    %4354 = vmatprep.subr.mxu0 0.0
    %4355 = vmatpush1.msra.mxu0 0.0
    %4356 = vmatprep.subr.mxu0 0.0
    %4357 = vmatpush1.msra.mxu0 0.0
    %4358 = vmatprep.subr.mxu0 0.0
    %4359 = vmatpush1.msra.mxu0 0.0
    %4360 = vmatprep.subr.mxu0 0.0
    %4361 = vmatpush1.msra.mxu0 0.0
    %4362 = vmatprep.subr.mxu0 0.0
    %4363 = vmatpush1.msra.mxu0 0.0
    %4364 = vmatprep.subr.mxu0 0.0
    %4365 = vmatpush1.msra.mxu0 0.0
    %4366 = vmatprep.subr.mxu0 0.0
    %4367 = vmatpush1.msra.mxu0 0.0
    %4368 = vmatprep.subr.mxu0 0.0
    %4369 = vmatpush1.msra.mxu0 0.0
    %4370 = vmatprep.mubr.f32.mxu0 0.0
    %4371 = vmatmul.mubr.f32.gmra.mrb[0].mxu0 %v4304
    %v4372 = vpop.f32.mrb[0].mxu0
    %v4373 = vadd.f32 0.0, %v4372
    %v4374 = vpop.f32.mrb[0].mxu0
    %4375 = vdwg.mxu0
    %4376 = vrot.lane.b32.xlu0 %v3783, 56
    %v4377 = vpop.permute.xlu0 %4376
    %v4380 = vsel %vm373, %v4299, 0
    %4382 = vmatprep.subr.mxu0 0.0
    %4383 = vmatpush1.msra.mxu0 %v4377
    %4384 = vmatprep.subr.mxu0 0.0
    %4385 = vmatpush1.msra.mxu0 0.0
    %4386 = vmatprep.subr.mxu0 0.0
    %4387 = vmatpush1.msra.mxu0 0.0
    %4388 = vmatprep.subr.mxu0 0.0
    %4389 = vmatpush1.msra.mxu0 0.0
    %4390 = vmatprep.subr.mxu0 0.0
    %4391 = vmatpush1.msra.mxu0 0.0
    %4392 = vmatprep.subr.mxu0 0.0
    %4393 = vmatpush1.msra.mxu0 0.0
    %4394 = vmatprep.subr.mxu0 0.0
    %4395 = vmatpush1.msra.mxu0 0.0
    %4396 = vmatprep.subr.mxu0 0.0
    %4397 = vmatpush1.msra.mxu0 0.0
    %4398 = vmatprep.subr.mxu0 0.0
    %4399 = vmatpush1.msra.mxu0 0.0
    %4400 = vmatprep.subr.mxu0 0.0
    %4401 = vmatpush1.msra.mxu0 0.0
    %4402 = vmatprep.subr.mxu0 0.0
    %4403 = vmatpush1.msra.mxu0 0.0
    %4404 = vmatprep.subr.mxu0 0.0
    %4405 = vmatpush1.msra.mxu0 0.0
    %4406 = vmatprep.subr.mxu0 0.0
    %4407 = vmatpush1.msra.mxu0 0.0
    %4408 = vmatprep.subr.mxu0 0.0
    %4409 = vmatpush1.msra.mxu0 0.0
    %4410 = vmatprep.subr.mxu0 0.0
    %4411 = vmatpush1.msra.mxu0 0.0
    %4412 = vmatprep.subr.mxu0 0.0
    %4413 = vmatpush1.msra.mxu0 0.0
    %4414 = vmatprep.subr.mxu0 0.0
    %4415 = vmatpush1.msra.mxu0 0.0
    %4416 = vmatprep.subr.mxu0 0.0
    %4417 = vmatpush1.msra.mxu0 0.0
    %4418 = vmatprep.subr.mxu0 0.0
    %4419 = vmatpush1.msra.mxu0 0.0
    %4420 = vmatprep.subr.mxu0 0.0
    %4421 = vmatpush1.msra.mxu0 0.0
    %4422 = vmatprep.subr.mxu0 0.0
    %4423 = vmatpush1.msra.mxu0 0.0
    %4424 = vmatprep.subr.mxu0 0.0
    %4425 = vmatpush1.msra.mxu0 0.0
    %4426 = vmatprep.subr.mxu0 0.0
    %4427 = vmatpush1.msra.mxu0 0.0
    %4428 = vmatprep.subr.mxu0 0.0
    %4429 = vmatpush1.msra.mxu0 0.0
    %4430 = vmatprep.subr.mxu0 0.0
    %4431 = vmatpush1.msra.mxu0 0.0
    %4432 = vmatprep.subr.mxu0 0.0
    %4433 = vmatpush1.msra.mxu0 0.0
    %4434 = vmatprep.subr.mxu0 0.0
    %4435 = vmatpush1.msra.mxu0 0.0
    %4436 = vmatprep.subr.mxu0 0.0
    %4437 = vmatpush1.msra.mxu0 0.0
    %4438 = vmatprep.subr.mxu0 0.0
    %4439 = vmatpush1.msra.mxu0 0.0
    %4440 = vmatprep.subr.mxu0 0.0
    %4441 = vmatpush1.msra.mxu0 0.0
    %4442 = vmatprep.subr.mxu0 0.0
    %4443 = vmatpush1.msra.mxu0 0.0
    %4444 = vmatprep.subr.mxu0 0.0
    %4445 = vmatpush1.msra.mxu0 0.0
    %4446 = vmatprep.mubr.f32.mxu0 0.0
    %4447 = vmatmul.mubr.f32.gmra.mrb[0].mxu0 %v4380
    %v4448 = vpop.f32.mrb[0].mxu0
    %v4449 = vadd.f32 0.0, %v4448
    %v4450 = vpop.f32.mrb[0].mxu0
    %4451 = vdwg.mxu0
    %4452 = vrot.lane.b32.xlu0 %v3778, 112
    %v4453 = vpop.permute.xlu0 %4452
    %4454 = vrot.lane.b32.xlu0 %v3778, 80
    %v4455 = vpop.permute.xlu0 %4454
    %v4456 = vsel %vm373, %v4453, 0
    %v4458 = vsel %vm373, %v4455, 0
    %4460 = vmatprep.subr.mxu0 0.0
    %4461 = vmatpush1.xpose.msra.mxu0 %v4458
    %4462 = vmatprep.subr.mxu0 0.0
    %4463 = vmatpush1.xpose.msra.mxu0 0.0
    %4464 = vmatprep.subr.mxu0 0.0
    %4465 = vmatpush1.xpose.msra.mxu0 0.0
    %4466 = vmatprep.subr.mxu0 0.0
    %4467 = vmatpush1.xpose.msra.mxu0 0.0
    %4468 = vmatprep.subr.mxu0 0.0
    %4469 = vmatpush1.xpose.msra.mxu0 0.0
    %4470 = vmatprep.subr.mxu0 0.0
    %4471 = vmatpush1.xpose.msra.mxu0 0.0
    %4472 = vmatprep.subr.mxu0 0.0
    %4473 = vmatpush1.xpose.msra.mxu0 0.0
    %4474 = vmatprep.subr.mxu0 0.0
    %4475 = vmatpush1.xpose.msra.mxu0 0.0
    %4476 = vmatprep.subr.mxu0 0.0
    %4477 = vmatpush1.xpose.msra.mxu0 0.0
    %4478 = vmatprep.subr.mxu0 0.0
    %4479 = vmatpush1.xpose.msra.mxu0 0.0
    %4480 = vmatprep.subr.mxu0 0.0
    %4481 = vmatpush1.xpose.msra.mxu0 0.0
    %4482 = vmatprep.subr.mxu0 0.0
    %4483 = vmatpush1.xpose.msra.mxu0 0.0
    %4484 = vmatprep.subr.mxu0 0.0
    %4485 = vmatpush1.xpose.msra.mxu0 0.0
    %4486 = vmatprep.subr.mxu0 0.0
    %4487 = vmatpush1.xpose.msra.mxu0 0.0
    %4488 = vmatprep.subr.mxu0 0.0
    %4489 = vmatpush1.xpose.msra.mxu0 0.0
    %4490 = vmatprep.subr.mxu0 0.0
    %4491 = vmatpush1.xpose.msra.mxu0 0.0
    %4492 = vmatprep.subr.mxu0 0.0
    %4493 = vmatpush1.xpose.msra.mxu0 0.0
    %4494 = vmatprep.subr.mxu0 0.0
    %4495 = vmatpush1.xpose.msra.mxu0 0.0
    %4496 = vmatprep.subr.mxu0 0.0
    %4497 = vmatpush1.xpose.msra.mxu0 0.0
    %4498 = vmatprep.subr.mxu0 0.0
    %4499 = vmatpush1.xpose.msra.mxu0 0.0
    %4500 = vmatprep.subr.mxu0 0.0
    %4501 = vmatpush1.xpose.msra.mxu0 0.0
    %4502 = vmatprep.subr.mxu0 0.0
    %4503 = vmatpush1.xpose.msra.mxu0 0.0
    %4504 = vmatprep.subr.mxu0 0.0
    %4505 = vmatpush1.xpose.msra.mxu0 0.0
    %4506 = vmatprep.subr.mxu0 0.0
    %4507 = vmatpush1.xpose.msra.mxu0 0.0
    %4508 = vmatprep.subr.mxu0 0.0
    %4509 = vmatpush1.xpose.msra.mxu0 0.0
    %4510 = vmatprep.subr.mxu0 0.0
    %4511 = vmatpush1.xpose.msra.mxu0 0.0
    %4512 = vmatprep.subr.mxu0 0.0
    %4513 = vmatpush1.xpose.msra.mxu0 0.0
    %4514 = vmatprep.subr.mxu0 0.0
    %4515 = vmatpush1.xpose.msra.mxu0 0.0
    %4516 = vmatprep.subr.mxu0 0.0
    %4517 = vmatpush1.xpose.msra.mxu0 0.0
    %4518 = vmatprep.subr.mxu0 0.0
    %4519 = vmatpush1.xpose.msra.mxu0 0.0
    %4520 = vmatprep.subr.mxu0 0.0
    %4521 = vmatpush1.xpose.msra.mxu0 0.0
    %4522 = vmatprep.subr.mxu0 0.0
    %4523 = vmatpush1.xpose.msra.mxu0 0.0
    %4524 = vmatprep.mubr.f32.mxu0 0.0
    %4525 = vmatmul.mubr.f32.gmra.mrb[0].mxu0 %v4456
    %v4526 = vpop.f32.mrb[0].mxu0
    %v4527 = vadd.f32 0.0, %v4526
    %v4528 = vpop.f32.mrb[0].mxu0
    %4529 = vdwg.mxu0
    %4530 = vrot.lane.b32.xlu0 %v3783, 112
    %v4531 = vpop.permute.xlu0 %4530
    %4532 = vrot.lane.b32.xlu0 %v3783, 80
    %v4533 = vpop.permute.xlu0 %4532
    %v4534 = vsel %vm373, %v4531, 0
    %v4536 = vsel %vm373, %v4533, 0
    %4538 = vmatprep.subr.mxu0 0.0
    %4539 = vmatpush1.xpose.msra.mxu0 %v4536
    %4540 = vmatprep.subr.mxu0 0.0
    %4541 = vmatpush1.xpose.msra.mxu0 0.0
    %4542 = vmatprep.subr.mxu0 0.0
    %4543 = vmatpush1.xpose.msra.mxu0 0.0
    %4544 = vmatprep.subr.mxu0 0.0
    %4545 = vmatpush1.xpose.msra.mxu0 0.0
    %4546 = vmatprep.subr.mxu0 0.0
    %4547 = vmatpush1.xpose.msra.mxu0 0.0
    %4548 = vmatprep.subr.mxu0 0.0
    %4549 = vmatpush1.xpose.msra.mxu0 0.0
    %4550 = vmatprep.subr.mxu0 0.0
    %4551 = vmatpush1.xpose.msra.mxu0 0.0
    %4552 = vmatprep.subr.mxu0 0.0
    %4553 = vmatpush1.xpose.msra.mxu0 0.0
    %4554 = vmatprep.subr.mxu0 0.0
    %4555 = vmatpush1.xpose.msra.mxu0 0.0
    %4556 = vmatprep.subr.mxu0 0.0
    %4557 = vmatpush1.xpose.msra.mxu0 0.0
    %4558 = vmatprep.subr.mxu0 0.0
    %4559 = vmatpush1.xpose.msra.mxu0 0.0
    %4560 = vmatprep.subr.mxu0 0.0
    %4561 = vmatpush1.xpose.msra.mxu0 0.0
    %4562 = vmatprep.subr.mxu0 0.0
    %4563 = vmatpush1.xpose.msra.mxu0 0.0
    %4564 = vmatprep.subr.mxu0 0.0
    %4565 = vmatpush1.xpose.msra.mxu0 0.0
    %4566 = vmatprep.subr.mxu0 0.0
    %4567 = vmatpush1.xpose.msra.mxu0 0.0
    %4568 = vmatprep.subr.mxu0 0.0
    %4569 = vmatpush1.xpose.msra.mxu0 0.0
    %4570 = vmatprep.subr.mxu0 0.0
    %4571 = vmatpush1.xpose.msra.mxu0 0.0
    %4572 = vmatprep.subr.mxu0 0.0
    %4573 = vmatpush1.xpose.msra.mxu0 0.0
    %4574 = vmatprep.subr.mxu0 0.0
    %4575 = vmatpush1.xpose.msra.mxu0 0.0
    %4576 = vmatprep.subr.mxu0 0.0
    %4577 = vmatpush1.xpose.msra.mxu0 0.0
    %4578 = vmatprep.subr.mxu0 0.0
    %4579 = vmatpush1.xpose.msra.mxu0 0.0
    %4580 = vmatprep.subr.mxu0 0.0
    %4581 = vmatpush1.xpose.msra.mxu0 0.0
    %4582 = vmatprep.subr.mxu0 0.0
    %4583 = vmatpush1.xpose.msra.mxu0 0.0
    %4584 = vmatprep.subr.mxu0 0.0
    %4585 = vmatpush1.xpose.msra.mxu0 0.0
    %4586 = vmatprep.subr.mxu0 0.0
    %4587 = vmatpush1.xpose.msra.mxu0 0.0
    %4588 = vmatprep.subr.mxu0 0.0
    %4589 = vmatpush1.xpose.msra.mxu0 0.0
    %4590 = vmatprep.subr.mxu0 0.0
    %4591 = vmatpush1.xpose.msra.mxu0 0.0
    %4592 = vmatprep.subr.mxu0 0.0
    %4593 = vmatpush1.xpose.msra.mxu0 0.0
    %4594 = vmatprep.subr.mxu0 0.0
    %4595 = vmatpush1.xpose.msra.mxu0 0.0
    %4596 = vmatprep.subr.mxu0 0.0
    %4597 = vmatpush1.xpose.msra.mxu0 0.0
    %4598 = vmatprep.subr.mxu0 0.0
    %4599 = vmatpush1.xpose.msra.mxu0 0.0
    %4600 = vmatprep.subr.mxu0 0.0
    %4601 = vmatpush1.xpose.msra.mxu0 0.0
    %4602 = vmatprep.mubr.f32.mxu0 0.0
    %4603 = vmatmul.mubr.f32.gmra.mrb[0].mxu0 %v4534
    %v4604 = vpop.f32.mrb[0].mxu0
    %v4605 = vadd.f32 0.0, %v4604
    %v4606 = vpop.f32.mrb[0].mxu0
    %4607 = vdwg.mxu0
    %v4608 = vmul.f32 %v4527, 0.35355338
    %v4609 = vmul.f32 %v4605, 0.35355338
    %v4610 = vsel %vm527, -1e+09, %v4608
    %v4611 = vsel %vm528, -1e+09, %v4609
    %v4612 = vsel %vm373, %v4610, -inf
    %4613 = vmax.xlane.f32.xlu0 %v4612
    %v4614 = vpop.xlane.xlu0 %4613
    %v4615 = vsel %vm373, %v4611, -inf
    %4616 = vmax.xlane.f32.xlu0 %v4615
    %v4617 = vpop.xlane.xlu0 %4616
    %v4618 = vsub.f32 %v4610, %v4614
    %v4619 = vsub.f32 %v4611, %v4617
    %v4620 = vmul.f32 %v4618, 1.442695
    %v4621 = vpow.pop %v4620
    %v4622 = vmul.f32 %v4619, 1.442695
    %v4623 = vpow.pop %v4622
    %v4624 = vsel %vm373, %v4621, 0.0
    %4625 = vadd.xlane.f32.xlu0 %v4624
    %v4626 = vpop.xlane.xlu0 %4625
    %v4627 = vsel %vm373, %v4623, 0.0
    %4628 = vadd.xlane.f32.xlu0 %v4627
    %v4629 = vpop.xlane.xlu0 %4628
    %v4630 = vrcp.pop %v4626
    %v4631 = vmul.f32 %v4621, %v4630
    %v4632 = vrcp.pop %v4629
    %v4633 = vmul.f32 %v4623, %v4632
    %4634 = vrot.lane.b32.xlu0 %v3778, 48
    %v4635 = vpop.permute.xlu0 %4634
    %v4638 = vsel %vm373, %v4631, 0
    %4640 = vmatprep.subr.mxu0 0.0
    %4641 = vmatpush1.msra.mxu0 %v4635
    %4642 = vmatprep.subr.mxu0 0.0
    %4643 = vmatpush1.msra.mxu0 0.0
    %4644 = vmatprep.subr.mxu0 0.0
    %4645 = vmatpush1.msra.mxu0 0.0
    %4646 = vmatprep.subr.mxu0 0.0
    %4647 = vmatpush1.msra.mxu0 0.0
    %4648 = vmatprep.subr.mxu0 0.0
    %4649 = vmatpush1.msra.mxu0 0.0
    %4650 = vmatprep.subr.mxu0 0.0
    %4651 = vmatpush1.msra.mxu0 0.0
    %4652 = vmatprep.subr.mxu0 0.0
    %4653 = vmatpush1.msra.mxu0 0.0
    %4654 = vmatprep.subr.mxu0 0.0
    %4655 = vmatpush1.msra.mxu0 0.0
    %4656 = vmatprep.subr.mxu0 0.0
    %4657 = vmatpush1.msra.mxu0 0.0
    %4658 = vmatprep.subr.mxu0 0.0
    %4659 = vmatpush1.msra.mxu0 0.0
    %4660 = vmatprep.subr.mxu0 0.0
    %4661 = vmatpush1.msra.mxu0 0.0
    %4662 = vmatprep.subr.mxu0 0.0
    %4663 = vmatpush1.msra.mxu0 0.0
    %4664 = vmatprep.subr.mxu0 0.0
    %4665 = vmatpush1.msra.mxu0 0.0
    %4666 = vmatprep.subr.mxu0 0.0
    %4667 = vmatpush1.msra.mxu0 0.0
    %4668 = vmatprep.subr.mxu0 0.0
    %4669 = vmatpush1.msra.mxu0 0.0
    %4670 = vmatprep.subr.mxu0 0.0
    %4671 = vmatpush1.msra.mxu0 0.0
    %4672 = vmatprep.subr.mxu0 0.0
    %4673 = vmatpush1.msra.mxu0 0.0
    %4674 = vmatprep.subr.mxu0 0.0
    %4675 = vmatpush1.msra.mxu0 0.0
    %4676 = vmatprep.subr.mxu0 0.0
    %4677 = vmatpush1.msra.mxu0 0.0
    %4678 = vmatprep.subr.mxu0 0.0
    %4679 = vmatpush1.msra.mxu0 0.0
    %4680 = vmatprep.subr.mxu0 0.0
    %4681 = vmatpush1.msra.mxu0 0.0
    %4682 = vmatprep.subr.mxu0 0.0
    %4683 = vmatpush1.msra.mxu0 0.0
    %4684 = vmatprep.subr.mxu0 0.0
    %4685 = vmatpush1.msra.mxu0 0.0
    %4686 = vmatprep.subr.mxu0 0.0
    %4687 = vmatpush1.msra.mxu0 0.0
    %4688 = vmatprep.subr.mxu0 0.0
    %4689 = vmatpush1.msra.mxu0 0.0
    %4690 = vmatprep.subr.mxu0 0.0
    %4691 = vmatpush1.msra.mxu0 0.0
    %4692 = vmatprep.subr.mxu0 0.0
    %4693 = vmatpush1.msra.mxu0 0.0
    %4694 = vmatprep.subr.mxu0 0.0
    %4695 = vmatpush1.msra.mxu0 0.0
    %4696 = vmatprep.subr.mxu0 0.0
    %4697 = vmatpush1.msra.mxu0 0.0
    %4698 = vmatprep.subr.mxu0 0.0
    %4699 = vmatpush1.msra.mxu0 0.0
    %4700 = vmatprep.subr.mxu0 0.0
    %4701 = vmatpush1.msra.mxu0 0.0
    %4702 = vmatprep.subr.mxu0 0.0
    %4703 = vmatpush1.msra.mxu0 0.0
    %4704 = vmatprep.mubr.f32.mxu0 0.0
    %4705 = vmatmul.mubr.f32.gmra.mrb[0].mxu0 %v4638
    %v4706 = vpop.f32.mrb[0].mxu0
    %v4707 = vadd.f32 0.0, %v4706
    %v4708 = vpop.f32.mrb[0].mxu0
    %4709 = vdwg.mxu0
    %4710 = vrot.lane.b32.xlu0 %v3783, 48
    %v4711 = vpop.permute.xlu0 %4710
    %v4714 = vsel %vm373, %v4633, 0
    %4716 = vmatprep.subr.mxu0 0.0
    %4717 = vmatpush1.msra.mxu0 %v4711
    %4718 = vmatprep.subr.mxu0 0.0
    %4719 = vmatpush1.msra.mxu0 0.0
    %4720 = vmatprep.subr.mxu0 0.0
    %4721 = vmatpush1.msra.mxu0 0.0
    %4722 = vmatprep.subr.mxu0 0.0
    %4723 = vmatpush1.msra.mxu0 0.0
    %4724 = vmatprep.subr.mxu0 0.0
    %4725 = vmatpush1.msra.mxu0 0.0
    %4726 = vmatprep.subr.mxu0 0.0
    %4727 = vmatpush1.msra.mxu0 0.0
    %4728 = vmatprep.subr.mxu0 0.0
    %4729 = vmatpush1.msra.mxu0 0.0
    %4730 = vmatprep.subr.mxu0 0.0
    %4731 = vmatpush1.msra.mxu0 0.0
    %4732 = vmatprep.subr.mxu0 0.0
    %4733 = vmatpush1.msra.mxu0 0.0
    %4734 = vmatprep.subr.mxu0 0.0
    %4735 = vmatpush1.msra.mxu0 0.0
    %4736 = vmatprep.subr.mxu0 0.0
    %4737 = vmatpush1.msra.mxu0 0.0
    %4738 = vmatprep.subr.mxu0 0.0
    %4739 = vmatpush1.msra.mxu0 0.0
    %4740 = vmatprep.subr.mxu0 0.0
    %4741 = vmatpush1.msra.mxu0 0.0
    %4742 = vmatprep.subr.mxu0 0.0
    %4743 = vmatpush1.msra.mxu0 0.0
    %4744 = vmatprep.subr.mxu0 0.0
    %4745 = vmatpush1.msra.mxu0 0.0
    %4746 = vmatprep.subr.mxu0 0.0
    %4747 = vmatpush1.msra.mxu0 0.0
    %4748 = vmatprep.subr.mxu0 0.0
    %4749 = vmatpush1.msra.mxu0 0.0
    %4750 = vmatprep.subr.mxu0 0.0
    %4751 = vmatpush1.msra.mxu0 0.0
    %4752 = vmatprep.subr.mxu0 0.0
    %4753 = vmatpush1.msra.mxu0 0.0
    %4754 = vmatprep.subr.mxu0 0.0
    %4755 = vmatpush1.msra.mxu0 0.0
    %4756 = vmatprep.subr.mxu0 0.0
    %4757 = vmatpush1.msra.mxu0 0.0
    %4758 = vmatprep.subr.mxu0 0.0
    %4759 = vmatpush1.msra.mxu0 0.0
    %4760 = vmatprep.subr.mxu0 0.0
    %4761 = vmatpush1.msra.mxu0 0.0
    %4762 = vmatprep.subr.mxu0 0.0
    %4763 = vmatpush1.msra.mxu0 0.0
    %4764 = vmatprep.subr.mxu0 0.0
    %4765 = vmatpush1.msra.mxu0 0.0
    %4766 = vmatprep.subr.mxu0 0.0
    %4767 = vmatpush1.msra.mxu0 0.0
    %4768 = vmatprep.subr.mxu0 0.0
    %4769 = vmatpush1.msra.mxu0 0.0
    %4770 = vmatprep.subr.mxu0 0.0
    %4771 = vmatpush1.msra.mxu0 0.0
    %4772 = vmatprep.subr.mxu0 0.0
    %4773 = vmatpush1.msra.mxu0 0.0
    %4774 = vmatprep.subr.mxu0 0.0
    %4775 = vmatpush1.msra.mxu0 0.0
    %4776 = vmatprep.subr.mxu0 0.0
    %4777 = vmatpush1.msra.mxu0 0.0
    %4778 = vmatprep.subr.mxu0 0.0
    %4779 = vmatpush1.msra.mxu0 0.0
    %4780 = vmatprep.mubr.f32.mxu0 0.0
    %4781 = vmatmul.mubr.f32.gmra.mrb[0].mxu0 %v4714
    %v4782 = vpop.f32.mrb[0].mxu0
    %v4783 = vadd.f32 0.0, %v4782
    %v4784 = vpop.f32.mrb[0].mxu0
    %4785 = vdwg.mxu0
    %4786 = vrot.lane.b32.xlu0 %v3778, 104
    %v4787 = vpop.permute.xlu0 %4786
    %4788 = vrot.lane.b32.xlu0 %v3778, 72
    %v4789 = vpop.permute.xlu0 %4788
    %v4790 = vsel %vm373, %v4787, 0
    %v4792 = vsel %vm373, %v4789, 0
    %4794 = vmatprep.subr.mxu0 0.0
    %4795 = vmatpush1.xpose.msra.mxu0 %v4792
    %4796 = vmatprep.subr.mxu0 0.0
    %4797 = vmatpush1.xpose.msra.mxu0 0.0
    %4798 = vmatprep.subr.mxu0 0.0
    %4799 = vmatpush1.xpose.msra.mxu0 0.0
    %4800 = vmatprep.subr.mxu0 0.0
    %4801 = vmatpush1.xpose.msra.mxu0 0.0
    %4802 = vmatprep.subr.mxu0 0.0
    %4803 = vmatpush1.xpose.msra.mxu0 0.0
    %4804 = vmatprep.subr.mxu0 0.0
    %4805 = vmatpush1.xpose.msra.mxu0 0.0
    %4806 = vmatprep.subr.mxu0 0.0
    %4807 = vmatpush1.xpose.msra.mxu0 0.0
    %4808 = vmatprep.subr.mxu0 0.0
    %4809 = vmatpush1.xpose.msra.mxu0 0.0
    %4810 = vmatprep.subr.mxu0 0.0
    %4811 = vmatpush1.xpose.msra.mxu0 0.0
    %4812 = vmatprep.subr.mxu0 0.0
    %4813 = vmatpush1.xpose.msra.mxu0 0.0
    %4814 = vmatprep.subr.mxu0 0.0
    %4815 = vmatpush1.xpose.msra.mxu0 0.0
    %4816 = vmatprep.subr.mxu0 0.0
    %4817 = vmatpush1.xpose.msra.mxu0 0.0
    %4818 = vmatprep.subr.mxu0 0.0
    %4819 = vmatpush1.xpose.msra.mxu0 0.0
    %4820 = vmatprep.subr.mxu0 0.0
    %4821 = vmatpush1.xpose.msra.mxu0 0.0
    %4822 = vmatprep.subr.mxu0 0.0
    %4823 = vmatpush1.xpose.msra.mxu0 0.0
    %4824 = vmatprep.subr.mxu0 0.0
    %4825 = vmatpush1.xpose.msra.mxu0 0.0
    %4826 = vmatprep.subr.mxu0 0.0
    %4827 = vmatpush1.xpose.msra.mxu0 0.0
    %4828 = vmatprep.subr.mxu0 0.0
    %4829 = vmatpush1.xpose.msra.mxu0 0.0
    %4830 = vmatprep.subr.mxu0 0.0
    %4831 = vmatpush1.xpose.msra.mxu0 0.0
    %4832 = vmatprep.subr.mxu0 0.0
    %4833 = vmatpush1.xpose.msra.mxu0 0.0
    %4834 = vmatprep.subr.mxu0 0.0
    %4835 = vmatpush1.xpose.msra.mxu0 0.0
    %4836 = vmatprep.subr.mxu0 0.0
    %4837 = vmatpush1.xpose.msra.mxu0 0.0
    %4838 = vmatprep.subr.mxu0 0.0
    %4839 = vmatpush1.xpose.msra.mxu0 0.0
    %4840 = vmatprep.subr.mxu0 0.0
    %4841 = vmatpush1.xpose.msra.mxu0 0.0
    %4842 = vmatprep.subr.mxu0 0.0
    %4843 = vmatpush1.xpose.msra.mxu0 0.0
    %4844 = vmatprep.subr.mxu0 0.0
    %4845 = vmatpush1.xpose.msra.mxu0 0.0
    %4846 = vmatprep.subr.mxu0 0.0
    %4847 = vmatpush1.xpose.msra.mxu0 0.0
    %4848 = vmatprep.subr.mxu0 0.0
    %4849 = vmatpush1.xpose.msra.mxu0 0.0
    %4850 = vmatprep.subr.mxu0 0.0
    %4851 = vmatpush1.xpose.msra.mxu0 0.0
    %4852 = vmatprep.subr.mxu0 0.0
    %4853 = vmatpush1.xpose.msra.mxu0 0.0
    %4854 = vmatprep.subr.mxu0 0.0
    %4855 = vmatpush1.xpose.msra.mxu0 0.0
    %4856 = vmatprep.subr.mxu0 0.0
    %4857 = vmatpush1.xpose.msra.mxu0 0.0
    %4858 = vmatprep.mubr.f32.mxu0 0.0
    %4859 = vmatmul.mubr.f32.gmra.mrb[0].mxu0 %v4790
    %v4860 = vpop.f32.mrb[0].mxu0
    %v4861 = vadd.f32 0.0, %v4860
    %v4862 = vpop.f32.mrb[0].mxu0
    %4863 = vdwg.mxu0
    %4864 = vrot.lane.b32.xlu0 %v3783, 104
    %v4865 = vpop.permute.xlu0 %4864
    %4866 = vrot.lane.b32.xlu0 %v3783, 72
    %v4867 = vpop.permute.xlu0 %4866
    %v4868 = vsel %vm373, %v4865, 0
    %v4870 = vsel %vm373, %v4867, 0
    %4872 = vmatprep.subr.mxu0 0.0
    %4873 = vmatpush1.xpose.msra.mxu0 %v4870
    %4874 = vmatprep.subr.mxu0 0.0
    %4875 = vmatpush1.xpose.msra.mxu0 0.0
    %4876 = vmatprep.subr.mxu0 0.0
    %4877 = vmatpush1.xpose.msra.mxu0 0.0
    %4878 = vmatprep.subr.mxu0 0.0
    %4879 = vmatpush1.xpose.msra.mxu0 0.0
    %4880 = vmatprep.subr.mxu0 0.0
    %4881 = vmatpush1.xpose.msra.mxu0 0.0
    %4882 = vmatprep.subr.mxu0 0.0
    %4883 = vmatpush1.xpose.msra.mxu0 0.0
    %4884 = vmatprep.subr.mxu0 0.0
    %4885 = vmatpush1.xpose.msra.mxu0 0.0
    %4886 = vmatprep.subr.mxu0 0.0
    %4887 = vmatpush1.xpose.msra.mxu0 0.0
    %4888 = vmatprep.subr.mxu0 0.0
    %4889 = vmatpush1.xpose.msra.mxu0 0.0
    %4890 = vmatprep.subr.mxu0 0.0
    %4891 = vmatpush1.xpose.msra.mxu0 0.0
    %4892 = vmatprep.subr.mxu0 0.0
    %4893 = vmatpush1.xpose.msra.mxu0 0.0
    %4894 = vmatprep.subr.mxu0 0.0
    %4895 = vmatpush1.xpose.msra.mxu0 0.0
    %4896 = vmatprep.subr.mxu0 0.0
    %4897 = vmatpush1.xpose.msra.mxu0 0.0
    %4898 = vmatprep.subr.mxu0 0.0
    %4899 = vmatpush1.xpose.msra.mxu0 0.0
    %4900 = vmatprep.subr.mxu0 0.0
    %4901 = vmatpush1.xpose.msra.mxu0 0.0
    %4902 = vmatprep.subr.mxu0 0.0
    %4903 = vmatpush1.xpose.msra.mxu0 0.0
    %4904 = vmatprep.subr.mxu0 0.0
    %4905 = vmatpush1.xpose.msra.mxu0 0.0
    %4906 = vmatprep.subr.mxu0 0.0
    %4907 = vmatpush1.xpose.msra.mxu0 0.0
    %4908 = vmatprep.subr.mxu0 0.0
    %4909 = vmatpush1.xpose.msra.mxu0 0.0
    %4910 = vmatprep.subr.mxu0 0.0
    %4911 = vmatpush1.xpose.msra.mxu0 0.0
    %4912 = vmatprep.subr.mxu0 0.0
    %4913 = vmatpush1.xpose.msra.mxu0 0.0
    %4914 = vmatprep.subr.mxu0 0.0
    %4915 = vmatpush1.xpose.msra.mxu0 0.0
    %4916 = vmatprep.subr.mxu0 0.0
    %4917 = vmatpush1.xpose.msra.mxu0 0.0
    %4918 = vmatprep.subr.mxu0 0.0
    %4919 = vmatpush1.xpose.msra.mxu0 0.0
    %4920 = vmatprep.subr.mxu0 0.0
    %4921 = vmatpush1.xpose.msra.mxu0 0.0
    %4922 = vmatprep.subr.mxu0 0.0
    %4923 = vmatpush1.xpose.msra.mxu0 0.0
    %4924 = vmatprep.subr.mxu0 0.0
    %4925 = vmatpush1.xpose.msra.mxu0 0.0
    %4926 = vmatprep.subr.mxu0 0.0
    %4927 = vmatpush1.xpose.msra.mxu0 0.0
    %4928 = vmatprep.subr.mxu0 0.0
    %4929 = vmatpush1.xpose.msra.mxu0 0.0
    %4930 = vmatprep.subr.mxu0 0.0
    %4931 = vmatpush1.xpose.msra.mxu0 0.0
    %4932 = vmatprep.subr.mxu0 0.0
    %4933 = vmatpush1.xpose.msra.mxu0 0.0
    %4934 = vmatprep.subr.mxu0 0.0
    %4935 = vmatpush1.xpose.msra.mxu0 0.0
    %4936 = vmatprep.mubr.f32.mxu0 0.0
    %4937 = vmatmul.mubr.f32.gmra.mrb[0].mxu0 %v4868
    %v4938 = vpop.f32.mrb[0].mxu0
    %v4939 = vadd.f32 0.0, %v4938
    %v4940 = vpop.f32.mrb[0].mxu0
    %4941 = vdwg.mxu0
    %v4942 = vmul.f32 %v4861, 0.35355338
    %v4943 = vmul.f32 %v4939, 0.35355338
    %v4944 = vsel %vm527, -1e+09, %v4942
    %v4945 = vsel %vm528, -1e+09, %v4943
    %v4946 = vsel %vm373, %v4944, -inf
    %4947 = vmax.xlane.f32.xlu0 %v4946
    %v4948 = vpop.xlane.xlu0 %4947
    %v4949 = vsel %vm373, %v4945, -inf
    %4950 = vmax.xlane.f32.xlu0 %v4949
    %v4951 = vpop.xlane.xlu0 %4950
    %v4952 = vsub.f32 %v4944, %v4948
    %v4953 = vsub.f32 %v4945, %v4951
    %v4954 = vmul.f32 %v4952, 1.442695
    %v4955 = vpow.pop %v4954
    %v4956 = vmul.f32 %v4953, 1.442695
    %v4957 = vpow.pop %v4956
    %v4958 = vsel %vm373, %v4955, 0.0
    %4959 = vadd.xlane.f32.xlu0 %v4958
    %v4960 = vpop.xlane.xlu0 %4959
    %v4961 = vsel %vm373, %v4957, 0.0
    %4962 = vadd.xlane.f32.xlu0 %v4961
    %v4963 = vpop.xlane.xlu0 %4962
    %v4964 = vrcp.pop %v4960
    %v4965 = vmul.f32 %v4955, %v4964
    %v4966 = vrcp.pop %v4963
    %v4967 = vmul.f32 %v4957, %v4966
    %4968 = vrot.lane.b32.xlu0 %v3778, 40
    %v4969 = vpop.permute.xlu0 %4968
    %v4972 = vsel %vm373, %v4965, 0
    %4974 = vmatprep.subr.mxu0 0.0
    %4975 = vmatpush1.msra.mxu0 %v4969
    %4976 = vmatprep.subr.mxu0 0.0
    %4977 = vmatpush1.msra.mxu0 0.0
    %4978 = vmatprep.subr.mxu0 0.0
    %4979 = vmatpush1.msra.mxu0 0.0
    %4980 = vmatprep.subr.mxu0 0.0
    %4981 = vmatpush1.msra.mxu0 0.0
    %4982 = vmatprep.subr.mxu0 0.0
    %4983 = vmatpush1.msra.mxu0 0.0
    %4984 = vmatprep.subr.mxu0 0.0
    %4985 = vmatpush1.msra.mxu0 0.0
    %4986 = vmatprep.subr.mxu0 0.0
    %4987 = vmatpush1.msra.mxu0 0.0
    %4988 = vmatprep.subr.mxu0 0.0
    %4989 = vmatpush1.msra.mxu0 0.0
    %4990 = vmatprep.subr.mxu0 0.0
    %4991 = vmatpush1.msra.mxu0 0.0
    %4992 = vmatprep.subr.mxu0 0.0
    %4993 = vmatpush1.msra.mxu0 0.0
    %4994 = vmatprep.subr.mxu0 0.0
    %4995 = vmatpush1.msra.mxu0 0.0
    %4996 = vmatprep.subr.mxu0 0.0
    %4997 = vmatpush1.msra.mxu0 0.0
    %4998 = vmatprep.subr.mxu0 0.0
    %4999 = vmatpush1.msra.mxu0 0.0
    %5000 = vmatprep.subr.mxu0 0.0
    %5001 = vmatpush1.msra.mxu0 0.0
    %5002 = vmatprep.subr.mxu0 0.0
    %5003 = vmatpush1.msra.mxu0 0.0
    %5004 = vmatprep.subr.mxu0 0.0
    %5005 = vmatpush1.msra.mxu0 0.0
    %5006 = vmatprep.subr.mxu0 0.0
    %5007 = vmatpush1.msra.mxu0 0.0
    %5008 = vmatprep.subr.mxu0 0.0
    %5009 = vmatpush1.msra.mxu0 0.0
    %5010 = vmatprep.subr.mxu0 0.0
    %5011 = vmatpush1.msra.mxu0 0.0
    %5012 = vmatprep.subr.mxu0 0.0
    %5013 = vmatpush1.msra.mxu0 0.0
    %5014 = vmatprep.subr.mxu0 0.0
    %5015 = vmatpush1.msra.mxu0 0.0
    %5016 = vmatprep.subr.mxu0 0.0
    %5017 = vmatpush1.msra.mxu0 0.0
    %5018 = vmatprep.subr.mxu0 0.0
    %5019 = vmatpush1.msra.mxu0 0.0
    %5020 = vmatprep.subr.mxu0 0.0
    %5021 = vmatpush1.msra.mxu0 0.0
    %5022 = vmatprep.subr.mxu0 0.0
    %5023 = vmatpush1.msra.mxu0 0.0
    %5024 = vmatprep.subr.mxu0 0.0
    %5025 = vmatpush1.msra.mxu0 0.0
    %5026 = vmatprep.subr.mxu0 0.0
    %5027 = vmatpush1.msra.mxu0 0.0
    %5028 = vmatprep.subr.mxu0 0.0
    %5029 = vmatpush1.msra.mxu0 0.0
    %5030 = vmatprep.subr.mxu0 0.0
    %5031 = vmatpush1.msra.mxu0 0.0
    %5032 = vmatprep.subr.mxu0 0.0
    %5033 = vmatpush1.msra.mxu0 0.0
    %5034 = vmatprep.subr.mxu0 0.0
    %5035 = vmatpush1.msra.mxu0 0.0
    %5036 = vmatprep.subr.mxu0 0.0
    %5037 = vmatpush1.msra.mxu0 0.0
    %5038 = vmatprep.mubr.f32.mxu0 0.0
    %5039 = vmatmul.mubr.f32.gmra.mrb[0].mxu0 %v4972
    %v5040 = vpop.f32.mrb[0].mxu0
    %v5041 = vadd.f32 0.0, %v5040
    %v5042 = vpop.f32.mrb[0].mxu0
    %5043 = vdwg.mxu0
    %5044 = vrot.lane.b32.xlu0 %v3783, 40
    %v5045 = vpop.permute.xlu0 %5044
    %v5048 = vsel %vm373, %v4967, 0
    %5050 = vmatprep.subr.mxu0 0.0
    %5051 = vmatpush1.msra.mxu0 %v5045
    %5052 = vmatprep.subr.mxu0 0.0
    %5053 = vmatpush1.msra.mxu0 0.0
    %5054 = vmatprep.subr.mxu0 0.0
    %5055 = vmatpush1.msra.mxu0 0.0
    %5056 = vmatprep.subr.mxu0 0.0
    %5057 = vmatpush1.msra.mxu0 0.0
    %5058 = vmatprep.subr.mxu0 0.0
    %5059 = vmatpush1.msra.mxu0 0.0
    %5060 = vmatprep.subr.mxu0 0.0
    %5061 = vmatpush1.msra.mxu0 0.0
    %5062 = vmatprep.subr.mxu0 0.0
    %5063 = vmatpush1.msra.mxu0 0.0
    %5064 = vmatprep.subr.mxu0 0.0
    %5065 = vmatpush1.msra.mxu0 0.0
    %5066 = vmatprep.subr.mxu0 0.0
    %5067 = vmatpush1.msra.mxu0 0.0
    %5068 = vmatprep.subr.mxu0 0.0
    %5069 = vmatpush1.msra.mxu0 0.0
    %5070 = vmatprep.subr.mxu0 0.0
    %5071 = vmatpush1.msra.mxu0 0.0
    %5072 = vmatprep.subr.mxu0 0.0
    %5073 = vmatpush1.msra.mxu0 0.0
    %5074 = vmatprep.subr.mxu0 0.0
    %5075 = vmatpush1.msra.mxu0 0.0
    %5076 = vmatprep.subr.mxu0 0.0
    %5077 = vmatpush1.msra.mxu0 0.0
    %5078 = vmatprep.subr.mxu0 0.0
    %5079 = vmatpush1.msra.mxu0 0.0
    %5080 = vmatprep.subr.mxu0 0.0
    %5081 = vmatpush1.msra.mxu0 0.0
    %5082 = vmatprep.subr.mxu0 0.0
    %5083 = vmatpush1.msra.mxu0 0.0
    %5084 = vmatprep.subr.mxu0 0.0
    %5085 = vmatpush1.msra.mxu0 0.0
    %5086 = vmatprep.subr.mxu0 0.0
    %5087 = vmatpush1.msra.mxu0 0.0
    %5088 = vmatprep.subr.mxu0 0.0
    %5089 = vmatpush1.msra.mxu0 0.0
    %5090 = vmatprep.subr.mxu0 0.0
    %5091 = vmatpush1.msra.mxu0 0.0
    %5092 = vmatprep.subr.mxu0 0.0
    %5093 = vmatpush1.msra.mxu0 0.0
    %5094 = vmatprep.subr.mxu0 0.0
    %5095 = vmatpush1.msra.mxu0 0.0
    %5096 = vmatprep.subr.mxu0 0.0
    %5097 = vmatpush1.msra.mxu0 0.0
    %5098 = vmatprep.subr.mxu0 0.0
    %5099 = vmatpush1.msra.mxu0 0.0
    %5100 = vmatprep.subr.mxu0 0.0
    %5101 = vmatpush1.msra.mxu0 0.0
    %5102 = vmatprep.subr.mxu0 0.0
    %5103 = vmatpush1.msra.mxu0 0.0
    %5104 = vmatprep.subr.mxu0 0.0
    %5105 = vmatpush1.msra.mxu0 0.0
    %5106 = vmatprep.subr.mxu0 0.0
    %5107 = vmatpush1.msra.mxu0 0.0
    %5108 = vmatprep.subr.mxu0 0.0
    %5109 = vmatpush1.msra.mxu0 0.0
    %5110 = vmatprep.subr.mxu0 0.0
    %5111 = vmatpush1.msra.mxu0 0.0
    %5112 = vmatprep.subr.mxu0 0.0
    %5113 = vmatpush1.msra.mxu0 0.0
    %5114 = vmatprep.mubr.f32.mxu0 0.0
    %5115 = vmatmul.mubr.f32.gmra.mrb[0].mxu0 %v5048
    %v5116 = vpop.f32.mrb[0].mxu0
    %v5117 = vadd.f32 0.0, %v5116
    %v5118 = vpop.f32.mrb[0].mxu0
    %5119 = vdwg.mxu0
    %5122 = vrot.lane.b32.xlu0 %v4373, 8
    %v5123 = vpop.permute.xlu0 %5122
    %5124 = vrot.lane.b32.xlu0 %v4449, 8
    %v5125 = vpop.permute.xlu0 %5124
    %5130 = vrot.lane.b32.xlu0 %v4707, 16
    %v5131 = vpop.permute.xlu0 %5130
    %5132 = vrot.lane.b32.xlu0 %v4783, 16
    %v5133 = vpop.permute.xlu0 %5132
    %5138 = vrot.lane.b32.xlu0 %v5041, 24
    %v5139 = vpop.permute.xlu0 %5138
    %5140 = vrot.lane.b32.xlu0 %v5117, 24
    %v5141 = vpop.permute.xlu0 %5140
    %v5144 = vsel %vm373, %v4039, %v5123
    %v5145 = vsel %vm373, %v4115, %v5125
    %v5146 = vsel %vm1733, %v5144, %v5131
    %v5147 = vsel %vm1733, %v5145, %v5133
    %v5148 = vsel %vm1736, %v5146, %v5139
    %v5149 = vsel %vm1736, %v5147, %v5141
    %v5151 = vsel %vm141, %v5148, 0
    %v5154 = vsel %vm141, %v5149, 0
    %5156 = vmatprep.subr.mxu0 0.0
    %5157 = vmatpush1.msra.mxu0 %v93
    %5158 = vmatprep.subr.mxu0 0.0
    %5159 = vmatpush1.msra.mxu0 %v94
    %5160 = vmatprep.subr.mxu0 0.0
    %5161 = vmatpush1.msra.mxu0 %v95
    %5162 = vmatprep.subr.mxu0 0.0
    %5163 = vmatpush1.msra.mxu0 %v96
    %5164 = vmatprep.subr.mxu0 0.0
    %5165 = vmatpush1.msra.mxu0 0.0
    %5166 = vmatprep.subr.mxu0 0.0
    %5167 = vmatpush1.msra.mxu0 0.0
    %5168 = vmatprep.subr.mxu0 0.0
    %5169 = vmatpush1.msra.mxu0 0.0
    %5170 = vmatprep.subr.mxu0 0.0
    %5171 = vmatpush1.msra.mxu0 0.0
    %5172 = vmatprep.subr.mxu0 0.0
    %5173 = vmatpush1.msra.mxu0 0.0
    %5174 = vmatprep.subr.mxu0 0.0
    %5175 = vmatpush1.msra.mxu0 0.0
    %5176 = vmatprep.subr.mxu0 0.0
    %5177 = vmatpush1.msra.mxu0 0.0
    %5178 = vmatprep.subr.mxu0 0.0
    %5179 = vmatpush1.msra.mxu0 0.0
    %5180 = vmatprep.subr.mxu0 0.0
    %5181 = vmatpush1.msra.mxu0 0.0
    %5182 = vmatprep.subr.mxu0 0.0
    %5183 = vmatpush1.msra.mxu0 0.0
    %5184 = vmatprep.subr.mxu0 0.0
    %5185 = vmatpush1.msra.mxu0 0.0
    %5186 = vmatprep.subr.mxu0 0.0
    %5187 = vmatpush1.msra.mxu0 0.0
    %5188 = vmatprep.subr.mxu0 0.0
    %5189 = vmatpush1.msra.mxu0 0.0
    %5190 = vmatprep.subr.mxu0 0.0
    %5191 = vmatpush1.msra.mxu0 0.0
    %5192 = vmatprep.subr.mxu0 0.0
    %5193 = vmatpush1.msra.mxu0 0.0
    %5194 = vmatprep.subr.mxu0 0.0
    %5195 = vmatpush1.msra.mxu0 0.0
    %5196 = vmatprep.subr.mxu0 0.0
    %5197 = vmatpush1.msra.mxu0 0.0
    %5198 = vmatprep.subr.mxu0 0.0
    %5199 = vmatpush1.msra.mxu0 0.0
    %5200 = vmatprep.subr.mxu0 0.0
    %5201 = vmatpush1.msra.mxu0 0.0
    %5202 = vmatprep.subr.mxu0 0.0
    %5203 = vmatpush1.msra.mxu0 0.0
    %5204 = vmatprep.subr.mxu0 0.0
    %5205 = vmatpush1.msra.mxu0 0.0
    %5206 = vmatprep.subr.mxu0 0.0
    %5207 = vmatpush1.msra.mxu0 0.0
    %5208 = vmatprep.subr.mxu0 0.0
    %5209 = vmatpush1.msra.mxu0 0.0
    %5210 = vmatprep.subr.mxu0 0.0
    %5211 = vmatpush1.msra.mxu0 0.0
    %5212 = vmatprep.subr.mxu0 0.0
    %5213 = vmatpush1.msra.mxu0 0.0
    %5214 = vmatprep.subr.mxu0 0.0
    %5215 = vmatpush1.msra.mxu0 0.0
    %5216 = vmatprep.subr.mxu0 0.0
    %5217 = vmatpush1.msra.mxu0 0.0
    %5218 = vmatprep.subr.mxu0 0.0
    %5219 = vmatpush1.msra.mxu0 0.0
    %5220 = vmatprep.mubr.f32.mxu0 0.0
    %5221 = vmatmul.mubr.f32.gmra.mrb[0].mxu0 %v5151
    %v5222 = vpop.f32.mrb[0].mxu0
    %v5223 = vadd.f32 %v1743, %v5222
    %v5224 = vpop.f32.mrb[0].mxu0
    %5225 = vmatprep.mubr.f32.mxu0 0.0
    %5226 = vmatmul.mubr.f32.gmra.mrb[0].mxu0 %v5154
    %v5227 = vpop.f32.mrb[0].mxu0
    %v5228 = vadd.f32 %v1743, %v5227
    %v5229 = vpop.f32.mrb[0].mxu0
    %5230 = vdwg.mxu0
    %v5231 = vadd.f32 %v3659, %v5223
    %v5232 = vadd.f32 %v3660, %v5228
    %v5233 = vsel %vm141, %v5231, 0.0
    %5234 = vadd.xlane.f32.xlu0 %v5233
    %v5235 = vpop.xlane.xlu0 %5234
    %v5236 = vsel %vm141, %v5232, 0.0
    %5237 = vadd.xlane.f32.xlu0 %v5236
    %v5238 = vpop.xlane.xlu0 %5237
    %v5239 = vmul.f32 %v5235, %v231
    %v5240 = vmul.f32 %v5238, %v231
    %v5241 = vsub.f32 %v5231, %v5239
    %v5242 = vsub.f32 %v5232, %v5240
    %v5243 = vmul.f32 %v5241, %v5241
    %v5244 = vmul.f32 %v5242, %v5242
    %v5245 = vsel %vm141, %v5243, 0.0
    %5246 = vadd.xlane.f32.xlu0 %v5245
    %v5247 = vpop.xlane.xlu0 %5246
    %v5248 = vsel %vm141, %v5244, 0.0
    %5249 = vadd.xlane.f32.xlu0 %v5248
    %v5250 = vpop.xlane.xlu0 %5249
    %v5251 = vmul.f32 %v5247, %v244
    %v5252 = vmul.f32 %v5250, %v244
    %v5253 = vrsqrt.pop %v5251
    %v5254 = vmul.f32 %v5251, %v5253
    %vm5255 = vcmp.eq.f32.partialorder %v5251, inf
    %v5256 = vsel %vm5255, %v5251, %v5254
    %vm5257 = vcmp.eq.f32.partialorder %v5251, 0.0
    %v5258 = vand.u32 %v5251, 2147483648
    %v5259 = vsel %vm5257, %v5258, %v5256
    %v5260 = vrsqrt.pop %v5252
    %v5261 = vmul.f32 %v5252, %v5260
    %vm5262 = vcmp.eq.f32.partialorder %v5252, inf
    %v5263 = vsel %vm5262, %v5252, %v5261
    %vm5264 = vcmp.eq.f32.partialorder %v5252, 0.0
    %v5265 = vand.u32 %v5252, 2147483648
    %v5266 = vsel %vm5264, %v5265, %v5263
    %v5267 = vmul.f32 %v1866, %v5241
    %v5268 = vmul.f32 %v1866, %v5242
    %v5269 = vadd.f32 %v5259, 1e-06
    %v5270 = vadd.f32 %v5266, 1e-06
    %v5271 = vrcp.pop %v5269
    %v5272 = vmul.f32 %v5267, %v5271
    %v5273 = vrcp.pop %v5270
    %v5274 = vmul.f32 %v5268, %v5273
    %v5275 = vadd.f32 %v5272, %v1880
    %v5276 = vadd.f32 %v5274, %v1880
    %v5278 = vsel %vm141, %v5275, 0
    %v5281 = vsel %vm141, %v5276, 0
    %5283 = vmatprep.subr.mxu0 0.0
    %5284 = vmatpush1.msra.mxu0 %v98
    %5285 = vmatprep.subr.mxu0 0.0
    %5286 = vmatpush1.msra.mxu0 %v99
    %5287 = vmatprep.subr.mxu0 0.0
    %5288 = vmatpush1.msra.mxu0 %v100
    %5289 = vmatprep.subr.mxu0 0.0
    %5290 = vmatpush1.msra.mxu0 %v101
    %5291 = vmatprep.subr.mxu0 0.0
    %5292 = vmatpush1.msra.mxu0 0.0
    %5293 = vmatprep.subr.mxu0 0.0
    %5294 = vmatpush1.msra.mxu0 0.0
    %5295 = vmatprep.subr.mxu0 0.0
    %5296 = vmatpush1.msra.mxu0 0.0
    %5297 = vmatprep.subr.mxu0 0.0
    %5298 = vmatpush1.msra.mxu0 0.0
    %5299 = vmatprep.subr.mxu0 0.0
    %5300 = vmatpush1.msra.mxu0 0.0
    %5301 = vmatprep.subr.mxu0 0.0
    %5302 = vmatpush1.msra.mxu0 0.0
    %5303 = vmatprep.subr.mxu0 0.0
    %5304 = vmatpush1.msra.mxu0 0.0
    %5305 = vmatprep.subr.mxu0 0.0
    %5306 = vmatpush1.msra.mxu0 0.0
    %5307 = vmatprep.subr.mxu0 0.0
    %5308 = vmatpush1.msra.mxu0 0.0
    %5309 = vmatprep.subr.mxu0 0.0
    %5310 = vmatpush1.msra.mxu0 0.0
    %5311 = vmatprep.subr.mxu0 0.0
    %5312 = vmatpush1.msra.mxu0 0.0
    %5313 = vmatprep.subr.mxu0 0.0
    %5314 = vmatpush1.msra.mxu0 0.0
    %5315 = vmatprep.subr.mxu0 0.0
    %5316 = vmatpush1.msra.mxu0 0.0
    %5317 = vmatprep.subr.mxu0 0.0
    %5318 = vmatpush1.msra.mxu0 0.0
    %5319 = vmatprep.subr.mxu0 0.0
    %5320 = vmatpush1.msra.mxu0 0.0
    %5321 = vmatprep.subr.mxu0 0.0
    %5322 = vmatpush1.msra.mxu0 0.0
    %5323 = vmatprep.subr.mxu0 0.0
    %5324 = vmatpush1.msra.mxu0 0.0
    %5325 = vmatprep.subr.mxu0 0.0
    %5326 = vmatpush1.msra.mxu0 0.0
    %5327 = vmatprep.subr.mxu0 0.0
    %5328 = vmatpush1.msra.mxu0 0.0
    %5329 = vmatprep.subr.mxu0 0.0
    %5330 = vmatpush1.msra.mxu0 0.0
    %5331 = vmatprep.subr.mxu0 0.0
    %5332 = vmatpush1.msra.mxu0 0.0
    %5333 = vmatprep.subr.mxu0 0.0
    %5334 = vmatpush1.msra.mxu0 0.0
    %5335 = vmatprep.subr.mxu0 0.0
    %5336 = vmatpush1.msra.mxu0 0.0
    %5337 = vmatprep.subr.mxu0 0.0
    %5338 = vmatpush1.msra.mxu0 0.0
    %5339 = vmatprep.subr.mxu0 0.0
    %5340 = vmatpush1.msra.mxu0 0.0
    %5341 = vmatprep.subr.mxu0 0.0
    %5342 = vmatpush1.msra.mxu0 0.0
    %5343 = vmatprep.subr.mxu0 0.0
    %5344 = vmatpush1.msra.mxu0 0.0
    %5345 = vmatprep.subr.mxu0 0.0
    %5346 = vmatpush1.msra.mxu0 0.0
    %5347 = vmatprep.mubr.f32.mxu0 0.0
    %5348 = vmatmul.mubr.f32.gmra.mrb[0].mxu0 %v5278
    %v5349 = vpop.f32.mrb[0].mxu0
    %v5350 = vadd.f32 %v1888, %v5349
    %v5351 = vpop.f32.mrb[0].mxu0
    %5352 = vmatprep.mubr.f32.mxu0 0.0
    %5353 = vmatmul.mubr.f32.gmra.mrb[0].mxu0 %v5281
    %v5354 = vpop.f32.mrb[0].mxu0
    %v5355 = vadd.f32 %v1888, %v5354
    %v5356 = vpop.f32.mrb[0].mxu0
    %5357 = vdwg.mxu0
    %v5359 = vsel %vm373, %v5350, 0
    %5361 = vmatprep.subr.mxu0 0.0
    %5362 = vmatpush1.xpose.msra.mxu0 %v1975
    %5363 = vmatprep.subr.mxu0 0.0
    %5364 = vmatpush1.xpose.msra.mxu0 0.0
    %5365 = vmatprep.subr.mxu0 0.0
    %5366 = vmatpush1.xpose.msra.mxu0 0.0
    %5367 = vmatprep.subr.mxu0 0.0
    %5368 = vmatpush1.xpose.msra.mxu0 0.0
    %5369 = vmatprep.subr.mxu0 0.0
    %5370 = vmatpush1.xpose.msra.mxu0 0.0
    %5371 = vmatprep.subr.mxu0 0.0
    %5372 = vmatpush1.xpose.msra.mxu0 0.0
    %5373 = vmatprep.subr.mxu0 0.0
    %5374 = vmatpush1.xpose.msra.mxu0 0.0
    %5375 = vmatprep.subr.mxu0 0.0
    %5376 = vmatpush1.xpose.msra.mxu0 0.0
    %5377 = vmatprep.subr.mxu0 0.0
    %5378 = vmatpush1.xpose.msra.mxu0 0.0
    %5379 = vmatprep.subr.mxu0 0.0
    %5380 = vmatpush1.xpose.msra.mxu0 0.0
    %5381 = vmatprep.subr.mxu0 0.0
    %5382 = vmatpush1.xpose.msra.mxu0 0.0
    %5383 = vmatprep.subr.mxu0 0.0
    %5384 = vmatpush1.xpose.msra.mxu0 0.0
    %5385 = vmatprep.subr.mxu0 0.0
    %5386 = vmatpush1.xpose.msra.mxu0 0.0
    %5387 = vmatprep.subr.mxu0 0.0
    %5388 = vmatpush1.xpose.msra.mxu0 0.0
    %5389 = vmatprep.subr.mxu0 0.0
    %5390 = vmatpush1.xpose.msra.mxu0 0.0
    %5391 = vmatprep.subr.mxu0 0.0
    %5392 = vmatpush1.xpose.msra.mxu0 0.0
    %5393 = vmatprep.subr.mxu0 0.0
    %5394 = vmatpush1.xpose.msra.mxu0 0.0
    %5395 = vmatprep.subr.mxu0 0.0
    %5396 = vmatpush1.xpose.msra.mxu0 0.0
    %5397 = vmatprep.subr.mxu0 0.0
    %5398 = vmatpush1.xpose.msra.mxu0 0.0
    %5399 = vmatprep.subr.mxu0 0.0
    %5400 = vmatpush1.xpose.msra.mxu0 0.0
    %5401 = vmatprep.subr.mxu0 0.0
    %5402 = vmatpush1.xpose.msra.mxu0 0.0
    %5403 = vmatprep.subr.mxu0 0.0
    %5404 = vmatpush1.xpose.msra.mxu0 0.0
    %5405 = vmatprep.subr.mxu0 0.0
    %5406 = vmatpush1.xpose.msra.mxu0 0.0
    %5407 = vmatprep.subr.mxu0 0.0
    %5408 = vmatpush1.xpose.msra.mxu0 0.0
    %5409 = vmatprep.subr.mxu0 0.0
    %5410 = vmatpush1.xpose.msra.mxu0 0.0
    %5411 = vmatprep.subr.mxu0 0.0
    %5412 = vmatpush1.xpose.msra.mxu0 0.0
    %5413 = vmatprep.subr.mxu0 0.0
    %5414 = vmatpush1.xpose.msra.mxu0 0.0
    %5415 = vmatprep.subr.mxu0 0.0
    %5416 = vmatpush1.xpose.msra.mxu0 0.0
    %5417 = vmatprep.subr.mxu0 0.0
    %5418 = vmatpush1.xpose.msra.mxu0 0.0
    %5419 = vmatprep.subr.mxu0 0.0
    %5420 = vmatpush1.xpose.msra.mxu0 0.0
    %5421 = vmatprep.subr.mxu0 0.0
    %5422 = vmatpush1.xpose.msra.mxu0 0.0
    %5423 = vmatprep.subr.mxu0 0.0
    %5424 = vmatpush1.xpose.msra.mxu0 0.0
    %5425 = vmatprep.mubr.f32.mxu0 0.0
    %5426 = vmatmul.mubr.f32.gmra.mrb[0].mxu0 %v5359
    %v5427 = vpop.f32.mrb[0].mxu0
    %v5428 = vadd.f32 0.0, %v5427
    %v5429 = vpop.f32.mrb[0].mxu0
    %5430 = vdwg.mxu0
    %v5432 = vsel %vm373, %v5355, 0
    %5434 = vmatprep.subr.mxu0 0.0
    %5435 = vmatpush1.xpose.msra.mxu0 %v2051
    %5436 = vmatprep.subr.mxu0 0.0
    %5437 = vmatpush1.xpose.msra.mxu0 0.0
    %5438 = vmatprep.subr.mxu0 0.0
    %5439 = vmatpush1.xpose.msra.mxu0 0.0
    %5440 = vmatprep.subr.mxu0 0.0
    %5441 = vmatpush1.xpose.msra.mxu0 0.0
    %5442 = vmatprep.subr.mxu0 0.0
    %5443 = vmatpush1.xpose.msra.mxu0 0.0
    %5444 = vmatprep.subr.mxu0 0.0
    %5445 = vmatpush1.xpose.msra.mxu0 0.0
    %5446 = vmatprep.subr.mxu0 0.0
    %5447 = vmatpush1.xpose.msra.mxu0 0.0
    %5448 = vmatprep.subr.mxu0 0.0
    %5449 = vmatpush1.xpose.msra.mxu0 0.0
    %5450 = vmatprep.subr.mxu0 0.0
    %5451 = vmatpush1.xpose.msra.mxu0 0.0
    %5452 = vmatprep.subr.mxu0 0.0
    %5453 = vmatpush1.xpose.msra.mxu0 0.0
    %5454 = vmatprep.subr.mxu0 0.0
    %5455 = vmatpush1.xpose.msra.mxu0 0.0
    %5456 = vmatprep.subr.mxu0 0.0
    %5457 = vmatpush1.xpose.msra.mxu0 0.0
    %5458 = vmatprep.subr.mxu0 0.0
    %5459 = vmatpush1.xpose.msra.mxu0 0.0
    %5460 = vmatprep.subr.mxu0 0.0
    %5461 = vmatpush1.xpose.msra.mxu0 0.0
    %5462 = vmatprep.subr.mxu0 0.0
    %5463 = vmatpush1.xpose.msra.mxu0 0.0
    %5464 = vmatprep.subr.mxu0 0.0
    %5465 = vmatpush1.xpose.msra.mxu0 0.0
    %5466 = vmatprep.subr.mxu0 0.0
    %5467 = vmatpush1.xpose.msra.mxu0 0.0
    %5468 = vmatprep.subr.mxu0 0.0
    %5469 = vmatpush1.xpose.msra.mxu0 0.0
    %5470 = vmatprep.subr.mxu0 0.0
    %5471 = vmatpush1.xpose.msra.mxu0 0.0
    %5472 = vmatprep.subr.mxu0 0.0
    %5473 = vmatpush1.xpose.msra.mxu0 0.0
    %5474 = vmatprep.subr.mxu0 0.0
    %5475 = vmatpush1.xpose.msra.mxu0 0.0
    %5476 = vmatprep.subr.mxu0 0.0
    %5477 = vmatpush1.xpose.msra.mxu0 0.0
    %5478 = vmatprep.subr.mxu0 0.0
    %5479 = vmatpush1.xpose.msra.mxu0 0.0
    %5480 = vmatprep.subr.mxu0 0.0
    %5481 = vmatpush1.xpose.msra.mxu0 0.0
    %5482 = vmatprep.subr.mxu0 0.0
    %5483 = vmatpush1.xpose.msra.mxu0 0.0
    %5484 = vmatprep.subr.mxu0 0.0
    %5485 = vmatpush1.xpose.msra.mxu0 0.0
    %5486 = vmatprep.subr.mxu0 0.0
    %5487 = vmatpush1.xpose.msra.mxu0 0.0
    %5488 = vmatprep.subr.mxu0 0.0
    %5489 = vmatpush1.xpose.msra.mxu0 0.0
    %5490 = vmatprep.subr.mxu0 0.0
    %5491 = vmatpush1.xpose.msra.mxu0 0.0
    %5492 = vmatprep.subr.mxu0 0.0
    %5493 = vmatpush1.xpose.msra.mxu0 0.0
    %5494 = vmatprep.subr.mxu0 0.0
    %5495 = vmatpush1.xpose.msra.mxu0 0.0
    %5496 = vmatprep.subr.mxu0 0.0
    %5497 = vmatpush1.xpose.msra.mxu0 0.0
    %5498 = vmatprep.mubr.f32.mxu0 0.0
    %5499 = vmatmul.mubr.f32.gmra.mrb[0].mxu0 %v5432
    %v5500 = vpop.f32.mrb[0].mxu0
    %v5501 = vadd.f32 0.0, %v5500
    %v5502 = vpop.f32.mrb[0].mxu0
    %5503 = vdwg.mxu0
    %v5504 = vmul.f32 %v5428, 0.35355338
    %v5505 = vmul.f32 %v5501, 0.35355338
    %v5506 = vsel %vm2125, -1e+09, %v5504
    %v5507 = vsel %vm2126, -1e+09, %v5505
    %v5508 = vsel %vm373, %v5506, -inf
    %5509 = vmax.xlane.f32.xlu0 %v5508
    %v5510 = vpop.xlane.xlu0 %5509
    %v5511 = vsel %vm373, %v5507, -inf
    %5512 = vmax.xlane.f32.xlu0 %v5511
    %v5513 = vpop.xlane.xlu0 %5512
    %v5514 = vsub.f32 %v5506, %v5510
    %v5515 = vsub.f32 %v5507, %v5513
    %v5516 = vmul.f32 %v5514, 1.442695
    %v5517 = vpow.pop %v5516
    %v5518 = vmul.f32 %v5515, 1.442695
    %v5519 = vpow.pop %v5518
    %v5520 = vsel %vm373, %v5517, 0.0
    %5521 = vadd.xlane.f32.xlu0 %v5520
    %v5522 = vpop.xlane.xlu0 %5521
    %v5523 = vsel %vm373, %v5519, 0.0
    %5524 = vadd.xlane.f32.xlu0 %v5523
    %v5525 = vpop.xlane.xlu0 %5524
    %v5526 = vrcp.pop %v5522
    %v5527 = vmul.f32 %v5517, %v5526
    %v5528 = vrcp.pop %v5525
    %v5529 = vmul.f32 %v5519, %v5528
    %v5531 = vsel %vm373, %v5527, 0
    %5533 = vmatprep.subr.mxu0 0.0
    %5534 = vmatpush1.msra.mxu0 %v2152
    %5535 = vmatprep.subr.mxu0 0.0
    %5536 = vmatpush1.msra.mxu0 0.0
    %5537 = vmatprep.subr.mxu0 0.0
    %5538 = vmatpush1.msra.mxu0 0.0
    %5539 = vmatprep.subr.mxu0 0.0
    %5540 = vmatpush1.msra.mxu0 0.0
    %5541 = vmatprep.subr.mxu0 0.0
    %5542 = vmatpush1.msra.mxu0 0.0
    %5543 = vmatprep.subr.mxu0 0.0
    %5544 = vmatpush1.msra.mxu0 0.0
    %5545 = vmatprep.subr.mxu0 0.0
    %5546 = vmatpush1.msra.mxu0 0.0
    %5547 = vmatprep.subr.mxu0 0.0
    %5548 = vmatpush1.msra.mxu0 0.0
    %5549 = vmatprep.subr.mxu0 0.0
    %5550 = vmatpush1.msra.mxu0 0.0
    %5551 = vmatprep.subr.mxu0 0.0
    %5552 = vmatpush1.msra.mxu0 0.0
    %5553 = vmatprep.subr.mxu0 0.0
    %5554 = vmatpush1.msra.mxu0 0.0
    %5555 = vmatprep.subr.mxu0 0.0
    %5556 = vmatpush1.msra.mxu0 0.0
    %5557 = vmatprep.subr.mxu0 0.0
    %5558 = vmatpush1.msra.mxu0 0.0
    %5559 = vmatprep.subr.mxu0 0.0
    %5560 = vmatpush1.msra.mxu0 0.0
    %5561 = vmatprep.subr.mxu0 0.0
    %5562 = vmatpush1.msra.mxu0 0.0
    %5563 = vmatprep.subr.mxu0 0.0
    %5564 = vmatpush1.msra.mxu0 0.0
    %5565 = vmatprep.subr.mxu0 0.0
    %5566 = vmatpush1.msra.mxu0 0.0
    %5567 = vmatprep.subr.mxu0 0.0
    %5568 = vmatpush1.msra.mxu0 0.0
    %5569 = vmatprep.subr.mxu0 0.0
    %5570 = vmatpush1.msra.mxu0 0.0
    %5571 = vmatprep.subr.mxu0 0.0
    %5572 = vmatpush1.msra.mxu0 0.0
    %5573 = vmatprep.subr.mxu0 0.0
    %5574 = vmatpush1.msra.mxu0 0.0
    %5575 = vmatprep.subr.mxu0 0.0
    %5576 = vmatpush1.msra.mxu0 0.0
    %5577 = vmatprep.subr.mxu0 0.0
    %5578 = vmatpush1.msra.mxu0 0.0
    %5579 = vmatprep.subr.mxu0 0.0
    %5580 = vmatpush1.msra.mxu0 0.0
    %5581 = vmatprep.subr.mxu0 0.0
    %5582 = vmatpush1.msra.mxu0 0.0
    %5583 = vmatprep.subr.mxu0 0.0
    %5584 = vmatpush1.msra.mxu0 0.0
    %5585 = vmatprep.subr.mxu0 0.0
    %5586 = vmatpush1.msra.mxu0 0.0
    %5587 = vmatprep.subr.mxu0 0.0
    %5588 = vmatpush1.msra.mxu0 0.0
    %5589 = vmatprep.subr.mxu0 0.0
    %5590 = vmatpush1.msra.mxu0 0.0
    %5591 = vmatprep.subr.mxu0 0.0
    %5592 = vmatpush1.msra.mxu0 0.0
    %5593 = vmatprep.subr.mxu0 0.0
    %5594 = vmatpush1.msra.mxu0 0.0
    %5595 = vmatprep.subr.mxu0 0.0
    %5596 = vmatpush1.msra.mxu0 0.0
    %5597 = vmatprep.mubr.f32.mxu0 0.0
    %5598 = vmatmul.mubr.f32.gmra.mrb[0].mxu0 %v5531
    %v5599 = vpop.f32.mrb[0].mxu0
    %v5600 = vadd.f32 0.0, %v5599
    %v5601 = vpop.f32.mrb[0].mxu0
    %5602 = vdwg.mxu0
    %v5604 = vsel %vm373, %v5529, 0
    %5606 = vmatprep.subr.mxu0 0.0
    %5607 = vmatpush1.msra.mxu0 %v2228
    %5608 = vmatprep.subr.mxu0 0.0
    %5609 = vmatpush1.msra.mxu0 0.0
    %5610 = vmatprep.subr.mxu0 0.0
    %5611 = vmatpush1.msra.mxu0 0.0
    %5612 = vmatprep.subr.mxu0 0.0
    %5613 = vmatpush1.msra.mxu0 0.0
    %5614 = vmatprep.subr.mxu0 0.0
    %5615 = vmatpush1.msra.mxu0 0.0
    %5616 = vmatprep.subr.mxu0 0.0
    %5617 = vmatpush1.msra.mxu0 0.0
    %5618 = vmatprep.subr.mxu0 0.0
    %5619 = vmatpush1.msra.mxu0 0.0
    %5620 = vmatprep.subr.mxu0 0.0
    %5621 = vmatpush1.msra.mxu0 0.0
    %5622 = vmatprep.subr.mxu0 0.0
    %5623 = vmatpush1.msra.mxu0 0.0
    %5624 = vmatprep.subr.mxu0 0.0
    %5625 = vmatpush1.msra.mxu0 0.0
    %5626 = vmatprep.subr.mxu0 0.0
    %5627 = vmatpush1.msra.mxu0 0.0
    %5628 = vmatprep.subr.mxu0 0.0
    %5629 = vmatpush1.msra.mxu0 0.0
    %5630 = vmatprep.subr.mxu0 0.0
    %5631 = vmatpush1.msra.mxu0 0.0
    %5632 = vmatprep.subr.mxu0 0.0
    %5633 = vmatpush1.msra.mxu0 0.0
    %5634 = vmatprep.subr.mxu0 0.0
    %5635 = vmatpush1.msra.mxu0 0.0
    %5636 = vmatprep.subr.mxu0 0.0
    %5637 = vmatpush1.msra.mxu0 0.0
    %5638 = vmatprep.subr.mxu0 0.0
    %5639 = vmatpush1.msra.mxu0 0.0
    %5640 = vmatprep.subr.mxu0 0.0
    %5641 = vmatpush1.msra.mxu0 0.0
    %5642 = vmatprep.subr.mxu0 0.0
    %5643 = vmatpush1.msra.mxu0 0.0
    %5644 = vmatprep.subr.mxu0 0.0
    %5645 = vmatpush1.msra.mxu0 0.0
    %5646 = vmatprep.subr.mxu0 0.0
    %5647 = vmatpush1.msra.mxu0 0.0
    %5648 = vmatprep.subr.mxu0 0.0
    %5649 = vmatpush1.msra.mxu0 0.0
    %5650 = vmatprep.subr.mxu0 0.0
    %5651 = vmatpush1.msra.mxu0 0.0
    %5652 = vmatprep.subr.mxu0 0.0
    %5653 = vmatpush1.msra.mxu0 0.0
    %5654 = vmatprep.subr.mxu0 0.0
    %5655 = vmatpush1.msra.mxu0 0.0
    %5656 = vmatprep.subr.mxu0 0.0
    %5657 = vmatpush1.msra.mxu0 0.0
    %5658 = vmatprep.subr.mxu0 0.0
    %5659 = vmatpush1.msra.mxu0 0.0
    %5660 = vmatprep.subr.mxu0 0.0
    %5661 = vmatpush1.msra.mxu0 0.0
    %5662 = vmatprep.subr.mxu0 0.0
    %5663 = vmatpush1.msra.mxu0 0.0
    %5664 = vmatprep.subr.mxu0 0.0
    %5665 = vmatpush1.msra.mxu0 0.0
    %5666 = vmatprep.subr.mxu0 0.0
    %5667 = vmatpush1.msra.mxu0 0.0
    %5668 = vmatprep.subr.mxu0 0.0
    %5669 = vmatpush1.msra.mxu0 0.0
    %5670 = vmatprep.mubr.f32.mxu0 0.0
    %5671 = vmatmul.mubr.f32.gmra.mrb[0].mxu0 %v5604
    %v5672 = vpop.f32.mrb[0].mxu0
    %v5673 = vadd.f32 0.0, %v5672
    %v5674 = vpop.f32.mrb[0].mxu0
    %5675 = vdwg.mxu0
    %5676 = vrot.lane.b32.xlu0 %v5350, 120
    %v5677 = vpop.permute.xlu0 %5676
    %v5678 = vsel %vm373, %v5677, 0
    %5680 = vmatprep.subr.mxu0 0.0
    %5681 = vmatpush1.xpose.msra.mxu0 %v2309
    %5682 = vmatprep.subr.mxu0 0.0
    %5683 = vmatpush1.xpose.msra.mxu0 0.0
    %5684 = vmatprep.subr.mxu0 0.0
    %5685 = vmatpush1.xpose.msra.mxu0 0.0
    %5686 = vmatprep.subr.mxu0 0.0
    %5687 = vmatpush1.xpose.msra.mxu0 0.0
    %5688 = vmatprep.subr.mxu0 0.0
    %5689 = vmatpush1.xpose.msra.mxu0 0.0
    %5690 = vmatprep.subr.mxu0 0.0
    %5691 = vmatpush1.xpose.msra.mxu0 0.0
    %5692 = vmatprep.subr.mxu0 0.0
    %5693 = vmatpush1.xpose.msra.mxu0 0.0
    %5694 = vmatprep.subr.mxu0 0.0
    %5695 = vmatpush1.xpose.msra.mxu0 0.0
    %5696 = vmatprep.subr.mxu0 0.0
    %5697 = vmatpush1.xpose.msra.mxu0 0.0
    %5698 = vmatprep.subr.mxu0 0.0
    %5699 = vmatpush1.xpose.msra.mxu0 0.0
    %5700 = vmatprep.subr.mxu0 0.0
    %5701 = vmatpush1.xpose.msra.mxu0 0.0
    %5702 = vmatprep.subr.mxu0 0.0
    %5703 = vmatpush1.xpose.msra.mxu0 0.0
    %5704 = vmatprep.subr.mxu0 0.0
    %5705 = vmatpush1.xpose.msra.mxu0 0.0
    %5706 = vmatprep.subr.mxu0 0.0
    %5707 = vmatpush1.xpose.msra.mxu0 0.0
    %5708 = vmatprep.subr.mxu0 0.0
    %5709 = vmatpush1.xpose.msra.mxu0 0.0
    %5710 = vmatprep.subr.mxu0 0.0
    %5711 = vmatpush1.xpose.msra.mxu0 0.0
    %5712 = vmatprep.subr.mxu0 0.0
    %5713 = vmatpush1.xpose.msra.mxu0 0.0
    %5714 = vmatprep.subr.mxu0 0.0
    %5715 = vmatpush1.xpose.msra.mxu0 0.0
    %5716 = vmatprep.subr.mxu0 0.0
    %5717 = vmatpush1.xpose.msra.mxu0 0.0
    %5718 = vmatprep.subr.mxu0 0.0
    %5719 = vmatpush1.xpose.msra.mxu0 0.0
    %5720 = vmatprep.subr.mxu0 0.0
    %5721 = vmatpush1.xpose.msra.mxu0 0.0
    %5722 = vmatprep.subr.mxu0 0.0
    %5723 = vmatpush1.xpose.msra.mxu0 0.0
    %5724 = vmatprep.subr.mxu0 0.0
    %5725 = vmatpush1.xpose.msra.mxu0 0.0
    %5726 = vmatprep.subr.mxu0 0.0
    %5727 = vmatpush1.xpose.msra.mxu0 0.0
    %5728 = vmatprep.subr.mxu0 0.0
    %5729 = vmatpush1.xpose.msra.mxu0 0.0
    %5730 = vmatprep.subr.mxu0 0.0
    %5731 = vmatpush1.xpose.msra.mxu0 0.0
    %5732 = vmatprep.subr.mxu0 0.0
    %5733 = vmatpush1.xpose.msra.mxu0 0.0
    %5734 = vmatprep.subr.mxu0 0.0
    %5735 = vmatpush1.xpose.msra.mxu0 0.0
    %5736 = vmatprep.subr.mxu0 0.0
    %5737 = vmatpush1.xpose.msra.mxu0 0.0
    %5738 = vmatprep.subr.mxu0 0.0
    %5739 = vmatpush1.xpose.msra.mxu0 0.0
    %5740 = vmatprep.subr.mxu0 0.0
    %5741 = vmatpush1.xpose.msra.mxu0 0.0
    %5742 = vmatprep.subr.mxu0 0.0
    %5743 = vmatpush1.xpose.msra.mxu0 0.0
    %5744 = vmatprep.mubr.f32.mxu0 0.0
    %5745 = vmatmul.mubr.f32.gmra.mrb[0].mxu0 %v5678
    %v5746 = vpop.f32.mrb[0].mxu0
    %v5747 = vadd.f32 0.0, %v5746
    %v5748 = vpop.f32.mrb[0].mxu0
    %5749 = vdwg.mxu0
    %5750 = vrot.lane.b32.xlu0 %v5355, 120
    %v5751 = vpop.permute.xlu0 %5750
    %v5752 = vsel %vm373, %v5751, 0
    %5754 = vmatprep.subr.mxu0 0.0
    %5755 = vmatpush1.xpose.msra.mxu0 %v2387
    %5756 = vmatprep.subr.mxu0 0.0
    %5757 = vmatpush1.xpose.msra.mxu0 0.0
    %5758 = vmatprep.subr.mxu0 0.0
    %5759 = vmatpush1.xpose.msra.mxu0 0.0
    %5760 = vmatprep.subr.mxu0 0.0
    %5761 = vmatpush1.xpose.msra.mxu0 0.0
    %5762 = vmatprep.subr.mxu0 0.0
    %5763 = vmatpush1.xpose.msra.mxu0 0.0
    %5764 = vmatprep.subr.mxu0 0.0
    %5765 = vmatpush1.xpose.msra.mxu0 0.0
    %5766 = vmatprep.subr.mxu0 0.0
    %5767 = vmatpush1.xpose.msra.mxu0 0.0
    %5768 = vmatprep.subr.mxu0 0.0
    %5769 = vmatpush1.xpose.msra.mxu0 0.0
    %5770 = vmatprep.subr.mxu0 0.0
    %5771 = vmatpush1.xpose.msra.mxu0 0.0
    %5772 = vmatprep.subr.mxu0 0.0
    %5773 = vmatpush1.xpose.msra.mxu0 0.0
    %5774 = vmatprep.subr.mxu0 0.0
    %5775 = vmatpush1.xpose.msra.mxu0 0.0
    %5776 = vmatprep.subr.mxu0 0.0
    %5777 = vmatpush1.xpose.msra.mxu0 0.0
    %5778 = vmatprep.subr.mxu0 0.0
    %5779 = vmatpush1.xpose.msra.mxu0 0.0
    %5780 = vmatprep.subr.mxu0 0.0
    %5781 = vmatpush1.xpose.msra.mxu0 0.0
    %5782 = vmatprep.subr.mxu0 0.0
    %5783 = vmatpush1.xpose.msra.mxu0 0.0
    %5784 = vmatprep.subr.mxu0 0.0
    %5785 = vmatpush1.xpose.msra.mxu0 0.0
    %5786 = vmatprep.subr.mxu0 0.0
    %5787 = vmatpush1.xpose.msra.mxu0 0.0
    %5788 = vmatprep.subr.mxu0 0.0
    %5789 = vmatpush1.xpose.msra.mxu0 0.0
    %5790 = vmatprep.subr.mxu0 0.0
    %5791 = vmatpush1.xpose.msra.mxu0 0.0
    %5792 = vmatprep.subr.mxu0 0.0
    %5793 = vmatpush1.xpose.msra.mxu0 0.0
    %5794 = vmatprep.subr.mxu0 0.0
    %5795 = vmatpush1.xpose.msra.mxu0 0.0
    %5796 = vmatprep.subr.mxu0 0.0
    %5797 = vmatpush1.xpose.msra.mxu0 0.0
    %5798 = vmatprep.subr.mxu0 0.0
    %5799 = vmatpush1.xpose.msra.mxu0 0.0
    %5800 = vmatprep.subr.mxu0 0.0
    %5801 = vmatpush1.xpose.msra.mxu0 0.0
    %5802 = vmatprep.subr.mxu0 0.0
    %5803 = vmatpush1.xpose.msra.mxu0 0.0
    %5804 = vmatprep.subr.mxu0 0.0
    %5805 = vmatpush1.xpose.msra.mxu0 0.0
    %5806 = vmatprep.subr.mxu0 0.0
    %5807 = vmatpush1.xpose.msra.mxu0 0.0
    %5808 = vmatprep.subr.mxu0 0.0
    %5809 = vmatpush1.xpose.msra.mxu0 0.0
    %5810 = vmatprep.subr.mxu0 0.0
    %5811 = vmatpush1.xpose.msra.mxu0 0.0
    %5812 = vmatprep.subr.mxu0 0.0
    %5813 = vmatpush1.xpose.msra.mxu0 0.0
    %5814 = vmatprep.subr.mxu0 0.0
    %5815 = vmatpush1.xpose.msra.mxu0 0.0
    %5816 = vmatprep.subr.mxu0 0.0
    %5817 = vmatpush1.xpose.msra.mxu0 0.0
    %5818 = vmatprep.mubr.f32.mxu0 0.0
    %5819 = vmatmul.mubr.f32.gmra.mrb[0].mxu0 %v5752
    %v5820 = vpop.f32.mrb[0].mxu0
    %v5821 = vadd.f32 0.0, %v5820
    %v5822 = vpop.f32.mrb[0].mxu0
    %5823 = vdwg.mxu0
    %v5824 = vmul.f32 %v5747, 0.35355338
    %v5825 = vmul.f32 %v5821, 0.35355338
    %v5826 = vsel %vm2125, -1e+09, %v5824
    %v5827 = vsel %vm2126, -1e+09, %v5825
    %v5828 = vsel %vm373, %v5826, -inf
    %5829 = vmax.xlane.f32.xlu0 %v5828
    %v5830 = vpop.xlane.xlu0 %5829
    %v5831 = vsel %vm373, %v5827, -inf
    %5832 = vmax.xlane.f32.xlu0 %v5831
    %v5833 = vpop.xlane.xlu0 %5832
    %v5834 = vsub.f32 %v5826, %v5830
    %v5835 = vsub.f32 %v5827, %v5833
    %v5836 = vmul.f32 %v5834, 1.442695
    %v5837 = vpow.pop %v5836
    %v5838 = vmul.f32 %v5835, 1.442695
    %v5839 = vpow.pop %v5838
    %v5840 = vsel %vm373, %v5837, 0.0
    %5841 = vadd.xlane.f32.xlu0 %v5840
    %v5842 = vpop.xlane.xlu0 %5841
    %v5843 = vsel %vm373, %v5839, 0.0
    %5844 = vadd.xlane.f32.xlu0 %v5843
    %v5845 = vpop.xlane.xlu0 %5844
    %v5846 = vrcp.pop %v5842
    %v5847 = vmul.f32 %v5837, %v5846
    %v5848 = vrcp.pop %v5845
    %v5849 = vmul.f32 %v5839, %v5848
    %v5851 = vsel %vm373, %v5847, 0
    %5853 = vmatprep.subr.mxu0 0.0
    %5854 = vmatpush1.msra.mxu0 %v2486
    %5855 = vmatprep.subr.mxu0 0.0
    %5856 = vmatpush1.msra.mxu0 0.0
    %5857 = vmatprep.subr.mxu0 0.0
    %5858 = vmatpush1.msra.mxu0 0.0
    %5859 = vmatprep.subr.mxu0 0.0
    %5860 = vmatpush1.msra.mxu0 0.0
    %5861 = vmatprep.subr.mxu0 0.0
    %5862 = vmatpush1.msra.mxu0 0.0
    %5863 = vmatprep.subr.mxu0 0.0
    %5864 = vmatpush1.msra.mxu0 0.0
    %5865 = vmatprep.subr.mxu0 0.0
    %5866 = vmatpush1.msra.mxu0 0.0
    %5867 = vmatprep.subr.mxu0 0.0
    %5868 = vmatpush1.msra.mxu0 0.0
    %5869 = vmatprep.subr.mxu0 0.0
    %5870 = vmatpush1.msra.mxu0 0.0
    %5871 = vmatprep.subr.mxu0 0.0
    %5872 = vmatpush1.msra.mxu0 0.0
    %5873 = vmatprep.subr.mxu0 0.0
    %5874 = vmatpush1.msra.mxu0 0.0
    %5875 = vmatprep.subr.mxu0 0.0
    %5876 = vmatpush1.msra.mxu0 0.0
    %5877 = vmatprep.subr.mxu0 0.0
    %5878 = vmatpush1.msra.mxu0 0.0
    %5879 = vmatprep.subr.mxu0 0.0
    %5880 = vmatpush1.msra.mxu0 0.0
    %5881 = vmatprep.subr.mxu0 0.0
    %5882 = vmatpush1.msra.mxu0 0.0
    %5883 = vmatprep.subr.mxu0 0.0
    %5884 = vmatpush1.msra.mxu0 0.0
    %5885 = vmatprep.subr.mxu0 0.0
    %5886 = vmatpush1.msra.mxu0 0.0
    %5887 = vmatprep.subr.mxu0 0.0
    %5888 = vmatpush1.msra.mxu0 0.0
    %5889 = vmatprep.subr.mxu0 0.0
    %5890 = vmatpush1.msra.mxu0 0.0
    %5891 = vmatprep.subr.mxu0 0.0
    %5892 = vmatpush1.msra.mxu0 0.0
    %5893 = vmatprep.subr.mxu0 0.0
    %5894 = vmatpush1.msra.mxu0 0.0
    %5895 = vmatprep.subr.mxu0 0.0
    %5896 = vmatpush1.msra.mxu0 0.0
    %5897 = vmatprep.subr.mxu0 0.0
    %5898 = vmatpush1.msra.mxu0 0.0
    %5899 = vmatprep.subr.mxu0 0.0
    %5900 = vmatpush1.msra.mxu0 0.0
    %5901 = vmatprep.subr.mxu0 0.0
    %5902 = vmatpush1.msra.mxu0 0.0
    %5903 = vmatprep.subr.mxu0 0.0
    %5904 = vmatpush1.msra.mxu0 0.0
    %5905 = vmatprep.subr.mxu0 0.0
    %5906 = vmatpush1.msra.mxu0 0.0
    %5907 = vmatprep.subr.mxu0 0.0
    %5908 = vmatpush1.msra.mxu0 0.0
    %5909 = vmatprep.subr.mxu0 0.0
    %5910 = vmatpush1.msra.mxu0 0.0
    %5911 = vmatprep.subr.mxu0 0.0
    %5912 = vmatpush1.msra.mxu0 0.0
    %5913 = vmatprep.subr.mxu0 0.0
    %5914 = vmatpush1.msra.mxu0 0.0
    %5915 = vmatprep.subr.mxu0 0.0
    %5916 = vmatpush1.msra.mxu0 0.0
    %5917 = vmatprep.mubr.f32.mxu0 0.0
    %5918 = vmatmul.mubr.f32.gmra.mrb[0].mxu0 %v5851
    %v5919 = vpop.f32.mrb[0].mxu0
    %v5920 = vadd.f32 0.0, %v5919
    %v5921 = vpop.f32.mrb[0].mxu0
    %5922 = vdwg.mxu0
    %v5924 = vsel %vm373, %v5849, 0
    %5926 = vmatprep.subr.mxu0 0.0
    %5927 = vmatpush1.msra.mxu0 %v2562
    %5928 = vmatprep.subr.mxu0 0.0
    %5929 = vmatpush1.msra.mxu0 0.0
    %5930 = vmatprep.subr.mxu0 0.0
    %5931 = vmatpush1.msra.mxu0 0.0
    %5932 = vmatprep.subr.mxu0 0.0
    %5933 = vmatpush1.msra.mxu0 0.0
    %5934 = vmatprep.subr.mxu0 0.0
    %5935 = vmatpush1.msra.mxu0 0.0
    %5936 = vmatprep.subr.mxu0 0.0
    %5937 = vmatpush1.msra.mxu0 0.0
    %5938 = vmatprep.subr.mxu0 0.0
    %5939 = vmatpush1.msra.mxu0 0.0
    %5940 = vmatprep.subr.mxu0 0.0
    %5941 = vmatpush1.msra.mxu0 0.0
    %5942 = vmatprep.subr.mxu0 0.0
    %5943 = vmatpush1.msra.mxu0 0.0
    %5944 = vmatprep.subr.mxu0 0.0
    %5945 = vmatpush1.msra.mxu0 0.0
    %5946 = vmatprep.subr.mxu0 0.0
    %5947 = vmatpush1.msra.mxu0 0.0
    %5948 = vmatprep.subr.mxu0 0.0
    %5949 = vmatpush1.msra.mxu0 0.0
    %5950 = vmatprep.subr.mxu0 0.0
    %5951 = vmatpush1.msra.mxu0 0.0
    %5952 = vmatprep.subr.mxu0 0.0
    %5953 = vmatpush1.msra.mxu0 0.0
    %5954 = vmatprep.subr.mxu0 0.0
    %5955 = vmatpush1.msra.mxu0 0.0
    %5956 = vmatprep.subr.mxu0 0.0
    %5957 = vmatpush1.msra.mxu0 0.0
    %5958 = vmatprep.subr.mxu0 0.0
    %5959 = vmatpush1.msra.mxu0 0.0
    %5960 = vmatprep.subr.mxu0 0.0
    %5961 = vmatpush1.msra.mxu0 0.0
    %5962 = vmatprep.subr.mxu0 0.0
    %5963 = vmatpush1.msra.mxu0 0.0
    %5964 = vmatprep.subr.mxu0 0.0
    %5965 = vmatpush1.msra.mxu0 0.0
    %5966 = vmatprep.subr.mxu0 0.0
    %5967 = vmatpush1.msra.mxu0 0.0
    %5968 = vmatprep.subr.mxu0 0.0
    %5969 = vmatpush1.msra.mxu0 0.0
    %5970 = vmatprep.subr.mxu0 0.0
    %5971 = vmatpush1.msra.mxu0 0.0
    %5972 = vmatprep.subr.mxu0 0.0
    %5973 = vmatpush1.msra.mxu0 0.0
    %5974 = vmatprep.subr.mxu0 0.0
    %5975 = vmatpush1.msra.mxu0 0.0
    %5976 = vmatprep.subr.mxu0 0.0
    %5977 = vmatpush1.msra.mxu0 0.0
    %5978 = vmatprep.subr.mxu0 0.0
    %5979 = vmatpush1.msra.mxu0 0.0
    %5980 = vmatprep.subr.mxu0 0.0
    %5981 = vmatpush1.msra.mxu0 0.0
    %5982 = vmatprep.subr.mxu0 0.0
    %5983 = vmatpush1.msra.mxu0 0.0
    %5984 = vmatprep.subr.mxu0 0.0
    %5985 = vmatpush1.msra.mxu0 0.0
    %5986 = vmatprep.subr.mxu0 0.0
    %5987 = vmatpush1.msra.mxu0 0.0
    %5988 = vmatprep.subr.mxu0 0.0
    %5989 = vmatpush1.msra.mxu0 0.0
    %5990 = vmatprep.mubr.f32.mxu0 0.0
    %5991 = vmatmul.mubr.f32.gmra.mrb[0].mxu0 %v5924
    %v5992 = vpop.f32.mrb[0].mxu0
    %v5993 = vadd.f32 0.0, %v5992
    %v5994 = vpop.f32.mrb[0].mxu0
    %5995 = vdwg.mxu0
    %5996 = vrot.lane.b32.xlu0 %v5350, 112
    %v5997 = vpop.permute.xlu0 %5996
    %v5998 = vsel %vm373, %v5997, 0
    %6000 = vmatprep.subr.mxu0 0.0
    %6001 = vmatpush1.xpose.msra.mxu0 %v2643
    %6002 = vmatprep.subr.mxu0 0.0
    %6003 = vmatpush1.xpose.msra.mxu0 0.0
    %6004 = vmatprep.subr.mxu0 0.0
    %6005 = vmatpush1.xpose.msra.mxu0 0.0
    %6006 = vmatprep.subr.mxu0 0.0
    %6007 = vmatpush1.xpose.msra.mxu0 0.0
    %6008 = vmatprep.subr.mxu0 0.0
    %6009 = vmatpush1.xpose.msra.mxu0 0.0
    %6010 = vmatprep.subr.mxu0 0.0
    %6011 = vmatpush1.xpose.msra.mxu0 0.0
    %6012 = vmatprep.subr.mxu0 0.0
    %6013 = vmatpush1.xpose.msra.mxu0 0.0
    %6014 = vmatprep.subr.mxu0 0.0
    %6015 = vmatpush1.xpose.msra.mxu0 0.0
    %6016 = vmatprep.subr.mxu0 0.0
    %6017 = vmatpush1.xpose.msra.mxu0 0.0
    %6018 = vmatprep.subr.mxu0 0.0
    %6019 = vmatpush1.xpose.msra.mxu0 0.0
    %6020 = vmatprep.subr.mxu0 0.0
    %6021 = vmatpush1.xpose.msra.mxu0 0.0
    %6022 = vmatprep.subr.mxu0 0.0
    %6023 = vmatpush1.xpose.msra.mxu0 0.0
    %6024 = vmatprep.subr.mxu0 0.0
    %6025 = vmatpush1.xpose.msra.mxu0 0.0
    %6026 = vmatprep.subr.mxu0 0.0
    %6027 = vmatpush1.xpose.msra.mxu0 0.0
    %6028 = vmatprep.subr.mxu0 0.0
    %6029 = vmatpush1.xpose.msra.mxu0 0.0
    %6030 = vmatprep.subr.mxu0 0.0
    %6031 = vmatpush1.xpose.msra.mxu0 0.0
    %6032 = vmatprep.subr.mxu0 0.0
    %6033 = vmatpush1.xpose.msra.mxu0 0.0
    %6034 = vmatprep.subr.mxu0 0.0
    %6035 = vmatpush1.xpose.msra.mxu0 0.0
    %6036 = vmatprep.subr.mxu0 0.0
    %6037 = vmatpush1.xpose.msra.mxu0 0.0
    %6038 = vmatprep.subr.mxu0 0.0
    %6039 = vmatpush1.xpose.msra.mxu0 0.0
    %6040 = vmatprep.subr.mxu0 0.0
    %6041 = vmatpush1.xpose.msra.mxu0 0.0
    %6042 = vmatprep.subr.mxu0 0.0
    %6043 = vmatpush1.xpose.msra.mxu0 0.0
    %6044 = vmatprep.subr.mxu0 0.0
    %6045 = vmatpush1.xpose.msra.mxu0 0.0
    %6046 = vmatprep.subr.mxu0 0.0
    %6047 = vmatpush1.xpose.msra.mxu0 0.0
    %6048 = vmatprep.subr.mxu0 0.0
    %6049 = vmatpush1.xpose.msra.mxu0 0.0
    %6050 = vmatprep.subr.mxu0 0.0
    %6051 = vmatpush1.xpose.msra.mxu0 0.0
    %6052 = vmatprep.subr.mxu0 0.0
    %6053 = vmatpush1.xpose.msra.mxu0 0.0
    %6054 = vmatprep.subr.mxu0 0.0
    %6055 = vmatpush1.xpose.msra.mxu0 0.0
    %6056 = vmatprep.subr.mxu0 0.0
    %6057 = vmatpush1.xpose.msra.mxu0 0.0
    %6058 = vmatprep.subr.mxu0 0.0
    %6059 = vmatpush1.xpose.msra.mxu0 0.0
    %6060 = vmatprep.subr.mxu0 0.0
    %6061 = vmatpush1.xpose.msra.mxu0 0.0
    %6062 = vmatprep.subr.mxu0 0.0
    %6063 = vmatpush1.xpose.msra.mxu0 0.0
    %6064 = vmatprep.mubr.f32.mxu0 0.0
    %6065 = vmatmul.mubr.f32.gmra.mrb[0].mxu0 %v5998
    %v6066 = vpop.f32.mrb[0].mxu0
    %v6067 = vadd.f32 0.0, %v6066
    %v6068 = vpop.f32.mrb[0].mxu0
    %6069 = vdwg.mxu0
    %6070 = vrot.lane.b32.xlu0 %v5355, 112
    %v6071 = vpop.permute.xlu0 %6070
    %v6072 = vsel %vm373, %v6071, 0
    %6074 = vmatprep.subr.mxu0 0.0
    %6075 = vmatpush1.xpose.msra.mxu0 %v2721
    %6076 = vmatprep.subr.mxu0 0.0
    %6077 = vmatpush1.xpose.msra.mxu0 0.0
    %6078 = vmatprep.subr.mxu0 0.0
    %6079 = vmatpush1.xpose.msra.mxu0 0.0
    %6080 = vmatprep.subr.mxu0 0.0
    %6081 = vmatpush1.xpose.msra.mxu0 0.0
    %6082 = vmatprep.subr.mxu0 0.0
    %6083 = vmatpush1.xpose.msra.mxu0 0.0
    %6084 = vmatprep.subr.mxu0 0.0
    %6085 = vmatpush1.xpose.msra.mxu0 0.0
    %6086 = vmatprep.subr.mxu0 0.0
    %6087 = vmatpush1.xpose.msra.mxu0 0.0
    %6088 = vmatprep.subr.mxu0 0.0
    %6089 = vmatpush1.xpose.msra.mxu0 0.0
    %6090 = vmatprep.subr.mxu0 0.0
    %6091 = vmatpush1.xpose.msra.mxu0 0.0
    %6092 = vmatprep.subr.mxu0 0.0
    %6093 = vmatpush1.xpose.msra.mxu0 0.0
    %6094 = vmatprep.subr.mxu0 0.0
    %6095 = vmatpush1.xpose.msra.mxu0 0.0
    %6096 = vmatprep.subr.mxu0 0.0
    %6097 = vmatpush1.xpose.msra.mxu0 0.0
    %6098 = vmatprep.subr.mxu0 0.0
    %6099 = vmatpush1.xpose.msra.mxu0 0.0
    %6100 = vmatprep.subr.mxu0 0.0
    %6101 = vmatpush1.xpose.msra.mxu0 0.0
    %6102 = vmatprep.subr.mxu0 0.0
    %6103 = vmatpush1.xpose.msra.mxu0 0.0
    %6104 = vmatprep.subr.mxu0 0.0
    %6105 = vmatpush1.xpose.msra.mxu0 0.0
    %6106 = vmatprep.subr.mxu0 0.0
    %6107 = vmatpush1.xpose.msra.mxu0 0.0
    %6108 = vmatprep.subr.mxu0 0.0
    %6109 = vmatpush1.xpose.msra.mxu0 0.0
    %6110 = vmatprep.subr.mxu0 0.0
    %6111 = vmatpush1.xpose.msra.mxu0 0.0
    %6112 = vmatprep.subr.mxu0 0.0
    %6113 = vmatpush1.xpose.msra.mxu0 0.0
    %6114 = vmatprep.subr.mxu0 0.0
    %6115 = vmatpush1.xpose.msra.mxu0 0.0
    %6116 = vmatprep.subr.mxu0 0.0
    %6117 = vmatpush1.xpose.msra.mxu0 0.0
    %6118 = vmatprep.subr.mxu0 0.0
    %6119 = vmatpush1.xpose.msra.mxu0 0.0
    %6120 = vmatprep.subr.mxu0 0.0
    %6121 = vmatpush1.xpose.msra.mxu0 0.0
    %6122 = vmatprep.subr.mxu0 0.0
    %6123 = vmatpush1.xpose.msra.mxu0 0.0
    %6124 = vmatprep.subr.mxu0 0.0
    %6125 = vmatpush1.xpose.msra.mxu0 0.0
    %6126 = vmatprep.subr.mxu0 0.0
    %6127 = vmatpush1.xpose.msra.mxu0 0.0
    %6128 = vmatprep.subr.mxu0 0.0
    %6129 = vmatpush1.xpose.msra.mxu0 0.0
    %6130 = vmatprep.subr.mxu0 0.0
    %6131 = vmatpush1.xpose.msra.mxu0 0.0
    %6132 = vmatprep.subr.mxu0 0.0
    %6133 = vmatpush1.xpose.msra.mxu0 0.0
    %6134 = vmatprep.subr.mxu0 0.0
    %6135 = vmatpush1.xpose.msra.mxu0 0.0
    %6136 = vmatprep.subr.mxu0 0.0
    %6137 = vmatpush1.xpose.msra.mxu0 0.0
    %6138 = vmatprep.mubr.f32.mxu0 0.0
    %6139 = vmatmul.mubr.f32.gmra.mrb[0].mxu0 %v6072
    %v6140 = vpop.f32.mrb[0].mxu0
    %v6141 = vadd.f32 0.0, %v6140
    %v6142 = vpop.f32.mrb[0].mxu0
    %6143 = vdwg.mxu0
    %v6144 = vmul.f32 %v6067, 0.35355338
    %v6145 = vmul.f32 %v6141, 0.35355338
    %v6146 = vsel %vm2125, -1e+09, %v6144
    %v6147 = vsel %vm2126, -1e+09, %v6145
    %v6148 = vsel %vm373, %v6146, -inf
    %6149 = vmax.xlane.f32.xlu0 %v6148
    %v6150 = vpop.xlane.xlu0 %6149
    %v6151 = vsel %vm373, %v6147, -inf
    %6152 = vmax.xlane.f32.xlu0 %v6151
    %v6153 = vpop.xlane.xlu0 %6152
    %v6154 = vsub.f32 %v6146, %v6150
    %v6155 = vsub.f32 %v6147, %v6153
    %v6156 = vmul.f32 %v6154, 1.442695
    %v6157 = vpow.pop %v6156
    %v6158 = vmul.f32 %v6155, 1.442695
    %v6159 = vpow.pop %v6158
    %v6160 = vsel %vm373, %v6157, 0.0
    %6161 = vadd.xlane.f32.xlu0 %v6160
    %v6162 = vpop.xlane.xlu0 %6161
    %v6163 = vsel %vm373, %v6159, 0.0
    %6164 = vadd.xlane.f32.xlu0 %v6163
    %v6165 = vpop.xlane.xlu0 %6164
    %v6166 = vrcp.pop %v6162
    %v6167 = vmul.f32 %v6157, %v6166
    %v6168 = vrcp.pop %v6165
    %v6169 = vmul.f32 %v6159, %v6168
    %v6171 = vsel %vm373, %v6167, 0
    %6173 = vmatprep.subr.mxu0 0.0
    %6174 = vmatpush1.msra.mxu0 %v2820
    %6175 = vmatprep.subr.mxu0 0.0
    %6176 = vmatpush1.msra.mxu0 0.0
    %6177 = vmatprep.subr.mxu0 0.0
    %6178 = vmatpush1.msra.mxu0 0.0
    %6179 = vmatprep.subr.mxu0 0.0
    %6180 = vmatpush1.msra.mxu0 0.0
    %6181 = vmatprep.subr.mxu0 0.0
    %6182 = vmatpush1.msra.mxu0 0.0
    %6183 = vmatprep.subr.mxu0 0.0
    %6184 = vmatpush1.msra.mxu0 0.0
    %6185 = vmatprep.subr.mxu0 0.0
    %6186 = vmatpush1.msra.mxu0 0.0
    %6187 = vmatprep.subr.mxu0 0.0
    %6188 = vmatpush1.msra.mxu0 0.0
    %6189 = vmatprep.subr.mxu0 0.0
    %6190 = vmatpush1.msra.mxu0 0.0
    %6191 = vmatprep.subr.mxu0 0.0
    %6192 = vmatpush1.msra.mxu0 0.0
    %6193 = vmatprep.subr.mxu0 0.0
    %6194 = vmatpush1.msra.mxu0 0.0
    %6195 = vmatprep.subr.mxu0 0.0
    %6196 = vmatpush1.msra.mxu0 0.0
    %6197 = vmatprep.subr.mxu0 0.0
    %6198 = vmatpush1.msra.mxu0 0.0
    %6199 = vmatprep.subr.mxu0 0.0
    %6200 = vmatpush1.msra.mxu0 0.0
    %6201 = vmatprep.subr.mxu0 0.0
    %6202 = vmatpush1.msra.mxu0 0.0
    %6203 = vmatprep.subr.mxu0 0.0
    %6204 = vmatpush1.msra.mxu0 0.0
    %6205 = vmatprep.subr.mxu0 0.0
    %6206 = vmatpush1.msra.mxu0 0.0
    %6207 = vmatprep.subr.mxu0 0.0
    %6208 = vmatpush1.msra.mxu0 0.0
    %6209 = vmatprep.subr.mxu0 0.0
    %6210 = vmatpush1.msra.mxu0 0.0
    %6211 = vmatprep.subr.mxu0 0.0
    %6212 = vmatpush1.msra.mxu0 0.0
    %6213 = vmatprep.subr.mxu0 0.0
    %6214 = vmatpush1.msra.mxu0 0.0
    %6215 = vmatprep.subr.mxu0 0.0
    %6216 = vmatpush1.msra.mxu0 0.0
    %6217 = vmatprep.subr.mxu0 0.0
    %6218 = vmatpush1.msra.mxu0 0.0
    %6219 = vmatprep.subr.mxu0 0.0
    %6220 = vmatpush1.msra.mxu0 0.0
    %6221 = vmatprep.subr.mxu0 0.0
    %6222 = vmatpush1.msra.mxu0 0.0
    %6223 = vmatprep.subr.mxu0 0.0
    %6224 = vmatpush1.msra.mxu0 0.0
    %6225 = vmatprep.subr.mxu0 0.0
    %6226 = vmatpush1.msra.mxu0 0.0
    %6227 = vmatprep.subr.mxu0 0.0
    %6228 = vmatpush1.msra.mxu0 0.0
    %6229 = vmatprep.subr.mxu0 0.0
    %6230 = vmatpush1.msra.mxu0 0.0
    %6231 = vmatprep.subr.mxu0 0.0
    %6232 = vmatpush1.msra.mxu0 0.0
    %6233 = vmatprep.subr.mxu0 0.0
    %6234 = vmatpush1.msra.mxu0 0.0
    %6235 = vmatprep.subr.mxu0 0.0
    %6236 = vmatpush1.msra.mxu0 0.0
    %6237 = vmatprep.mubr.f32.mxu0 0.0
    %6238 = vmatmul.mubr.f32.gmra.mrb[0].mxu0 %v6171
    %v6239 = vpop.f32.mrb[0].mxu0
    %v6240 = vadd.f32 0.0, %v6239
    %v6241 = vpop.f32.mrb[0].mxu0
    %6242 = vdwg.mxu0
    %v6244 = vsel %vm373, %v6169, 0
    %6246 = vmatprep.subr.mxu0 0.0
    %6247 = vmatpush1.msra.mxu0 %v2896
    %6248 = vmatprep.subr.mxu0 0.0
    %6249 = vmatpush1.msra.mxu0 0.0
    %6250 = vmatprep.subr.mxu0 0.0
    %6251 = vmatpush1.msra.mxu0 0.0
    %6252 = vmatprep.subr.mxu0 0.0
    %6253 = vmatpush1.msra.mxu0 0.0
    %6254 = vmatprep.subr.mxu0 0.0
    %6255 = vmatpush1.msra.mxu0 0.0
    %6256 = vmatprep.subr.mxu0 0.0
    %6257 = vmatpush1.msra.mxu0 0.0
    %6258 = vmatprep.subr.mxu0 0.0
    %6259 = vmatpush1.msra.mxu0 0.0
    %6260 = vmatprep.subr.mxu0 0.0
    %6261 = vmatpush1.msra.mxu0 0.0
    %6262 = vmatprep.subr.mxu0 0.0
    %6263 = vmatpush1.msra.mxu0 0.0
    %6264 = vmatprep.subr.mxu0 0.0
    %6265 = vmatpush1.msra.mxu0 0.0
    %6266 = vmatprep.subr.mxu0 0.0
    %6267 = vmatpush1.msra.mxu0 0.0
    %6268 = vmatprep.subr.mxu0 0.0
    %6269 = vmatpush1.msra.mxu0 0.0
    %6270 = vmatprep.subr.mxu0 0.0
    %6271 = vmatpush1.msra.mxu0 0.0
    %6272 = vmatprep.subr.mxu0 0.0
    %6273 = vmatpush1.msra.mxu0 0.0
    %6274 = vmatprep.subr.mxu0 0.0
    %6275 = vmatpush1.msra.mxu0 0.0
    %6276 = vmatprep.subr.mxu0 0.0
    %6277 = vmatpush1.msra.mxu0 0.0
    %6278 = vmatprep.subr.mxu0 0.0
    %6279 = vmatpush1.msra.mxu0 0.0
    %6280 = vmatprep.subr.mxu0 0.0
    %6281 = vmatpush1.msra.mxu0 0.0
    %6282 = vmatprep.subr.mxu0 0.0
    %6283 = vmatpush1.msra.mxu0 0.0
    %6284 = vmatprep.subr.mxu0 0.0
    %6285 = vmatpush1.msra.mxu0 0.0
    %6286 = vmatprep.subr.mxu0 0.0
    %6287 = vmatpush1.msra.mxu0 0.0
    %6288 = vmatprep.subr.mxu0 0.0
    %6289 = vmatpush1.msra.mxu0 0.0
    %6290 = vmatprep.subr.mxu0 0.0
    %6291 = vmatpush1.msra.mxu0 0.0
    %6292 = vmatprep.subr.mxu0 0.0
    %6293 = vmatpush1.msra.mxu0 0.0
    %6294 = vmatprep.subr.mxu0 0.0
    %6295 = vmatpush1.msra.mxu0 0.0
    %6296 = vmatprep.subr.mxu0 0.0
    %6297 = vmatpush1.msra.mxu0 0.0
    %6298 = vmatprep.subr.mxu0 0.0
    %6299 = vmatpush1.msra.mxu0 0.0
    %6300 = vmatprep.subr.mxu0 0.0
    %6301 = vmatpush1.msra.mxu0 0.0
    %6302 = vmatprep.subr.mxu0 0.0
    %6303 = vmatpush1.msra.mxu0 0.0
    %6304 = vmatprep.subr.mxu0 0.0
    %6305 = vmatpush1.msra.mxu0 0.0
    %6306 = vmatprep.subr.mxu0 0.0
    %6307 = vmatpush1.msra.mxu0 0.0
    %6308 = vmatprep.subr.mxu0 0.0
    %6309 = vmatpush1.msra.mxu0 0.0
    %6310 = vmatprep.mubr.f32.mxu0 0.0
    %6311 = vmatmul.mubr.f32.gmra.mrb[0].mxu0 %v6244
    %v6312 = vpop.f32.mrb[0].mxu0
    %v6313 = vadd.f32 0.0, %v6312
    %v6314 = vpop.f32.mrb[0].mxu0
    %6315 = vdwg.mxu0
    %6316 = vrot.lane.b32.xlu0 %v5350, 104
    %v6317 = vpop.permute.xlu0 %6316
    %v6318 = vsel %vm373, %v6317, 0
    %6320 = vmatprep.subr.mxu0 0.0
    %6321 = vmatpush1.xpose.msra.mxu0 %v2977
    %6322 = vmatprep.subr.mxu0 0.0
    %6323 = vmatpush1.xpose.msra.mxu0 0.0
    %6324 = vmatprep.subr.mxu0 0.0
    %6325 = vmatpush1.xpose.msra.mxu0 0.0
    %6326 = vmatprep.subr.mxu0 0.0
    %6327 = vmatpush1.xpose.msra.mxu0 0.0
    %6328 = vmatprep.subr.mxu0 0.0
    %6329 = vmatpush1.xpose.msra.mxu0 0.0
    %6330 = vmatprep.subr.mxu0 0.0
    %6331 = vmatpush1.xpose.msra.mxu0 0.0
    %6332 = vmatprep.subr.mxu0 0.0
    %6333 = vmatpush1.xpose.msra.mxu0 0.0
    %6334 = vmatprep.subr.mxu0 0.0
    %6335 = vmatpush1.xpose.msra.mxu0 0.0
    %6336 = vmatprep.subr.mxu0 0.0
    %6337 = vmatpush1.xpose.msra.mxu0 0.0
    %6338 = vmatprep.subr.mxu0 0.0
    %6339 = vmatpush1.xpose.msra.mxu0 0.0
    %6340 = vmatprep.subr.mxu0 0.0
    %6341 = vmatpush1.xpose.msra.mxu0 0.0
    %6342 = vmatprep.subr.mxu0 0.0
    %6343 = vmatpush1.xpose.msra.mxu0 0.0
    %6344 = vmatprep.subr.mxu0 0.0
    %6345 = vmatpush1.xpose.msra.mxu0 0.0
    %6346 = vmatprep.subr.mxu0 0.0
    %6347 = vmatpush1.xpose.msra.mxu0 0.0
    %6348 = vmatprep.subr.mxu0 0.0
    %6349 = vmatpush1.xpose.msra.mxu0 0.0
    %6350 = vmatprep.subr.mxu0 0.0
    %6351 = vmatpush1.xpose.msra.mxu0 0.0
    %6352 = vmatprep.subr.mxu0 0.0
    %6353 = vmatpush1.xpose.msra.mxu0 0.0
    %6354 = vmatprep.subr.mxu0 0.0
    %6355 = vmatpush1.xpose.msra.mxu0 0.0
    %6356 = vmatprep.subr.mxu0 0.0
    %6357 = vmatpush1.xpose.msra.mxu0 0.0
    %6358 = vmatprep.subr.mxu0 0.0
    %6359 = vmatpush1.xpose.msra.mxu0 0.0
    %6360 = vmatprep.subr.mxu0 0.0
    %6361 = vmatpush1.xpose.msra.mxu0 0.0
    %6362 = vmatprep.subr.mxu0 0.0
    %6363 = vmatpush1.xpose.msra.mxu0 0.0
    %6364 = vmatprep.subr.mxu0 0.0
    %6365 = vmatpush1.xpose.msra.mxu0 0.0
    %6366 = vmatprep.subr.mxu0 0.0
    %6367 = vmatpush1.xpose.msra.mxu0 0.0
    %6368 = vmatprep.subr.mxu0 0.0
    %6369 = vmatpush1.xpose.msra.mxu0 0.0
    %6370 = vmatprep.subr.mxu0 0.0
    %6371 = vmatpush1.xpose.msra.mxu0 0.0
    %6372 = vmatprep.subr.mxu0 0.0
    %6373 = vmatpush1.xpose.msra.mxu0 0.0
    %6374 = vmatprep.subr.mxu0 0.0
    %6375 = vmatpush1.xpose.msra.mxu0 0.0
    %6376 = vmatprep.subr.mxu0 0.0
    %6377 = vmatpush1.xpose.msra.mxu0 0.0
    %6378 = vmatprep.subr.mxu0 0.0
    %6379 = vmatpush1.xpose.msra.mxu0 0.0
    %6380 = vmatprep.subr.mxu0 0.0
    %6381 = vmatpush1.xpose.msra.mxu0 0.0
    %6382 = vmatprep.subr.mxu0 0.0
    %6383 = vmatpush1.xpose.msra.mxu0 0.0
    %6384 = vmatprep.mubr.f32.mxu0 0.0
    %6385 = vmatmul.mubr.f32.gmra.mrb[0].mxu0 %v6318
    %v6386 = vpop.f32.mrb[0].mxu0
    %v6387 = vadd.f32 0.0, %v6386
    %v6388 = vpop.f32.mrb[0].mxu0
    %6389 = vdwg.mxu0
    %6390 = vrot.lane.b32.xlu0 %v5355, 104
    %v6391 = vpop.permute.xlu0 %6390
    %v6392 = vsel %vm373, %v6391, 0
    %6394 = vmatprep.subr.mxu0 0.0
    %6395 = vmatpush1.xpose.msra.mxu0 %v3055
    %6396 = vmatprep.subr.mxu0 0.0
    %6397 = vmatpush1.xpose.msra.mxu0 0.0
    %6398 = vmatprep.subr.mxu0 0.0
    %6399 = vmatpush1.xpose.msra.mxu0 0.0
    %6400 = vmatprep.subr.mxu0 0.0
    %6401 = vmatpush1.xpose.msra.mxu0 0.0
    %6402 = vmatprep.subr.mxu0 0.0
    %6403 = vmatpush1.xpose.msra.mxu0 0.0
    %6404 = vmatprep.subr.mxu0 0.0
    %6405 = vmatpush1.xpose.msra.mxu0 0.0
    %6406 = vmatprep.subr.mxu0 0.0
    %6407 = vmatpush1.xpose.msra.mxu0 0.0
    %6408 = vmatprep.subr.mxu0 0.0
    %6409 = vmatpush1.xpose.msra.mxu0 0.0
    %6410 = vmatprep.subr.mxu0 0.0
    %6411 = vmatpush1.xpose.msra.mxu0 0.0
    %6412 = vmatprep.subr.mxu0 0.0
    %6413 = vmatpush1.xpose.msra.mxu0 0.0
    %6414 = vmatprep.subr.mxu0 0.0
    %6415 = vmatpush1.xpose.msra.mxu0 0.0
    %6416 = vmatprep.subr.mxu0 0.0
    %6417 = vmatpush1.xpose.msra.mxu0 0.0
    %6418 = vmatprep.subr.mxu0 0.0
    %6419 = vmatpush1.xpose.msra.mxu0 0.0
    %6420 = vmatprep.subr.mxu0 0.0
    %6421 = vmatpush1.xpose.msra.mxu0 0.0
    %6422 = vmatprep.subr.mxu0 0.0
    %6423 = vmatpush1.xpose.msra.mxu0 0.0
    %6424 = vmatprep.subr.mxu0 0.0
    %6425 = vmatpush1.xpose.msra.mxu0 0.0
    %6426 = vmatprep.subr.mxu0 0.0
    %6427 = vmatpush1.xpose.msra.mxu0 0.0
    %6428 = vmatprep.subr.mxu0 0.0
    %6429 = vmatpush1.xpose.msra.mxu0 0.0
    %6430 = vmatprep.subr.mxu0 0.0
    %6431 = vmatpush1.xpose.msra.mxu0 0.0
    %6432 = vmatprep.subr.mxu0 0.0
    %6433 = vmatpush1.xpose.msra.mxu0 0.0
    %6434 = vmatprep.subr.mxu0 0.0
    %6435 = vmatpush1.xpose.msra.mxu0 0.0
    %6436 = vmatprep.subr.mxu0 0.0
    %6437 = vmatpush1.xpose.msra.mxu0 0.0
    %6438 = vmatprep.subr.mxu0 0.0
    %6439 = vmatpush1.xpose.msra.mxu0 0.0
    %6440 = vmatprep.subr.mxu0 0.0
    %6441 = vmatpush1.xpose.msra.mxu0 0.0
    %6442 = vmatprep.subr.mxu0 0.0
    %6443 = vmatpush1.xpose.msra.mxu0 0.0
    %6444 = vmatprep.subr.mxu0 0.0
    %6445 = vmatpush1.xpose.msra.mxu0 0.0
    %6446 = vmatprep.subr.mxu0 0.0
    %6447 = vmatpush1.xpose.msra.mxu0 0.0
    %6448 = vmatprep.subr.mxu0 0.0
    %6449 = vmatpush1.xpose.msra.mxu0 0.0
    %6450 = vmatprep.subr.mxu0 0.0
    %6451 = vmatpush1.xpose.msra.mxu0 0.0
    %6452 = vmatprep.subr.mxu0 0.0
    %6453 = vmatpush1.xpose.msra.mxu0 0.0
    %6454 = vmatprep.subr.mxu0 0.0
    %6455 = vmatpush1.xpose.msra.mxu0 0.0
    %6456 = vmatprep.subr.mxu0 0.0
    %6457 = vmatpush1.xpose.msra.mxu0 0.0
    %6458 = vmatprep.mubr.f32.mxu0 0.0
    %6459 = vmatmul.mubr.f32.gmra.mrb[0].mxu0 %v6392
    %v6460 = vpop.f32.mrb[0].mxu0
    %v6461 = vadd.f32 0.0, %v6460
    %v6462 = vpop.f32.mrb[0].mxu0
    %6463 = vdwg.mxu0
    %v6464 = vmul.f32 %v6387, 0.35355338
    %v6465 = vmul.f32 %v6461, 0.35355338
    %v6466 = vsel %vm2125, -1e+09, %v6464
    %v6467 = vsel %vm2126, -1e+09, %v6465
    %v6468 = vsel %vm373, %v6466, -inf
    %6469 = vmax.xlane.f32.xlu0 %v6468
    %v6470 = vpop.xlane.xlu0 %6469
    %v6471 = vsel %vm373, %v6467, -inf
    %6472 = vmax.xlane.f32.xlu0 %v6471
    %v6473 = vpop.xlane.xlu0 %6472
    %v6474 = vsub.f32 %v6466, %v6470
    %v6475 = vsub.f32 %v6467, %v6473
    %v6476 = vmul.f32 %v6474, 1.442695
    %v6477 = vpow.pop %v6476
    %v6478 = vmul.f32 %v6475, 1.442695
    %v6479 = vpow.pop %v6478
    %v6480 = vsel %vm373, %v6477, 0.0
    %6481 = vadd.xlane.f32.xlu0 %v6480
    %v6482 = vpop.xlane.xlu0 %6481
    %v6483 = vsel %vm373, %v6479, 0.0
    %6484 = vadd.xlane.f32.xlu0 %v6483
    %v6485 = vpop.xlane.xlu0 %6484
    %v6486 = vrcp.pop %v6482
    %v6487 = vmul.f32 %v6477, %v6486
    %v6488 = vrcp.pop %v6485
    %v6489 = vmul.f32 %v6479, %v6488
    %v6491 = vsel %vm373, %v6487, 0
    %6493 = vmatprep.subr.mxu0 0.0
    %6494 = vmatpush1.msra.mxu0 %v3154
    %6495 = vmatprep.subr.mxu0 0.0
    %6496 = vmatpush1.msra.mxu0 0.0
    %6497 = vmatprep.subr.mxu0 0.0
    %6498 = vmatpush1.msra.mxu0 0.0
    %6499 = vmatprep.subr.mxu0 0.0
    %6500 = vmatpush1.msra.mxu0 0.0
    %6501 = vmatprep.subr.mxu0 0.0
    %6502 = vmatpush1.msra.mxu0 0.0
    %6503 = vmatprep.subr.mxu0 0.0
    %6504 = vmatpush1.msra.mxu0 0.0
    %6505 = vmatprep.subr.mxu0 0.0
    %6506 = vmatpush1.msra.mxu0 0.0
    %6507 = vmatprep.subr.mxu0 0.0
    %6508 = vmatpush1.msra.mxu0 0.0
    %6509 = vmatprep.subr.mxu0 0.0
    %6510 = vmatpush1.msra.mxu0 0.0
    %6511 = vmatprep.subr.mxu0 0.0
    %6512 = vmatpush1.msra.mxu0 0.0
    %6513 = vmatprep.subr.mxu0 0.0
    %6514 = vmatpush1.msra.mxu0 0.0
    %6515 = vmatprep.subr.mxu0 0.0
    %6516 = vmatpush1.msra.mxu0 0.0
    %6517 = vmatprep.subr.mxu0 0.0
    %6518 = vmatpush1.msra.mxu0 0.0
    %6519 = vmatprep.subr.mxu0 0.0
    %6520 = vmatpush1.msra.mxu0 0.0
    %6521 = vmatprep.subr.mxu0 0.0
    %6522 = vmatpush1.msra.mxu0 0.0
    %6523 = vmatprep.subr.mxu0 0.0
    %6524 = vmatpush1.msra.mxu0 0.0
    %6525 = vmatprep.subr.mxu0 0.0
    %6526 = vmatpush1.msra.mxu0 0.0
    %6527 = vmatprep.subr.mxu0 0.0
    %6528 = vmatpush1.msra.mxu0 0.0
    %6529 = vmatprep.subr.mxu0 0.0
    %6530 = vmatpush1.msra.mxu0 0.0
    %6531 = vmatprep.subr.mxu0 0.0
    %6532 = vmatpush1.msra.mxu0 0.0
    %6533 = vmatprep.subr.mxu0 0.0
    %6534 = vmatpush1.msra.mxu0 0.0
    %6535 = vmatprep.subr.mxu0 0.0
    %6536 = vmatpush1.msra.mxu0 0.0
    %6537 = vmatprep.subr.mxu0 0.0
    %6538 = vmatpush1.msra.mxu0 0.0
    %6539 = vmatprep.subr.mxu0 0.0
    %6540 = vmatpush1.msra.mxu0 0.0
    %6541 = vmatprep.subr.mxu0 0.0
    %6542 = vmatpush1.msra.mxu0 0.0
    %6543 = vmatprep.subr.mxu0 0.0
    %6544 = vmatpush1.msra.mxu0 0.0
    %6545 = vmatprep.subr.mxu0 0.0
    %6546 = vmatpush1.msra.mxu0 0.0
    %6547 = vmatprep.subr.mxu0 0.0
    %6548 = vmatpush1.msra.mxu0 0.0
    %6549 = vmatprep.subr.mxu0 0.0
    %6550 = vmatpush1.msra.mxu0 0.0
    %6551 = vmatprep.subr.mxu0 0.0
    %6552 = vmatpush1.msra.mxu0 0.0
    %6553 = vmatprep.subr.mxu0 0.0
    %6554 = vmatpush1.msra.mxu0 0.0
    %6555 = vmatprep.subr.mxu0 0.0
    %6556 = vmatpush1.msra.mxu0 0.0
    %6557 = vmatprep.mubr.f32.mxu0 0.0
    %6558 = vmatmul.mubr.f32.gmra.mrb[0].mxu0 %v6491
    %v6559 = vpop.f32.mrb[0].mxu0
    %v6560 = vadd.f32 0.0, %v6559
    %v6561 = vpop.f32.mrb[0].mxu0
    %6562 = vdwg.mxu0
    %v6564 = vsel %vm373, %v6489, 0
    %6566 = vmatprep.subr.mxu0 0.0
    %6567 = vmatpush1.msra.mxu0 %v3230
    %6568 = vmatprep.subr.mxu0 0.0
    %6569 = vmatpush1.msra.mxu0 0.0
    %6570 = vmatprep.subr.mxu0 0.0
    %6571 = vmatpush1.msra.mxu0 0.0
    %6572 = vmatprep.subr.mxu0 0.0
    %6573 = vmatpush1.msra.mxu0 0.0
    %6574 = vmatprep.subr.mxu0 0.0
    %6575 = vmatpush1.msra.mxu0 0.0
    %6576 = vmatprep.subr.mxu0 0.0
    %6577 = vmatpush1.msra.mxu0 0.0
    %6578 = vmatprep.subr.mxu0 0.0
    %6579 = vmatpush1.msra.mxu0 0.0
    %6580 = vmatprep.subr.mxu0 0.0
    %6581 = vmatpush1.msra.mxu0 0.0
    %6582 = vmatprep.subr.mxu0 0.0
    %6583 = vmatpush1.msra.mxu0 0.0
    %6584 = vmatprep.subr.mxu0 0.0
    %6585 = vmatpush1.msra.mxu0 0.0
    %6586 = vmatprep.subr.mxu0 0.0
    %6587 = vmatpush1.msra.mxu0 0.0
    %6588 = vmatprep.subr.mxu0 0.0
    %6589 = vmatpush1.msra.mxu0 0.0
    %6590 = vmatprep.subr.mxu0 0.0
    %6591 = vmatpush1.msra.mxu0 0.0
    %6592 = vmatprep.subr.mxu0 0.0
    %6593 = vmatpush1.msra.mxu0 0.0
    %6594 = vmatprep.subr.mxu0 0.0
    %6595 = vmatpush1.msra.mxu0 0.0
    %6596 = vmatprep.subr.mxu0 0.0
    %6597 = vmatpush1.msra.mxu0 0.0
    %6598 = vmatprep.subr.mxu0 0.0
    %6599 = vmatpush1.msra.mxu0 0.0
    %6600 = vmatprep.subr.mxu0 0.0
    %6601 = vmatpush1.msra.mxu0 0.0
    %6602 = vmatprep.subr.mxu0 0.0
    %6603 = vmatpush1.msra.mxu0 0.0
    %6604 = vmatprep.subr.mxu0 0.0
    %6605 = vmatpush1.msra.mxu0 0.0
    %6606 = vmatprep.subr.mxu0 0.0
    %6607 = vmatpush1.msra.mxu0 0.0
    %6608 = vmatprep.subr.mxu0 0.0
    %6609 = vmatpush1.msra.mxu0 0.0
    %6610 = vmatprep.subr.mxu0 0.0
    %6611 = vmatpush1.msra.mxu0 0.0
    %6612 = vmatprep.subr.mxu0 0.0
    %6613 = vmatpush1.msra.mxu0 0.0
    %6614 = vmatprep.subr.mxu0 0.0
    %6615 = vmatpush1.msra.mxu0 0.0
    %6616 = vmatprep.subr.mxu0 0.0
    %6617 = vmatpush1.msra.mxu0 0.0
    %6618 = vmatprep.subr.mxu0 0.0
    %6619 = vmatpush1.msra.mxu0 0.0
    %6620 = vmatprep.subr.mxu0 0.0
    %6621 = vmatpush1.msra.mxu0 0.0
    %6622 = vmatprep.subr.mxu0 0.0
    %6623 = vmatpush1.msra.mxu0 0.0
    %6624 = vmatprep.subr.mxu0 0.0
    %6625 = vmatpush1.msra.mxu0 0.0
    %6626 = vmatprep.subr.mxu0 0.0
    %6627 = vmatpush1.msra.mxu0 0.0
    %6628 = vmatprep.subr.mxu0 0.0
    %6629 = vmatpush1.msra.mxu0 0.0
    %6630 = vmatprep.mubr.f32.mxu0 0.0
    %6631 = vmatmul.mubr.f32.gmra.mrb[0].mxu0 %v6564
    %v6632 = vpop.f32.mrb[0].mxu0
    %v6633 = vadd.f32 0.0, %v6632
    %v6634 = vpop.f32.mrb[0].mxu0
    %6635 = vdwg.mxu0
    %6638 = vrot.lane.b32.xlu0 %v5920, 8
    %v6639 = vpop.permute.xlu0 %6638
    %6640 = vrot.lane.b32.xlu0 %v5993, 8
    %v6641 = vpop.permute.xlu0 %6640
    %6646 = vrot.lane.b32.xlu0 %v6240, 16
    %v6647 = vpop.permute.xlu0 %6646
    %6648 = vrot.lane.b32.xlu0 %v6313, 16
    %v6649 = vpop.permute.xlu0 %6648
    %6654 = vrot.lane.b32.xlu0 %v6560, 24
    %v6655 = vpop.permute.xlu0 %6654
    %6656 = vrot.lane.b32.xlu0 %v6633, 24
    %v6657 = vpop.permute.xlu0 %6656
    %v6660 = vsel %vm373, %v5600, %v6639
    %v6661 = vsel %vm373, %v5673, %v6641
    %v6662 = vsel %vm1733, %v6660, %v6647
    %v6663 = vsel %vm1733, %v6661, %v6649
    %v6664 = vsel %vm1736, %v6662, %v6655
    %v6665 = vsel %vm1736, %v6663, %v6657
    %v6667 = vsel %vm141, %v6664, 0
    %v6670 = vsel %vm141, %v6665, 0
    %6672 = vmatprep.subr.mxu0 0.0
    %6673 = vmatpush1.msra.mxu0 %v103
    %6674 = vmatprep.subr.mxu0 0.0
    %6675 = vmatpush1.msra.mxu0 %v104
    %6676 = vmatprep.subr.mxu0 0.0
    %6677 = vmatpush1.msra.mxu0 %v105
    %6678 = vmatprep.subr.mxu0 0.0
    %6679 = vmatpush1.msra.mxu0 %v106
    %6680 = vmatprep.subr.mxu0 0.0
    %6681 = vmatpush1.msra.mxu0 0.0
    %6682 = vmatprep.subr.mxu0 0.0
    %6683 = vmatpush1.msra.mxu0 0.0
    %6684 = vmatprep.subr.mxu0 0.0
    %6685 = vmatpush1.msra.mxu0 0.0
    %6686 = vmatprep.subr.mxu0 0.0
    %6687 = vmatpush1.msra.mxu0 0.0
    %6688 = vmatprep.subr.mxu0 0.0
    %6689 = vmatpush1.msra.mxu0 0.0
    %6690 = vmatprep.subr.mxu0 0.0
    %6691 = vmatpush1.msra.mxu0 0.0
    %6692 = vmatprep.subr.mxu0 0.0
    %6693 = vmatpush1.msra.mxu0 0.0
    %6694 = vmatprep.subr.mxu0 0.0
    %6695 = vmatpush1.msra.mxu0 0.0
    %6696 = vmatprep.subr.mxu0 0.0
    %6697 = vmatpush1.msra.mxu0 0.0
    %6698 = vmatprep.subr.mxu0 0.0
    %6699 = vmatpush1.msra.mxu0 0.0
    %6700 = vmatprep.subr.mxu0 0.0
    %6701 = vmatpush1.msra.mxu0 0.0
    %6702 = vmatprep.subr.mxu0 0.0
    %6703 = vmatpush1.msra.mxu0 0.0
    %6704 = vmatprep.subr.mxu0 0.0
    %6705 = vmatpush1.msra.mxu0 0.0
    %6706 = vmatprep.subr.mxu0 0.0
    %6707 = vmatpush1.msra.mxu0 0.0
    %6708 = vmatprep.subr.mxu0 0.0
    %6709 = vmatpush1.msra.mxu0 0.0
    %6710 = vmatprep.subr.mxu0 0.0
    %6711 = vmatpush1.msra.mxu0 0.0
    %6712 = vmatprep.subr.mxu0 0.0
    %6713 = vmatpush1.msra.mxu0 0.0
    %6714 = vmatprep.subr.mxu0 0.0
    %6715 = vmatpush1.msra.mxu0 0.0
    %6716 = vmatprep.subr.mxu0 0.0
    %6717 = vmatpush1.msra.mxu0 0.0
    %6718 = vmatprep.subr.mxu0 0.0
    %6719 = vmatpush1.msra.mxu0 0.0
    %6720 = vmatprep.subr.mxu0 0.0
    %6721 = vmatpush1.msra.mxu0 0.0
    %6722 = vmatprep.subr.mxu0 0.0
    %6723 = vmatpush1.msra.mxu0 0.0
    %6724 = vmatprep.subr.mxu0 0.0
    %6725 = vmatpush1.msra.mxu0 0.0
    %6726 = vmatprep.subr.mxu0 0.0
    %6727 = vmatpush1.msra.mxu0 0.0
    %6728 = vmatprep.subr.mxu0 0.0
    %6729 = vmatpush1.msra.mxu0 0.0
    %6730 = vmatprep.subr.mxu0 0.0
    %6731 = vmatpush1.msra.mxu0 0.0
    %6732 = vmatprep.subr.mxu0 0.0
    %6733 = vmatpush1.msra.mxu0 0.0
    %6734 = vmatprep.subr.mxu0 0.0
    %6735 = vmatpush1.msra.mxu0 0.0
    %6736 = vmatprep.mubr.f32.mxu0 0.0
    %6737 = vmatmul.mubr.f32.gmra.mrb[0].mxu0 %v6667
    %v6738 = vpop.f32.mrb[0].mxu0
    %v6739 = vadd.f32 %v3339, %v6738
    %v6740 = vpop.f32.mrb[0].mxu0
    %6741 = vmatprep.mubr.f32.mxu0 0.0
    %6742 = vmatmul.mubr.f32.gmra.mrb[0].mxu0 %v6670
    %v6743 = vpop.f32.mrb[0].mxu0
    %v6744 = vadd.f32 %v3339, %v6743
    %v6745 = vpop.f32.mrb[0].mxu0
    %6746 = vdwg.mxu0
    %v6747 = vadd.f32 %v5231, %v6739
    %v6748 = vadd.f32 %v5232, %v6744
    %v6749 = vsel %vm141, %v6747, 0.0
    %6750 = vadd.xlane.f32.xlu0 %v6749
    %v6751 = vpop.xlane.xlu0 %6750
    %v6752 = vsel %vm141, %v6748, 0.0
    %6753 = vadd.xlane.f32.xlu0 %v6752
    %v6754 = vpop.xlane.xlu0 %6753
    %v6755 = vmul.f32 %v6751, %v231
    %v6756 = vmul.f32 %v6754, %v231
    %v6757 = vsub.f32 %v6747, %v6755
    %v6758 = vsub.f32 %v6748, %v6756
    %v6759 = vmul.f32 %v6757, %v6757
    %v6760 = vmul.f32 %v6758, %v6758
    %v6761 = vsel %vm141, %v6759, 0.0
    %6762 = vadd.xlane.f32.xlu0 %v6761
    %v6763 = vpop.xlane.xlu0 %6762
    %v6764 = vsel %vm141, %v6760, 0.0
    %6765 = vadd.xlane.f32.xlu0 %v6764
    %v6766 = vpop.xlane.xlu0 %6765
    %v6767 = vmul.f32 %v6763, %v244
    %v6768 = vmul.f32 %v6766, %v244
    %v6769 = vrsqrt.pop %v6767
    %v6770 = vmul.f32 %v6767, %v6769
    %vm6771 = vcmp.eq.f32.partialorder %v6767, inf
    %v6772 = vsel %vm6771, %v6767, %v6770
    %vm6773 = vcmp.eq.f32.partialorder %v6767, 0.0
    %v6774 = vand.u32 %v6767, 2147483648
    %v6775 = vsel %vm6773, %v6774, %v6772
    %v6776 = vrsqrt.pop %v6768
    %v6777 = vmul.f32 %v6768, %v6776
    %vm6778 = vcmp.eq.f32.partialorder %v6768, inf
    %v6779 = vsel %vm6778, %v6768, %v6777
    %vm6780 = vcmp.eq.f32.partialorder %v6768, 0.0
    %v6781 = vand.u32 %v6768, 2147483648
    %v6782 = vsel %vm6780, %v6781, %v6779
    %v6783 = vmul.f32 %v3462, %v6757
    %v6784 = vmul.f32 %v3462, %v6758
    %v6785 = vadd.f32 %v6775, 1e-06
    %v6786 = vadd.f32 %v6782, 1e-06
    %v6787 = vrcp.pop %v6785
    %v6788 = vmul.f32 %v6783, %v6787
    %v6789 = vrcp.pop %v6786
    %v6790 = vmul.f32 %v6784, %v6789
    %v6791 = vadd.f32 %v6788, %v3476
    %v6792 = vadd.f32 %v6790, %v3476
    %v6794 = vsel %vm141, %v6791, 0
    %v6797 = vsel %vm141, %v6792, 0
    %6799 = vmatprep.subr.mxu0 0.0
    %6800 = vmatpush1.msra.mxu0 %v108
    %6801 = vmatprep.subr.mxu0 0.0
    %6802 = vmatpush1.msra.mxu0 %v109
    %6803 = vmatprep.subr.mxu0 0.0
    %6804 = vmatpush1.msra.mxu0 %v110
    %6805 = vmatprep.subr.mxu0 0.0
    %6806 = vmatpush1.msra.mxu0 %v111
    %6807 = vmatprep.subr.mxu0 0.0
    %6808 = vmatpush1.msra.mxu0 0.0
    %6809 = vmatprep.subr.mxu0 0.0
    %6810 = vmatpush1.msra.mxu0 0.0
    %6811 = vmatprep.subr.mxu0 0.0
    %6812 = vmatpush1.msra.mxu0 0.0
    %6813 = vmatprep.subr.mxu0 0.0
    %6814 = vmatpush1.msra.mxu0 0.0
    %6815 = vmatprep.subr.mxu0 0.0
    %6816 = vmatpush1.msra.mxu0 0.0
    %6817 = vmatprep.subr.mxu0 0.0
    %6818 = vmatpush1.msra.mxu0 0.0
    %6819 = vmatprep.subr.mxu0 0.0
    %6820 = vmatpush1.msra.mxu0 0.0
    %6821 = vmatprep.subr.mxu0 0.0
    %6822 = vmatpush1.msra.mxu0 0.0
    %6823 = vmatprep.subr.mxu0 0.0
    %6824 = vmatpush1.msra.mxu0 0.0
    %6825 = vmatprep.subr.mxu0 0.0
    %6826 = vmatpush1.msra.mxu0 0.0
    %6827 = vmatprep.subr.mxu0 0.0
    %6828 = vmatpush1.msra.mxu0 0.0
    %6829 = vmatprep.subr.mxu0 0.0
    %6830 = vmatpush1.msra.mxu0 0.0
    %6831 = vmatprep.subr.mxu0 0.0
    %6832 = vmatpush1.msra.mxu0 0.0
    %6833 = vmatprep.subr.mxu0 0.0
    %6834 = vmatpush1.msra.mxu0 0.0
    %6835 = vmatprep.subr.mxu0 0.0
    %6836 = vmatpush1.msra.mxu0 0.0
    %6837 = vmatprep.subr.mxu0 0.0
    %6838 = vmatpush1.msra.mxu0 0.0
    %6839 = vmatprep.subr.mxu0 0.0
    %6840 = vmatpush1.msra.mxu0 0.0
    %6841 = vmatprep.subr.mxu0 0.0
    %6842 = vmatpush1.msra.mxu0 0.0
    %6843 = vmatprep.subr.mxu0 0.0
    %6844 = vmatpush1.msra.mxu0 0.0
    %6845 = vmatprep.subr.mxu0 0.0
    %6846 = vmatpush1.msra.mxu0 0.0
    %6847 = vmatprep.subr.mxu0 0.0
    %6848 = vmatpush1.msra.mxu0 0.0
    %6849 = vmatprep.subr.mxu0 0.0
    %6850 = vmatpush1.msra.mxu0 0.0
    %6851 = vmatprep.subr.mxu0 0.0
    %6852 = vmatpush1.msra.mxu0 0.0
    %6853 = vmatprep.subr.mxu0 0.0
    %6854 = vmatpush1.msra.mxu0 0.0
    %6855 = vmatprep.subr.mxu0 0.0
    %6856 = vmatpush1.msra.mxu0 0.0
    %6857 = vmatprep.subr.mxu0 0.0
    %6858 = vmatpush1.msra.mxu0 0.0
    %6859 = vmatprep.subr.mxu0 0.0
    %6860 = vmatpush1.msra.mxu0 0.0
    %6861 = vmatprep.subr.mxu0 0.0
    %6862 = vmatpush1.msra.mxu0 0.0
    %6863 = vmatprep.mubr.f32.mxu0 0.0
    %6864 = vmatmul.mubr.f32.gmra.mrb[0].mxu0 %v6794
    %v6865 = vpop.f32.mrb[0].mxu0
    %v6866 = vadd.f32 %v3484, %v6865
    %v6867 = vpop.f32.mrb[0].mxu0
    %6868 = vmatprep.mubr.f32.mxu0 0.0
    %6869 = vmatmul.mubr.f32.gmra.mrb[0].mxu0 %v6797
    %v6870 = vpop.f32.mrb[0].mxu0
    %v6871 = vadd.f32 %v3484, %v6870
    %v6872 = vpop.f32.mrb[0].mxu0
    %6873 = vdwg.mxu0
    %v6874 = vmax.f32 %v6866, 0.0
    %v6875 = vmax.f32 %v6871, 0.0
    %v6877 = vsel %vm3569, %v6874, 0
    %v6880 = vsel %vm3569, %v6875, 0
    %6882 = vmatprep.subr.mxu0 0.0
    %6883 = vmatpush1.msra.mxu0 %v113
    %6884 = vmatprep.subr.mxu0 0.0
    %6885 = vmatpush1.msra.mxu0 %v114
    %6886 = vmatprep.subr.mxu0 0.0
    %6887 = vmatpush1.msra.mxu0 %v115
    %6888 = vmatprep.subr.mxu0 0.0
    %6889 = vmatpush1.msra.mxu0 %v116
    %6890 = vmatprep.subr.mxu0 0.0
    %6891 = vmatpush1.msra.mxu0 %v117
    %6892 = vmatprep.subr.mxu0 0.0
    %6893 = vmatpush1.msra.mxu0 %v118
    %6894 = vmatprep.subr.mxu0 0.0
    %6895 = vmatpush1.msra.mxu0 %v119
    %6896 = vmatprep.subr.mxu0 0.0
    %6897 = vmatpush1.msra.mxu0 %v120
    %6898 = vmatprep.subr.mxu0 0.0
    %6899 = vmatpush1.msra.mxu0 0.0
    %6900 = vmatprep.subr.mxu0 0.0
    %6901 = vmatpush1.msra.mxu0 0.0
    %6902 = vmatprep.subr.mxu0 0.0
    %6903 = vmatpush1.msra.mxu0 0.0
    %6904 = vmatprep.subr.mxu0 0.0
    %6905 = vmatpush1.msra.mxu0 0.0
    %6906 = vmatprep.subr.mxu0 0.0
    %6907 = vmatpush1.msra.mxu0 0.0
    %6908 = vmatprep.subr.mxu0 0.0
    %6909 = vmatpush1.msra.mxu0 0.0
    %6910 = vmatprep.subr.mxu0 0.0
    %6911 = vmatpush1.msra.mxu0 0.0
    %6912 = vmatprep.subr.mxu0 0.0
    %6913 = vmatpush1.msra.mxu0 0.0
    %6914 = vmatprep.subr.mxu0 0.0
    %6915 = vmatpush1.msra.mxu0 0.0
    %6916 = vmatprep.subr.mxu0 0.0
    %6917 = vmatpush1.msra.mxu0 0.0
    %6918 = vmatprep.subr.mxu0 0.0
    %6919 = vmatpush1.msra.mxu0 0.0
    %6920 = vmatprep.subr.mxu0 0.0
    %6921 = vmatpush1.msra.mxu0 0.0
    %6922 = vmatprep.subr.mxu0 0.0
    %6923 = vmatpush1.msra.mxu0 0.0
    %6924 = vmatprep.subr.mxu0 0.0
    %6925 = vmatpush1.msra.mxu0 0.0
    %6926 = vmatprep.subr.mxu0 0.0
    %6927 = vmatpush1.msra.mxu0 0.0
    %6928 = vmatprep.subr.mxu0 0.0
    %6929 = vmatpush1.msra.mxu0 0.0
    %6930 = vmatprep.subr.mxu0 0.0
    %6931 = vmatpush1.msra.mxu0 0.0
    %6932 = vmatprep.subr.mxu0 0.0
    %6933 = vmatpush1.msra.mxu0 0.0
    %6934 = vmatprep.subr.mxu0 0.0
    %6935 = vmatpush1.msra.mxu0 0.0
    %6936 = vmatprep.subr.mxu0 0.0
    %6937 = vmatpush1.msra.mxu0 0.0
    %6938 = vmatprep.subr.mxu0 0.0
    %6939 = vmatpush1.msra.mxu0 0.0
    %6940 = vmatprep.subr.mxu0 0.0
    %6941 = vmatpush1.msra.mxu0 0.0
    %6942 = vmatprep.subr.mxu0 0.0
    %6943 = vmatpush1.msra.mxu0 0.0
    %6944 = vmatprep.subr.mxu0 0.0
    %6945 = vmatpush1.msra.mxu0 0.0
    %6946 = vmatprep.mubr.f32.mxu0 0.0
    %6947 = vmatmul.mubr.f32.gmra.mrb[0].mxu0 %v6877
    %v6948 = vpop.f32.mrb[0].mxu0
    %v6949 = vadd.f32 0.0, %v6948
    %v6950 = vpop.f32.mrb[0].mxu0
    %6951 = vmatprep.mubr.f32.mxu0 0.0
    %6952 = vmatmul.mubr.f32.gmra.mrb[0].mxu0 %v6880
    %v6953 = vpop.f32.mrb[0].mxu0
    %v6954 = vadd.f32 0.0, %v6953
    %v6955 = vpop.f32.mrb[0].mxu0
    %6956 = vdwg.mxu0
    %v6957 = vadd.f32 %v6747, %v6949
    %v6958 = vadd.f32 %v6748, %v6954
    %v6959 = vadd.f32 %v6957, %v3657
    %v6960 = vadd.f32 %v6958, %v3657
    %v6961 = vld [vmem:[%s24] sm:$0x1]
    %v6962 = vld [vmem:[%s25] sm:$0x1]
    %v6963 = vsel %vm141, %v6959, 0.0
    %6964 = vadd.xlane.f32.xlu0 %v6963
    %v6965 = vpop.xlane.xlu0 %6964
    %v6966 = vsel %vm141, %v6960, 0.0
    %6967 = vadd.xlane.f32.xlu0 %v6966
    %v6968 = vpop.xlane.xlu0 %6967
    %v6969 = vmul.f32 %v6965, %v231
    %v6970 = vmul.f32 %v6968, %v231
    %v6971 = vsub.f32 %v6959, %v6969
    %v6972 = vsub.f32 %v6960, %v6970
    %v6973 = vmul.f32 %v6971, %v6971
    %v6974 = vmul.f32 %v6972, %v6972
    %v6975 = vsel %vm141, %v6973, 0.0
    %6976 = vadd.xlane.f32.xlu0 %v6975
    %v6977 = vpop.xlane.xlu0 %6976
    %v6978 = vsel %vm141, %v6974, 0.0
    %6979 = vadd.xlane.f32.xlu0 %v6978
    %v6980 = vpop.xlane.xlu0 %6979
    %v6981 = vmul.f32 %v6977, %v244
    %v6982 = vmul.f32 %v6980, %v244
    %v6983 = vrsqrt.pop %v6981
    %v6984 = vmul.f32 %v6981, %v6983
    %vm6985 = vcmp.eq.f32.partialorder %v6981, inf
    %v6986 = vsel %vm6985, %v6981, %v6984
    %vm6987 = vcmp.eq.f32.partialorder %v6981, 0.0
    %v6988 = vand.u32 %v6981, 2147483648
    %v6989 = vsel %vm6987, %v6988, %v6986
    %v6990 = vrsqrt.pop %v6982
    %v6991 = vmul.f32 %v6982, %v6990
    %vm6992 = vcmp.eq.f32.partialorder %v6982, inf
    %v6993 = vsel %vm6992, %v6982, %v6991
    %vm6994 = vcmp.eq.f32.partialorder %v6982, 0.0
    %v6995 = vand.u32 %v6982, 2147483648
    %v6996 = vsel %vm6994, %v6995, %v6993
    %v6998 = vlaneseq
    %v6999 = vshrl.u32 %v6998, 7
    %v7000 = vsub.s32 0, %v6999
    %v7001 = vrot.slane %v6961, %v7000
    %v7003 = vmul.f32 %v7001, %v6971
    %v7004 = vmul.f32 %v7001, %v6972
    %v7005 = vadd.f32 %v6989, 1e-06
    %v7006 = vadd.f32 %v6996, 1e-06
    %v7007 = vrcp.pop %v7005
    %v7008 = vmul.f32 %v7003, %v7007
    %v7009 = vrcp.pop %v7006
    %v7010 = vmul.f32 %v7004, %v7009
    %v7012 = vlaneseq
    %v7013 = vshrl.u32 %v7012, 7
    %v7014 = vsub.s32 0, %v7013
    %v7015 = vrot.slane %v6962, %v7014
    %v7017 = vadd.f32 %v7008, %v7015
    %v7018 = vadd.f32 %v7010, %v7015
    %7019 = vst.msk [vmem:[#allocation2] sm:$0xff] %vm141, %v7017
    %7020 = vst.msk [vmem:[#allocation2 + $0x8] sm:$0xff] %vm141, %v7018
    // Predicated region
    $region106: #{decoder_forward.1} parent=1 // pred_check
      _
    $region107: #{decoder_forward.1} parent=1 // pred_check_branch
      %7022 = sbr.rel (0) target = $region109
    $region108: #{decoder_forward.1} parent=1 // pred_region
      %s7024 = ssub.s32 256, 256
      %7025 = vsyncadd [#allocation3], %s7024
      %s7026 = sshll.u32 [#allocation2], 4
      %s7027 = int_to_ptr.vmem [resolvable:$true] %s7026
      %7032 = dma.vmem_to_hbm [thread:$0]  %s7027, 256, %s26, [#allocation3], 128, 128, 8
    $region109: #{decoder_forward.1} parent=1 // pred_fallthru
      _
    // Predicated region
    $region110: #{decoder_forward.1} parent=1 // pred_check
      _
    $region111: #{decoder_forward.1} parent=1 // pred_check_branch
      %7034 = sbr.rel (0) target = $region113
    $region112: #{decoder_forward.1} parent=1 // pred_region
      %7035 = dma.done [#allocation3], 256
    $region113: #{decoder_forward.1} parent=1 // pred_fallthru
      _
    %7036 = vsyncpa [#allocation3], 1

</llo_original>
